<compile_context>
chip_gen: v7x
topology: tpu7x:2x2x1
jax: 0.10.0
libtpu: 0.0.40
codegen_flags: <defaults>
</compile_context>

<pallas_src>
import math

import jax
import jax.numpy as jnp
from jax.experimental import pallas as pl
from jax.experimental.pallas import tpu as pltpu

_KS = 7                       # conv kernel size
_DIL = 3                      # dilation
_PAD = 9                      # conv padding
_SPAN = _DIL * (_KS - 1)      # 18: largest tap offset
_ROW0 = 16                    # sublane-aligned row of the map interiors (>= _PAD)

# Correctness guards (see review): the 2*_PAD zero gap between lane segments
# must cover the dilated receptive field, and the interior row offset must
# leave room for the upward-reaching taps.
assert 2 * _PAD >= _SPAN
assert _ROW0 >= _PAD


def _round_up(x, m):
    return (x + m - 1) // m * m


def _make_kernel(shapes, bases, batch, max_h, l_out, l_zero, r_pad):
    """shapes: list of (C, H, W); bases: lane offset of each tensor's segments."""
    r_base = _ROW0 - _PAD     # first padded row any tap touches (7)

    def kernel(w_ref, b_ref, x1, x2, x3, x4, x5,
               o1, o2, o3, o4, o5, pad_ref):
        x_refs = (x1, x2, x3, x4, x5)
        o_refs = (o1, o2, o3, o4, o5)

        # Zero only the lanes that feed valid output columns (l_zero is a
        # multiple of 128 -> unmasked stores).  Kernel body runs exactly once
        # (grid=()), so the scratch cannot carry stale data between steps.
        pad_ref[:, :, 0:l_zero] = jnp.zeros((2, r_pad, l_zero), jnp.float32)

        # Channel reductions; batch elements lane-packed into the padded slab.
        for x_ref, (C, H, W), base in zip(x_refs, shapes, bases):
            x = x_ref[...]                    # (B, C, H, W)
            avg = jnp.mean(x, axis=1)         # (B, H, W)  -- true C divisor
            mx = jnp.max(x, axis=1)           # (B, H, W)
            seg = W + 2 * _PAD
            for b in range(batch):
                c0 = base + b * seg + _PAD
                pad_ref[0, _ROW0:_ROW0 + H, c0:c0 + W] = avg[b]
                pad_ref[1, _ROW0:_ROW0 + H, c0:c0 + W] = mx[b]

        # Dilated 7x7 conv.  (c, j) outer / i inner: only 14 lane-shifted
        # column views are extracted; the 98 taps then read lane-aligned
        # row slices of those views.  Two independent accumulators.
        accs = [None, None]
        idx = 0
        for c in range(2):
            for j in range(_KS):
                c0 = _DIL * j
                col = pad_ref[c, :, c0:c0 + l_out]     # (r_pad, l_out) view
                for i in range(_KS):
                    wv = w_ref[c * _KS * _KS + i * _KS + j]
                    r0 = r_base + _DIL * i
                    tap = wv * col[r0:r0 + max_h, :]
                    k = idx & 1
                    accs[k] = tap if accs[k] is None else accs[k] + tap
                    idx += 1
        res = jax.nn.sigmoid(accs[0] + accs[1] + b_ref[0])   # (max_h, l_out)

        # In-kernel extraction of the five (B, 1, H, W) attention maps
        # (replaces the wrapper's slice/stack epilogue).
        for o_ref, (C, H, W), base in zip(o_refs, shapes, bases):
            seg = W + 2 * _PAD
            for b in range(batch):
                c0 = base + b * seg
                o_ref[b, 0, :, :] = res[0:H, c0:c0 + W]

    return kernel


def spatial_att_bridge(t1, t2, t3, t4, t5, w, b):
    """Pallas version of Spatial_Att_Bridge.forward (shared conv weights)."""
    ts = [t.astype(jnp.float32) for t in (t1, t2, t3, t4, t5)]
    w_flat = w.astype(jnp.float32).reshape(-1)     # (2*7*7,) = (98,)
    b_flat = b.astype(jnp.float32).reshape(-1)     # (1,)

    batch = ts[0].shape[0]
    shapes = [t.shape[1:] for t in ts]             # (C, H, W) per tensor
    max_h = max(s[1] for s in shapes)

    # Lane layout: each (tensor, batch) pair gets a (W + 18)-wide padded segment.
    bases, off = [], 0
    for (_, _, W) in shapes:
        seg = W + 2 * _PAD
        assert seg - W >= _SPAN        # zero gap covers the receptive field
        bases.append(off)
        off += batch * seg
    l_active = off
    l_out = _round_up(l_active, 128)               # lane-dense conv width
    l_zero = _round_up(l_active + _SPAN, 128)      # lanes that must be zeroed
    l_pad = _round_up(l_out + _SPAN, 128)          # slab width (tap headroom)
    r_pad = _round_up((_ROW0 - _PAD) + _SPAN + max_h, 8)
    assert l_zero <= l_pad

    kernel = _make_kernel(shapes, bases, batch, max_h, l_out, l_zero, r_pad)

    in_specs = [
        pl.BlockSpec(memory_space=pltpu.MemorySpace.SMEM),   # conv weights
        pl.BlockSpec(memory_space=pltpu.MemorySpace.SMEM),   # conv bias
    ]
    for _ in shapes:
        in_specs.append(pl.BlockSpec(memory_space=pltpu.MemorySpace.VMEM))

    out_shape = tuple(jax.ShapeDtypeStruct((batch, 1, H, W), jnp.float32)
                      for (_, H, W) in shapes)
    out_specs = tuple(pl.BlockSpec(memory_space=pltpu.MemorySpace.VMEM)
                      for _ in shapes)

    outs = pl.pallas_call(
        kernel,
        out_shape=out_shape,
        in_specs=in_specs,
        out_specs=out_specs,
        scratch_shapes=[pltpu.VMEM((2, r_pad, l_pad), jnp.float32)],
    )(w_flat, b_flat, *ts)
    return outs


# ----------------------- pure-JAX reference (for checking) ------------------
def _reference_single(x, w, b):
    avg = jnp.mean(x, axis=1, keepdims=True)
    mx = jnp.max(x, axis=1, keepdims=True)
    att = jnp.concatenate([avg, mx], axis=1)       # (B, 2, H, W)
    out = jax.lax.conv_general_dilated(
        att, w,
        window_strides=(1, 1),
        padding=((9, 9), (9, 9)),
        rhs_dilation=(3, 3),
        dimension_numbers=("NCHW", "OIHW", "NCHW"),
    )
    return jax.nn.sigmoid(out + b.reshape(1, 1, 1, 1))


if __name__ == "__main__":
    key = jax.random.PRNGKey(0)
    kw, kb, k1, k2, k3, k4, k5 = jax.random.split(key, 7)

    # Conv2d(2, 1, 7) PyTorch-style uniform init, deterministic.
    fan_in = 2 * 7 * 7
    bound = 1.0 / math.sqrt(fan_in)
    w = jax.random.uniform(kw, (1, 2, 7, 7), jnp.float32, -bound, bound)
    b = jax.random.uniform(kb, (1,), jnp.float32, -bound, bound)

    # Five small feature maps (NCHW), varying channels / spatial sizes.
    t1 = jax.random.normal(k1, (2, 4, 16, 16), jnp.float32)
    t2 = jax.random.normal(k2, (2, 8, 16, 16), jnp.float32)
    t3 = jax.random.normal(k3, (2, 6, 16, 16), jnp.float32)
    t4 = jax.random.normal(k4, (2, 4, 8, 8), jnp.float32)
    t5 = jax.random.normal(k5, (2, 8, 8, 8), jnp.float32)

    outs = spatial_att_bridge(t1, t2, t3, t4, t5, w, b)
    outs = jax.block_until_ready(outs)

    # Verify against pure-JAX reference.
    for t, o in zip((t1, t2, t3, t4, t5), outs):
        ref = _reference_single(t, w, b)
        assert o.shape == ref.shape, (o.shape, ref.shape)
        err = float(jnp.max(jnp.abs(o - ref)))
        assert err < 1e-4, err

    print("KERNEL_OK")
</pallas_src>

<mosaic_0001>
module attributes {stable_mosaic.version = 11 : i64} {
  func.func @kernel(%arg0: memref<98xf32, #tpu.memory_space<smem>>, %arg1: memref<1xf32, #tpu.memory_space<smem>>, %arg2: memref<2x4x16x16xf32, #tpu.memory_space<vmem>>, %arg3: memref<2x8x16x16xf32, #tpu.memory_space<vmem>>, %arg4: memref<2x6x16x16xf32, #tpu.memory_space<vmem>>, %arg5: memref<2x4x8x8xf32, #tpu.memory_space<vmem>>, %arg6: memref<2x8x8x8xf32, #tpu.memory_space<vmem>>, %arg7: memref<2x1x16x16xf32, #tpu.memory_space<vmem>>, %arg8: memref<2x1x16x16xf32, #tpu.memory_space<vmem>>, %arg9: memref<2x1x16x16xf32, #tpu.memory_space<vmem>>, %arg10: memref<2x1x8x8xf32, #tpu.memory_space<vmem>>, %arg11: memref<2x1x8x8xf32, #tpu.memory_space<vmem>>, %arg12: memref<2x48x512xf32, #tpu.memory_space<vmem>>) attributes {dimension_semantics = [], scalar_prefetch = 0 : i64, scratch_operands = 1 : i64, tpu.core_type = #tpu.core_type<tc>} {
    %cst = arith.constant 0.000000e+00 : f32
    %0 = vector.broadcast %cst : f32 to vector<2x48x384xf32>
    %c0 = arith.constant 0 : index
    %c0_0 = arith.constant 0 : index
    %c0_1 = arith.constant 0 : index
    %1 = vector.load %arg12[%c0, %c0_0, %c0_1] : memref<2x48x512xf32, #tpu.memory_space<vmem>>, vector<2x48x384xf32>
    tpu.vector_store %arg12[%c0, %c0_0, %c0_1], %0 {strides = array<i32>} : memref<2x48x512xf32, #tpu.memory_space<vmem>>, vector<2x48x384xf32>,
    %c0_2 = arith.constant 0 : index
    %c0_3 = arith.constant 0 : index
    %c0_4 = arith.constant 0 : index
    %c0_5 = arith.constant 0 : index
    %2 = vector.load %arg2[%c0_2, %c0_3, %c0_4, %c0_5] : memref<2x4x16x16xf32, #tpu.memory_space<vmem>>, vector<2x4x16x16xf32>
    %cst_6 = arith.constant dense<0.000000e+00> : vector<2x16x16xf32>
    %3 = vector.multi_reduction <add>, %2, %cst_6 [1] : vector<2x4x16x16xf32> to vector<2x16x16xf32>
    %cst_7 = arith.constant 4.000000e+00 : f32
    %4 = vector.broadcast %cst_7 : f32 to vector<2x16x16xf32>
    %5 = arith.divf %3, %4 : vector<2x16x16xf32>
    %cst_8 = arith.constant dense<0xFF800000> : vector<2x16x16xf32>
    %6 = vector.multi_reduction <maximumf>, %2, %cst_8 [1] : vector<2x4x16x16xf32> to vector<2x16x16xf32>
    %7 = vector.extract_strided_slice %5 {offsets = [0, 0, 0], sizes = [1, 16, 16], strides = [1, 1, 1]} : vector<2x16x16xf32> to vector<1x16x16xf32>
    %8 = vector.shape_cast %7 : vector<1x16x16xf32> to vector<16x16xf32>
    %c0_9 = arith.constant 0 : index
    %c16 = arith.constant 16 : index
    %c9 = arith.constant 9 : index
    %9 = vector.load %arg12[%c0_9, %c16, %c9] : memref<2x48x512xf32, #tpu.memory_space<vmem>>, vector<1x16x16xf32>
    %10 = vector.shape_cast %9 : vector<1x16x16xf32> to vector<16x16xf32>
    %11 = vector.shape_cast %8 : vector<16x16xf32> to vector<1x16x16xf32>
    tpu.vector_store %arg12[%c0_9, %c16, %c9], %11 {strides = array<i32>} : memref<2x48x512xf32, #tpu.memory_space<vmem>>, vector<1x16x16xf32>,
    %12 = vector.extract_strided_slice %6 {offsets = [0, 0, 0], sizes = [1, 16, 16], strides = [1, 1, 1]} : vector<2x16x16xf32> to vector<1x16x16xf32>
    %13 = vector.shape_cast %12 : vector<1x16x16xf32> to vector<16x16xf32>
    %c1 = arith.constant 1 : index
    %c16_10 = arith.constant 16 : index
    %c9_11 = arith.constant 9 : index
    %14 = vector.load %arg12[%c1, %c16_10, %c9_11] : memref<2x48x512xf32, #tpu.memory_space<vmem>>, vector<1x16x16xf32>
    %15 = vector.shape_cast %14 : vector<1x16x16xf32> to vector<16x16xf32>
    %16 = vector.shape_cast %13 : vector<16x16xf32> to vector<1x16x16xf32>
    tpu.vector_store %arg12[%c1, %c16_10, %c9_11], %16 {strides = array<i32>} : memref<2x48x512xf32, #tpu.memory_space<vmem>>, vector<1x16x16xf32>,
    %17 = vector.extract_strided_slice %5 {offsets = [1, 0, 0], sizes = [1, 16, 16], strides = [1, 1, 1]} : vector<2x16x16xf32> to vector<1x16x16xf32>
    %18 = vector.shape_cast %17 : vector<1x16x16xf32> to vector<16x16xf32>
    %c0_12 = arith.constant 0 : index
    %c16_13 = arith.constant 16 : index
    %c43 = arith.constant 43 : index
    %19 = vector.load %arg12[%c0_12, %c16_13, %c43] : memref<2x48x512xf32, #tpu.memory_space<vmem>>, vector<1x16x16xf32>
    %20 = vector.shape_cast %19 : vector<1x16x16xf32> to vector<16x16xf32>
    %21 = vector.shape_cast %18 : vector<16x16xf32> to vector<1x16x16xf32>
    tpu.vector_store %arg12[%c0_12, %c16_13, %c43], %21 {strides = array<i32>} : memref<2x48x512xf32, #tpu.memory_space<vmem>>, vector<1x16x16xf32>,
    %22 = vector.extract_strided_slice %6 {offsets = [1, 0, 0], sizes = [1, 16, 16], strides = [1, 1, 1]} : vector<2x16x16xf32> to vector<1x16x16xf32>
    %23 = vector.shape_cast %22 : vector<1x16x16xf32> to vector<16x16xf32>
    %c1_14 = arith.constant 1 : index
    %c16_15 = arith.constant 16 : index
    %c43_16 = arith.constant 43 : index
    %24 = vector.load %arg12[%c1_14, %c16_15, %c43_16] : memref<2x48x512xf32, #tpu.memory_space<vmem>>, vector<1x16x16xf32>
    %25 = vector.shape_cast %24 : vector<1x16x16xf32> to vector<16x16xf32>
    %26 = vector.shape_cast %23 : vector<16x16xf32> to vector<1x16x16xf32>
    tpu.vector_store %arg12[%c1_14, %c16_15, %c43_16], %26 {strides = array<i32>} : memref<2x48x512xf32, #tpu.memory_space<vmem>>, vector<1x16x16xf32>,
    %c0_17 = arith.constant 0 : index
    %c0_18 = arith.constant 0 : index
    %c0_19 = arith.constant 0 : index
    %c0_20 = arith.constant 0 : index
    %27 = vector.load %arg3[%c0_17, %c0_18, %c0_19, %c0_20] : memref<2x8x16x16xf32, #tpu.memory_space<vmem>>, vector<2x8x16x16xf32>
    %cst_21 = arith.constant dense<0.000000e+00> : vector<2x16x16xf32>
    %28 = vector.multi_reduction <add>, %27, %cst_21 [1] : vector<2x8x16x16xf32> to vector<2x16x16xf32>
    %cst_22 = arith.constant 8.000000e+00 : f32
    %29 = vector.broadcast %cst_22 : f32 to vector<2x16x16xf32>
    %30 = arith.divf %28, %29 : vector<2x16x16xf32>
    %cst_23 = arith.constant dense<0xFF800000> : vector<2x16x16xf32>
    %31 = vector.multi_reduction <maximumf>, %27, %cst_23 [1] : vector<2x8x16x16xf32> to vector<2x16x16xf32>
    %32 = vector.extract_strided_slice %30 {offsets = [0, 0, 0], sizes = [1, 16, 16], strides = [1, 1, 1]} : vector<2x16x16xf32> to vector<1x16x16xf32>
    %33 = vector.shape_cast %32 : vector<1x16x16xf32> to vector<16x16xf32>
    %c0_24 = arith.constant 0 : index
    %c16_25 = arith.constant 16 : index
    %c77 = arith.constant 77 : index
    %34 = vector.load %arg12[%c0_24, %c16_25, %c77] : memref<2x48x512xf32, #tpu.memory_space<vmem>>, vector<1x16x16xf32>
    %35 = vector.shape_cast %34 : vector<1x16x16xf32> to vector<16x16xf32>
    %36 = vector.shape_cast %33 : vector<16x16xf32> to vector<1x16x16xf32>
    tpu.vector_store %arg12[%c0_24, %c16_25, %c77], %36 {strides = array<i32>} : memref<2x48x512xf32, #tpu.memory_space<vmem>>, vector<1x16x16xf32>,
    %37 = vector.extract_strided_slice %31 {offsets = [0, 0, 0], sizes = [1, 16, 16], strides = [1, 1, 1]} : vector<2x16x16xf32> to vector<1x16x16xf32>
    %38 = vector.shape_cast %37 : vector<1x16x16xf32> to vector<16x16xf32>
    %c1_26 = arith.constant 1 : index
    %c16_27 = arith.constant 16 : index
    %c77_28 = arith.constant 77 : index
    %39 = vector.load %arg12[%c1_26, %c16_27, %c77_28] : memref<2x48x512xf32, #tpu.memory_space<vmem>>, vector<1x16x16xf32>
    %40 = vector.shape_cast %39 : vector<1x16x16xf32> to vector<16x16xf32>
    %41 = vector.shape_cast %38 : vector<16x16xf32> to vector<1x16x16xf32>
    tpu.vector_store %arg12[%c1_26, %c16_27, %c77_28], %41 {strides = array<i32>} : memref<2x48x512xf32, #tpu.memory_space<vmem>>, vector<1x16x16xf32>,
    %42 = vector.extract_strided_slice %30 {offsets = [1, 0, 0], sizes = [1, 16, 16], strides = [1, 1, 1]} : vector<2x16x16xf32> to vector<1x16x16xf32>
    %43 = vector.shape_cast %42 : vector<1x16x16xf32> to vector<16x16xf32>
    %c0_29 = arith.constant 0 : index
    %c16_30 = arith.constant 16 : index
    %c111 = arith.constant 111 : index
    %44 = vector.load %arg12[%c0_29, %c16_30, %c111] : memref<2x48x512xf32, #tpu.memory_space<vmem>>, vector<1x16x16xf32>
    %45 = vector.shape_cast %44 : vector<1x16x16xf32> to vector<16x16xf32>
    %46 = vector.shape_cast %43 : vector<16x16xf32> to vector<1x16x16xf32>
    tpu.vector_store %arg12[%c0_29, %c16_30, %c111], %46 {strides = array<i32>} : memref<2x48x512xf32, #tpu.memory_space<vmem>>, vector<1x16x16xf32>,
    %47 = vector.extract_strided_slice %31 {offsets = [1, 0, 0], sizes = [1, 16, 16], strides = [1, 1, 1]} : vector<2x16x16xf32> to vector<1x16x16xf32>
    %48 = vector.shape_cast %47 : vector<1x16x16xf32> to vector<16x16xf32>
    %c1_31 = arith.constant 1 : index
    %c16_32 = arith.constant 16 : index
    %c111_33 = arith.constant 111 : index
    %49 = vector.load %arg12[%c1_31, %c16_32, %c111_33] : memref<2x48x512xf32, #tpu.memory_space<vmem>>, vector<1x16x16xf32>
    %50 = vector.shape_cast %49 : vector<1x16x16xf32> to vector<16x16xf32>
    %51 = vector.shape_cast %48 : vector<16x16xf32> to vector<1x16x16xf32>
    tpu.vector_store %arg12[%c1_31, %c16_32, %c111_33], %51 {strides = array<i32>} : memref<2x48x512xf32, #tpu.memory_space<vmem>>, vector<1x16x16xf32>,
    %c0_34 = arith.constant 0 : index
    %c0_35 = arith.constant 0 : index
    %c0_36 = arith.constant 0 : index
    %c0_37 = arith.constant 0 : index
    %52 = vector.load %arg4[%c0_34, %c0_35, %c0_36, %c0_37] : memref<2x6x16x16xf32, #tpu.memory_space<vmem>>, vector<2x6x16x16xf32>
    %cst_38 = arith.constant dense<0.000000e+00> : vector<2x16x16xf32>
    %53 = vector.multi_reduction <add>, %52, %cst_38 [1] : vector<2x6x16x16xf32> to vector<2x16x16xf32>
    %cst_39 = arith.constant 6.000000e+00 : f32
    %54 = vector.broadcast %cst_39 : f32 to vector<2x16x16xf32>
    %55 = arith.divf %53, %54 : vector<2x16x16xf32>
    %cst_40 = arith.constant dense<0xFF800000> : vector<2x16x16xf32>
    %56 = vector.multi_reduction <maximumf>, %52, %cst_40 [1] : vector<2x6x16x16xf32> to vector<2x16x16xf32>
    %57 = vector.extract_strided_slice %55 {offsets = [0, 0, 0], sizes = [1, 16, 16], strides = [1, 1, 1]} : vector<2x16x16xf32> to vector<1x16x16xf32>
    %58 = vector.shape_cast %57 : vector<1x16x16xf32> to vector<16x16xf32>
    %c0_41 = arith.constant 0 : index
    %c16_42 = arith.constant 16 : index
    %c145 = arith.constant 145 : index
    %59 = vector.load %arg12[%c0_41, %c16_42, %c145] : memref<2x48x512xf32, #tpu.memory_space<vmem>>, vector<1x16x16xf32>
    %60 = vector.shape_cast %59 : vector<1x16x16xf32> to vector<16x16xf32>
    %61 = vector.shape_cast %58 : vector<16x16xf32> to vector<1x16x16xf32>
    tpu.vector_store %arg12[%c0_41, %c16_42, %c145], %61 {strides = array<i32>} : memref<2x48x512xf32, #tpu.memory_space<vmem>>, vector<1x16x16xf32>,
    %62 = vector.extract_strided_slice %56 {offsets = [0, 0, 0], sizes = [1, 16, 16], strides = [1, 1, 1]} : vector<2x16x16xf32> to vector<1x16x16xf32>
    %63 = vector.shape_cast %62 : vector<1x16x16xf32> to vector<16x16xf32>
    %c1_43 = arith.constant 1 : index
    %c16_44 = arith.constant 16 : index
    %c145_45 = arith.constant 145 : index
    %64 = vector.load %arg12[%c1_43, %c16_44, %c145_45] : memref<2x48x512xf32, #tpu.memory_space<vmem>>, vector<1x16x16xf32>
    %65 = vector.shape_cast %64 : vector<1x16x16xf32> to vector<16x16xf32>
    %66 = vector.shape_cast %63 : vector<16x16xf32> to vector<1x16x16xf32>
    tpu.vector_store %arg12[%c1_43, %c16_44, %c145_45], %66 {strides = array<i32>} : memref<2x48x512xf32, #tpu.memory_space<vmem>>, vector<1x16x16xf32>,
    %67 = vector.extract_strided_slice %55 {offsets = [1, 0, 0], sizes = [1, 16, 16], strides = [1, 1, 1]} : vector<2x16x16xf32> to vector<1x16x16xf32>
    %68 = vector.shape_cast %67 : vector<1x16x16xf32> to vector<16x16xf32>
    %c0_46 = arith.constant 0 : index
    %c16_47 = arith.constant 16 : index
    %c179 = arith.constant 179 : index
    %69 = vector.load %arg12[%c0_46, %c16_47, %c179] : memref<2x48x512xf32, #tpu.memory_space<vmem>>, vector<1x16x16xf32>
    %70 = vector.shape_cast %69 : vector<1x16x16xf32> to vector<16x16xf32>
    %71 = vector.shape_cast %68 : vector<16x16xf32> to vector<1x16x16xf32>
    tpu.vector_store %arg12[%c0_46, %c16_47, %c179], %71 {strides = array<i32>} : memref<2x48x512xf32, #tpu.memory_space<vmem>>, vector<1x16x16xf32>,
    %72 = vector.extract_strided_slice %56 {offsets = [1, 0, 0], sizes = [1, 16, 16], strides = [1, 1, 1]} : vector<2x16x16xf32> to vector<1x16x16xf32>
    %73 = vector.shape_cast %72 : vector<1x16x16xf32> to vector<16x16xf32>
    %c1_48 = arith.constant 1 : index
    %c16_49 = arith.constant 16 : index
    %c179_50 = arith.constant 179 : index
    %74 = vector.load %arg12[%c1_48, %c16_49, %c179_50] : memref<2x48x512xf32, #tpu.memory_space<vmem>>, vector<1x16x16xf32>
    %75 = vector.shape_cast %74 : vector<1x16x16xf32> to vector<16x16xf32>
    %76 = vector.shape_cast %73 : vector<16x16xf32> to vector<1x16x16xf32>
    tpu.vector_store %arg12[%c1_48, %c16_49, %c179_50], %76 {strides = array<i32>} : memref<2x48x512xf32, #tpu.memory_space<vmem>>, vector<1x16x16xf32>,
    %c0_51 = arith.constant 0 : index
    %c0_52 = arith.constant 0 : index
    %c0_53 = arith.constant 0 : index
    %c0_54 = arith.constant 0 : index
    %77 = vector.load %arg5[%c0_51, %c0_52, %c0_53, %c0_54] : memref<2x4x8x8xf32, #tpu.memory_space<vmem>>, vector<2x4x8x8xf32>
    %cst_55 = arith.constant dense<0.000000e+00> : vector<2x8x8xf32>
    %78 = vector.multi_reduction <add>, %77, %cst_55 [1] : vector<2x4x8x8xf32> to vector<2x8x8xf32>
    %cst_56 = arith.constant 4.000000e+00 : f32
    %79 = vector.broadcast %cst_56 : f32 to vector<2x8x8xf32>
    %80 = arith.divf %78, %79 : vector<2x8x8xf32>
    %cst_57 = arith.constant dense<0xFF800000> : vector<2x8x8xf32>
    %81 = vector.multi_reduction <maximumf>, %77, %cst_57 [1] : vector<2x4x8x8xf32> to vector<2x8x8xf32>
    %82 = vector.extract_strided_slice %80 {offsets = [0, 0, 0], sizes = [1, 8, 8], strides = [1, 1, 1]} : vector<2x8x8xf32> to vector<1x8x8xf32>
    %83 = vector.shape_cast %82 : vector<1x8x8xf32> to vector<8x8xf32>
    %c0_58 = arith.constant 0 : index
    %c16_59 = arith.constant 16 : index
    %c213 = arith.constant 213 : index
    %84 = vector.load %arg12[%c0_58, %c16_59, %c213] : memref<2x48x512xf32, #tpu.memory_space<vmem>>, vector<1x8x8xf32>
    %85 = vector.shape_cast %84 : vector<1x8x8xf32> to vector<8x8xf32>
    %86 = vector.shape_cast %83 : vector<8x8xf32> to vector<1x8x8xf32>
    tpu.vector_store %arg12[%c0_58, %c16_59, %c213], %86 {strides = array<i32>} : memref<2x48x512xf32, #tpu.memory_space<vmem>>, vector<1x8x8xf32>,
    %87 = vector.extract_strided_slice %81 {offsets = [0, 0, 0], sizes = [1, 8, 8], strides = [1, 1, 1]} : vector<2x8x8xf32> to vector<1x8x8xf32>
    %88 = vector.shape_cast %87 : vector<1x8x8xf32> to vector<8x8xf32>
    %c1_60 = arith.constant 1 : index
    %c16_61 = arith.constant 16 : index
    %c213_62 = arith.constant 213 : index
    %89 = vector.load %arg12[%c1_60, %c16_61, %c213_62] : memref<2x48x512xf32, #tpu.memory_space<vmem>>, vector<1x8x8xf32>
    %90 = vector.shape_cast %89 : vector<1x8x8xf32> to vector<8x8xf32>
    %91 = vector.shape_cast %88 : vector<8x8xf32> to vector<1x8x8xf32>
    tpu.vector_store %arg12[%c1_60, %c16_61, %c213_62], %91 {strides = array<i32>} : memref<2x48x512xf32, #tpu.memory_space<vmem>>, vector<1x8x8xf32>,
    %92 = vector.extract_strided_slice %80 {offsets = [1, 0, 0], sizes = [1, 8, 8], strides = [1, 1, 1]} : vector<2x8x8xf32> to vector<1x8x8xf32>
    %93 = vector.shape_cast %92 : vector<1x8x8xf32> to vector<8x8xf32>
    %c0_63 = arith.constant 0 : index
    %c16_64 = arith.constant 16 : index
    %c239 = arith.constant 239 : index
    %94 = vector.load %arg12[%c0_63, %c16_64, %c239] : memref<2x48x512xf32, #tpu.memory_space<vmem>>, vector<1x8x8xf32>
    %95 = vector.shape_cast %94 : vector<1x8x8xf32> to vector<8x8xf32>
    %96 = vector.shape_cast %93 : vector<8x8xf32> to vector<1x8x8xf32>
    tpu.vector_store %arg12[%c0_63, %c16_64, %c239], %96 {strides = array<i32>} : memref<2x48x512xf32, #tpu.memory_space<vmem>>, vector<1x8x8xf32>,
    %97 = vector.extract_strided_slice %81 {offsets = [1, 0, 0], sizes = [1, 8, 8], strides = [1, 1, 1]} : vector<2x8x8xf32> to vector<1x8x8xf32>
    %98 = vector.shape_cast %97 : vector<1x8x8xf32> to vector<8x8xf32>
    %c1_65 = arith.constant 1 : index
    %c16_66 = arith.constant 16 : index
    %c239_67 = arith.constant 239 : index
    %99 = vector.load %arg12[%c1_65, %c16_66, %c239_67] : memref<2x48x512xf32, #tpu.memory_space<vmem>>, vector<1x8x8xf32>
    %100 = vector.shape_cast %99 : vector<1x8x8xf32> to vector<8x8xf32>
    %101 = vector.shape_cast %98 : vector<8x8xf32> to vector<1x8x8xf32>
    tpu.vector_store %arg12[%c1_65, %c16_66, %c239_67], %101 {strides = array<i32>} : memref<2x48x512xf32, #tpu.memory_space<vmem>>, vector<1x8x8xf32>,
    %c0_68 = arith.constant 0 : index
    %c0_69 = arith.constant 0 : index
    %c0_70 = arith.constant 0 : index
    %c0_71 = arith.constant 0 : index
    %102 = vector.load %arg6[%c0_68, %c0_69, %c0_70, %c0_71] : memref<2x8x8x8xf32, #tpu.memory_space<vmem>>, vector<2x8x8x8xf32>
    %cst_72 = arith.constant dense<0.000000e+00> : vector<2x8x8xf32>
    %103 = vector.multi_reduction <add>, %102, %cst_72 [1] : vector<2x8x8x8xf32> to vector<2x8x8xf32>
    %cst_73 = arith.constant 8.000000e+00 : f32
    %104 = vector.broadcast %cst_73 : f32 to vector<2x8x8xf32>
    %105 = arith.divf %103, %104 : vector<2x8x8xf32>
    %cst_74 = arith.constant dense<0xFF800000> : vector<2x8x8xf32>
    %106 = vector.multi_reduction <maximumf>, %102, %cst_74 [1] : vector<2x8x8x8xf32> to vector<2x8x8xf32>
    %107 = vector.extract_strided_slice %105 {offsets = [0, 0, 0], sizes = [1, 8, 8], strides = [1, 1, 1]} : vector<2x8x8xf32> to vector<1x8x8xf32>
    %108 = vector.shape_cast %107 : vector<1x8x8xf32> to vector<8x8xf32>
    %c0_75 = arith.constant 0 : index
    %c16_76 = arith.constant 16 : index
    %c265 = arith.constant 265 : index
    %109 = vector.load %arg12[%c0_75, %c16_76, %c265] : memref<2x48x512xf32, #tpu.memory_space<vmem>>, vector<1x8x8xf32>
    %110 = vector.shape_cast %109 : vector<1x8x8xf32> to vector<8x8xf32>
    %111 = vector.shape_cast %108 : vector<8x8xf32> to vector<1x8x8xf32>
    tpu.vector_store %arg12[%c0_75, %c16_76, %c265], %111 {strides = array<i32>} : memref<2x48x512xf32, #tpu.memory_space<vmem>>, vector<1x8x8xf32>,
    %112 = vector.extract_strided_slice %106 {offsets = [0, 0, 0], sizes = [1, 8, 8], strides = [1, 1, 1]} : vector<2x8x8xf32> to vector<1x8x8xf32>
    %113 = vector.shape_cast %112 : vector<1x8x8xf32> to vector<8x8xf32>
    %c1_77 = arith.constant 1 : index
    %c16_78 = arith.constant 16 : index
    %c265_79 = arith.constant 265 : index
    %114 = vector.load %arg12[%c1_77, %c16_78, %c265_79] : memref<2x48x512xf32, #tpu.memory_space<vmem>>, vector<1x8x8xf32>
    %115 = vector.shape_cast %114 : vector<1x8x8xf32> to vector<8x8xf32>
    %116 = vector.shape_cast %113 : vector<8x8xf32> to vector<1x8x8xf32>
    tpu.vector_store %arg12[%c1_77, %c16_78, %c265_79], %116 {strides = array<i32>} : memref<2x48x512xf32, #tpu.memory_space<vmem>>, vector<1x8x8xf32>,
    %117 = vector.extract_strided_slice %105 {offsets = [1, 0, 0], sizes = [1, 8, 8], strides = [1, 1, 1]} : vector<2x8x8xf32> to vector<1x8x8xf32>
    %118 = vector.shape_cast %117 : vector<1x8x8xf32> to vector<8x8xf32>
    %c0_80 = arith.constant 0 : index
    %c16_81 = arith.constant 16 : index
    %c291 = arith.constant 291 : index
    %119 = vector.load %arg12[%c0_80, %c16_81, %c291] : memref<2x48x512xf32, #tpu.memory_space<vmem>>, vector<1x8x8xf32>
    %120 = vector.shape_cast %119 : vector<1x8x8xf32> to vector<8x8xf32>
    %121 = vector.shape_cast %118 : vector<8x8xf32> to vector<1x8x8xf32>
    tpu.vector_store %arg12[%c0_80, %c16_81, %c291], %121 {strides = array<i32>} : memref<2x48x512xf32, #tpu.memory_space<vmem>>, vector<1x8x8xf32>,
    %122 = vector.extract_strided_slice %106 {offsets = [1, 0, 0], sizes = [1, 8, 8], strides = [1, 1, 1]} : vector<2x8x8xf32> to vector<1x8x8xf32>
    %123 = vector.shape_cast %122 : vector<1x8x8xf32> to vector<8x8xf32>
    %c1_82 = arith.constant 1 : index
    %c16_83 = arith.constant 16 : index
    %c291_84 = arith.constant 291 : index
    %124 = vector.load %arg12[%c1_82, %c16_83, %c291_84] : memref<2x48x512xf32, #tpu.memory_space<vmem>>, vector<1x8x8xf32>
    %125 = vector.shape_cast %124 : vector<1x8x8xf32> to vector<8x8xf32>
    %126 = vector.shape_cast %123 : vector<8x8xf32> to vector<1x8x8xf32>
    tpu.vector_store %arg12[%c1_82, %c16_83, %c291_84], %126 {strides = array<i32>} : memref<2x48x512xf32, #tpu.memory_space<vmem>>, vector<1x8x8xf32>,
    %c0_85 = arith.constant 0 : index
    %c0_86 = arith.constant 0 : index
    %c0_87 = arith.constant 0 : index
    %127 = vector.load %arg12[%c0_85, %c0_86, %c0_87] : memref<2x48x512xf32, #tpu.memory_space<vmem>>, vector<1x48x384xf32>
    %128 = vector.shape_cast %127 : vector<1x48x384xf32> to vector<48x384xf32>
    %c0_88 = arith.constant 0 : index
    %129 = memref.load %arg0[%c0_88] : memref<98xf32, #tpu.memory_space<smem>>
    %130 = vector.extract_strided_slice %128 {offsets = [7, 0], sizes = [16, 384], strides = [1, 1]} : vector<48x384xf32> to vector<16x384xf32>
    %131 = vector.broadcast %129 : f32 to vector<16x384xf32>
    %132 = arith.mulf %131, %130 : vector<16x384xf32>
    %c7 = arith.constant 7 : index
    %133 = memref.load %arg0[%c7] : memref<98xf32, #tpu.memory_space<smem>>
    %134 = vector.extract_strided_slice %128 {offsets = [10, 0], sizes = [16, 384], strides = [1, 1]} : vector<48x384xf32> to vector<16x384xf32>
    %135 = vector.broadcast %133 : f32 to vector<16x384xf32>
    %136 = arith.mulf %135, %134 : vector<16x384xf32>
    %c14 = arith.constant 14 : index
    %137 = memref.load %arg0[%c14] : memref<98xf32, #tpu.memory_space<smem>>
    %138 = vector.extract_strided_slice %128 {offsets = [13, 0], sizes = [16, 384], strides = [1, 1]} : vector<48x384xf32> to vector<16x384xf32>
    %139 = vector.broadcast %137 : f32 to vector<16x384xf32>
    %140 = arith.mulf %139, %138 : vector<16x384xf32>
    %141 = arith.addf %132, %140 : vector<16x384xf32>
    %c21 = arith.constant 21 : index
    %142 = memref.load %arg0[%c21] : memref<98xf32, #tpu.memory_space<smem>>
    %143 = vector.extract_strided_slice %128 {offsets = [16, 0], sizes = [16, 384], strides = [1, 1]} : vector<48x384xf32> to vector<16x384xf32>
    %144 = vector.broadcast %142 : f32 to vector<16x384xf32>
    %145 = arith.mulf %144, %143 : vector<16x384xf32>
    %146 = arith.addf %136, %145 : vector<16x384xf32>
    %c28 = arith.constant 28 : index
    %147 = memref.load %arg0[%c28] : memref<98xf32, #tpu.memory_space<smem>>
    %148 = vector.extract_strided_slice %128 {offsets = [19, 0], sizes = [16, 384], strides = [1, 1]} : vector<48x384xf32> to vector<16x384xf32>
    %149 = vector.broadcast %147 : f32 to vector<16x384xf32>
    %150 = arith.mulf %149, %148 : vector<16x384xf32>
    %151 = arith.addf %141, %150 : vector<16x384xf32>
    %c35 = arith.constant 35 : index
    %152 = memref.load %arg0[%c35] : memref<98xf32, #tpu.memory_space<smem>>
    %153 = vector.extract_strided_slice %128 {offsets = [22, 0], sizes = [16, 384], strides = [1, 1]} : vector<48x384xf32> to vector<16x384xf32>
    %154 = vector.broadcast %152 : f32 to vector<16x384xf32>
    %155 = arith.mulf %154, %153 : vector<16x384xf32>
    %156 = arith.addf %146, %155 : vector<16x384xf32>
    %c42 = arith.constant 42 : index
    %157 = memref.load %arg0[%c42] : memref<98xf32, #tpu.memory_space<smem>>
    %158 = vector.extract_strided_slice %128 {offsets = [25, 0], sizes = [16, 384], strides = [1, 1]} : vector<48x384xf32> to vector<16x384xf32>
    %159 = vector.broadcast %157 : f32 to vector<16x384xf32>
    %160 = arith.mulf %159, %158 : vector<16x384xf32>
    %161 = arith.addf %151, %160 : vector<16x384xf32>
    %c0_89 = arith.constant 0 : index
    %c0_90 = arith.constant 0 : index
    %c3 = arith.constant 3 : index
    %162 = vector.load %arg12[%c0_89, %c0_90, %c3] : memref<2x48x512xf32, #tpu.memory_space<vmem>>, vector<1x48x384xf32>
    %163 = vector.shape_cast %162 : vector<1x48x384xf32> to vector<48x384xf32>
    %c1_91 = arith.constant 1 : index
    %164 = memref.load %arg0[%c1_91] : memref<98xf32, #tpu.memory_space<smem>>
    %165 = vector.extract_strided_slice %163 {offsets = [7, 0], sizes = [16, 384], strides = [1, 1]} : vector<48x384xf32> to vector<16x384xf32>
    %166 = vector.broadcast %164 : f32 to vector<16x384xf32>
    %167 = arith.mulf %166, %165 : vector<16x384xf32>
    %168 = arith.addf %156, %167 : vector<16x384xf32>
    %c8 = arith.constant 8 : index
    %169 = memref.load %arg0[%c8] : memref<98xf32, #tpu.memory_space<smem>>
    %170 = vector.extract_strided_slice %163 {offsets = [10, 0], sizes = [16, 384], strides = [1, 1]} : vector<48x384xf32> to vector<16x384xf32>
    %171 = vector.broadcast %169 : f32 to vector<16x384xf32>
    %172 = arith.mulf %171, %170 : vector<16x384xf32>
    %173 = arith.addf %161, %172 : vector<16x384xf32>
    %c15 = arith.constant 15 : index
    %174 = memref.load %arg0[%c15] : memref<98xf32, #tpu.memory_space<smem>>
    %175 = vector.extract_strided_slice %163 {offsets = [13, 0], sizes = [16, 384], strides = [1, 1]} : vector<48x384xf32> to vector<16x384xf32>
    %176 = vector.broadcast %174 : f32 to vector<16x384xf32>
    %177 = arith.mulf %176, %175 : vector<16x384xf32>
    %178 = arith.addf %168, %177 : vector<16x384xf32>
    %c22 = arith.constant 22 : index
    %179 = memref.load %arg0[%c22] : memref<98xf32, #tpu.memory_space<smem>>
    %180 = vector.extract_strided_slice %163 {offsets = [16, 0], sizes = [16, 384], strides = [1, 1]} : vector<48x384xf32> to vector<16x384xf32>
    %181 = vector.broadcast %179 : f32 to vector<16x384xf32>
    %182 = arith.mulf %181, %180 : vector<16x384xf32>
    %183 = arith.addf %173, %182 : vector<16x384xf32>
    %c29 = arith.constant 29 : index
    %184 = memref.load %arg0[%c29] : memref<98xf32, #tpu.memory_space<smem>>
    %185 = vector.extract_strided_slice %163 {offsets = [19, 0], sizes = [16, 384], strides = [1, 1]} : vector<48x384xf32> to vector<16x384xf32>
    %186 = vector.broadcast %184 : f32 to vector<16x384xf32>
    %187 = arith.mulf %186, %185 : vector<16x384xf32>
    %188 = arith.addf %178, %187 : vector<16x384xf32>
    %c36 = arith.constant 36 : index
    %189 = memref.load %arg0[%c36] : memref<98xf32, #tpu.memory_space<smem>>
    %190 = vector.extract_strided_slice %163 {offsets = [22, 0], sizes = [16, 384], strides = [1, 1]} : vector<48x384xf32> to vector<16x384xf32>
    %191 = vector.broadcast %189 : f32 to vector<16x384xf32>
    %192 = arith.mulf %191, %190 : vector<16x384xf32>
    %193 = arith.addf %183, %192 : vector<16x384xf32>
    %c43_92 = arith.constant 43 : index
    %194 = memref.load %arg0[%c43_92] : memref<98xf32, #tpu.memory_space<smem>>
    %195 = vector.extract_strided_slice %163 {offsets = [25, 0], sizes = [16, 384], strides = [1, 1]} : vector<48x384xf32> to vector<16x384xf32>
    %196 = vector.broadcast %194 : f32 to vector<16x384xf32>
    %197 = arith.mulf %196, %195 : vector<16x384xf32>
    %198 = arith.addf %188, %197 : vector<16x384xf32>
    %c0_93 = arith.constant 0 : index
    %c0_94 = arith.constant 0 : index
    %c6 = arith.constant 6 : index
    %199 = vector.load %arg12[%c0_93, %c0_94, %c6] : memref<2x48x512xf32, #tpu.memory_space<vmem>>, vector<1x48x384xf32>
    %200 = vector.shape_cast %199 : vector<1x48x384xf32> to vector<48x384xf32>
    %c2 = arith.constant 2 : index
    %201 = memref.load %arg0[%c2] : memref<98xf32, #tpu.memory_space<smem>>
    %202 = vector.extract_strided_slice %200 {offsets = [7, 0], sizes = [16, 384], strides = [1, 1]} : vector<48x384xf32> to vector<16x384xf32>
    %203 = vector.broadcast %201 : f32 to vector<16x384xf32>
    %204 = arith.mulf %203, %202 : vector<16x384xf32>
    %205 = arith.addf %193, %204 : vector<16x384xf32>
    %c9_95 = arith.constant 9 : index
    %206 = memref.load %arg0[%c9_95] : memref<98xf32, #tpu.memory_space<smem>>
    %207 = vector.extract_strided_slice %200 {offsets = [10, 0], sizes = [16, 384], strides = [1, 1]} : vector<48x384xf32> to vector<16x384xf32>
    %208 = vector.broadcast %206 : f32 to vector<16x384xf32>
    %209 = arith.mulf %208, %207 : vector<16x384xf32>
    %210 = arith.addf %198, %209 : vector<16x384xf32>
    %c16_96 = arith.constant 16 : index
    %211 = memref.load %arg0[%c16_96] : memref<98xf32, #tpu.memory_space<smem>>
    %212 = vector.extract_strided_slice %200 {offsets = [13, 0], sizes = [16, 384], strides = [1, 1]} : vector<48x384xf32> to vector<16x384xf32>
    %213 = vector.broadcast %211 : f32 to vector<16x384xf32>
    %214 = arith.mulf %213, %212 : vector<16x384xf32>
    %215 = arith.addf %205, %214 : vector<16x384xf32>
    %c23 = arith.constant 23 : index
    %216 = memref.load %arg0[%c23] : memref<98xf32, #tpu.memory_space<smem>>
    %217 = vector.extract_strided_slice %200 {offsets = [16, 0], sizes = [16, 384], strides = [1, 1]} : vector<48x384xf32> to vector<16x384xf32>
    %218 = vector.broadcast %216 : f32 to vector<16x384xf32>
    %219 = arith.mulf %218, %217 : vector<16x384xf32>
    %220 = arith.addf %210, %219 : vector<16x384xf32>
    %c30 = arith.constant 30 : index
    %221 = memref.load %arg0[%c30] : memref<98xf32, #tpu.memory_space<smem>>
    %222 = vector.extract_strided_slice %200 {offsets = [19, 0], sizes = [16, 384], strides = [1, 1]} : vector<48x384xf32> to vector<16x384xf32>
    %223 = vector.broadcast %221 : f32 to vector<16x384xf32>
    %224 = arith.mulf %223, %222 : vector<16x384xf32>
    %225 = arith.addf %215, %224 : vector<16x384xf32>
    %c37 = arith.constant 37 : index
    %226 = memref.load %arg0[%c37] : memref<98xf32, #tpu.memory_space<smem>>
    %227 = vector.extract_strided_slice %200 {offsets = [22, 0], sizes = [16, 384], strides = [1, 1]} : vector<48x384xf32> to vector<16x384xf32>
    %228 = vector.broadcast %226 : f32 to vector<16x384xf32>
    %229 = arith.mulf %228, %227 : vector<16x384xf32>
    %230 = arith.addf %220, %229 : vector<16x384xf32>
    %c44 = arith.constant 44 : index
    %231 = memref.load %arg0[%c44] : memref<98xf32, #tpu.memory_space<smem>>
    %232 = vector.extract_strided_slice %200 {offsets = [25, 0], sizes = [16, 384], strides = [1, 1]} : vector<48x384xf32> to vector<16x384xf32>
    %233 = vector.broadcast %231 : f32 to vector<16x384xf32>
    %234 = arith.mulf %233, %232 : vector<16x384xf32>
    %235 = arith.addf %225, %234 : vector<16x384xf32>
    %c0_97 = arith.constant 0 : index
    %c0_98 = arith.constant 0 : index
    %c9_99 = arith.constant 9 : index
    %236 = vector.load %arg12[%c0_97, %c0_98, %c9_99] : memref<2x48x512xf32, #tpu.memory_space<vmem>>, vector<1x48x384xf32>
    %237 = vector.shape_cast %236 : vector<1x48x384xf32> to vector<48x384xf32>
    %c3_100 = arith.constant 3 : index
    %238 = memref.load %arg0[%c3_100] : memref<98xf32, #tpu.memory_space<smem>>
    %239 = vector.extract_strided_slice %237 {offsets = [7, 0], sizes = [16, 384], strides = [1, 1]} : vector<48x384xf32> to vector<16x384xf32>
    %240 = vector.broadcast %238 : f32 to vector<16x384xf32>
    %241 = arith.mulf %240, %239 : vector<16x384xf32>
    %242 = arith.addf %230, %241 : vector<16x384xf32>
    %c10 = arith.constant 10 : index
    %243 = memref.load %arg0[%c10] : memref<98xf32, #tpu.memory_space<smem>>
    %244 = vector.extract_strided_slice %237 {offsets = [10, 0], sizes = [16, 384], strides = [1, 1]} : vector<48x384xf32> to vector<16x384xf32>
    %245 = vector.broadcast %243 : f32 to vector<16x384xf32>
    %246 = arith.mulf %245, %244 : vector<16x384xf32>
    %247 = arith.addf %235, %246 : vector<16x384xf32>
    %c17 = arith.constant 17 : index
    %248 = memref.load %arg0[%c17] : memref<98xf32, #tpu.memory_space<smem>>
    %249 = vector.extract_strided_slice %237 {offsets = [13, 0], sizes = [16, 384], strides = [1, 1]} : vector<48x384xf32> to vector<16x384xf32>
    %250 = vector.broadcast %248 : f32 to vector<16x384xf32>
    %251 = arith.mulf %250, %249 : vector<16x384xf32>
    %252 = arith.addf %242, %251 : vector<16x384xf32>
    %c24 = arith.constant 24 : index
    %253 = memref.load %arg0[%c24] : memref<98xf32, #tpu.memory_space<smem>>
    %254 = vector.extract_strided_slice %237 {offsets = [16, 0], sizes = [16, 384], strides = [1, 1]} : vector<48x384xf32> to vector<16x384xf32>
    %255 = vector.broadcast %253 : f32 to vector<16x384xf32>
    %256 = arith.mulf %255, %254 : vector<16x384xf32>
    %257 = arith.addf %247, %256 : vector<16x384xf32>
    %c31 = arith.constant 31 : index
    %258 = memref.load %arg0[%c31] : memref<98xf32, #tpu.memory_space<smem>>
    %259 = vector.extract_strided_slice %237 {offsets = [19, 0], sizes = [16, 384], strides = [1, 1]} : vector<48x384xf32> to vector<16x384xf32>
    %260 = vector.broadcast %258 : f32 to vector<16x384xf32>
    %261 = arith.mulf %260, %259 : vector<16x384xf32>
    %262 = arith.addf %252, %261 : vector<16x384xf32>
    %c38 = arith.constant 38 : index
    %263 = memref.load %arg0[%c38] : memref<98xf32, #tpu.memory_space<smem>>
    %264 = vector.extract_strided_slice %237 {offsets = [22, 0], sizes = [16, 384], strides = [1, 1]} : vector<48x384xf32> to vector<16x384xf32>
    %265 = vector.broadcast %263 : f32 to vector<16x384xf32>
    %266 = arith.mulf %265, %264 : vector<16x384xf32>
    %267 = arith.addf %257, %266 : vector<16x384xf32>
    %c45 = arith.constant 45 : index
    %268 = memref.load %arg0[%c45] : memref<98xf32, #tpu.memory_space<smem>>
    %269 = vector.extract_strided_slice %237 {offsets = [25, 0], sizes = [16, 384], strides = [1, 1]} : vector<48x384xf32> to vector<16x384xf32>
    %270 = vector.broadcast %268 : f32 to vector<16x384xf32>
    %271 = arith.mulf %270, %269 : vector<16x384xf32>
    %272 = arith.addf %262, %271 : vector<16x384xf32>
    %c0_101 = arith.constant 0 : index
    %c0_102 = arith.constant 0 : index
    %c12 = arith.constant 12 : index
    %273 = vector.load %arg12[%c0_101, %c0_102, %c12] : memref<2x48x512xf32, #tpu.memory_space<vmem>>, vector<1x48x384xf32>
    %274 = vector.shape_cast %273 : vector<1x48x384xf32> to vector<48x384xf32>
    %c4 = arith.constant 4 : index
    %275 = memref.load %arg0[%c4] : memref<98xf32, #tpu.memory_space<smem>>
    %276 = vector.extract_strided_slice %274 {offsets = [7, 0], sizes = [16, 384], strides = [1, 1]} : vector<48x384xf32> to vector<16x384xf32>
    %277 = vector.broadcast %275 : f32 to vector<16x384xf32>
    %278 = arith.mulf %277, %276 : vector<16x384xf32>
    %279 = arith.addf %267, %278 : vector<16x384xf32>
    %c11 = arith.constant 11 : index
    %280 = memref.load %arg0[%c11] : memref<98xf32, #tpu.memory_space<smem>>
    %281 = vector.extract_strided_slice %274 {offsets = [10, 0], sizes = [16, 384], strides = [1, 1]} : vector<48x384xf32> to vector<16x384xf32>
    %282 = vector.broadcast %280 : f32 to vector<16x384xf32>
    %283 = arith.mulf %282, %281 : vector<16x384xf32>
    %284 = arith.addf %272, %283 : vector<16x384xf32>
    %c18 = arith.constant 18 : index
    %285 = memref.load %arg0[%c18] : memref<98xf32, #tpu.memory_space<smem>>
    %286 = vector.extract_strided_slice %274 {offsets = [13, 0], sizes = [16, 384], strides = [1, 1]} : vector<48x384xf32> to vector<16x384xf32>
    %287 = vector.broadcast %285 : f32 to vector<16x384xf32>
    %288 = arith.mulf %287, %286 : vector<16x384xf32>
    %289 = arith.addf %279, %288 : vector<16x384xf32>
    %c25 = arith.constant 25 : index
    %290 = memref.load %arg0[%c25] : memref<98xf32, #tpu.memory_space<smem>>
    %291 = vector.extract_strided_slice %274 {offsets = [16, 0], sizes = [16, 384], strides = [1, 1]} : vector<48x384xf32> to vector<16x384xf32>
    %292 = vector.broadcast %290 : f32 to vector<16x384xf32>
    %293 = arith.mulf %292, %291 : vector<16x384xf32>
    %294 = arith.addf %284, %293 : vector<16x384xf32>
    %c32 = arith.constant 32 : index
    %295 = memref.load %arg0[%c32] : memref<98xf32, #tpu.memory_space<smem>>
    %296 = vector.extract_strided_slice %274 {offsets = [19, 0], sizes = [16, 384], strides = [1, 1]} : vector<48x384xf32> to vector<16x384xf32>
    %297 = vector.broadcast %295 : f32 to vector<16x384xf32>
    %298 = arith.mulf %297, %296 : vector<16x384xf32>
    %299 = arith.addf %289, %298 : vector<16x384xf32>
    %c39 = arith.constant 39 : index
    %300 = memref.load %arg0[%c39] : memref<98xf32, #tpu.memory_space<smem>>
    %301 = vector.extract_strided_slice %274 {offsets = [22, 0], sizes = [16, 384], strides = [1, 1]} : vector<48x384xf32> to vector<16x384xf32>
    %302 = vector.broadcast %300 : f32 to vector<16x384xf32>
    %303 = arith.mulf %302, %301 : vector<16x384xf32>
    %304 = arith.addf %294, %303 : vector<16x384xf32>
    %c46 = arith.constant 46 : index
    %305 = memref.load %arg0[%c46] : memref<98xf32, #tpu.memory_space<smem>>
    %306 = vector.extract_strided_slice %274 {offsets = [25, 0], sizes = [16, 384], strides = [1, 1]} : vector<48x384xf32> to vector<16x384xf32>
    %307 = vector.broadcast %305 : f32 to vector<16x384xf32>
    %308 = arith.mulf %307, %306 : vector<16x384xf32>
    %309 = arith.addf %299, %308 : vector<16x384xf32>
    %c0_103 = arith.constant 0 : index
    %c0_104 = arith.constant 0 : index
    %c15_105 = arith.constant 15 : index
    %310 = vector.load %arg12[%c0_103, %c0_104, %c15_105] : memref<2x48x512xf32, #tpu.memory_space<vmem>>, vector<1x48x384xf32>
    %311 = vector.shape_cast %310 : vector<1x48x384xf32> to vector<48x384xf32>
    %c5 = arith.constant 5 : index
    %312 = memref.load %arg0[%c5] : memref<98xf32, #tpu.memory_space<smem>>
    %313 = vector.extract_strided_slice %311 {offsets = [7, 0], sizes = [16, 384], strides = [1, 1]} : vector<48x384xf32> to vector<16x384xf32>
    %314 = vector.broadcast %312 : f32 to vector<16x384xf32>
    %315 = arith.mulf %314, %313 : vector<16x384xf32>
    %316 = arith.addf %304, %315 : vector<16x384xf32>
    %c12_106 = arith.constant 12 : index
    %317 = memref.load %arg0[%c12_106] : memref<98xf32, #tpu.memory_space<smem>>
    %318 = vector.extract_strided_slice %311 {offsets = [10, 0], sizes = [16, 384], strides = [1, 1]} : vector<48x384xf32> to vector<16x384xf32>
    %319 = vector.broadcast %317 : f32 to vector<16x384xf32>
    %320 = arith.mulf %319, %318 : vector<16x384xf32>
    %321 = arith.addf %309, %320 : vector<16x384xf32>
    %c19 = arith.constant 19 : index
    %322 = memref.load %arg0[%c19] : memref<98xf32, #tpu.memory_space<smem>>
    %323 = vector.extract_strided_slice %311 {offsets = [13, 0], sizes = [16, 384], strides = [1, 1]} : vector<48x384xf32> to vector<16x384xf32>
    %324 = vector.broadcast %322 : f32 to vector<16x384xf32>
    %325 = arith.mulf %324, %323 : vector<16x384xf32>
    %326 = arith.addf %316, %325 : vector<16x384xf32>
    %c26 = arith.constant 26 : index
    %327 = memref.load %arg0[%c26] : memref<98xf32, #tpu.memory_space<smem>>
    %328 = vector.extract_strided_slice %311 {offsets = [16, 0], sizes = [16, 384], strides = [1, 1]} : vector<48x384xf32> to vector<16x384xf32>
    %329 = vector.broadcast %327 : f32 to vector<16x384xf32>
    %330 = arith.mulf %329, %328 : vector<16x384xf32>
    %331 = arith.addf %321, %330 : vector<16x384xf32>
    %c33 = arith.constant 33 : index
    %332 = memref.load %arg0[%c33] : memref<98xf32, #tpu.memory_space<smem>>
    %333 = vector.extract_strided_slice %311 {offsets = [19, 0], sizes = [16, 384], strides = [1, 1]} : vector<48x384xf32> to vector<16x384xf32>
    %334 = vector.broadcast %332 : f32 to vector<16x384xf32>
    %335 = arith.mulf %334, %333 : vector<16x384xf32>
    %336 = arith.addf %326, %335 : vector<16x384xf32>
    %c40 = arith.constant 40 : index
    %337 = memref.load %arg0[%c40] : memref<98xf32, #tpu.memory_space<smem>>
    %338 = vector.extract_strided_slice %311 {offsets = [22, 0], sizes = [16, 384], strides = [1, 1]} : vector<48x384xf32> to vector<16x384xf32>
    %339 = vector.broadcast %337 : f32 to vector<16x384xf32>
    %340 = arith.mulf %339, %338 : vector<16x384xf32>
    %341 = arith.addf %331, %340 : vector<16x384xf32>
    %c47 = arith.constant 47 : index
    %342 = memref.load %arg0[%c47] : memref<98xf32, #tpu.memory_space<smem>>
    %343 = vector.extract_strided_slice %311 {offsets = [25, 0], sizes = [16, 384], strides = [1, 1]} : vector<48x384xf32> to vector<16x384xf32>
    %344 = vector.broadcast %342 : f32 to vector<16x384xf32>
    %345 = arith.mulf %344, %343 : vector<16x384xf32>
    %346 = arith.addf %336, %345 : vector<16x384xf32>
    %c0_107 = arith.constant 0 : index
    %c0_108 = arith.constant 0 : index
    %c18_109 = arith.constant 18 : index
    %347 = vector.load %arg12[%c0_107, %c0_108, %c18_109] : memref<2x48x512xf32, #tpu.memory_space<vmem>>, vector<1x48x384xf32>
    %348 = vector.shape_cast %347 : vector<1x48x384xf32> to vector<48x384xf32>
    %c6_110 = arith.constant 6 : index
    %349 = memref.load %arg0[%c6_110] : memref<98xf32, #tpu.memory_space<smem>>
    %350 = vector.extract_strided_slice %348 {offsets = [7, 0], sizes = [16, 384], strides = [1, 1]} : vector<48x384xf32> to vector<16x384xf32>
    %351 = vector.broadcast %349 : f32 to vector<16x384xf32>
    %352 = arith.mulf %351, %350 : vector<16x384xf32>
    %353 = arith.addf %341, %352 : vector<16x384xf32>
    %c13 = arith.constant 13 : index
    %354 = memref.load %arg0[%c13] : memref<98xf32, #tpu.memory_space<smem>>
    %355 = vector.extract_strided_slice %348 {offsets = [10, 0], sizes = [16, 384], strides = [1, 1]} : vector<48x384xf32> to vector<16x384xf32>
    %356 = vector.broadcast %354 : f32 to vector<16x384xf32>
    %357 = arith.mulf %356, %355 : vector<16x384xf32>
    %358 = arith.addf %346, %357 : vector<16x384xf32>
    %c20 = arith.constant 20 : index
    %359 = memref.load %arg0[%c20] : memref<98xf32, #tpu.memory_space<smem>>
    %360 = vector.extract_strided_slice %348 {offsets = [13, 0], sizes = [16, 384], strides = [1, 1]} : vector<48x384xf32> to vector<16x384xf32>
    %361 = vector.broadcast %359 : f32 to vector<16x384xf32>
    %362 = arith.mulf %361, %360 : vector<16x384xf32>
    %363 = arith.addf %353, %362 : vector<16x384xf32>
    %c27 = arith.constant 27 : index
    %364 = memref.load %arg0[%c27] : memref<98xf32, #tpu.memory_space<smem>>
    %365 = vector.extract_strided_slice %348 {offsets = [16, 0], sizes = [16, 384], strides = [1, 1]} : vector<48x384xf32> to vector<16x384xf32>
    %366 = vector.broadcast %364 : f32 to vector<16x384xf32>
    %367 = arith.mulf %366, %365 : vector<16x384xf32>
    %368 = arith.addf %358, %367 : vector<16x384xf32>
    %c34 = arith.constant 34 : index
    %369 = memref.load %arg0[%c34] : memref<98xf32, #tpu.memory_space<smem>>
    %370 = vector.extract_strided_slice %348 {offsets = [19, 0], sizes = [16, 384], strides = [1, 1]} : vector<48x384xf32> to vector<16x384xf32>
    %371 = vector.broadcast %369 : f32 to vector<16x384xf32>
    %372 = arith.mulf %371, %370 : vector<16x384xf32>
    %373 = arith.addf %363, %372 : vector<16x384xf32>
    %c41 = arith.constant 41 : index
    %374 = memref.load %arg0[%c41] : memref<98xf32, #tpu.memory_space<smem>>
    %375 = vector.extract_strided_slice %348 {offsets = [22, 0], sizes = [16, 384], strides = [1, 1]} : vector<48x384xf32> to vector<16x384xf32>
    %376 = vector.broadcast %374 : f32 to vector<16x384xf32>
    %377 = arith.mulf %376, %375 : vector<16x384xf32>
    %378 = arith.addf %368, %377 : vector<16x384xf32>
    %c48 = arith.constant 48 : index
    %379 = memref.load %arg0[%c48] : memref<98xf32, #tpu.memory_space<smem>>
    %380 = vector.extract_strided_slice %348 {offsets = [25, 0], sizes = [16, 384], strides = [1, 1]} : vector<48x384xf32> to vector<16x384xf32>
    %381 = vector.broadcast %379 : f32 to vector<16x384xf32>
    %382 = arith.mulf %381, %380 : vector<16x384xf32>
    %383 = arith.addf %373, %382 : vector<16x384xf32>
    %c1_111 = arith.constant 1 : index
    %c0_112 = arith.constant 0 : index
    %c0_113 = arith.constant 0 : index
    %384 = vector.load %arg12[%c1_111, %c0_112, %c0_113] : memref<2x48x512xf32, #tpu.memory_space<vmem>>, vector<1x48x384xf32>
    %385 = vector.shape_cast %384 : vector<1x48x384xf32> to vector<48x384xf32>
    %c49 = arith.constant 49 : index
    %386 = memref.load %arg0[%c49] : memref<98xf32, #tpu.memory_space<smem>>
    %387 = vector.extract_strided_slice %385 {offsets = [7, 0], sizes = [16, 384], strides = [1, 1]} : vector<48x384xf32> to vector<16x384xf32>
    %388 = vector.broadcast %386 : f32 to vector<16x384xf32>
    %389 = arith.mulf %388, %387 : vector<16x384xf32>
    %390 = arith.addf %378, %389 : vector<16x384xf32>
    %c56 = arith.constant 56 : index
    %391 = memref.load %arg0[%c56] : memref<98xf32, #tpu.memory_space<smem>>
    %392 = vector.extract_strided_slice %385 {offsets = [10, 0], sizes = [16, 384], strides = [1, 1]} : vector<48x384xf32> to vector<16x384xf32>
    %393 = vector.broadcast %391 : f32 to vector<16x384xf32>
    %394 = arith.mulf %393, %392 : vector<16x384xf32>
    %395 = arith.addf %383, %394 : vector<16x384xf32>
    %c63 = arith.constant 63 : index
    %396 = memref.load %arg0[%c63] : memref<98xf32, #tpu.memory_space<smem>>
    %397 = vector.extract_strided_slice %385 {offsets = [13, 0], sizes = [16, 384], strides = [1, 1]} : vector<48x384xf32> to vector<16x384xf32>
    %398 = vector.broadcast %396 : f32 to vector<16x384xf32>
    %399 = arith.mulf %398, %397 : vector<16x384xf32>
    %400 = arith.addf %390, %399 : vector<16x384xf32>
    %c70 = arith.constant 70 : index
    %401 = memref.load %arg0[%c70] : memref<98xf32, #tpu.memory_space<smem>>
    %402 = vector.extract_strided_slice %385 {offsets = [16, 0], sizes = [16, 384], strides = [1, 1]} : vector<48x384xf32> to vector<16x384xf32>
    %403 = vector.broadcast %401 : f32 to vector<16x384xf32>
    %404 = arith.mulf %403, %402 : vector<16x384xf32>
    %405 = arith.addf %395, %404 : vector<16x384xf32>
    %c77_114 = arith.constant 77 : index
    %406 = memref.load %arg0[%c77_114] : memref<98xf32, #tpu.memory_space<smem>>
    %407 = vector.extract_strided_slice %385 {offsets = [19, 0], sizes = [16, 384], strides = [1, 1]} : vector<48x384xf32> to vector<16x384xf32>
    %408 = vector.broadcast %406 : f32 to vector<16x384xf32>
    %409 = arith.mulf %408, %407 : vector<16x384xf32>
    %410 = arith.addf %400, %409 : vector<16x384xf32>
    %c84 = arith.constant 84 : index
    %411 = memref.load %arg0[%c84] : memref<98xf32, #tpu.memory_space<smem>>
    %412 = vector.extract_strided_slice %385 {offsets = [22, 0], sizes = [16, 384], strides = [1, 1]} : vector<48x384xf32> to vector<16x384xf32>
    %413 = vector.broadcast %411 : f32 to vector<16x384xf32>
    %414 = arith.mulf %413, %412 : vector<16x384xf32>
    %415 = arith.addf %405, %414 : vector<16x384xf32>
    %c91 = arith.constant 91 : index
    %416 = memref.load %arg0[%c91] : memref<98xf32, #tpu.memory_space<smem>>
    %417 = vector.extract_strided_slice %385 {offsets = [25, 0], sizes = [16, 384], strides = [1, 1]} : vector<48x384xf32> to vector<16x384xf32>
    %418 = vector.broadcast %416 : f32 to vector<16x384xf32>
    %419 = arith.mulf %418, %417 : vector<16x384xf32>
    %420 = arith.addf %410, %419 : vector<16x384xf32>
    %c1_115 = arith.constant 1 : index
    %c0_116 = arith.constant 0 : index
    %c3_117 = arith.constant 3 : index
    %421 = vector.load %arg12[%c1_115, %c0_116, %c3_117] : memref<2x48x512xf32, #tpu.memory_space<vmem>>, vector<1x48x384xf32>
    %422 = vector.shape_cast %421 : vector<1x48x384xf32> to vector<48x384xf32>
    %c50 = arith.constant 50 : index
    %423 = memref.load %arg0[%c50] : memref<98xf32, #tpu.memory_space<smem>>
    %424 = vector.extract_strided_slice %422 {offsets = [7, 0], sizes = [16, 384], strides = [1, 1]} : vector<48x384xf32> to vector<16x384xf32>
    %425 = vector.broadcast %423 : f32 to vector<16x384xf32>
    %426 = arith.mulf %425, %424 : vector<16x384xf32>
    %427 = arith.addf %415, %426 : vector<16x384xf32>
    %c57 = arith.constant 57 : index
    %428 = memref.load %arg0[%c57] : memref<98xf32, #tpu.memory_space<smem>>
    %429 = vector.extract_strided_slice %422 {offsets = [10, 0], sizes = [16, 384], strides = [1, 1]} : vector<48x384xf32> to vector<16x384xf32>
    %430 = vector.broadcast %428 : f32 to vector<16x384xf32>
    %431 = arith.mulf %430, %429 : vector<16x384xf32>
    %432 = arith.addf %420, %431 : vector<16x384xf32>
    %c64 = arith.constant 64 : index
    %433 = memref.load %arg0[%c64] : memref<98xf32, #tpu.memory_space<smem>>
    %434 = vector.extract_strided_slice %422 {offsets = [13, 0], sizes = [16, 384], strides = [1, 1]} : vector<48x384xf32> to vector<16x384xf32>
    %435 = vector.broadcast %433 : f32 to vector<16x384xf32>
    %436 = arith.mulf %435, %434 : vector<16x384xf32>
    %437 = arith.addf %427, %436 : vector<16x384xf32>
    %c71 = arith.constant 71 : index
    %438 = memref.load %arg0[%c71] : memref<98xf32, #tpu.memory_space<smem>>
    %439 = vector.extract_strided_slice %422 {offsets = [16, 0], sizes = [16, 384], strides = [1, 1]} : vector<48x384xf32> to vector<16x384xf32>
    %440 = vector.broadcast %438 : f32 to vector<16x384xf32>
    %441 = arith.mulf %440, %439 : vector<16x384xf32>
    %442 = arith.addf %432, %441 : vector<16x384xf32>
    %c78 = arith.constant 78 : index
    %443 = memref.load %arg0[%c78] : memref<98xf32, #tpu.memory_space<smem>>
    %444 = vector.extract_strided_slice %422 {offsets = [19, 0], sizes = [16, 384], strides = [1, 1]} : vector<48x384xf32> to vector<16x384xf32>
    %445 = vector.broadcast %443 : f32 to vector<16x384xf32>
    %446 = arith.mulf %445, %444 : vector<16x384xf32>
    %447 = arith.addf %437, %446 : vector<16x384xf32>
    %c85 = arith.constant 85 : index
    %448 = memref.load %arg0[%c85] : memref<98xf32, #tpu.memory_space<smem>>
    %449 = vector.extract_strided_slice %422 {offsets = [22, 0], sizes = [16, 384], strides = [1, 1]} : vector<48x384xf32> to vector<16x384xf32>
    %450 = vector.broadcast %448 : f32 to vector<16x384xf32>
    %451 = arith.mulf %450, %449 : vector<16x384xf32>
    %452 = arith.addf %442, %451 : vector<16x384xf32>
    %c92 = arith.constant 92 : index
    %453 = memref.load %arg0[%c92] : memref<98xf32, #tpu.memory_space<smem>>
    %454 = vector.extract_strided_slice %422 {offsets = [25, 0], sizes = [16, 384], strides = [1, 1]} : vector<48x384xf32> to vector<16x384xf32>
    %455 = vector.broadcast %453 : f32 to vector<16x384xf32>
    %456 = arith.mulf %455, %454 : vector<16x384xf32>
    %457 = arith.addf %447, %456 : vector<16x384xf32>
    %c1_118 = arith.constant 1 : index
    %c0_119 = arith.constant 0 : index
    %c6_120 = arith.constant 6 : index
    %458 = vector.load %arg12[%c1_118, %c0_119, %c6_120] : memref<2x48x512xf32, #tpu.memory_space<vmem>>, vector<1x48x384xf32>
    %459 = vector.shape_cast %458 : vector<1x48x384xf32> to vector<48x384xf32>
    %c51 = arith.constant 51 : index
    %460 = memref.load %arg0[%c51] : memref<98xf32, #tpu.memory_space<smem>>
    %461 = vector.extract_strided_slice %459 {offsets = [7, 0], sizes = [16, 384], strides = [1, 1]} : vector<48x384xf32> to vector<16x384xf32>
    %462 = vector.broadcast %460 : f32 to vector<16x384xf32>
    %463 = arith.mulf %462, %461 : vector<16x384xf32>
    %464 = arith.addf %452, %463 : vector<16x384xf32>
    %c58 = arith.constant 58 : index
    %465 = memref.load %arg0[%c58] : memref<98xf32, #tpu.memory_space<smem>>
    %466 = vector.extract_strided_slice %459 {offsets = [10, 0], sizes = [16, 384], strides = [1, 1]} : vector<48x384xf32> to vector<16x384xf32>
    %467 = vector.broadcast %465 : f32 to vector<16x384xf32>
    %468 = arith.mulf %467, %466 : vector<16x384xf32>
    %469 = arith.addf %457, %468 : vector<16x384xf32>
    %c65 = arith.constant 65 : index
    %470 = memref.load %arg0[%c65] : memref<98xf32, #tpu.memory_space<smem>>
    %471 = vector.extract_strided_slice %459 {offsets = [13, 0], sizes = [16, 384], strides = [1, 1]} : vector<48x384xf32> to vector<16x384xf32>
    %472 = vector.broadcast %470 : f32 to vector<16x384xf32>
    %473 = arith.mulf %472, %471 : vector<16x384xf32>
    %474 = arith.addf %464, %473 : vector<16x384xf32>
    %c72 = arith.constant 72 : index
    %475 = memref.load %arg0[%c72] : memref<98xf32, #tpu.memory_space<smem>>
    %476 = vector.extract_strided_slice %459 {offsets = [16, 0], sizes = [16, 384], strides = [1, 1]} : vector<48x384xf32> to vector<16x384xf32>
    %477 = vector.broadcast %475 : f32 to vector<16x384xf32>
    %478 = arith.mulf %477, %476 : vector<16x384xf32>
    %479 = arith.addf %469, %478 : vector<16x384xf32>
    %c79 = arith.constant 79 : index
    %480 = memref.load %arg0[%c79] : memref<98xf32, #tpu.memory_space<smem>>
    %481 = vector.extract_strided_slice %459 {offsets = [19, 0], sizes = [16, 384], strides = [1, 1]} : vector<48x384xf32> to vector<16x384xf32>
    %482 = vector.broadcast %480 : f32 to vector<16x384xf32>
    %483 = arith.mulf %482, %481 : vector<16x384xf32>
    %484 = arith.addf %474, %483 : vector<16x384xf32>
    %c86 = arith.constant 86 : index
    %485 = memref.load %arg0[%c86] : memref<98xf32, #tpu.memory_space<smem>>
    %486 = vector.extract_strided_slice %459 {offsets = [22, 0], sizes = [16, 384], strides = [1, 1]} : vector<48x384xf32> to vector<16x384xf32>
    %487 = vector.broadcast %485 : f32 to vector<16x384xf32>
    %488 = arith.mulf %487, %486 : vector<16x384xf32>
    %489 = arith.addf %479, %488 : vector<16x384xf32>
    %c93 = arith.constant 93 : index
    %490 = memref.load %arg0[%c93] : memref<98xf32, #tpu.memory_space<smem>>
    %491 = vector.extract_strided_slice %459 {offsets = [25, 0], sizes = [16, 384], strides = [1, 1]} : vector<48x384xf32> to vector<16x384xf32>
    %492 = vector.broadcast %490 : f32 to vector<16x384xf32>
    %493 = arith.mulf %492, %491 : vector<16x384xf32>
    %494 = arith.addf %484, %493 : vector<16x384xf32>
    %c1_121 = arith.constant 1 : index
    %c0_122 = arith.constant 0 : index
    %c9_123 = arith.constant 9 : index
    %495 = vector.load %arg12[%c1_121, %c0_122, %c9_123] : memref<2x48x512xf32, #tpu.memory_space<vmem>>, vector<1x48x384xf32>
    %496 = vector.shape_cast %495 : vector<1x48x384xf32> to vector<48x384xf32>
    %c52 = arith.constant 52 : index
    %497 = memref.load %arg0[%c52] : memref<98xf32, #tpu.memory_space<smem>>
    %498 = vector.extract_strided_slice %496 {offsets = [7, 0], sizes = [16, 384], strides = [1, 1]} : vector<48x384xf32> to vector<16x384xf32>
    %499 = vector.broadcast %497 : f32 to vector<16x384xf32>
    %500 = arith.mulf %499, %498 : vector<16x384xf32>
    %501 = arith.addf %489, %500 : vector<16x384xf32>
    %c59 = arith.constant 59 : index
    %502 = memref.load %arg0[%c59] : memref<98xf32, #tpu.memory_space<smem>>
    %503 = vector.extract_strided_slice %496 {offsets = [10, 0], sizes = [16, 384], strides = [1, 1]} : vector<48x384xf32> to vector<16x384xf32>
    %504 = vector.broadcast %502 : f32 to vector<16x384xf32>
    %505 = arith.mulf %504, %503 : vector<16x384xf32>
    %506 = arith.addf %494, %505 : vector<16x384xf32>
    %c66 = arith.constant 66 : index
    %507 = memref.load %arg0[%c66] : memref<98xf32, #tpu.memory_space<smem>>
    %508 = vector.extract_strided_slice %496 {offsets = [13, 0], sizes = [16, 384], strides = [1, 1]} : vector<48x384xf32> to vector<16x384xf32>
    %509 = vector.broadcast %507 : f32 to vector<16x384xf32>
    %510 = arith.mulf %509, %508 : vector<16x384xf32>
    %511 = arith.addf %501, %510 : vector<16x384xf32>
    %c73 = arith.constant 73 : index
    %512 = memref.load %arg0[%c73] : memref<98xf32, #tpu.memory_space<smem>>
    %513 = vector.extract_strided_slice %496 {offsets = [16, 0], sizes = [16, 384], strides = [1, 1]} : vector<48x384xf32> to vector<16x384xf32>
    %514 = vector.broadcast %512 : f32 to vector<16x384xf32>
    %515 = arith.mulf %514, %513 : vector<16x384xf32>
    %516 = arith.addf %506, %515 : vector<16x384xf32>
    %c80 = arith.constant 80 : index
    %517 = memref.load %arg0[%c80] : memref<98xf32, #tpu.memory_space<smem>>
    %518 = vector.extract_strided_slice %496 {offsets = [19, 0], sizes = [16, 384], strides = [1, 1]} : vector<48x384xf32> to vector<16x384xf32>
    %519 = vector.broadcast %517 : f32 to vector<16x384xf32>
    %520 = arith.mulf %519, %518 : vector<16x384xf32>
    %521 = arith.addf %511, %520 : vector<16x384xf32>
    %c87 = arith.constant 87 : index
    %522 = memref.load %arg0[%c87] : memref<98xf32, #tpu.memory_space<smem>>
    %523 = vector.extract_strided_slice %496 {offsets = [22, 0], sizes = [16, 384], strides = [1, 1]} : vector<48x384xf32> to vector<16x384xf32>
    %524 = vector.broadcast %522 : f32 to vector<16x384xf32>
    %525 = arith.mulf %524, %523 : vector<16x384xf32>
    %526 = arith.addf %516, %525 : vector<16x384xf32>
    %c94 = arith.constant 94 : index
    %527 = memref.load %arg0[%c94] : memref<98xf32, #tpu.memory_space<smem>>
    %528 = vector.extract_strided_slice %496 {offsets = [25, 0], sizes = [16, 384], strides = [1, 1]} : vector<48x384xf32> to vector<16x384xf32>
    %529 = vector.broadcast %527 : f32 to vector<16x384xf32>
    %530 = arith.mulf %529, %528 : vector<16x384xf32>
    %531 = arith.addf %521, %530 : vector<16x384xf32>
    %c1_124 = arith.constant 1 : index
    %c0_125 = arith.constant 0 : index
    %c12_126 = arith.constant 12 : index
    %532 = vector.load %arg12[%c1_124, %c0_125, %c12_126] : memref<2x48x512xf32, #tpu.memory_space<vmem>>, vector<1x48x384xf32>
    %533 = vector.shape_cast %532 : vector<1x48x384xf32> to vector<48x384xf32>
    %c53 = arith.constant 53 : index
    %534 = memref.load %arg0[%c53] : memref<98xf32, #tpu.memory_space<smem>>
    %535 = vector.extract_strided_slice %533 {offsets = [7, 0], sizes = [16, 384], strides = [1, 1]} : vector<48x384xf32> to vector<16x384xf32>
    %536 = vector.broadcast %534 : f32 to vector<16x384xf32>
    %537 = arith.mulf %536, %535 : vector<16x384xf32>
    %538 = arith.addf %526, %537 : vector<16x384xf32>
    %c60 = arith.constant 60 : index
    %539 = memref.load %arg0[%c60] : memref<98xf32, #tpu.memory_space<smem>>
    %540 = vector.extract_strided_slice %533 {offsets = [10, 0], sizes = [16, 384], strides = [1, 1]} : vector<48x384xf32> to vector<16x384xf32>
    %541 = vector.broadcast %539 : f32 to vector<16x384xf32>
    %542 = arith.mulf %541, %540 : vector<16x384xf32>
    %543 = arith.addf %531, %542 : vector<16x384xf32>
    %c67 = arith.constant 67 : index
    %544 = memref.load %arg0[%c67] : memref<98xf32, #tpu.memory_space<smem>>
    %545 = vector.extract_strided_slice %533 {offsets = [13, 0], sizes = [16, 384], strides = [1, 1]} : vector<48x384xf32> to vector<16x384xf32>
    %546 = vector.broadcast %544 : f32 to vector<16x384xf32>
    %547 = arith.mulf %546, %545 : vector<16x384xf32>
    %548 = arith.addf %538, %547 : vector<16x384xf32>
    %c74 = arith.constant 74 : index
    %549 = memref.load %arg0[%c74] : memref<98xf32, #tpu.memory_space<smem>>
    %550 = vector.extract_strided_slice %533 {offsets = [16, 0], sizes = [16, 384], strides = [1, 1]} : vector<48x384xf32> to vector<16x384xf32>
    %551 = vector.broadcast %549 : f32 to vector<16x384xf32>
    %552 = arith.mulf %551, %550 : vector<16x384xf32>
    %553 = arith.addf %543, %552 : vector<16x384xf32>
    %c81 = arith.constant 81 : index
    %554 = memref.load %arg0[%c81] : memref<98xf32, #tpu.memory_space<smem>>
    %555 = vector.extract_strided_slice %533 {offsets = [19, 0], sizes = [16, 384], strides = [1, 1]} : vector<48x384xf32> to vector<16x384xf32>
    %556 = vector.broadcast %554 : f32 to vector<16x384xf32>
    %557 = arith.mulf %556, %555 : vector<16x384xf32>
    %558 = arith.addf %548, %557 : vector<16x384xf32>
    %c88 = arith.constant 88 : index
    %559 = memref.load %arg0[%c88] : memref<98xf32, #tpu.memory_space<smem>>
    %560 = vector.extract_strided_slice %533 {offsets = [22, 0], sizes = [16, 384], strides = [1, 1]} : vector<48x384xf32> to vector<16x384xf32>
    %561 = vector.broadcast %559 : f32 to vector<16x384xf32>
    %562 = arith.mulf %561, %560 : vector<16x384xf32>
    %563 = arith.addf %553, %562 : vector<16x384xf32>
    %c95 = arith.constant 95 : index
    %564 = memref.load %arg0[%c95] : memref<98xf32, #tpu.memory_space<smem>>
    %565 = vector.extract_strided_slice %533 {offsets = [25, 0], sizes = [16, 384], strides = [1, 1]} : vector<48x384xf32> to vector<16x384xf32>
    %566 = vector.broadcast %564 : f32 to vector<16x384xf32>
    %567 = arith.mulf %566, %565 : vector<16x384xf32>
    %568 = arith.addf %558, %567 : vector<16x384xf32>
    %c1_127 = arith.constant 1 : index
    %c0_128 = arith.constant 0 : index
    %c15_129 = arith.constant 15 : index
    %569 = vector.load %arg12[%c1_127, %c0_128, %c15_129] : memref<2x48x512xf32, #tpu.memory_space<vmem>>, vector<1x48x384xf32>
    %570 = vector.shape_cast %569 : vector<1x48x384xf32> to vector<48x384xf32>
    %c54 = arith.constant 54 : index
    %571 = memref.load %arg0[%c54] : memref<98xf32, #tpu.memory_space<smem>>
    %572 = vector.extract_strided_slice %570 {offsets = [7, 0], sizes = [16, 384], strides = [1, 1]} : vector<48x384xf32> to vector<16x384xf32>
    %573 = vector.broadcast %571 : f32 to vector<16x384xf32>
    %574 = arith.mulf %573, %572 : vector<16x384xf32>
    %575 = arith.addf %563, %574 : vector<16x384xf32>
    %c61 = arith.constant 61 : index
    %576 = memref.load %arg0[%c61] : memref<98xf32, #tpu.memory_space<smem>>
    %577 = vector.extract_strided_slice %570 {offsets = [10, 0], sizes = [16, 384], strides = [1, 1]} : vector<48x384xf32> to vector<16x384xf32>
    %578 = vector.broadcast %576 : f32 to vector<16x384xf32>
    %579 = arith.mulf %578, %577 : vector<16x384xf32>
    %580 = arith.addf %568, %579 : vector<16x384xf32>
    %c68 = arith.constant 68 : index
    %581 = memref.load %arg0[%c68] : memref<98xf32, #tpu.memory_space<smem>>
    %582 = vector.extract_strided_slice %570 {offsets = [13, 0], sizes = [16, 384], strides = [1, 1]} : vector<48x384xf32> to vector<16x384xf32>
    %583 = vector.broadcast %581 : f32 to vector<16x384xf32>
    %584 = arith.mulf %583, %582 : vector<16x384xf32>
    %585 = arith.addf %575, %584 : vector<16x384xf32>
    %c75 = arith.constant 75 : index
    %586 = memref.load %arg0[%c75] : memref<98xf32, #tpu.memory_space<smem>>
    %587 = vector.extract_strided_slice %570 {offsets = [16, 0], sizes = [16, 384], strides = [1, 1]} : vector<48x384xf32> to vector<16x384xf32>
    %588 = vector.broadcast %586 : f32 to vector<16x384xf32>
    %589 = arith.mulf %588, %587 : vector<16x384xf32>
    %590 = arith.addf %580, %589 : vector<16x384xf32>
    %c82 = arith.constant 82 : index
    %591 = memref.load %arg0[%c82] : memref<98xf32, #tpu.memory_space<smem>>
    %592 = vector.extract_strided_slice %570 {offsets = [19, 0], sizes = [16, 384], strides = [1, 1]} : vector<48x384xf32> to vector<16x384xf32>
    %593 = vector.broadcast %591 : f32 to vector<16x384xf32>
    %594 = arith.mulf %593, %592 : vector<16x384xf32>
    %595 = arith.addf %585, %594 : vector<16x384xf32>
    %c89 = arith.constant 89 : index
    %596 = memref.load %arg0[%c89] : memref<98xf32, #tpu.memory_space<smem>>
    %597 = vector.extract_strided_slice %570 {offsets = [22, 0], sizes = [16, 384], strides = [1, 1]} : vector<48x384xf32> to vector<16x384xf32>
    %598 = vector.broadcast %596 : f32 to vector<16x384xf32>
    %599 = arith.mulf %598, %597 : vector<16x384xf32>
    %600 = arith.addf %590, %599 : vector<16x384xf32>
    %c96 = arith.constant 96 : index
    %601 = memref.load %arg0[%c96] : memref<98xf32, #tpu.memory_space<smem>>
    %602 = vector.extract_strided_slice %570 {offsets = [25, 0], sizes = [16, 384], strides = [1, 1]} : vector<48x384xf32> to vector<16x384xf32>
    %603 = vector.broadcast %601 : f32 to vector<16x384xf32>
    %604 = arith.mulf %603, %602 : vector<16x384xf32>
    %605 = arith.addf %595, %604 : vector<16x384xf32>
    %c1_130 = arith.constant 1 : index
    %c0_131 = arith.constant 0 : index
    %c18_132 = arith.constant 18 : index
    %606 = vector.load %arg12[%c1_130, %c0_131, %c18_132] : memref<2x48x512xf32, #tpu.memory_space<vmem>>, vector<1x48x384xf32>
    %607 = vector.shape_cast %606 : vector<1x48x384xf32> to vector<48x384xf32>
    %c55 = arith.constant 55 : index
    %608 = memref.load %arg0[%c55] : memref<98xf32, #tpu.memory_space<smem>>
    %609 = vector.extract_strided_slice %607 {offsets = [7, 0], sizes = [16, 384], strides = [1, 1]} : vector<48x384xf32> to vector<16x384xf32>
    %610 = vector.broadcast %608 : f32 to vector<16x384xf32>
    %611 = arith.mulf %610, %609 : vector<16x384xf32>
    %612 = arith.addf %600, %611 : vector<16x384xf32>
    %c62 = arith.constant 62 : index
    %613 = memref.load %arg0[%c62] : memref<98xf32, #tpu.memory_space<smem>>
    %614 = vector.extract_strided_slice %607 {offsets = [10, 0], sizes = [16, 384], strides = [1, 1]} : vector<48x384xf32> to vector<16x384xf32>
    %615 = vector.broadcast %613 : f32 to vector<16x384xf32>
    %616 = arith.mulf %615, %614 : vector<16x384xf32>
    %617 = arith.addf %605, %616 : vector<16x384xf32>
    %c69 = arith.constant 69 : index
    %618 = memref.load %arg0[%c69] : memref<98xf32, #tpu.memory_space<smem>>
    %619 = vector.extract_strided_slice %607 {offsets = [13, 0], sizes = [16, 384], strides = [1, 1]} : vector<48x384xf32> to vector<16x384xf32>
    %620 = vector.broadcast %618 : f32 to vector<16x384xf32>
    %621 = arith.mulf %620, %619 : vector<16x384xf32>
    %622 = arith.addf %612, %621 : vector<16x384xf32>
    %c76 = arith.constant 76 : index
    %623 = memref.load %arg0[%c76] : memref<98xf32, #tpu.memory_space<smem>>
    %624 = vector.extract_strided_slice %607 {offsets = [16, 0], sizes = [16, 384], strides = [1, 1]} : vector<48x384xf32> to vector<16x384xf32>
    %625 = vector.broadcast %623 : f32 to vector<16x384xf32>
    %626 = arith.mulf %625, %624 : vector<16x384xf32>
    %627 = arith.addf %617, %626 : vector<16x384xf32>
    %c83 = arith.constant 83 : index
    %628 = memref.load %arg0[%c83] : memref<98xf32, #tpu.memory_space<smem>>
    %629 = vector.extract_strided_slice %607 {offsets = [19, 0], sizes = [16, 384], strides = [1, 1]} : vector<48x384xf32> to vector<16x384xf32>
    %630 = vector.broadcast %628 : f32 to vector<16x384xf32>
    %631 = arith.mulf %630, %629 : vector<16x384xf32>
    %632 = arith.addf %622, %631 : vector<16x384xf32>
    %c90 = arith.constant 90 : index
    %633 = memref.load %arg0[%c90] : memref<98xf32, #tpu.memory_space<smem>>
    %634 = vector.extract_strided_slice %607 {offsets = [22, 0], sizes = [16, 384], strides = [1, 1]} : vector<48x384xf32> to vector<16x384xf32>
    %635 = vector.broadcast %633 : f32 to vector<16x384xf32>
    %636 = arith.mulf %635, %634 : vector<16x384xf32>
    %637 = arith.addf %627, %636 : vector<16x384xf32>
    %c97 = arith.constant 97 : index
    %638 = memref.load %arg0[%c97] : memref<98xf32, #tpu.memory_space<smem>>
    %639 = vector.extract_strided_slice %607 {offsets = [25, 0], sizes = [16, 384], strides = [1, 1]} : vector<48x384xf32> to vector<16x384xf32>
    %640 = vector.broadcast %638 : f32 to vector<16x384xf32>
    %641 = arith.mulf %640, %639 : vector<16x384xf32>
    %642 = arith.addf %632, %641 : vector<16x384xf32>
    %643 = arith.addf %637, %642 : vector<16x384xf32>
    %c0_133 = arith.constant 0 : index
    %644 = memref.load %arg1[%c0_133] : memref<1xf32, #tpu.memory_space<smem>>
    %645 = vector.broadcast %644 : f32 to vector<16x384xf32>
    %646 = arith.addf %643, %645 : vector<16x384xf32>
    %647 = arith.negf %646 : vector<16x384xf32>
    %648 = math.exp %647 : vector<16x384xf32>
    %cst_134 = arith.constant 1.000000e+00 : f32
    %649 = vector.broadcast %cst_134 : f32 to vector<16x384xf32>
    %650 = arith.addf %649, %648 : vector<16x384xf32>
    %651 = arith.divf %649, %650 : vector<16x384xf32>
    %652 = vector.extract_strided_slice %651 {offsets = [0, 0], sizes = [16, 16], strides = [1, 1]} : vector<16x384xf32> to vector<16x16xf32>
    %c0_135 = arith.constant 0 : index
    %c0_136 = arith.constant 0 : index
    %c0_137 = arith.constant 0 : index
    %c0_138 = arith.constant 0 : index
    %653 = vector.load %arg7[%c0_135, %c0_136, %c0_137, %c0_138] : memref<2x1x16x16xf32, #tpu.memory_space<vmem>>, vector<1x1x16x16xf32>
    %654 = vector.shape_cast %653 : vector<1x1x16x16xf32> to vector<16x16xf32>
    %655 = vector.shape_cast %652 : vector<16x16xf32> to vector<1x1x16x16xf32>
    tpu.vector_store %arg7[%c0_135, %c0_136, %c0_137, %c0_138], %655 {strides = array<i32>} : memref<2x1x16x16xf32, #tpu.memory_space<vmem>>, vector<1x1x16x16xf32>,
    %656 = vector.extract_strided_slice %651 {offsets = [0, 34], sizes = [16, 16], strides = [1, 1]} : vector<16x384xf32> to vector<16x16xf32>
    %c1_139 = arith.constant 1 : index
    %c0_140 = arith.constant 0 : index
    %c0_141 = arith.constant 0 : index
    %c0_142 = arith.constant 0 : index
    %657 = vector.load %arg7[%c1_139, %c0_140, %c0_141, %c0_142] : memref<2x1x16x16xf32, #tpu.memory_space<vmem>>, vector<1x1x16x16xf32>
    %658 = vector.shape_cast %657 : vector<1x1x16x16xf32> to vector<16x16xf32>
    %659 = vector.shape_cast %656 : vector<16x16xf32> to vector<1x1x16x16xf32>
    tpu.vector_store %arg7[%c1_139, %c0_140, %c0_141, %c0_142], %659 {strides = array<i32>} : memref<2x1x16x16xf32, #tpu.memory_space<vmem>>, vector<1x1x16x16xf32>,
    %660 = vector.extract_strided_slice %651 {offsets = [0, 68], sizes = [16, 16], strides = [1, 1]} : vector<16x384xf32> to vector<16x16xf32>
    %c0_143 = arith.constant 0 : index
    %c0_144 = arith.constant 0 : index
    %c0_145 = arith.constant 0 : index
    %c0_146 = arith.constant 0 : index
    %661 = vector.load %arg8[%c0_143, %c0_144, %c0_145, %c0_146] : memref<2x1x16x16xf32, #tpu.memory_space<vmem>>, vector<1x1x16x16xf32>
    %662 = vector.shape_cast %661 : vector<1x1x16x16xf32> to vector<16x16xf32>
    %663 = vector.shape_cast %660 : vector<16x16xf32> to vector<1x1x16x16xf32>
    tpu.vector_store %arg8[%c0_143, %c0_144, %c0_145, %c0_146], %663 {strides = array<i32>} : memref<2x1x16x16xf32, #tpu.memory_space<vmem>>, vector<1x1x16x16xf32>,
    %664 = vector.extract_strided_slice %651 {offsets = [0, 102], sizes = [16, 16], strides = [1, 1]} : vector<16x384xf32> to vector<16x16xf32>
    %c1_147 = arith.constant 1 : index
    %c0_148 = arith.constant 0 : index
    %c0_149 = arith.constant 0 : index
    %c0_150 = arith.constant 0 : index
    %665 = vector.load %arg8[%c1_147, %c0_148, %c0_149, %c0_150] : memref<2x1x16x16xf32, #tpu.memory_space<vmem>>, vector<1x1x16x16xf32>
    %666 = vector.shape_cast %665 : vector<1x1x16x16xf32> to vector<16x16xf32>
    %667 = vector.shape_cast %664 : vector<16x16xf32> to vector<1x1x16x16xf32>
    tpu.vector_store %arg8[%c1_147, %c0_148, %c0_149, %c0_150], %667 {strides = array<i32>} : memref<2x1x16x16xf32, #tpu.memory_space<vmem>>, vector<1x1x16x16xf32>,
    %668 = vector.extract_strided_slice %651 {offsets = [0, 136], sizes = [16, 16], strides = [1, 1]} : vector<16x384xf32> to vector<16x16xf32>
    %c0_151 = arith.constant 0 : index
    %c0_152 = arith.constant 0 : index
    %c0_153 = arith.constant 0 : index
    %c0_154 = arith.constant 0 : index
    %669 = vector.load %arg9[%c0_151, %c0_152, %c0_153, %c0_154] : memref<2x1x16x16xf32, #tpu.memory_space<vmem>>, vector<1x1x16x16xf32>
    %670 = vector.shape_cast %669 : vector<1x1x16x16xf32> to vector<16x16xf32>
    %671 = vector.shape_cast %668 : vector<16x16xf32> to vector<1x1x16x16xf32>
    tpu.vector_store %arg9[%c0_151, %c0_152, %c0_153, %c0_154], %671 {strides = array<i32>} : memref<2x1x16x16xf32, #tpu.memory_space<vmem>>, vector<1x1x16x16xf32>,
    %672 = vector.extract_strided_slice %651 {offsets = [0, 170], sizes = [16, 16], strides = [1, 1]} : vector<16x384xf32> to vector<16x16xf32>
    %c1_155 = arith.constant 1 : index
    %c0_156 = arith.constant 0 : index
    %c0_157 = arith.constant 0 : index
    %c0_158 = arith.constant 0 : index
    %673 = vector.load %arg9[%c1_155, %c0_156, %c0_157, %c0_158] : memref<2x1x16x16xf32, #tpu.memory_space<vmem>>, vector<1x1x16x16xf32>
    %674 = vector.shape_cast %673 : vector<1x1x16x16xf32> to vector<16x16xf32>
    %675 = vector.shape_cast %672 : vector<16x16xf32> to vector<1x1x16x16xf32>
    tpu.vector_store %arg9[%c1_155, %c0_156, %c0_157, %c0_158], %675 {strides = array<i32>} : memref<2x1x16x16xf32, #tpu.memory_space<vmem>>, vector<1x1x16x16xf32>,
    %676 = vector.extract_strided_slice %651 {offsets = [0, 204], sizes = [8, 8], strides = [1, 1]} : vector<16x384xf32> to vector<8x8xf32>
    %c0_159 = arith.constant 0 : index
    %c0_160 = arith.constant 0 : index
    %c0_161 = arith.constant 0 : index
    %c0_162 = arith.constant 0 : index
    %677 = vector.load %arg10[%c0_159, %c0_160, %c0_161, %c0_162] : memref<2x1x8x8xf32, #tpu.memory_space<vmem>>, vector<1x1x8x8xf32>
    %678 = vector.shape_cast %677 : vector<1x1x8x8xf32> to vector<8x8xf32>
    %679 = vector.shape_cast %676 : vector<8x8xf32> to vector<1x1x8x8xf32>
    tpu.vector_store %arg10[%c0_159, %c0_160, %c0_161, %c0_162], %679 {strides = array<i32>} : memref<2x1x8x8xf32, #tpu.memory_space<vmem>>, vector<1x1x8x8xf32>,
    %680 = vector.extract_strided_slice %651 {offsets = [0, 230], sizes = [8, 8], strides = [1, 1]} : vector<16x384xf32> to vector<8x8xf32>
    %c1_163 = arith.constant 1 : index
    %c0_164 = arith.constant 0 : index
    %c0_165 = arith.constant 0 : index
    %c0_166 = arith.constant 0 : index
    %681 = vector.load %arg10[%c1_163, %c0_164, %c0_165, %c0_166] : memref<2x1x8x8xf32, #tpu.memory_space<vmem>>, vector<1x1x8x8xf32>
    %682 = vector.shape_cast %681 : vector<1x1x8x8xf32> to vector<8x8xf32>
    %683 = vector.shape_cast %680 : vector<8x8xf32> to vector<1x1x8x8xf32>
    tpu.vector_store %arg10[%c1_163, %c0_164, %c0_165, %c0_166], %683 {strides = array<i32>} : memref<2x1x8x8xf32, #tpu.memory_space<vmem>>, vector<1x1x8x8xf32>,
    %684 = vector.extract_strided_slice %651 {offsets = [0, 256], sizes = [8, 8], strides = [1, 1]} : vector<16x384xf32> to vector<8x8xf32>
    %c0_167 = arith.constant 0 : index
    %c0_168 = arith.constant 0 : index
    %c0_169 = arith.constant 0 : index
    %c0_170 = arith.constant 0 : index
    %685 = vector.load %arg11[%c0_167, %c0_168, %c0_169, %c0_170] : memref<2x1x8x8xf32, #tpu.memory_space<vmem>>, vector<1x1x8x8xf32>
    %686 = vector.shape_cast %685 : vector<1x1x8x8xf32> to vector<8x8xf32>
    %687 = vector.shape_cast %684 : vector<8x8xf32> to vector<1x1x8x8xf32>
    tpu.vector_store %arg11[%c0_167, %c0_168, %c0_169, %c0_170], %687 {strides = array<i32>} : memref<2x1x8x8xf32, #tpu.memory_space<vmem>>, vector<1x1x8x8xf32>,
    %688 = vector.extract_strided_slice %651 {offsets = [0, 282], sizes = [8, 8], strides = [1, 1]} : vector<16x384xf32> to vector<8x8xf32>
    %c1_171 = arith.constant 1 : index
    %c0_172 = arith.constant 0 : index
    %c0_173 = arith.constant 0 : index
    %c0_174 = arith.constant 0 : index
    %689 = vector.load %arg11[%c1_171, %c0_172, %c0_173, %c0_174] : memref<2x1x8x8xf32, #tpu.memory_space<vmem>>, vector<1x1x8x8xf32>
    %690 = vector.shape_cast %689 : vector<1x1x8x8xf32> to vector<8x8xf32>
    %691 = vector.shape_cast %688 : vector<8x8xf32> to vector<1x1x8x8xf32>
    tpu.vector_store %arg11[%c1_171, %c0_172, %c0_173, %c0_174], %691 {strides = array<i32>} : memref<2x1x8x8xf32, #tpu.memory_space<vmem>>, vector<1x1x8x8xf32>,
    return
  }
}

</mosaic_0001>

<llo_original>
// kernel: tpu_custom_call.1
$region0: #{tpu_custom_call.1}
  #allocation0 [shape = 'u32[]', space=smem, size = 0x4, offset = 0x4, fixed_abs, tag = 'smem constant byte address 0x4 - core index']
  #allocation1 [shape = 'u32[144,128]{1,0:T(1,128)}', space=vmem, size = 0x12000, scoped, tag = 'internal scratch']
  #allocation2 [shape = 'f32[2,48,512]{2,1,0:T(8,128)}', space=vmem, size = 0x30000, scoped, tag = 'scratch operand']
  #allocation3 [shape = 'f32[1]{0:T(128)S(6)}', space=smem, size = 0x200, scoped, tag = 'scoped memory for tpu_custom_call.1']
  %s0 = inlined_call_operand.vmem [shape: f32[98], index: 0, kind: input, shape index: {}]
  %s1 = inlined_call_operand.<no memory space> [shape: f32[1], index: 1, kind: input, shape index: {}]
  %s2 = inlined_call_operand.hbm [shape: f32[2,4,16,16], index: 2, kind: input, shape index: {}]
  %s3 = inlined_call_operand.hbm [shape: f32[2,8,16,16], index: 3, kind: input, shape index: {}]
  %s4 = inlined_call_operand.hbm [shape: f32[2,6,16,16], index: 4, kind: input, shape index: {}]
  %s5 = inlined_call_operand.hbm [shape: f32[2,4,8,8], index: 5, kind: input, shape index: {}]
  %s6 = inlined_call_operand.hbm [shape: f32[2,8,8,8], index: 6, kind: input, shape index: {}]
  %s7 = inlined_call_operand.hbm [shape: f32[2,1,16,16], index: 7, kind: output, shape index: {0}]
  %s8 = inlined_call_operand.hbm [shape: f32[2,1,16,16], index: 8, kind: output, shape index: {1}]
  %s9 = inlined_call_operand.hbm [shape: f32[2,1,16,16], index: 9, kind: output, shape index: {2}]
  %s10 = inlined_call_operand.hbm [shape: f32[2,1,8,8], index: 10, kind: output, shape index: {3}]
  %s11 = inlined_call_operand.hbm [shape: f32[2,1,8,8], index: 11, kind: output, shape index: {4}]
  %12 = xla_tuple %s7, %s8, %s9, %s10, %s11
  %s13 = sld [smem:[#allocation0]]
  $region94: #{tpu_custom_call.1} parent=0
    _
  %s15 = ssub.s32 1, %s13
  %s16 = scalar_select 0, %s15, %s13
  %17 = sst [smem:[#allocation3]] %s1
  $region1: #{tpu_custom_call.1} parent=0
    #allocation4 [shape = 'u8[512]{0}', space=smem, size = 0x200, scoped, tag = 'input window, operand 0, single buffered']
    #allocation5 [shape = 's32[1]{0}', space=sflag, size = 0x4, scoped, tag = 'scoped memory for tpu_custom_call.1']
    #allocation6 [shape = 's32[1]{0}', space=sflag, size = 0x4, scoped, tag = 'scoped memory for tpu_custom_call.1']
    #allocation7 [shape = 's32[1]{0}', space=sflag, size = 0x4, scoped, tag = 'scoped memory for tpu_custom_call.1']
    #allocation8 [shape = 'u8[65536]{0}', space=vmem, size = 0x10000, scoped, tag = 'input window, operand 2, single buffered']
    #allocation9 [shape = 'u8[131072]{0}', space=vmem, size = 0x20000, scoped, tag = 'input window, operand 3, single buffered']
    #allocation10 [shape = 's32[1]{0}', space=sflag, size = 0x4, scoped, tag = 'scoped memory for tpu_custom_call.1']
    #allocation11 [shape = 'u8[98304]{0}', space=vmem, size = 0x18000, scoped, tag = 'input window, operand 4, single buffered']
    #allocation12 [shape = 'u8[32768]{0}', space=vmem, size = 0x8000, scoped, tag = 'input window, operand 5, single buffered']
    #allocation13 [shape = 's32[1]{0}', space=sflag, size = 0x4, scoped, tag = 'scoped memory for tpu_custom_call.1']
    #allocation14 [shape = 'u8[65536]{0}', space=vmem, size = 0x10000, scoped, tag = 'input window, operand 6, single buffered']
    #allocation15 [shape = 'u8[16384]{0}', space=vmem, size = 0x4000, scoped, tag = 'output window, operand 0, single buffered']
    #allocation16 [shape = 'u8[16384]{0}', space=vmem, size = 0x4000, scoped, tag = 'output window, operand 1, single buffered']
    #allocation17 [shape = 's32[1]{0}', space=sflag, size = 0x4, scoped, tag = 'scoped memory for tpu_custom_call.1']
    #allocation18 [shape = 'u8[16384]{0}', space=vmem, size = 0x4000, scoped, tag = 'output window, operand 2, single buffered']
    #allocation19 [shape = 'u8[8192]{0}', space=vmem, size = 0x2000, scoped, tag = 'output window, operand 3, single buffered']
    #allocation20 [shape = 's32[1]{0}', space=sflag, size = 0x4, scoped, tag = 'scoped memory for tpu_custom_call.1']
    #allocation21 [shape = 'u8[8192]{0}', space=vmem, size = 0x2000, scoped, tag = 'output window, operand 4, single buffered']
    %18 = vsyncpa [#allocation7], 0
    %19 = vsyncpa [#allocation5], 0
    %20 = vsyncpa [#allocation10], 0
    %21 = vsyncpa [#allocation13], 0
    %22 = vsyncpa [#allocation6], 0
    %23 = vsyncpa [#allocation17], 0
    %24 = vsyncpa [#allocation20], 0
    // Predicated region
    $region2: #{tpu_custom_call.1} parent=1 // pred_check
      _
    $region3: #{tpu_custom_call.1} parent=1 // pred_check_branch
      %26 = sbr.rel (0) target = $region5
    $region4: #{tpu_custom_call.1} parent=1 // pred_region
      %s28 = ssub.s32 16, 16
      %29 = vsyncadd [#allocation7], %s28
      %s31 = sshll.u32 %s0, 4
      %s32 = int_to_ptr.vmem [resolvable:$true] %s31
      %34 = dma.vmem_to_smem %s32, 16, [#allocation4], [#allocation7]
    $region5: #{tpu_custom_call.1} parent=1 // pred_fallthru
      _
    // Predicated region
    $region6: #{tpu_custom_call.1} parent=1 // pred_check
      _
    $region7: #{tpu_custom_call.1} parent=1 // pred_check_branch
      %36 = sbr.rel (0) target = $region9
    $region8: #{tpu_custom_call.1} parent=1 // pred_region
      _
    $region9: #{tpu_custom_call.1} parent=1 // pred_fallthru
      _
    // Predicated region
    $region10: #{tpu_custom_call.1} parent=1 // pred_check
      _
    $region11: #{tpu_custom_call.1} parent=1 // pred_check_branch
      %38 = sbr.rel (0) target = $region13
    $region12: #{tpu_custom_call.1} parent=1 // pred_region
      %s40 = ssub.s32 2048, 2048
      %41 = vsyncadd [#allocation5], %s40
      %s42 = sshll.u32 [#allocation8], 4
      %s43 = int_to_ptr.vmem [resolvable:$true] %s42
      %48 = dma.hbm_to_vmem [thread:$0]  %s2, 2048, %s43, [#allocation5], 128, 128, 8
    $region13: #{tpu_custom_call.1} parent=1 // pred_fallthru
      _
    // Predicated region
    $region14: #{tpu_custom_call.1} parent=1 // pred_check
      _
    $region15: #{tpu_custom_call.1} parent=1 // pred_check_branch
      %50 = sbr.rel (0) target = $region17
    $region16: #{tpu_custom_call.1} parent=1 // pred_region
      %s52 = ssub.s32 4096, 4096
      %53 = vsyncadd [#allocation10], %s52
      %s54 = sshll.u32 [#allocation9], 4
      %s55 = int_to_ptr.vmem [resolvable:$true] %s54
      %60 = dma.hbm_to_vmem [thread:$0]  %s3, 4096, %s55, [#allocation10], 128, 128, 8
    $region17: #{tpu_custom_call.1} parent=1 // pred_fallthru
      _
    // Predicated region
    $region18: #{tpu_custom_call.1} parent=1 // pred_check
      _
    $region19: #{tpu_custom_call.1} parent=1 // pred_check_branch
      %62 = sbr.rel (0) target = $region21
    $region20: #{tpu_custom_call.1} parent=1 // pred_region
      %s64 = ssub.s32 3072, 3072
      %65 = vsyncadd [#allocation10], %s64
      %s66 = sshll.u32 [#allocation11], 4
      %s67 = int_to_ptr.vmem [resolvable:$true] %s66
      %72 = dma.hbm_to_vmem [thread:$0]  %s4, 3072, %s67, [#allocation10], 128, 128, 8
    $region21: #{tpu_custom_call.1} parent=1 // pred_fallthru
      _
    // Predicated region
    $region22: #{tpu_custom_call.1} parent=1 // pred_check
      _
    $region23: #{tpu_custom_call.1} parent=1 // pred_check_branch
      %74 = sbr.rel (0) target = $region25
    $region24: #{tpu_custom_call.1} parent=1 // pred_region
      %s76 = ssub.s32 1024, 1024
      %77 = vsyncadd [#allocation13], %s76
      %s78 = sshll.u32 [#allocation12], 4
      %s79 = int_to_ptr.vmem [resolvable:$true] %s78
      %84 = dma.hbm_to_vmem [thread:$0]  %s5, 1024, %s79, [#allocation13], 128, 128, 8
    $region25: #{tpu_custom_call.1} parent=1 // pred_fallthru
      _
    // Predicated region
    $region26: #{tpu_custom_call.1} parent=1 // pred_check
      _
    $region27: #{tpu_custom_call.1} parent=1 // pred_check_branch
      %86 = sbr.rel (0) target = $region29
    $region28: #{tpu_custom_call.1} parent=1 // pred_region
      %s88 = ssub.s32 2048, 2048
      %89 = vsyncadd [#allocation13], %s88
      %s90 = sshll.u32 [#allocation14], 4
      %s91 = int_to_ptr.vmem [resolvable:$true] %s90
      %96 = dma.hbm_to_vmem [thread:$0]  %s6, 2048, %s91, [#allocation13], 128, 128, 8
    $region29: #{tpu_custom_call.1} parent=1 // pred_fallthru
      _
    // Predicated region
    $region30: #{tpu_custom_call.1} parent=1 // pred_check
      _
    $region31: #{tpu_custom_call.1} parent=1 // pred_check_branch
      %98 = sbr.rel (0) target = $region33
    $region32: #{tpu_custom_call.1} parent=1 // pred_region
      %99 = dma.done [#allocation7], 16
    $region33: #{tpu_custom_call.1} parent=1 // pred_fallthru
      _
    // Predicated region
    $region34: #{tpu_custom_call.1} parent=1 // pred_check
      _
    $region35: #{tpu_custom_call.1} parent=1 // pred_check_branch
      %101 = sbr.rel (0) target = $region37
    $region36: #{tpu_custom_call.1} parent=1 // pred_region
      %102 = dma.done [#allocation5], 2048
    $region37: #{tpu_custom_call.1} parent=1 // pred_fallthru
      _
    // Predicated region
    $region38: #{tpu_custom_call.1} parent=1 // pred_check
      _
    $region39: #{tpu_custom_call.1} parent=1 // pred_check_branch
      %104 = sbr.rel (0) target = $region41
    $region40: #{tpu_custom_call.1} parent=1 // pred_region
      %105 = dma.done [#allocation10], 4096
    $region41: #{tpu_custom_call.1} parent=1 // pred_fallthru
      _
    // Predicated region
    $region42: #{tpu_custom_call.1} parent=1 // pred_check
      _
    $region43: #{tpu_custom_call.1} parent=1 // pred_check_branch
      %107 = sbr.rel (0) target = $region45
    $region44: #{tpu_custom_call.1} parent=1 // pred_region
      %108 = dma.done [#allocation10], 3072
    $region45: #{tpu_custom_call.1} parent=1 // pred_fallthru
      _
    // Predicated region
    $region46: #{tpu_custom_call.1} parent=1 // pred_check
      _
    $region47: #{tpu_custom_call.1} parent=1 // pred_check_branch
      %110 = sbr.rel (0) target = $region49
    $region48: #{tpu_custom_call.1} parent=1 // pred_region
      %111 = dma.done [#allocation13], 1024
    $region49: #{tpu_custom_call.1} parent=1 // pred_fallthru
      _
    // Predicated region
    $region50: #{tpu_custom_call.1} parent=1 // pred_check
      _
    $region51: #{tpu_custom_call.1} parent=1 // pred_check_branch
      %113 = sbr.rel (0) target = $region53
    $region52: #{tpu_custom_call.1} parent=1 // pred_region
      %114 = dma.done [#allocation13], 2048
    $region53: #{tpu_custom_call.1} parent=1 // pred_fallthru
      _
    %115 = sfence
    %116 = vst [vmem:[#allocation2] sm:$0xff] 0.0
    %117 = vst [vmem:[#allocation2 + $0x8] sm:$0xff] 0.0
    %118 = vst [vmem:[#allocation2 + $0x10] sm:$0xff] 0.0
    %119 = vst [vmem:[#allocation2 + $0x20] sm:$0xff] 0.0
    %120 = vst [vmem:[#allocation2 + $0x28] sm:$0xff] 0.0
    %121 = vst [vmem:[#allocation2 + $0x30] sm:$0xff] 0.0
    %122 = vst [vmem:[#allocation2 + $0x40] sm:$0xff] 0.0
    %123 = vst [vmem:[#allocation2 + $0x48] sm:$0xff] 0.0
    %124 = vst [vmem:[#allocation2 + $0x50] sm:$0xff] 0.0
    %125 = vst [vmem:[#allocation2 + $0x60] sm:$0xff] 0.0
    %126 = vst [vmem:[#allocation2 + $0x68] sm:$0xff] 0.0
    %127 = vst [vmem:[#allocation2 + $0x70] sm:$0xff] 0.0
    %128 = vst [vmem:[#allocation2 + $0x80] sm:$0xff] 0.0
    %129 = vst [vmem:[#allocation2 + $0x88] sm:$0xff] 0.0
    %130 = vst [vmem:[#allocation2 + $0x90] sm:$0xff] 0.0
    %131 = vst [vmem:[#allocation2 + $0xa0] sm:$0xff] 0.0
    %132 = vst [vmem:[#allocation2 + $0xa8] sm:$0xff] 0.0
    %133 = vst [vmem:[#allocation2 + $0xb0] sm:$0xff] 0.0
    %134 = vst [vmem:[#allocation2 + $0xc0] sm:$0xff] 0.0
    %135 = vst [vmem:[#allocation2 + $0xc8] sm:$0xff] 0.0
    %136 = vst [vmem:[#allocation2 + $0xd0] sm:$0xff] 0.0
    %137 = vst [vmem:[#allocation2 + $0xe0] sm:$0xff] 0.0
    %138 = vst [vmem:[#allocation2 + $0xe8] sm:$0xff] 0.0
    %139 = vst [vmem:[#allocation2 + $0xf0] sm:$0xff] 0.0
    %140 = vst [vmem:[#allocation2 + $0x100] sm:$0xff] 0.0
    %141 = vst [vmem:[#allocation2 + $0x108] sm:$0xff] 0.0
    %142 = vst [vmem:[#allocation2 + $0x110] sm:$0xff] 0.0
    %143 = vst [vmem:[#allocation2 + $0x120] sm:$0xff] 0.0
    %144 = vst [vmem:[#allocation2 + $0x128] sm:$0xff] 0.0
    %145 = vst [vmem:[#allocation2 + $0x130] sm:$0xff] 0.0
    %146 = vst [vmem:[#allocation2 + $0x140] sm:$0xff] 0.0
    %147 = vst [vmem:[#allocation2 + $0x148] sm:$0xff] 0.0
    %148 = vst [vmem:[#allocation2 + $0x150] sm:$0xff] 0.0
    %149 = vst [vmem:[#allocation2 + $0x160] sm:$0xff] 0.0
    %150 = vst [vmem:[#allocation2 + $0x168] sm:$0xff] 0.0
    %151 = vst [vmem:[#allocation2 + $0x170] sm:$0xff] 0.0
    %v152 = vld [vmem:[#allocation8] sm:$0xff]
    %v153 = vld [vmem:[#allocation8 + $0x8] sm:$0xff]
    %v154 = vld [vmem:[#allocation8 + $0x10] sm:$0xff]
    %v155 = vld [vmem:[#allocation8 + $0x18] sm:$0xff]
    %v156 = vld [vmem:[#allocation8 + $0x20] sm:$0xff]
    %v157 = vld [vmem:[#allocation8 + $0x28] sm:$0xff]
    %v158 = vld [vmem:[#allocation8 + $0x30] sm:$0xff]
    %v159 = vld [vmem:[#allocation8 + $0x38] sm:$0xff]
    %v160 = vld [vmem:[#allocation8 + $0x40] sm:$0xff]
    %v161 = vld [vmem:[#allocation8 + $0x48] sm:$0xff]
    %v162 = vld [vmem:[#allocation8 + $0x50] sm:$0xff]
    %v163 = vld [vmem:[#allocation8 + $0x58] sm:$0xff]
    %v164 = vld [vmem:[#allocation8 + $0x60] sm:$0xff]
    %v165 = vld [vmem:[#allocation8 + $0x68] sm:$0xff]
    %v166 = vld [vmem:[#allocation8 + $0x70] sm:$0xff]
    %v167 = vld [vmem:[#allocation8 + $0x78] sm:$0xff]
    %vm168 = vcmask 130048
    %v169 = vsel %vm168, %v152, 0.0
    %v170 = vsel %vm168, %v154, 0.0
    %v171 = vadd.f32 %v169, %v170
    %v172 = vsel %vm168, %v156, 0.0
    %v173 = vadd.f32 %v171, %v172
    %v174 = vsel %vm168, %v158, 0.0
    %v175 = vadd.f32 %v173, %v174
    %v176 = vsel %vm168, %v153, 0.0
    %v177 = vsel %vm168, %v155, 0.0
    %v178 = vadd.f32 %v176, %v177
    %v179 = vsel %vm168, %v157, 0.0
    %v180 = vadd.f32 %v178, %v179
    %v181 = vsel %vm168, %v159, 0.0
    %v182 = vadd.f32 %v180, %v181
    %v183 = vsel %vm168, %v160, 0.0
    %v184 = vsel %vm168, %v162, 0.0
    %v185 = vadd.f32 %v183, %v184
    %v186 = vsel %vm168, %v164, 0.0
    %v187 = vadd.f32 %v185, %v186
    %v188 = vsel %vm168, %v166, 0.0
    %v189 = vadd.f32 %v187, %v188
    %v190 = vsel %vm168, %v161, 0.0
    %v191 = vsel %vm168, %v163, 0.0
    %v192 = vadd.f32 %v190, %v191
    %v193 = vsel %vm168, %v165, 0.0
    %v194 = vadd.f32 %v192, %v193
    %v195 = vsel %vm168, %v167, 0.0
    %v196 = vadd.f32 %v194, %v195
    %v197 = vrcp.pop 4.0
    %v198 = vmul.f32 %v175, %v197
    %v199 = vmul.f32 %v182, %v197
    %v200 = vmul.f32 %v189, %v197
    %v201 = vmul.f32 %v196, %v197
    %v202 = vsel %vm168, %v152, -inf
    %v203 = vsel %vm168, %v154, -inf
    %v204 = vmax.f32 %v202, %v203
    %v205 = vsel %vm168, %v156, -inf
    %v206 = vmax.f32 %v204, %v205
    %v207 = vsel %vm168, %v158, -inf
    %v208 = vmax.f32 %v206, %v207
    %v209 = vsel %vm168, %v153, -inf
    %v210 = vsel %vm168, %v155, -inf
    %v211 = vmax.f32 %v209, %v210
    %v212 = vsel %vm168, %v157, -inf
    %v213 = vmax.f32 %v211, %v212
    %v214 = vsel %vm168, %v159, -inf
    %v215 = vmax.f32 %v213, %v214
    %v216 = vsel %vm168, %v160, -inf
    %v217 = vsel %vm168, %v162, -inf
    %v218 = vmax.f32 %v216, %v217
    %v219 = vsel %vm168, %v164, -inf
    %v220 = vmax.f32 %v218, %v219
    %v221 = vsel %vm168, %v166, -inf
    %v222 = vmax.f32 %v220, %v221
    %v223 = vsel %vm168, %v161, -inf
    %v224 = vsel %vm168, %v163, -inf
    %v225 = vmax.f32 %v223, %v224
    %v226 = vsel %vm168, %v165, -inf
    %v227 = vmax.f32 %v225, %v226
    %v228 = vsel %vm168, %v167, -inf
    %v229 = vmax.f32 %v227, %v228
    %232 = vrot.lane.b32.xlu0 %v198, 9
    %v233 = vpop.permute.xlu0 %232
    %234 = vrot.lane.b32.xlu0 %v199, 9
    %v235 = vpop.permute.xlu0 %234
    %vm238 = vcmask 203848
    %239 = vst.msk [vmem:[#allocation2 + $0x40] sm:$0xff] %vm238, %v233
    %240 = vst.msk [vmem:[#allocation2 + $0x60] sm:$0xff] %vm238, %v235
    %243 = vrot.lane.b32.xlu0 %v208, 9
    %v244 = vpop.permute.xlu0 %243
    %245 = vrot.lane.b32.xlu0 %v215, 9
    %v246 = vpop.permute.xlu0 %245
    %s249 = scalar_lea.vmem [#allocation2], 192
    %250 = vst.msk [vmem:[%s249 + $0x40] sm:$0xff] %vm238, %v244
    %251 = vst.msk [vmem:[%s249 + $0x60] sm:$0xff] %vm238, %v246
    %254 = vrot.lane.b32.xlu0 %v200, 43
    %v255 = vpop.permute.xlu0 %254
    %256 = vrot.lane.b32.xlu0 %v201, 43
    %v257 = vpop.permute.xlu0 %256
    %vm260 = vcmask 482648
    %261 = vst.msk [vmem:[#allocation2 + $0x40] sm:$0xff] %vm260, %v255
    %262 = vst.msk [vmem:[#allocation2 + $0x60] sm:$0xff] %vm260, %v257
    %265 = vrot.lane.b32.xlu0 %v222, 43
    %v266 = vpop.permute.xlu0 %265
    %267 = vrot.lane.b32.xlu0 %v229, 43
    %v268 = vpop.permute.xlu0 %267
    %271 = vst.msk [vmem:[%s249 + $0x40] sm:$0xff] %vm260, %v266
    %272 = vst.msk [vmem:[%s249 + $0x60] sm:$0xff] %vm260, %v268
    %v273 = vld [vmem:[#allocation9] sm:$0xff]
    %v274 = vld [vmem:[#allocation9 + $0x8] sm:$0xff]
    %v275 = vld [vmem:[#allocation9 + $0x10] sm:$0xff]
    %v276 = vld [vmem:[#allocation9 + $0x18] sm:$0xff]
    %v277 = vld [vmem:[#allocation9 + $0x20] sm:$0xff]
    %v278 = vld [vmem:[#allocation9 + $0x28] sm:$0xff]
    %v279 = vld [vmem:[#allocation9 + $0x30] sm:$0xff]
    %v280 = vld [vmem:[#allocation9 + $0x38] sm:$0xff]
    %v281 = vld [vmem:[#allocation9 + $0x40] sm:$0xff]
    %v282 = vld [vmem:[#allocation9 + $0x48] sm:$0xff]
    %v283 = vld [vmem:[#allocation9 + $0x50] sm:$0xff]
    %v284 = vld [vmem:[#allocation9 + $0x58] sm:$0xff]
    %v285 = vld [vmem:[#allocation9 + $0x60] sm:$0xff]
    %v286 = vld [vmem:[#allocation9 + $0x68] sm:$0xff]
    %v287 = vld [vmem:[#allocation9 + $0x70] sm:$0xff]
    %v288 = vld [vmem:[#allocation9 + $0x78] sm:$0xff]
    %v289 = vld [vmem:[#allocation9 + $0x80] sm:$0xff]
    %v290 = vld [vmem:[#allocation9 + $0x88] sm:$0xff]
    %v291 = vld [vmem:[#allocation9 + $0x90] sm:$0xff]
    %v292 = vld [vmem:[#allocation9 + $0x98] sm:$0xff]
    %v293 = vld [vmem:[#allocation9 + $0xa0] sm:$0xff]
    %v294 = vld [vmem:[#allocation9 + $0xa8] sm:$0xff]
    %v295 = vld [vmem:[#allocation9 + $0xb0] sm:$0xff]
    %v296 = vld [vmem:[#allocation9 + $0xb8] sm:$0xff]
    %v297 = vld [vmem:[#allocation9 + $0xc0] sm:$0xff]
    %v298 = vld [vmem:[#allocation9 + $0xc8] sm:$0xff]
    %v299 = vld [vmem:[#allocation9 + $0xd0] sm:$0xff]
    %v300 = vld [vmem:[#allocation9 + $0xd8] sm:$0xff]
    %v301 = vld [vmem:[#allocation9 + $0xe0] sm:$0xff]
    %v302 = vld [vmem:[#allocation9 + $0xe8] sm:$0xff]
    %v303 = vld [vmem:[#allocation9 + $0xf0] sm:$0xff]
    %v304 = vld [vmem:[#allocation9 + $0xf8] sm:$0xff]
    %v305 = vsel %vm168, %v273, 0.0
    %v306 = vsel %vm168, %v275, 0.0
    %v307 = vadd.f32 %v305, %v306
    %v308 = vsel %vm168, %v277, 0.0
    %v309 = vadd.f32 %v307, %v308
    %v310 = vsel %vm168, %v279, 0.0
    %v311 = vadd.f32 %v309, %v310
    %v312 = vsel %vm168, %v281, 0.0
    %v313 = vadd.f32 %v311, %v312
    %v314 = vsel %vm168, %v283, 0.0
    %v315 = vadd.f32 %v313, %v314
    %v316 = vsel %vm168, %v285, 0.0
    %v317 = vadd.f32 %v315, %v316
    %v318 = vsel %vm168, %v287, 0.0
    %v319 = vadd.f32 %v317, %v318
    %v320 = vsel %vm168, %v274, 0.0
    %v321 = vsel %vm168, %v276, 0.0
    %v322 = vadd.f32 %v320, %v321
    %v323 = vsel %vm168, %v278, 0.0
    %v324 = vadd.f32 %v322, %v323
    %v325 = vsel %vm168, %v280, 0.0
    %v326 = vadd.f32 %v324, %v325
    %v327 = vsel %vm168, %v282, 0.0
    %v328 = vadd.f32 %v326, %v327
    %v329 = vsel %vm168, %v284, 0.0
    %v330 = vadd.f32 %v328, %v329
    %v331 = vsel %vm168, %v286, 0.0
    %v332 = vadd.f32 %v330, %v331
    %v333 = vsel %vm168, %v288, 0.0
    %v334 = vadd.f32 %v332, %v333
    %v335 = vsel %vm168, %v289, 0.0
    %v336 = vsel %vm168, %v291, 0.0
    %v337 = vadd.f32 %v335, %v336
    %v338 = vsel %vm168, %v293, 0.0
    %v339 = vadd.f32 %v337, %v338
    %v340 = vsel %vm168, %v295, 0.0
    %v341 = vadd.f32 %v339, %v340
    %v342 = vsel %vm168, %v297, 0.0
    %v343 = vadd.f32 %v341, %v342
    %v344 = vsel %vm168, %v299, 0.0
    %v345 = vadd.f32 %v343, %v344
    %v346 = vsel %vm168, %v301, 0.0
    %v347 = vadd.f32 %v345, %v346
    %v348 = vsel %vm168, %v303, 0.0
    %v349 = vadd.f32 %v347, %v348
    %v350 = vsel %vm168, %v290, 0.0
    %v351 = vsel %vm168, %v292, 0.0
    %v352 = vadd.f32 %v350, %v351
    %v353 = vsel %vm168, %v294, 0.0
    %v354 = vadd.f32 %v352, %v353
    %v355 = vsel %vm168, %v296, 0.0
    %v356 = vadd.f32 %v354, %v355
    %v357 = vsel %vm168, %v298, 0.0
    %v358 = vadd.f32 %v356, %v357
    %v359 = vsel %vm168, %v300, 0.0
    %v360 = vadd.f32 %v358, %v359
    %v361 = vsel %vm168, %v302, 0.0
    %v362 = vadd.f32 %v360, %v361
    %v363 = vsel %vm168, %v304, 0.0
    %v364 = vadd.f32 %v362, %v363
    %v365 = vrcp.pop 8.0
    %v366 = vmul.f32 %v319, %v365
    %v367 = vmul.f32 %v334, %v365
    %v368 = vmul.f32 %v349, %v365
    %v369 = vmul.f32 %v364, %v365
    %v370 = vsel %vm168, %v273, -inf
    %v371 = vsel %vm168, %v275, -inf
    %v372 = vmax.f32 %v370, %v371
    %v373 = vsel %vm168, %v277, -inf
    %v374 = vmax.f32 %v372, %v373
    %v375 = vsel %vm168, %v279, -inf
    %v376 = vmax.f32 %v374, %v375
    %v377 = vsel %vm168, %v281, -inf
    %v378 = vmax.f32 %v376, %v377
    %v379 = vsel %vm168, %v283, -inf
    %v380 = vmax.f32 %v378, %v379
    %v381 = vsel %vm168, %v285, -inf
    %v382 = vmax.f32 %v380, %v381
    %v383 = vsel %vm168, %v287, -inf
    %v384 = vmax.f32 %v382, %v383
    %v385 = vsel %vm168, %v274, -inf
    %v386 = vsel %vm168, %v276, -inf
    %v387 = vmax.f32 %v385, %v386
    %v388 = vsel %vm168, %v278, -inf
    %v389 = vmax.f32 %v387, %v388
    %v390 = vsel %vm168, %v280, -inf
    %v391 = vmax.f32 %v389, %v390
    %v392 = vsel %vm168, %v282, -inf
    %v393 = vmax.f32 %v391, %v392
    %v394 = vsel %vm168, %v284, -inf
    %v395 = vmax.f32 %v393, %v394
    %v396 = vsel %vm168, %v286, -inf
    %v397 = vmax.f32 %v395, %v396
    %v398 = vsel %vm168, %v288, -inf
    %v399 = vmax.f32 %v397, %v398
    %v400 = vsel %vm168, %v289, -inf
    %v401 = vsel %vm168, %v291, -inf
    %v402 = vmax.f32 %v400, %v401
    %v403 = vsel %vm168, %v293, -inf
    %v404 = vmax.f32 %v402, %v403
    %v405 = vsel %vm168, %v295, -inf
    %v406 = vmax.f32 %v404, %v405
    %v407 = vsel %vm168, %v297, -inf
    %v408 = vmax.f32 %v406, %v407
    %v409 = vsel %vm168, %v299, -inf
    %v410 = vmax.f32 %v408, %v409
    %v411 = vsel %vm168, %v301, -inf
    %v412 = vmax.f32 %v410, %v411
    %v413 = vsel %vm168, %v303, -inf
    %v414 = vmax.f32 %v412, %v413
    %v415 = vsel %vm168, %v290, -inf
    %v416 = vsel %vm168, %v292, -inf
    %v417 = vmax.f32 %v415, %v416
    %v418 = vsel %vm168, %v294, -inf
    %v419 = vmax.f32 %v417, %v418
    %v420 = vsel %vm168, %v296, -inf
    %v421 = vmax.f32 %v419, %v420
    %v422 = vsel %vm168, %v298, -inf
    %v423 = vmax.f32 %v421, %v422
    %v424 = vsel %vm168, %v300, -inf
    %v425 = vmax.f32 %v423, %v424
    %v426 = vsel %vm168, %v302, -inf
    %v427 = vmax.f32 %v425, %v426
    %v428 = vsel %vm168, %v304, -inf
    %v429 = vmax.f32 %v427, %v428
    %432 = vrot.lane.b32.xlu0 %v366, 77
    %v433 = vpop.permute.xlu0 %432
    %434 = vrot.lane.b32.xlu0 %v367, 77
    %v435 = vpop.permute.xlu0 %434
    %vm438 = vcmask 761448
    %439 = vst.msk [vmem:[#allocation2 + $0x40] sm:$0xff] %vm438, %v433
    %440 = vst.msk [vmem:[#allocation2 + $0x60] sm:$0xff] %vm438, %v435
    %443 = vrot.lane.b32.xlu0 %v384, 77
    %v444 = vpop.permute.xlu0 %443
    %445 = vrot.lane.b32.xlu0 %v399, 77
    %v446 = vpop.permute.xlu0 %445
    %449 = vst.msk [vmem:[%s249 + $0x40] sm:$0xff] %vm438, %v444
    %450 = vst.msk [vmem:[%s249 + $0x60] sm:$0xff] %vm438, %v446
    %453 = vrot.lane.b32.xlu0 %v368, 111
    %v454 = vpop.permute.xlu0 %453
    %455 = vrot.lane.b32.xlu0 %v369, 111
    %v456 = vpop.permute.xlu0 %455
    %vm459 = vcmask 1040248
    %460 = vst.msk [vmem:[#allocation2 + $0x40] sm:$0xff] %vm459, %v454
    %461 = vst.msk [vmem:[#allocation2 + $0x60] sm:$0xff] %vm459, %v456
    %464 = vrot.lane.b32.xlu0 %v414, 111
    %v465 = vpop.permute.xlu0 %464
    %466 = vrot.lane.b32.xlu0 %v429, 111
    %v467 = vpop.permute.xlu0 %466
    %470 = vst.msk [vmem:[%s249 + $0x40] sm:$0xff] %vm459, %v465
    %471 = vst.msk [vmem:[%s249 + $0x60] sm:$0xff] %vm459, %v467
    %v472 = vld [vmem:[#allocation11] sm:$0xff]
    %v473 = vld [vmem:[#allocation11 + $0x8] sm:$0xff]
    %v474 = vld [vmem:[#allocation11 + $0x10] sm:$0xff]
    %v475 = vld [vmem:[#allocation11 + $0x18] sm:$0xff]
    %v476 = vld [vmem:[#allocation11 + $0x20] sm:$0xff]
    %v477 = vld [vmem:[#allocation11 + $0x28] sm:$0xff]
    %v478 = vld [vmem:[#allocation11 + $0x30] sm:$0xff]
    %v479 = vld [vmem:[#allocation11 + $0x38] sm:$0xff]
    %v480 = vld [vmem:[#allocation11 + $0x40] sm:$0xff]
    %v481 = vld [vmem:[#allocation11 + $0x48] sm:$0xff]
    %v482 = vld [vmem:[#allocation11 + $0x50] sm:$0xff]
    %v483 = vld [vmem:[#allocation11 + $0x58] sm:$0xff]
    %v484 = vld [vmem:[#allocation11 + $0x60] sm:$0xff]
    %v485 = vld [vmem:[#allocation11 + $0x68] sm:$0xff]
    %v486 = vld [vmem:[#allocation11 + $0x70] sm:$0xff]
    %v487 = vld [vmem:[#allocation11 + $0x78] sm:$0xff]
    %v488 = vld [vmem:[#allocation11 + $0x80] sm:$0xff]
    %v489 = vld [vmem:[#allocation11 + $0x88] sm:$0xff]
    %v490 = vld [vmem:[#allocation11 + $0x90] sm:$0xff]
    %v491 = vld [vmem:[#allocation11 + $0x98] sm:$0xff]
    %v492 = vld [vmem:[#allocation11 + $0xa0] sm:$0xff]
    %v493 = vld [vmem:[#allocation11 + $0xa8] sm:$0xff]
    %v494 = vld [vmem:[#allocation11 + $0xb0] sm:$0xff]
    %v495 = vld [vmem:[#allocation11 + $0xb8] sm:$0xff]
    %v496 = vsel %vm168, %v472, 0.0
    %v497 = vsel %vm168, %v474, 0.0
    %v498 = vadd.f32 %v496, %v497
    %v499 = vsel %vm168, %v476, 0.0
    %v500 = vadd.f32 %v498, %v499
    %v501 = vsel %vm168, %v478, 0.0
    %v502 = vadd.f32 %v500, %v501
    %v503 = vsel %vm168, %v480, 0.0
    %v504 = vadd.f32 %v502, %v503
    %v505 = vsel %vm168, %v482, 0.0
    %v506 = vadd.f32 %v504, %v505
    %v507 = vsel %vm168, %v473, 0.0
    %v508 = vsel %vm168, %v475, 0.0
    %v509 = vadd.f32 %v507, %v508
    %v510 = vsel %vm168, %v477, 0.0
    %v511 = vadd.f32 %v509, %v510
    %v512 = vsel %vm168, %v479, 0.0
    %v513 = vadd.f32 %v511, %v512
    %v514 = vsel %vm168, %v481, 0.0
    %v515 = vadd.f32 %v513, %v514
    %v516 = vsel %vm168, %v483, 0.0
    %v517 = vadd.f32 %v515, %v516
    %v518 = vsel %vm168, %v484, 0.0
    %v519 = vsel %vm168, %v486, 0.0
    %v520 = vadd.f32 %v518, %v519
    %v521 = vsel %vm168, %v488, 0.0
    %v522 = vadd.f32 %v520, %v521
    %v523 = vsel %vm168, %v490, 0.0
    %v524 = vadd.f32 %v522, %v523
    %v525 = vsel %vm168, %v492, 0.0
    %v526 = vadd.f32 %v524, %v525
    %v527 = vsel %vm168, %v494, 0.0
    %v528 = vadd.f32 %v526, %v527
    %v529 = vsel %vm168, %v485, 0.0
    %v530 = vsel %vm168, %v487, 0.0
    %v531 = vadd.f32 %v529, %v530
    %v532 = vsel %vm168, %v489, 0.0
    %v533 = vadd.f32 %v531, %v532
    %v534 = vsel %vm168, %v491, 0.0
    %v535 = vadd.f32 %v533, %v534
    %v536 = vsel %vm168, %v493, 0.0
    %v537 = vadd.f32 %v535, %v536
    %v538 = vsel %vm168, %v495, 0.0
    %v539 = vadd.f32 %v537, %v538
    %v540 = vrcp.pop 6.0
    %v541 = vmul.f32 %v506, %v540
    %v542 = vmul.f32 %v517, %v540
    %v543 = vmul.f32 %v528, %v540
    %v544 = vmul.f32 %v539, %v540
    %v545 = vsel %vm168, %v472, -inf
    %v546 = vsel %vm168, %v474, -inf
    %v547 = vmax.f32 %v545, %v546
    %v548 = vsel %vm168, %v476, -inf
    %v549 = vmax.f32 %v547, %v548
    %v550 = vsel %vm168, %v478, -inf
    %v551 = vmax.f32 %v549, %v550
    %v552 = vsel %vm168, %v480, -inf
    %v553 = vmax.f32 %v551, %v552
    %v554 = vsel %vm168, %v482, -inf
    %v555 = vmax.f32 %v553, %v554
    %v556 = vsel %vm168, %v473, -inf
    %v557 = vsel %vm168, %v475, -inf
    %v558 = vmax.f32 %v556, %v557
    %v559 = vsel %vm168, %v477, -inf
    %v560 = vmax.f32 %v558, %v559
    %v561 = vsel %vm168, %v479, -inf
    %v562 = vmax.f32 %v560, %v561
    %v563 = vsel %vm168, %v481, -inf
    %v564 = vmax.f32 %v562, %v563
    %v565 = vsel %vm168, %v483, -inf
    %v566 = vmax.f32 %v564, %v565
    %v567 = vsel %vm168, %v484, -inf
    %v568 = vsel %vm168, %v486, -inf
    %v569 = vmax.f32 %v567, %v568
    %v570 = vsel %vm168, %v488, -inf
    %v571 = vmax.f32 %v569, %v570
    %v572 = vsel %vm168, %v490, -inf
    %v573 = vmax.f32 %v571, %v572
    %v574 = vsel %vm168, %v492, -inf
    %v575 = vmax.f32 %v573, %v574
    %v576 = vsel %vm168, %v494, -inf
    %v577 = vmax.f32 %v575, %v576
    %v578 = vsel %vm168, %v485, -inf
    %v579 = vsel %vm168, %v487, -inf
    %v580 = vmax.f32 %v578, %v579
    %v581 = vsel %vm168, %v489, -inf
    %v582 = vmax.f32 %v580, %v581
    %v583 = vsel %vm168, %v491, -inf
    %v584 = vmax.f32 %v582, %v583
    %v585 = vsel %vm168, %v493, -inf
    %v586 = vmax.f32 %v584, %v585
    %v587 = vsel %vm168, %v495, -inf
    %v588 = vmax.f32 %v586, %v587
    %591 = vrot.lane.b32.xlu0 %v541, 17
    %v592 = vpop.permute.xlu0 %591
    %593 = vrot.lane.b32.xlu0 %v542, 17
    %v594 = vpop.permute.xlu0 %593
    %vm597 = vcmask 269448
    %598 = vst.msk [vmem:[#allocation2 + $0x48] sm:$0xff] %vm597, %v592
    %599 = vst.msk [vmem:[#allocation2 + $0x68] sm:$0xff] %vm597, %v594
    %602 = vrot.lane.b32.xlu0 %v555, 17
    %v603 = vpop.permute.xlu0 %602
    %604 = vrot.lane.b32.xlu0 %v566, 17
    %v605 = vpop.permute.xlu0 %604
    %608 = vst.msk [vmem:[%s249 + $0x48] sm:$0xff] %vm597, %v603
    %609 = vst.msk [vmem:[%s249 + $0x68] sm:$0xff] %vm597, %v605
    %612 = vrot.lane.b32.xlu0 %v543, 51
    %v613 = vpop.permute.xlu0 %612
    %614 = vrot.lane.b32.xlu0 %v544, 51
    %v615 = vpop.permute.xlu0 %614
    %vm618 = vcmask 548248
    %619 = vst.msk [vmem:[#allocation2 + $0x48] sm:$0xff] %vm618, %v613
    %620 = vst.msk [vmem:[#allocation2 + $0x68] sm:$0xff] %vm618, %v615
    %623 = vrot.lane.b32.xlu0 %v577, 51
    %v624 = vpop.permute.xlu0 %623
    %625 = vrot.lane.b32.xlu0 %v588, 51
    %v626 = vpop.permute.xlu0 %625
    %629 = vst.msk [vmem:[%s249 + $0x48] sm:$0xff] %vm618, %v624
    %630 = vst.msk [vmem:[%s249 + $0x68] sm:$0xff] %vm618, %v626
    %v631 = vld [vmem:[#allocation12] sm:$0xff]
    %v632 = vld [vmem:[#allocation12 + $0x8] sm:$0xff]
    %v633 = vld [vmem:[#allocation12 + $0x10] sm:$0xff]
    %v634 = vld [vmem:[#allocation12 + $0x18] sm:$0xff]
    %v635 = vld [vmem:[#allocation12 + $0x20] sm:$0xff]
    %v636 = vld [vmem:[#allocation12 + $0x28] sm:$0xff]
    %v637 = vld [vmem:[#allocation12 + $0x30] sm:$0xff]
    %v638 = vld [vmem:[#allocation12 + $0x38] sm:$0xff]
    %vm639 = vcmask 64512
    %v640 = vsel %vm639, %v631, 0.0
    %v641 = vsel %vm639, %v632, 0.0
    %v642 = vadd.f32 %v640, %v641
    %v643 = vsel %vm639, %v633, 0.0
    %v644 = vadd.f32 %v642, %v643
    %v645 = vsel %vm639, %v634, 0.0
    %v646 = vadd.f32 %v644, %v645
    %v647 = vsel %vm639, %v635, 0.0
    %v648 = vsel %vm639, %v636, 0.0
    %v649 = vadd.f32 %v647, %v648
    %v650 = vsel %vm639, %v637, 0.0
    %v651 = vadd.f32 %v649, %v650
    %v652 = vsel %vm639, %v638, 0.0
    %v653 = vadd.f32 %v651, %v652
    %v654 = vmul.f32 %v646, %v197
    %v655 = vmul.f32 %v653, %v197
    %v656 = vsel %vm639, %v631, -inf
    %v657 = vsel %vm639, %v632, -inf
    %v658 = vsel %vm639, %v633, -inf
    %v659 = vmax.f32 %v656, %v658
    %v660 = vsel %vm639, %v634, -inf
    %v661 = vmax.f32 %v657, %v660
    %v662 = vmax.f32 %v659, %v661
    %v663 = vsel %vm639, %v635, -inf
    %v664 = vsel %vm639, %v636, -inf
    %v665 = vsel %vm639, %v637, -inf
    %v666 = vmax.f32 %v663, %v665
    %v667 = vsel %vm639, %v638, -inf
    %v668 = vmax.f32 %v664, %v667
    %v669 = vmax.f32 %v666, %v668
    %671 = vrot.lane.b32.xlu0 %v654, 85
    %v672 = vpop.permute.xlu0 %671
    %vm674 = vcmask 761512
    %675 = vst.msk [vmem:[#allocation2 + $0x48] sm:$0xff] %vm674, %v672
    %677 = vrot.lane.b32.xlu0 %v662, 85
    %v678 = vpop.permute.xlu0 %677
    %680 = vst.msk [vmem:[%s249 + $0x48] sm:$0xff] %vm674, %v678
    %682 = vrot.lane.b32.xlu0 %v655, 111
    %v683 = vpop.permute.xlu0 %682
    %vm685 = vcmask 974712
    %686 = vst.msk [vmem:[#allocation2 + $0x48] sm:$0xff] %vm685, %v683
    %688 = vrot.lane.b32.xlu0 %v669, 111
    %v689 = vpop.permute.xlu0 %688
    %691 = vst.msk [vmem:[%s249 + $0x48] sm:$0xff] %vm685, %v689
    %v692 = vld [vmem:[#allocation14] sm:$0xff]
    %v693 = vld [vmem:[#allocation14 + $0x8] sm:$0xff]
    %v694 = vld [vmem:[#allocation14 + $0x10] sm:$0xff]
    %v695 = vld [vmem:[#allocation14 + $0x18] sm:$0xff]
    %v696 = vld [vmem:[#allocation14 + $0x20] sm:$0xff]
    %v697 = vld [vmem:[#allocation14 + $0x28] sm:$0xff]
    %v698 = vld [vmem:[#allocation14 + $0x30] sm:$0xff]
    %v699 = vld [vmem:[#allocation14 + $0x38] sm:$0xff]
    %v700 = vld [vmem:[#allocation14 + $0x40] sm:$0xff]
    %v701 = vld [vmem:[#allocation14 + $0x48] sm:$0xff]
    %v702 = vld [vmem:[#allocation14 + $0x50] sm:$0xff]
    %v703 = vld [vmem:[#allocation14 + $0x58] sm:$0xff]
    %v704 = vld [vmem:[#allocation14 + $0x60] sm:$0xff]
    %v705 = vld [vmem:[#allocation14 + $0x68] sm:$0xff]
    %v706 = vld [vmem:[#allocation14 + $0x70] sm:$0xff]
    %v707 = vld [vmem:[#allocation14 + $0x78] sm:$0xff]
    %v708 = vsel %vm639, %v692, 0.0
    %v709 = vsel %vm639, %v693, 0.0
    %v710 = vadd.f32 %v708, %v709
    %v711 = vsel %vm639, %v694, 0.0
    %v712 = vadd.f32 %v710, %v711
    %v713 = vsel %vm639, %v695, 0.0
    %v714 = vadd.f32 %v712, %v713
    %v715 = vsel %vm639, %v696, 0.0
    %v716 = vadd.f32 %v714, %v715
    %v717 = vsel %vm639, %v697, 0.0
    %v718 = vadd.f32 %v716, %v717
    %v719 = vsel %vm639, %v698, 0.0
    %v720 = vadd.f32 %v718, %v719
    %v721 = vsel %vm639, %v699, 0.0
    %v722 = vadd.f32 %v720, %v721
    %v723 = vsel %vm639, %v700, 0.0
    %v724 = vsel %vm639, %v701, 0.0
    %v725 = vadd.f32 %v723, %v724
    %v726 = vsel %vm639, %v702, 0.0
    %v727 = vadd.f32 %v725, %v726
    %v728 = vsel %vm639, %v703, 0.0
    %v729 = vadd.f32 %v727, %v728
    %v730 = vsel %vm639, %v704, 0.0
    %v731 = vadd.f32 %v729, %v730
    %v732 = vsel %vm639, %v705, 0.0
    %v733 = vadd.f32 %v731, %v732
    %v734 = vsel %vm639, %v706, 0.0
    %v735 = vadd.f32 %v733, %v734
    %v736 = vsel %vm639, %v707, 0.0
    %v737 = vadd.f32 %v735, %v736
    %v738 = vmul.f32 %v722, %v365
    %v739 = vmul.f32 %v737, %v365
    %v740 = vsel %vm639, %v692, -inf
    %v741 = vsel %vm639, %v693, -inf
    %v742 = vsel %vm639, %v694, -inf
    %v743 = vmax.f32 %v740, %v742
    %v744 = vsel %vm639, %v695, -inf
    %v745 = vmax.f32 %v741, %v744
    %v746 = vsel %vm639, %v696, -inf
    %v747 = vmax.f32 %v743, %v746
    %v748 = vsel %vm639, %v697, -inf
    %v749 = vmax.f32 %v745, %v748
    %v750 = vsel %vm639, %v698, -inf
    %v751 = vmax.f32 %v747, %v750
    %v752 = vsel %vm639, %v699, -inf
    %v753 = vmax.f32 %v749, %v752
    %v754 = vmax.f32 %v751, %v753
    %v755 = vsel %vm639, %v700, -inf
    %v756 = vsel %vm639, %v701, -inf
    %v757 = vsel %vm639, %v702, -inf
    %v758 = vmax.f32 %v755, %v757
    %v759 = vsel %vm639, %v703, -inf
    %v760 = vmax.f32 %v756, %v759
    %v761 = vsel %vm639, %v704, -inf
    %v762 = vmax.f32 %v758, %v761
    %v763 = vsel %vm639, %v705, -inf
    %v764 = vmax.f32 %v760, %v763
    %v765 = vsel %vm639, %v706, -inf
    %v766 = vmax.f32 %v762, %v765
    %v767 = vsel %vm639, %v707, -inf
    %v768 = vmax.f32 %v764, %v767
    %v769 = vmax.f32 %v766, %v768
    %771 = vrot.lane.b32.xlu0 %v738, 9
    %v772 = vpop.permute.xlu0 %771
    %vm774 = vcmask 138312
    %775 = vst.msk [vmem:[#allocation2 + $0x50] sm:$0xff] %vm774, %v772
    %777 = vrot.lane.b32.xlu0 %v754, 9
    %v778 = vpop.permute.xlu0 %777
    %780 = vst.msk [vmem:[%s249 + $0x50] sm:$0xff] %vm774, %v778
    %782 = vrot.lane.b32.xlu0 %v739, 35
    %v783 = vpop.permute.xlu0 %782
    %vm785 = vcmask 351512
    %786 = vst.msk [vmem:[#allocation2 + $0x50] sm:$0xff] %vm785, %v783
    %788 = vrot.lane.b32.xlu0 %v769, 35
    %v789 = vpop.permute.xlu0 %788
    %791 = vst.msk [vmem:[%s249 + $0x50] sm:$0xff] %vm785, %v789
    %v792 = vld [vmem:[#allocation2] sm:$0xff]
    %v793 = vld [vmem:[#allocation2 + $0x8] sm:$0xff]
    %v794 = vld [vmem:[#allocation2 + $0x10] sm:$0xff]
    %v795 = vld [vmem:[#allocation2 + $0x20] sm:$0xff]
    %v796 = vld [vmem:[#allocation2 + $0x28] sm:$0xff]
    %v797 = vld [vmem:[#allocation2 + $0x30] sm:$0xff]
    %v798 = vld [vmem:[#allocation2 + $0x40] sm:$0xff]
    %v799 = vld [vmem:[#allocation2 + $0x48] sm:$0xff]
    %v800 = vld [vmem:[#allocation2 + $0x50] sm:$0xff]
    %v801 = vld [vmem:[#allocation2 + $0x60] sm:$0xff]
    %v802 = vld [vmem:[#allocation2 + $0x68] sm:$0xff]
    %v803 = vld [vmem:[#allocation2 + $0x70] sm:$0xff]
    %v804 = vld [vmem:[#allocation2 + $0x80] sm:$0xff]
    %v805 = vld [vmem:[#allocation2 + $0x88] sm:$0xff]
    %v806 = vld [vmem:[#allocation2 + $0x90] sm:$0xff]
    %v807 = vld [vmem:[#allocation2 + $0xa0] sm:$0xff]
    %v808 = vld [vmem:[#allocation2 + $0xa8] sm:$0xff]
    %s809 = sld [smem:[#allocation4]]
    %v810 = vstv %s809
    %v811 = vmul.f32 %v810, %v792
    %v812 = vmul.f32 %v810, %v793
    %v813 = vmul.f32 %v810, %v794
    %v814 = vmul.f32 %v810, %v795
    %v815 = vmul.f32 %v810, %v796
    %v816 = vmul.f32 %v810, %v797
    %v817 = vmul.f32 %v810, %v798
    %v818 = vmul.f32 %v810, %v799
    %s819 = sld [smem:[#allocation4 + $0x7]]
    %v820 = vstv %s819
    %v821 = vmul.f32 %v820, %v795
    %v822 = vmul.f32 %v820, %v796
    %v823 = vmul.f32 %v820, %v797
    %v824 = vmul.f32 %v820, %v798
    %v825 = vmul.f32 %v820, %v799
    %v826 = vmul.f32 %v820, %v800
    %v827 = vmul.f32 %v820, %v801
    %v828 = vmul.f32 %v820, %v802
    %s829 = sld [smem:[#allocation4 + $0xe]]
    %v830 = vstv %s829
    %v831 = vmul.f32 %v830, %v795
    %v832 = vmul.f32 %v830, %v796
    %v833 = vmul.f32 %v830, %v797
    %v834 = vmul.f32 %v830, %v798
    %v835 = vmul.f32 %v830, %v799
    %v836 = vmul.f32 %v830, %v800
    %v837 = vmul.f32 %v830, %v801
    %v838 = vmul.f32 %v830, %v802
    %vm847 = vcmask 1041408
    %v848 = vrot.slane %v831, 6
    %v849 = vrot.slane %v832, 6
    %v850 = vrot.slane %v833, 6
    %v851 = vrot.slane %v834, 6
    %v852 = vsel %vm847, %v848, %v851
    %v853 = vrot.slane %v835, 6
    %v854 = vsel %vm847, %v849, %v853
    %v855 = vrot.slane %v836, 6
    %v856 = vsel %vm847, %v850, %v855
    %v857 = vrot.slane %v837, 6
    %v858 = vsel %vm847, %v851, %v857
    %v859 = vrot.slane %v838, 6
    %v860 = vsel %vm847, %v853, %v859
    %v869 = vadd.f32 %v811, %v848
    %v870 = vadd.f32 %v812, %v849
    %v871 = vadd.f32 %v813, %v850
    %v872 = vadd.f32 %v814, %v852
    %v873 = vadd.f32 %v815, %v854
    %v874 = vadd.f32 %v816, %v856
    %v875 = vadd.f32 %v817, %v858
    %v876 = vadd.f32 %v818, %v860
    %s877 = sld [smem:[#allocation4 + $0x15]]
    %v878 = vstv %s877
    %v879 = vmul.f32 %v878, %v798
    %v880 = vmul.f32 %v878, %v799
    %v881 = vmul.f32 %v878, %v800
    %v882 = vmul.f32 %v878, %v801
    %v883 = vmul.f32 %v878, %v802
    %v884 = vmul.f32 %v878, %v803
    %v891 = vrot.slane %v879, 6
    %v892 = vrot.slane %v880, 6
    %v893 = vrot.slane %v881, 6
    %v894 = vrot.slane %v882, 6
    %v895 = vsel %vm847, %v891, %v894
    %v896 = vrot.slane %v883, 6
    %v897 = vsel %vm847, %v892, %v896
    %v898 = vrot.slane %v884, 6
    %v899 = vsel %vm847, %v893, %v898
    %v908 = vadd.f32 %v821, %v891
    %v909 = vadd.f32 %v822, %v892
    %v910 = vadd.f32 %v823, %v893
    %v911 = vadd.f32 %v824, %v895
    %v912 = vadd.f32 %v825, %v897
    %v913 = vadd.f32 %v826, %v899
    %v914 = vadd.f32 %v827, %v894
    %v915 = vadd.f32 %v828, %v896
    %s916 = sld [smem:[#allocation4 + $0x1c]]
    %v917 = vstv %s916
    %v918 = vmul.f32 %v917, %v798
    %v919 = vmul.f32 %v917, %v799
    %v920 = vmul.f32 %v917, %v800
    %v921 = vmul.f32 %v917, %v801
    %v922 = vmul.f32 %v917, %v802
    %v923 = vmul.f32 %v917, %v803
    %v924 = vmul.f32 %v917, %v804
    %v925 = vmul.f32 %v917, %v805
    %vm934 = vcmask 1043456
    %v935 = vrot.slane %v918, 4
    %v936 = vrot.slane %v919, 4
    %v937 = vrot.slane %v920, 4
    %v938 = vrot.slane %v921, 4
    %v939 = vsel %vm934, %v935, %v938
    %v940 = vrot.slane %v922, 4
    %v941 = vsel %vm934, %v936, %v940
    %v942 = vrot.slane %v923, 4
    %v943 = vsel %vm934, %v937, %v942
    %v944 = vrot.slane %v924, 4
    %v945 = vsel %vm934, %v938, %v944
    %v946 = vrot.slane %v925, 4
    %v947 = vsel %vm934, %v940, %v946
    %v956 = vadd.f32 %v869, %v935
    %v957 = vadd.f32 %v870, %v936
    %v958 = vadd.f32 %v871, %v937
    %v959 = vadd.f32 %v872, %v939
    %v960 = vadd.f32 %v873, %v941
    %v961 = vadd.f32 %v874, %v943
    %v962 = vadd.f32 %v875, %v945
    %v963 = vadd.f32 %v876, %v947
    %s964 = sld [smem:[#allocation4 + $0x23]]
    %v965 = vstv %s964
    %v966 = vmul.f32 %v965, %v798
    %v967 = vmul.f32 %v965, %v799
    %v968 = vmul.f32 %v965, %v800
    %v969 = vmul.f32 %v965, %v801
    %v970 = vmul.f32 %v965, %v802
    %v971 = vmul.f32 %v965, %v803
    %v972 = vmul.f32 %v965, %v804
    %v973 = vmul.f32 %v965, %v805
    %v974 = vmul.f32 %v965, %v806
    %v984 = vrot.slane %v966, 4
    %v985 = vrot.slane %v969, 4
    %v986 = vsel %vm934, %v984, %v985
    %v987 = vrot.slane %v967, 4
    %v988 = vrot.slane %v970, 4
    %v989 = vsel %vm934, %v987, %v988
    %v990 = vrot.slane %v968, 4
    %v991 = vrot.slane %v971, 4
    %v992 = vsel %vm934, %v990, %v991
    %v993 = vrot.slane %v972, 4
    %v994 = vsel %vm934, %v985, %v993
    %v995 = vrot.slane %v973, 4
    %v996 = vsel %vm934, %v988, %v995
    %v997 = vrot.slane %v974, 4
    %v998 = vsel %vm934, %v991, %v997
    %v1007 = vadd.f32 %v908, %v986
    %v1008 = vadd.f32 %v909, %v989
    %v1009 = vadd.f32 %v910, %v992
    %v1010 = vadd.f32 %v911, %v994
    %v1011 = vadd.f32 %v912, %v996
    %v1012 = vadd.f32 %v913, %v998
    %v1013 = vadd.f32 %v914, %v993
    %v1014 = vadd.f32 %v915, %v995
    %s1015 = sld [smem:[#allocation4 + $0x2a]]
    %v1016 = vstv %s1015
    %v1017 = vmul.f32 %v1016, %v801
    %v1018 = vmul.f32 %v1016, %v802
    %v1019 = vmul.f32 %v1016, %v803
    %v1020 = vmul.f32 %v1016, %v804
    %v1021 = vmul.f32 %v1016, %v805
    %v1022 = vmul.f32 %v1016, %v806
    %v1023 = vmul.f32 %v1016, %v807
    %v1024 = vmul.f32 %v1016, %v808
    %vm1033 = vcmask 1045504
    %v1034 = vrot.slane %v1017, 2
    %v1035 = vrot.slane %v1018, 2
    %v1036 = vrot.slane %v1019, 2
    %v1037 = vrot.slane %v1020, 2
    %v1038 = vsel %vm1033, %v1034, %v1037
    %v1039 = vrot.slane %v1021, 2
    %v1040 = vsel %vm1033, %v1035, %v1039
    %v1041 = vrot.slane %v1022, 2
    %v1042 = vsel %vm1033, %v1036, %v1041
    %v1043 = vrot.slane %v1023, 2
    %v1044 = vsel %vm1033, %v1037, %v1043
    %v1045 = vrot.slane %v1024, 2
    %v1046 = vsel %vm1033, %v1039, %v1045
    %v1055 = vadd.f32 %v956, %v1034
    %v1056 = vadd.f32 %v957, %v1035
    %v1057 = vadd.f32 %v958, %v1036
    %v1058 = vadd.f32 %v959, %v1038
    %v1059 = vadd.f32 %v960, %v1040
    %v1060 = vadd.f32 %v961, %v1042
    %v1061 = vadd.f32 %v962, %v1044
    %v1062 = vadd.f32 %v963, %v1046
    %v1063 = vld [vmem:[#allocation2] sm:$0xff]
    %v1064 = vld [vmem:[#allocation2 + $0x8] sm:$0xff]
    %v1065 = vld [vmem:[#allocation2 + $0x10] sm:$0xff]
    %v1066 = vld [vmem:[#allocation2 + $0x18] sm:$0xff]
    %v1067 = vld [vmem:[#allocation2 + $0x20] sm:$0xff]
    %v1068 = vld [vmem:[#allocation2 + $0x28] sm:$0xff]
    %v1069 = vld [vmem:[#allocation2 + $0x30] sm:$0xff]
    %v1070 = vld [vmem:[#allocation2 + $0x38] sm:$0xff]
    %v1071 = vld [vmem:[#allocation2 + $0x40] sm:$0xff]
    %v1072 = vld [vmem:[#allocation2 + $0x48] sm:$0xff]
    %v1073 = vld [vmem:[#allocation2 + $0x50] sm:$0xff]
    %v1074 = vld [vmem:[#allocation2 + $0x58] sm:$0xff]
    %v1075 = vld [vmem:[#allocation2 + $0x60] sm:$0xff]
    %v1076 = vld [vmem:[#allocation2 + $0x68] sm:$0xff]
    %v1077 = vld [vmem:[#allocation2 + $0x70] sm:$0xff]
    %v1078 = vld [vmem:[#allocation2 + $0x78] sm:$0xff]
    %v1079 = vld [vmem:[#allocation2 + $0x80] sm:$0xff]
    %v1080 = vld [vmem:[#allocation2 + $0x88] sm:$0xff]
    %v1081 = vld [vmem:[#allocation2 + $0x90] sm:$0xff]
    %v1082 = vld [vmem:[#allocation2 + $0x98] sm:$0xff]
    %v1083 = vld [vmem:[#allocation2 + $0xa0] sm:$0xff]
    %v1084 = vld [vmem:[#allocation2 + $0xa8] sm:$0xff]
    %v1085 = vld [vmem:[#allocation2 + $0xb0] sm:$0xff]
    %s1086 = sld [smem:[#allocation4 + $0x1]]
    %v1087 = vstv %s1086
    %v1088 = vmul.f32 %v1087, %v1063
    %v1089 = vmul.f32 %v1087, %v1064
    %v1090 = vmul.f32 %v1087, %v1065
    %v1091 = vmul.f32 %v1087, %v1066
    %v1092 = vmul.f32 %v1087, %v1067
    %v1093 = vmul.f32 %v1087, %v1068
    %v1094 = vmul.f32 %v1087, %v1069
    %v1095 = vmul.f32 %v1087, %v1070
    %v1096 = vmul.f32 %v1087, %v1071
    %v1097 = vmul.f32 %v1087, %v1072
    %v1098 = vmul.f32 %v1087, %v1073
    %v1099 = vmul.f32 %v1087, %v1074
    %vm1112 = vcmask 1042432
    %v1113 = vrot.slane %v1088, 5
    %v1114 = vrot.slane %v1092, 5
    %v1115 = vsel %vm1112, %v1113, %v1114
    %v1116 = vrot.slane %v1089, 5
    %v1117 = vrot.slane %v1093, 5
    %v1118 = vsel %vm1112, %v1116, %v1117
    %v1119 = vrot.slane %v1090, 5
    %v1120 = vrot.slane %v1094, 5
    %v1121 = vsel %vm1112, %v1119, %v1120
    %v1122 = vrot.slane %v1091, 5
    %v1123 = vrot.slane %v1095, 5
    %v1124 = vsel %vm1112, %v1122, %v1123
    %v1125 = vrot.slane %v1096, 5
    %v1126 = vsel %vm1112, %v1114, %v1125
    %v1127 = vrot.slane %v1097, 5
    %v1128 = vsel %vm1112, %v1117, %v1127
    %v1129 = vrot.slane %v1098, 5
    %v1130 = vsel %vm1112, %v1120, %v1129
    %v1131 = vrot.slane %v1099, 5
    %v1132 = vsel %vm1112, %v1123, %v1131
    %1133 = vrot.lane.b32.xlu0 %v1115, 125
    %v1134 = vpop.permute.xlu0 %1133
    %1135 = vrot.lane.b32.xlu0 %v1118, 125
    %v1136 = vpop.permute.xlu0 %1135
    %1137 = vrot.lane.b32.xlu0 %v1121, 125
    %v1138 = vpop.permute.xlu0 %1137
    %1139 = vrot.lane.b32.xlu0 %v1124, 125
    %v1140 = vpop.permute.xlu0 %1139
    %1141 = vrot.lane.b32.xlu0 %v1126, 125
    %v1142 = vpop.permute.xlu0 %1141
    %1143 = vrot.lane.b32.xlu0 %v1128, 125
    %v1144 = vpop.permute.xlu0 %1143
    %1145 = vrot.lane.b32.xlu0 %v1130, 125
    %v1146 = vpop.permute.xlu0 %1145
    %1147 = vrot.lane.b32.xlu0 %v1132, 125
    %v1148 = vpop.permute.xlu0 %1147
    %1149 = vrot.lane.b32.xlu0 %v1125, 125
    %v1150 = vpop.permute.xlu0 %1149
    %1151 = vrot.lane.b32.xlu0 %v1127, 125
    %v1152 = vpop.permute.xlu0 %1151
    %1153 = vrot.lane.b32.xlu0 %v1129, 125
    %v1154 = vpop.permute.xlu0 %1153
    %vm1155 = vcmask 1022976
    %v1156 = vsel %vm1155, %v1134, %v1136
    %v1157 = vsel %vm1155, %v1136, %v1138
    %v1158 = vsel %vm1155, %v1138, %v1140
    %v1159 = vsel %vm1155, %v1142, %v1144
    %v1160 = vsel %vm1155, %v1144, %v1146
    %v1161 = vsel %vm1155, %v1146, %v1148
    %v1162 = vsel %vm1155, %v1150, %v1152
    %v1163 = vsel %vm1155, %v1152, %v1154
    %v1172 = vadd.f32 %v1007, %v1156
    %v1173 = vadd.f32 %v1008, %v1157
    %v1174 = vadd.f32 %v1009, %v1158
    %v1175 = vadd.f32 %v1010, %v1159
    %v1176 = vadd.f32 %v1011, %v1160
    %v1177 = vadd.f32 %v1012, %v1161
    %v1178 = vadd.f32 %v1013, %v1162
    %v1179 = vadd.f32 %v1014, %v1163
    %s1180 = sld [smem:[#allocation4 + $0x8]]
    %v1181 = vstv %s1180
    %v1182 = vmul.f32 %v1181, %v1067
    %v1183 = vmul.f32 %v1181, %v1068
    %v1184 = vmul.f32 %v1181, %v1069
    %v1185 = vmul.f32 %v1181, %v1070
    %v1186 = vmul.f32 %v1181, %v1071
    %v1187 = vmul.f32 %v1181, %v1072
    %v1188 = vmul.f32 %v1181, %v1073
    %v1189 = vmul.f32 %v1181, %v1074
    %v1190 = vmul.f32 %v1181, %v1075
    %v1191 = vmul.f32 %v1181, %v1076
    %v1192 = vmul.f32 %v1181, %v1077
    %vm1204 = vcmask 1044480
    %v1205 = vrot.slane %v1182, 3
    %v1206 = vrot.slane %v1183, 3
    %v1207 = vrot.slane %v1184, 3
    %v1208 = vrot.slane %v1185, 3
    %v1209 = vrot.slane %v1186, 3
    %v1210 = vsel %vm1204, %v1205, %v1209
    %v1211 = vrot.slane %v1187, 3
    %v1212 = vsel %vm1204, %v1206, %v1211
    %v1213 = vrot.slane %v1188, 3
    %v1214 = vsel %vm1204, %v1207, %v1213
    %v1215 = vrot.slane %v1189, 3
    %v1216 = vsel %vm1204, %v1208, %v1215
    %v1217 = vrot.slane %v1190, 3
    %v1218 = vsel %vm1204, %v1209, %v1217
    %v1219 = vrot.slane %v1191, 3
    %v1220 = vsel %vm1204, %v1211, %v1219
    %v1221 = vrot.slane %v1192, 3
    %v1222 = vsel %vm1204, %v1213, %v1221
    %1223 = vrot.lane.b32.xlu0 %v1205, 125
    %v1224 = vpop.permute.xlu0 %1223
    %1225 = vrot.lane.b32.xlu0 %v1206, 125
    %v1226 = vpop.permute.xlu0 %1225
    %1227 = vrot.lane.b32.xlu0 %v1207, 125
    %v1228 = vpop.permute.xlu0 %1227
    %1229 = vrot.lane.b32.xlu0 %v1208, 125
    %v1230 = vpop.permute.xlu0 %1229
    %1231 = vrot.lane.b32.xlu0 %v1210, 125
    %v1232 = vpop.permute.xlu0 %1231
    %1233 = vrot.lane.b32.xlu0 %v1212, 125
    %v1234 = vpop.permute.xlu0 %1233
    %1235 = vrot.lane.b32.xlu0 %v1214, 125
    %v1236 = vpop.permute.xlu0 %1235
    %1237 = vrot.lane.b32.xlu0 %v1216, 125
    %v1238 = vpop.permute.xlu0 %1237
    %1239 = vrot.lane.b32.xlu0 %v1218, 125
    %v1240 = vpop.permute.xlu0 %1239
    %1241 = vrot.lane.b32.xlu0 %v1220, 125
    %v1242 = vpop.permute.xlu0 %1241
    %1243 = vrot.lane.b32.xlu0 %v1222, 125
    %v1244 = vpop.permute.xlu0 %1243
    %v1245 = vsel %vm1155, %v1224, %v1226
    %v1246 = vsel %vm1155, %v1226, %v1228
    %v1247 = vsel %vm1155, %v1228, %v1230
    %v1248 = vsel %vm1155, %v1232, %v1234
    %v1249 = vsel %vm1155, %v1234, %v1236
    %v1250 = vsel %vm1155, %v1236, %v1238
    %v1251 = vsel %vm1155, %v1240, %v1242
    %v1252 = vsel %vm1155, %v1242, %v1244
    %v1261 = vadd.f32 %v1055, %v1245
    %v1262 = vadd.f32 %v1056, %v1246
    %v1263 = vadd.f32 %v1057, %v1247
    %v1264 = vadd.f32 %v1058, %v1248
    %v1265 = vadd.f32 %v1059, %v1249
    %v1266 = vadd.f32 %v1060, %v1250
    %v1267 = vadd.f32 %v1061, %v1251
    %v1268 = vadd.f32 %v1062, %v1252
    %s1269 = sld [smem:[#allocation4 + $0xf]]
    %v1270 = vstv %s1269
    %v1271 = vmul.f32 %v1270, %v1067
    %v1272 = vmul.f32 %v1270, %v1068
    %v1273 = vmul.f32 %v1270, %v1069
    %v1274 = vmul.f32 %v1270, %v1070
    %v1275 = vmul.f32 %v1270, %v1071
    %v1276 = vmul.f32 %v1270, %v1072
    %v1277 = vmul.f32 %v1270, %v1073
    %v1278 = vmul.f32 %v1270, %v1074
    %v1279 = vmul.f32 %v1270, %v1075
    %v1280 = vmul.f32 %v1270, %v1076
    %v1281 = vmul.f32 %v1270, %v1077
    %v1282 = vmul.f32 %v1270, %v1078
    %v1295 = vrot.slane %v1271, 3
    %v1296 = vrot.slane %v1275, 3
    %v1297 = vsel %vm1204, %v1295, %v1296
    %v1298 = vrot.slane %v1272, 3
    %v1299 = vrot.slane %v1276, 3
    %v1300 = vsel %vm1204, %v1298, %v1299
    %v1301 = vrot.slane %v1273, 3
    %v1302 = vrot.slane %v1277, 3
    %v1303 = vsel %vm1204, %v1301, %v1302
    %v1304 = vrot.slane %v1274, 3
    %v1305 = vrot.slane %v1278, 3
    %v1306 = vsel %vm1204, %v1304, %v1305
    %v1307 = vrot.slane %v1279, 3
    %v1308 = vsel %vm1204, %v1296, %v1307
    %v1309 = vrot.slane %v1280, 3
    %v1310 = vsel %vm1204, %v1299, %v1309
    %v1311 = vrot.slane %v1281, 3
    %v1312 = vsel %vm1204, %v1302, %v1311
    %v1313 = vrot.slane %v1282, 3
    %v1314 = vsel %vm1204, %v1305, %v1313
    %1315 = vrot.lane.b32.xlu0 %v1297, 125
    %v1316 = vpop.permute.xlu0 %1315
    %1317 = vrot.lane.b32.xlu0 %v1300, 125
    %v1318 = vpop.permute.xlu0 %1317
    %1319 = vrot.lane.b32.xlu0 %v1303, 125
    %v1320 = vpop.permute.xlu0 %1319
    %1321 = vrot.lane.b32.xlu0 %v1306, 125
    %v1322 = vpop.permute.xlu0 %1321
    %1323 = vrot.lane.b32.xlu0 %v1308, 125
    %v1324 = vpop.permute.xlu0 %1323
    %1325 = vrot.lane.b32.xlu0 %v1310, 125
    %v1326 = vpop.permute.xlu0 %1325
    %1327 = vrot.lane.b32.xlu0 %v1312, 125
    %v1328 = vpop.permute.xlu0 %1327
    %1329 = vrot.lane.b32.xlu0 %v1314, 125
    %v1330 = vpop.permute.xlu0 %1329
    %1331 = vrot.lane.b32.xlu0 %v1307, 125
    %v1332 = vpop.permute.xlu0 %1331
    %1333 = vrot.lane.b32.xlu0 %v1309, 125
    %v1334 = vpop.permute.xlu0 %1333
    %1335 = vrot.lane.b32.xlu0 %v1311, 125
    %v1336 = vpop.permute.xlu0 %1335
    %v1337 = vsel %vm1155, %v1316, %v1318
    %v1338 = vsel %vm1155, %v1318, %v1320
    %v1339 = vsel %vm1155, %v1320, %v1322
    %v1340 = vsel %vm1155, %v1324, %v1326
    %v1341 = vsel %vm1155, %v1326, %v1328
    %v1342 = vsel %vm1155, %v1328, %v1330
    %v1343 = vsel %vm1155, %v1332, %v1334
    %v1344 = vsel %vm1155, %v1334, %v1336
    %v1353 = vadd.f32 %v1172, %v1337
    %v1354 = vadd.f32 %v1173, %v1338
    %v1355 = vadd.f32 %v1174, %v1339
    %v1356 = vadd.f32 %v1175, %v1340
    %v1357 = vadd.f32 %v1176, %v1341
    %v1358 = vadd.f32 %v1177, %v1342
    %v1359 = vadd.f32 %v1178, %v1343
    %v1360 = vadd.f32 %v1179, %v1344
    %s1361 = sld [smem:[#allocation4 + $0x16]]
    %v1362 = vstv %s1361
    %v1363 = vmul.f32 %v1362, %v1071
    %v1364 = vmul.f32 %v1362, %v1072
    %v1365 = vmul.f32 %v1362, %v1073
    %v1366 = vmul.f32 %v1362, %v1074
    %v1367 = vmul.f32 %v1362, %v1075
    %v1368 = vmul.f32 %v1362, %v1076
    %v1369 = vmul.f32 %v1362, %v1077
    %v1370 = vmul.f32 %v1362, %v1078
    %vm1379 = vcmask 1046528
    %v1380 = vrot.slane %v1363, 1
    %v1381 = vrot.slane %v1364, 1
    %v1382 = vrot.slane %v1365, 1
    %v1383 = vrot.slane %v1366, 1
    %v1384 = vrot.slane %v1367, 1
    %v1385 = vsel %vm1379, %v1380, %v1384
    %v1386 = vrot.slane %v1368, 1
    %v1387 = vsel %vm1379, %v1381, %v1386
    %v1388 = vrot.slane %v1369, 1
    %v1389 = vsel %vm1379, %v1382, %v1388
    %v1390 = vrot.slane %v1370, 1
    %v1391 = vsel %vm1379, %v1383, %v1390
    %1392 = vrot.lane.b32.xlu0 %v1380, 125
    %v1393 = vpop.permute.xlu0 %1392
    %1394 = vrot.lane.b32.xlu0 %v1381, 125
    %v1395 = vpop.permute.xlu0 %1394
    %1396 = vrot.lane.b32.xlu0 %v1382, 125
    %v1397 = vpop.permute.xlu0 %1396
    %1398 = vrot.lane.b32.xlu0 %v1383, 125
    %v1399 = vpop.permute.xlu0 %1398
    %1400 = vrot.lane.b32.xlu0 %v1385, 125
    %v1401 = vpop.permute.xlu0 %1400
    %1402 = vrot.lane.b32.xlu0 %v1387, 125
    %v1403 = vpop.permute.xlu0 %1402
    %1404 = vrot.lane.b32.xlu0 %v1389, 125
    %v1405 = vpop.permute.xlu0 %1404
    %1406 = vrot.lane.b32.xlu0 %v1391, 125
    %v1407 = vpop.permute.xlu0 %1406
    %1408 = vrot.lane.b32.xlu0 %v1384, 125
    %v1409 = vpop.permute.xlu0 %1408
    %1410 = vrot.lane.b32.xlu0 %v1386, 125
    %v1411 = vpop.permute.xlu0 %1410
    %1412 = vrot.lane.b32.xlu0 %v1388, 125
    %v1413 = vpop.permute.xlu0 %1412
    %v1414 = vsel %vm1155, %v1393, %v1395
    %v1415 = vsel %vm1155, %v1395, %v1397
    %v1416 = vsel %vm1155, %v1397, %v1399
    %v1417 = vsel %vm1155, %v1401, %v1403
    %v1418 = vsel %vm1155, %v1403, %v1405
    %v1419 = vsel %vm1155, %v1405, %v1407
    %v1420 = vsel %vm1155, %v1409, %v1411
    %v1421 = vsel %vm1155, %v1411, %v1413
    %v1430 = vadd.f32 %v1261, %v1414
    %v1431 = vadd.f32 %v1262, %v1415
    %v1432 = vadd.f32 %v1263, %v1416
    %v1433 = vadd.f32 %v1264, %v1417
    %v1434 = vadd.f32 %v1265, %v1418
    %v1435 = vadd.f32 %v1266, %v1419
    %v1436 = vadd.f32 %v1267, %v1420
    %v1437 = vadd.f32 %v1268, %v1421
    %s1438 = sld [smem:[#allocation4 + $0x1d]]
    %v1439 = vstv %s1438
    %v1440 = vmul.f32 %v1439, %v1071
    %v1441 = vmul.f32 %v1439, %v1072
    %v1442 = vmul.f32 %v1439, %v1073
    %v1443 = vmul.f32 %v1439, %v1074
    %v1444 = vmul.f32 %v1439, %v1075
    %v1445 = vmul.f32 %v1439, %v1076
    %v1446 = vmul.f32 %v1439, %v1077
    %v1447 = vmul.f32 %v1439, %v1078
    %v1448 = vmul.f32 %v1439, %v1079
    %v1449 = vmul.f32 %v1439, %v1080
    %v1450 = vmul.f32 %v1439, %v1081
    %v1451 = vmul.f32 %v1439, %v1082
    %v1464 = vrot.slane %v1440, 1
    %v1465 = vrot.slane %v1444, 1
    %v1466 = vsel %vm1379, %v1464, %v1465
    %v1467 = vrot.slane %v1441, 1
    %v1468 = vrot.slane %v1445, 1
    %v1469 = vsel %vm1379, %v1467, %v1468
    %v1470 = vrot.slane %v1442, 1
    %v1471 = vrot.slane %v1446, 1
    %v1472 = vsel %vm1379, %v1470, %v1471
    %v1473 = vrot.slane %v1443, 1
    %v1474 = vrot.slane %v1447, 1
    %v1475 = vsel %vm1379, %v1473, %v1474
    %v1476 = vrot.slane %v1448, 1
    %v1477 = vsel %vm1379, %v1465, %v1476
    %v1478 = vrot.slane %v1449, 1
    %v1479 = vsel %vm1379, %v1468, %v1478
    %v1480 = vrot.slane %v1450, 1
    %v1481 = vsel %vm1379, %v1471, %v1480
    %v1482 = vrot.slane %v1451, 1
    %v1483 = vsel %vm1379, %v1474, %v1482
    %1484 = vrot.lane.b32.xlu0 %v1466, 125
    %v1485 = vpop.permute.xlu0 %1484
    %1486 = vrot.lane.b32.xlu0 %v1469, 125
    %v1487 = vpop.permute.xlu0 %1486
    %1488 = vrot.lane.b32.xlu0 %v1472, 125
    %v1489 = vpop.permute.xlu0 %1488
    %1490 = vrot.lane.b32.xlu0 %v1475, 125
    %v1491 = vpop.permute.xlu0 %1490
    %1492 = vrot.lane.b32.xlu0 %v1477, 125
    %v1493 = vpop.permute.xlu0 %1492
    %1494 = vrot.lane.b32.xlu0 %v1479, 125
    %v1495 = vpop.permute.xlu0 %1494
    %1496 = vrot.lane.b32.xlu0 %v1481, 125
    %v1497 = vpop.permute.xlu0 %1496
    %1498 = vrot.lane.b32.xlu0 %v1483, 125
    %v1499 = vpop.permute.xlu0 %1498
    %1500 = vrot.lane.b32.xlu0 %v1476, 125
    %v1501 = vpop.permute.xlu0 %1500
    %1502 = vrot.lane.b32.xlu0 %v1478, 125
    %v1503 = vpop.permute.xlu0 %1502
    %1504 = vrot.lane.b32.xlu0 %v1480, 125
    %v1505 = vpop.permute.xlu0 %1504
    %v1506 = vsel %vm1155, %v1485, %v1487
    %v1507 = vsel %vm1155, %v1487, %v1489
    %v1508 = vsel %vm1155, %v1489, %v1491
    %v1509 = vsel %vm1155, %v1493, %v1495
    %v1510 = vsel %vm1155, %v1495, %v1497
    %v1511 = vsel %vm1155, %v1497, %v1499
    %v1512 = vsel %vm1155, %v1501, %v1503
    %v1513 = vsel %vm1155, %v1503, %v1505
    %v1522 = vadd.f32 %v1353, %v1506
    %v1523 = vadd.f32 %v1354, %v1507
    %v1524 = vadd.f32 %v1355, %v1508
    %v1525 = vadd.f32 %v1356, %v1509
    %v1526 = vadd.f32 %v1357, %v1510
    %v1527 = vadd.f32 %v1358, %v1511
    %v1528 = vadd.f32 %v1359, %v1512
    %v1529 = vadd.f32 %v1360, %v1513
    %s1530 = sld [smem:[#allocation4 + $0x24]]
    %v1531 = vstv %s1530
    %v1532 = vmul.f32 %v1531, %v1071
    %v1533 = vmul.f32 %v1531, %v1072
    %v1534 = vmul.f32 %v1531, %v1073
    %v1535 = vmul.f32 %v1531, %v1074
    %v1536 = vmul.f32 %v1531, %v1075
    %v1537 = vmul.f32 %v1531, %v1076
    %v1538 = vmul.f32 %v1531, %v1077
    %v1539 = vmul.f32 %v1531, %v1078
    %v1540 = vmul.f32 %v1531, %v1079
    %v1541 = vmul.f32 %v1531, %v1080
    %v1542 = vmul.f32 %v1531, %v1081
    %vm1554 = vcmask 1040384
    %v1555 = vrot.slane %v1532, 7
    %v1556 = vrot.slane %v1533, 7
    %v1557 = vrot.slane %v1534, 7
    %v1558 = vrot.slane %v1535, 7
    %v1559 = vrot.slane %v1536, 7
    %v1560 = vsel %vm1554, %v1555, %v1559
    %v1561 = vrot.slane %v1537, 7
    %v1562 = vsel %vm1554, %v1556, %v1561
    %v1563 = vrot.slane %v1538, 7
    %v1564 = vsel %vm1554, %v1557, %v1563
    %v1565 = vrot.slane %v1539, 7
    %v1566 = vsel %vm1554, %v1558, %v1565
    %v1567 = vrot.slane %v1540, 7
    %v1568 = vsel %vm1554, %v1559, %v1567
    %v1569 = vrot.slane %v1541, 7
    %v1570 = vsel %vm1554, %v1561, %v1569
    %v1571 = vrot.slane %v1542, 7
    %v1572 = vsel %vm1554, %v1563, %v1571
    %1573 = vrot.lane.b32.xlu0 %v1555, 125
    %v1574 = vpop.permute.xlu0 %1573
    %1575 = vrot.lane.b32.xlu0 %v1556, 125
    %v1576 = vpop.permute.xlu0 %1575
    %1577 = vrot.lane.b32.xlu0 %v1557, 125
    %v1578 = vpop.permute.xlu0 %1577
    %1579 = vrot.lane.b32.xlu0 %v1558, 125
    %v1580 = vpop.permute.xlu0 %1579
    %1581 = vrot.lane.b32.xlu0 %v1560, 125
    %v1582 = vpop.permute.xlu0 %1581
    %1583 = vrot.lane.b32.xlu0 %v1562, 125
    %v1584 = vpop.permute.xlu0 %1583
    %1585 = vrot.lane.b32.xlu0 %v1564, 125
    %v1586 = vpop.permute.xlu0 %1585
    %1587 = vrot.lane.b32.xlu0 %v1566, 125
    %v1588 = vpop.permute.xlu0 %1587
    %1589 = vrot.lane.b32.xlu0 %v1568, 125
    %v1590 = vpop.permute.xlu0 %1589
    %1591 = vrot.lane.b32.xlu0 %v1570, 125
    %v1592 = vpop.permute.xlu0 %1591
    %1593 = vrot.lane.b32.xlu0 %v1572, 125
    %v1594 = vpop.permute.xlu0 %1593
    %v1595 = vsel %vm1155, %v1574, %v1576
    %v1596 = vsel %vm1155, %v1576, %v1578
    %v1597 = vsel %vm1155, %v1578, %v1580
    %v1598 = vsel %vm1155, %v1582, %v1584
    %v1599 = vsel %vm1155, %v1584, %v1586
    %v1600 = vsel %vm1155, %v1586, %v1588
    %v1601 = vsel %vm1155, %v1590, %v1592
    %v1602 = vsel %vm1155, %v1592, %v1594
    %v1611 = vadd.f32 %v1430, %v1595
    %v1612 = vadd.f32 %v1431, %v1596
    %v1613 = vadd.f32 %v1432, %v1597
    %v1614 = vadd.f32 %v1433, %v1598
    %v1615 = vadd.f32 %v1434, %v1599
    %v1616 = vadd.f32 %v1435, %v1600
    %v1617 = vadd.f32 %v1436, %v1601
    %v1618 = vadd.f32 %v1437, %v1602
    %s1619 = sld [smem:[#allocation4 + $0x2b]]
    %v1620 = vstv %s1619
    %v1621 = vmul.f32 %v1620, %v1075
    %v1622 = vmul.f32 %v1620, %v1076
    %v1623 = vmul.f32 %v1620, %v1077
    %v1624 = vmul.f32 %v1620, %v1078
    %v1625 = vmul.f32 %v1620, %v1079
    %v1626 = vmul.f32 %v1620, %v1080
    %v1627 = vmul.f32 %v1620, %v1081
    %v1628 = vmul.f32 %v1620, %v1082
    %v1629 = vmul.f32 %v1620, %v1083
    %v1630 = vmul.f32 %v1620, %v1084
    %v1631 = vmul.f32 %v1620, %v1085
    %v1643 = vrot.slane %v1621, 7
    %v1644 = vrot.slane %v1622, 7
    %v1645 = vrot.slane %v1623, 7
    %v1646 = vrot.slane %v1624, 7
    %v1647 = vrot.slane %v1625, 7
    %v1648 = vsel %vm1554, %v1643, %v1647
    %v1649 = vrot.slane %v1626, 7
    %v1650 = vsel %vm1554, %v1644, %v1649
    %v1651 = vrot.slane %v1627, 7
    %v1652 = vsel %vm1554, %v1645, %v1651
    %v1653 = vrot.slane %v1628, 7
    %v1654 = vsel %vm1554, %v1646, %v1653
    %v1655 = vrot.slane %v1629, 7
    %v1656 = vsel %vm1554, %v1647, %v1655
    %v1657 = vrot.slane %v1630, 7
    %v1658 = vsel %vm1554, %v1649, %v1657
    %v1659 = vrot.slane %v1631, 7
    %v1660 = vsel %vm1554, %v1651, %v1659
    %1661 = vrot.lane.b32.xlu0 %v1643, 125
    %v1662 = vpop.permute.xlu0 %1661
    %1663 = vrot.lane.b32.xlu0 %v1644, 125
    %v1664 = vpop.permute.xlu0 %1663
    %1665 = vrot.lane.b32.xlu0 %v1645, 125
    %v1666 = vpop.permute.xlu0 %1665
    %1667 = vrot.lane.b32.xlu0 %v1646, 125
    %v1668 = vpop.permute.xlu0 %1667
    %1669 = vrot.lane.b32.xlu0 %v1648, 125
    %v1670 = vpop.permute.xlu0 %1669
    %1671 = vrot.lane.b32.xlu0 %v1650, 125
    %v1672 = vpop.permute.xlu0 %1671
    %1673 = vrot.lane.b32.xlu0 %v1652, 125
    %v1674 = vpop.permute.xlu0 %1673
    %1675 = vrot.lane.b32.xlu0 %v1654, 125
    %v1676 = vpop.permute.xlu0 %1675
    %1677 = vrot.lane.b32.xlu0 %v1656, 125
    %v1678 = vpop.permute.xlu0 %1677
    %1679 = vrot.lane.b32.xlu0 %v1658, 125
    %v1680 = vpop.permute.xlu0 %1679
    %1681 = vrot.lane.b32.xlu0 %v1660, 125
    %v1682 = vpop.permute.xlu0 %1681
    %v1683 = vsel %vm1155, %v1662, %v1664
    %v1684 = vsel %vm1155, %v1664, %v1666
    %v1685 = vsel %vm1155, %v1666, %v1668
    %v1686 = vsel %vm1155, %v1670, %v1672
    %v1687 = vsel %vm1155, %v1672, %v1674
    %v1688 = vsel %vm1155, %v1674, %v1676
    %v1689 = vsel %vm1155, %v1678, %v1680
    %v1690 = vsel %vm1155, %v1680, %v1682
    %v1699 = vadd.f32 %v1522, %v1683
    %v1700 = vadd.f32 %v1523, %v1684
    %v1701 = vadd.f32 %v1524, %v1685
    %v1702 = vadd.f32 %v1525, %v1686
    %v1703 = vadd.f32 %v1526, %v1687
    %v1704 = vadd.f32 %v1527, %v1688
    %v1705 = vadd.f32 %v1528, %v1689
    %v1706 = vadd.f32 %v1529, %v1690
    %s1707 = sld [smem:[#allocation4 + $0x2]]
    %v1708 = vstv %s1707
    %v1709 = vmul.f32 %v1708, %v1063
    %v1710 = vmul.f32 %v1708, %v1064
    %v1711 = vmul.f32 %v1708, %v1065
    %v1712 = vmul.f32 %v1708, %v1066
    %v1713 = vmul.f32 %v1708, %v1067
    %v1714 = vmul.f32 %v1708, %v1068
    %v1715 = vmul.f32 %v1708, %v1069
    %v1716 = vmul.f32 %v1708, %v1070
    %v1717 = vmul.f32 %v1708, %v1071
    %v1718 = vmul.f32 %v1708, %v1072
    %v1719 = vmul.f32 %v1708, %v1073
    %1731 = vrot.lane.b32.xlu0 %v1709, 122
    %v1732 = vpop.permute.xlu0 %1731
    %1733 = vrot.lane.b32.xlu0 %v1710, 122
    %v1734 = vpop.permute.xlu0 %1733
    %1735 = vrot.lane.b32.xlu0 %v1711, 122
    %v1736 = vpop.permute.xlu0 %1735
    %1737 = vrot.lane.b32.xlu0 %v1712, 122
    %v1738 = vpop.permute.xlu0 %1737
    %1739 = vrot.lane.b32.xlu0 %v1713, 122
    %v1740 = vpop.permute.xlu0 %1739
    %1741 = vrot.lane.b32.xlu0 %v1714, 122
    %v1742 = vpop.permute.xlu0 %1741
    %1743 = vrot.lane.b32.xlu0 %v1715, 122
    %v1744 = vpop.permute.xlu0 %1743
    %1745 = vrot.lane.b32.xlu0 %v1716, 122
    %v1746 = vpop.permute.xlu0 %1745
    %1747 = vrot.lane.b32.xlu0 %v1717, 122
    %v1748 = vpop.permute.xlu0 %1747
    %1749 = vrot.lane.b32.xlu0 %v1718, 122
    %v1750 = vpop.permute.xlu0 %1749
    %1751 = vrot.lane.b32.xlu0 %v1719, 122
    %v1752 = vpop.permute.xlu0 %1751
    %vm1753 = vcmask 998400
    %v1754 = vsel %vm1753, %v1732, %v1734
    %v1755 = vsel %vm1753, %v1734, %v1736
    %v1756 = vsel %vm1753, %v1736, %v1738
    %v1757 = vsel %vm1753, %v1740, %v1742
    %v1758 = vsel %vm1753, %v1742, %v1744
    %v1759 = vsel %vm1753, %v1744, %v1746
    %v1760 = vsel %vm1753, %v1748, %v1750
    %v1761 = vsel %vm1753, %v1750, %v1752
    %v1770 = vadd.f32 %v1611, %v1754
    %v1771 = vadd.f32 %v1612, %v1755
    %v1772 = vadd.f32 %v1613, %v1756
    %v1773 = vadd.f32 %v1614, %v1757
    %v1774 = vadd.f32 %v1615, %v1758
    %v1775 = vadd.f32 %v1616, %v1759
    %v1776 = vadd.f32 %v1617, %v1760
    %v1777 = vadd.f32 %v1618, %v1761
    %s1778 = sld [smem:[#allocation4 + $0x9]]
    %v1779 = vstv %s1778
    %v1780 = vmul.f32 %v1779, %v1067
    %v1781 = vmul.f32 %v1779, %v1068
    %v1782 = vmul.f32 %v1779, %v1069
    %v1783 = vmul.f32 %v1779, %v1070
    %v1784 = vmul.f32 %v1779, %v1071
    %v1785 = vmul.f32 %v1779, %v1072
    %v1786 = vmul.f32 %v1779, %v1073
    %v1787 = vmul.f32 %v1779, %v1074
    %v1788 = vmul.f32 %v1779, %v1075
    %v1789 = vmul.f32 %v1779, %v1076
    %v1790 = vmul.f32 %v1779, %v1077
    %1802 = vrot.lane.b32.xlu0 %v1780, 122
    %v1803 = vpop.permute.xlu0 %1802
    %1804 = vrot.lane.b32.xlu0 %v1781, 122
    %v1805 = vpop.permute.xlu0 %1804
    %1806 = vrot.lane.b32.xlu0 %v1782, 122
    %v1807 = vpop.permute.xlu0 %1806
    %1808 = vrot.lane.b32.xlu0 %v1783, 122
    %v1809 = vpop.permute.xlu0 %1808
    %1810 = vrot.lane.b32.xlu0 %v1784, 122
    %v1811 = vpop.permute.xlu0 %1810
    %1812 = vrot.lane.b32.xlu0 %v1785, 122
    %v1813 = vpop.permute.xlu0 %1812
    %1814 = vrot.lane.b32.xlu0 %v1786, 122
    %v1815 = vpop.permute.xlu0 %1814
    %1816 = vrot.lane.b32.xlu0 %v1787, 122
    %v1817 = vpop.permute.xlu0 %1816
    %1818 = vrot.lane.b32.xlu0 %v1788, 122
    %v1819 = vpop.permute.xlu0 %1818
    %1820 = vrot.lane.b32.xlu0 %v1789, 122
    %v1821 = vpop.permute.xlu0 %1820
    %1822 = vrot.lane.b32.xlu0 %v1790, 122
    %v1823 = vpop.permute.xlu0 %1822
    %v1824 = vsel %vm1753, %v1803, %v1805
    %v1825 = vsel %vm1753, %v1805, %v1807
    %v1826 = vsel %vm1753, %v1807, %v1809
    %v1827 = vsel %vm1753, %v1811, %v1813
    %v1828 = vsel %vm1753, %v1813, %v1815
    %v1829 = vsel %vm1753, %v1815, %v1817
    %v1830 = vsel %vm1753, %v1819, %v1821
    %v1831 = vsel %vm1753, %v1821, %v1823
    %v1840 = vadd.f32 %v1699, %v1824
    %v1841 = vadd.f32 %v1700, %v1825
    %v1842 = vadd.f32 %v1701, %v1826
    %v1843 = vadd.f32 %v1702, %v1827
    %v1844 = vadd.f32 %v1703, %v1828
    %v1845 = vadd.f32 %v1704, %v1829
    %v1846 = vadd.f32 %v1705, %v1830
    %v1847 = vadd.f32 %v1706, %v1831
    %s1848 = sld [smem:[#allocation4 + $0x10]]
    %v1849 = vstv %s1848
    %v1850 = vmul.f32 %v1849, %v1067
    %v1851 = vmul.f32 %v1849, %v1068
    %v1852 = vmul.f32 %v1849, %v1069
    %v1853 = vmul.f32 %v1849, %v1070
    %v1854 = vmul.f32 %v1849, %v1071
    %v1855 = vmul.f32 %v1849, %v1072
    %v1856 = vmul.f32 %v1849, %v1073
    %v1857 = vmul.f32 %v1849, %v1074
    %v1858 = vmul.f32 %v1849, %v1075
    %v1859 = vmul.f32 %v1849, %v1076
    %v1860 = vmul.f32 %v1849, %v1077
    %v1872 = vrot.slane %v1850, 6
    %v1873 = vrot.slane %v1851, 6
    %v1874 = vrot.slane %v1852, 6
    %v1875 = vrot.slane %v1853, 6
    %v1876 = vrot.slane %v1854, 6
    %v1877 = vsel %vm847, %v1872, %v1876
    %v1878 = vrot.slane %v1855, 6
    %v1879 = vsel %vm847, %v1873, %v1878
    %v1880 = vrot.slane %v1856, 6
    %v1881 = vsel %vm847, %v1874, %v1880
    %v1882 = vrot.slane %v1857, 6
    %v1883 = vsel %vm847, %v1875, %v1882
    %v1884 = vrot.slane %v1858, 6
    %v1885 = vsel %vm847, %v1876, %v1884
    %v1886 = vrot.slane %v1859, 6
    %v1887 = vsel %vm847, %v1878, %v1886
    %v1888 = vrot.slane %v1860, 6
    %v1889 = vsel %vm847, %v1880, %v1888
    %1890 = vrot.lane.b32.xlu0 %v1872, 122
    %v1891 = vpop.permute.xlu0 %1890
    %1892 = vrot.lane.b32.xlu0 %v1873, 122
    %v1893 = vpop.permute.xlu0 %1892
    %1894 = vrot.lane.b32.xlu0 %v1874, 122
    %v1895 = vpop.permute.xlu0 %1894
    %1896 = vrot.lane.b32.xlu0 %v1875, 122
    %v1897 = vpop.permute.xlu0 %1896
    %1898 = vrot.lane.b32.xlu0 %v1877, 122
    %v1899 = vpop.permute.xlu0 %1898
    %1900 = vrot.lane.b32.xlu0 %v1879, 122
    %v1901 = vpop.permute.xlu0 %1900
    %1902 = vrot.lane.b32.xlu0 %v1881, 122
    %v1903 = vpop.permute.xlu0 %1902
    %1904 = vrot.lane.b32.xlu0 %v1883, 122
    %v1905 = vpop.permute.xlu0 %1904
    %1906 = vrot.lane.b32.xlu0 %v1885, 122
    %v1907 = vpop.permute.xlu0 %1906
    %1908 = vrot.lane.b32.xlu0 %v1887, 122
    %v1909 = vpop.permute.xlu0 %1908
    %1910 = vrot.lane.b32.xlu0 %v1889, 122
    %v1911 = vpop.permute.xlu0 %1910
    %v1912 = vsel %vm1753, %v1891, %v1893
    %v1913 = vsel %vm1753, %v1893, %v1895
    %v1914 = vsel %vm1753, %v1895, %v1897
    %v1915 = vsel %vm1753, %v1899, %v1901
    %v1916 = vsel %vm1753, %v1901, %v1903
    %v1917 = vsel %vm1753, %v1903, %v1905
    %v1918 = vsel %vm1753, %v1907, %v1909
    %v1919 = vsel %vm1753, %v1909, %v1911
    %v1928 = vadd.f32 %v1770, %v1912
    %v1929 = vadd.f32 %v1771, %v1913
    %v1930 = vadd.f32 %v1772, %v1914
    %v1931 = vadd.f32 %v1773, %v1915
    %v1932 = vadd.f32 %v1774, %v1916
    %v1933 = vadd.f32 %v1775, %v1917
    %v1934 = vadd.f32 %v1776, %v1918
    %v1935 = vadd.f32 %v1777, %v1919
    %s1936 = sld [smem:[#allocation4 + $0x17]]
    %v1937 = vstv %s1936
    %v1938 = vmul.f32 %v1937, %v1071
    %v1939 = vmul.f32 %v1937, %v1072
    %v1940 = vmul.f32 %v1937, %v1073
    %v1941 = vmul.f32 %v1937, %v1074
    %v1942 = vmul.f32 %v1937, %v1075
    %v1943 = vmul.f32 %v1937, %v1076
    %v1944 = vmul.f32 %v1937, %v1077
    %v1945 = vmul.f32 %v1937, %v1078
    %v1954 = vrot.slane %v1938, 6
    %v1955 = vrot.slane %v1939, 6
    %v1956 = vrot.slane %v1940, 6
    %v1957 = vrot.slane %v1941, 6
    %v1958 = vrot.slane %v1942, 6
    %v1959 = vsel %vm847, %v1954, %v1958
    %v1960 = vrot.slane %v1943, 6
    %v1961 = vsel %vm847, %v1955, %v1960
    %v1962 = vrot.slane %v1944, 6
    %v1963 = vsel %vm847, %v1956, %v1962
    %v1964 = vrot.slane %v1945, 6
    %v1965 = vsel %vm847, %v1957, %v1964
    %1966 = vrot.lane.b32.xlu0 %v1954, 122
    %v1967 = vpop.permute.xlu0 %1966
    %1968 = vrot.lane.b32.xlu0 %v1955, 122
    %v1969 = vpop.permute.xlu0 %1968
    %1970 = vrot.lane.b32.xlu0 %v1956, 122
    %v1971 = vpop.permute.xlu0 %1970
    %1972 = vrot.lane.b32.xlu0 %v1957, 122
    %v1973 = vpop.permute.xlu0 %1972
    %1974 = vrot.lane.b32.xlu0 %v1959, 122
    %v1975 = vpop.permute.xlu0 %1974
    %1976 = vrot.lane.b32.xlu0 %v1961, 122
    %v1977 = vpop.permute.xlu0 %1976
    %1978 = vrot.lane.b32.xlu0 %v1963, 122
    %v1979 = vpop.permute.xlu0 %1978
    %1980 = vrot.lane.b32.xlu0 %v1965, 122
    %v1981 = vpop.permute.xlu0 %1980
    %1982 = vrot.lane.b32.xlu0 %v1958, 122
    %v1983 = vpop.permute.xlu0 %1982
    %1984 = vrot.lane.b32.xlu0 %v1960, 122
    %v1985 = vpop.permute.xlu0 %1984
    %1986 = vrot.lane.b32.xlu0 %v1962, 122
    %v1987 = vpop.permute.xlu0 %1986
    %v1988 = vsel %vm1753, %v1967, %v1969
    %v1989 = vsel %vm1753, %v1969, %v1971
    %v1990 = vsel %vm1753, %v1971, %v1973
    %v1991 = vsel %vm1753, %v1975, %v1977
    %v1992 = vsel %vm1753, %v1977, %v1979
    %v1993 = vsel %vm1753, %v1979, %v1981
    %v1994 = vsel %vm1753, %v1983, %v1985
    %v1995 = vsel %vm1753, %v1985, %v1987
    %v2004 = vadd.f32 %v1840, %v1988
    %v2005 = vadd.f32 %v1841, %v1989
    %v2006 = vadd.f32 %v1842, %v1990
    %v2007 = vadd.f32 %v1843, %v1991
    %v2008 = vadd.f32 %v1844, %v1992
    %v2009 = vadd.f32 %v1845, %v1993
    %v2010 = vadd.f32 %v1846, %v1994
    %v2011 = vadd.f32 %v1847, %v1995
    %s2012 = sld [smem:[#allocation4 + $0x1e]]
    %v2013 = vstv %s2012
    %v2014 = vmul.f32 %v2013, %v1071
    %v2015 = vmul.f32 %v2013, %v1072
    %v2016 = vmul.f32 %v2013, %v1073
    %v2017 = vmul.f32 %v2013, %v1074
    %v2018 = vmul.f32 %v2013, %v1075
    %v2019 = vmul.f32 %v2013, %v1076
    %v2020 = vmul.f32 %v2013, %v1077
    %v2021 = vmul.f32 %v2013, %v1078
    %v2022 = vmul.f32 %v2013, %v1079
    %v2023 = vmul.f32 %v2013, %v1080
    %v2024 = vmul.f32 %v2013, %v1081
    %v2036 = vrot.slane %v2014, 4
    %v2037 = vrot.slane %v2015, 4
    %v2038 = vrot.slane %v2016, 4
    %v2039 = vrot.slane %v2017, 4
    %v2040 = vrot.slane %v2018, 4
    %v2041 = vsel %vm934, %v2036, %v2040
    %v2042 = vrot.slane %v2019, 4
    %v2043 = vsel %vm934, %v2037, %v2042
    %v2044 = vrot.slane %v2020, 4
    %v2045 = vsel %vm934, %v2038, %v2044
    %v2046 = vrot.slane %v2021, 4
    %v2047 = vsel %vm934, %v2039, %v2046
    %v2048 = vrot.slane %v2022, 4
    %v2049 = vsel %vm934, %v2040, %v2048
    %v2050 = vrot.slane %v2023, 4
    %v2051 = vsel %vm934, %v2042, %v2050
    %v2052 = vrot.slane %v2024, 4
    %v2053 = vsel %vm934, %v2044, %v2052
    %2054 = vrot.lane.b32.xlu0 %v2036, 122
    %v2055 = vpop.permute.xlu0 %2054
    %2056 = vrot.lane.b32.xlu0 %v2037, 122
    %v2057 = vpop.permute.xlu0 %2056
    %2058 = vrot.lane.b32.xlu0 %v2038, 122
    %v2059 = vpop.permute.xlu0 %2058
    %2060 = vrot.lane.b32.xlu0 %v2039, 122
    %v2061 = vpop.permute.xlu0 %2060
    %2062 = vrot.lane.b32.xlu0 %v2041, 122
    %v2063 = vpop.permute.xlu0 %2062
    %2064 = vrot.lane.b32.xlu0 %v2043, 122
    %v2065 = vpop.permute.xlu0 %2064
    %2066 = vrot.lane.b32.xlu0 %v2045, 122
    %v2067 = vpop.permute.xlu0 %2066
    %2068 = vrot.lane.b32.xlu0 %v2047, 122
    %v2069 = vpop.permute.xlu0 %2068
    %2070 = vrot.lane.b32.xlu0 %v2049, 122
    %v2071 = vpop.permute.xlu0 %2070
    %2072 = vrot.lane.b32.xlu0 %v2051, 122
    %v2073 = vpop.permute.xlu0 %2072
    %2074 = vrot.lane.b32.xlu0 %v2053, 122
    %v2075 = vpop.permute.xlu0 %2074
    %v2076 = vsel %vm1753, %v2055, %v2057
    %v2077 = vsel %vm1753, %v2057, %v2059
    %v2078 = vsel %vm1753, %v2059, %v2061
    %v2079 = vsel %vm1753, %v2063, %v2065
    %v2080 = vsel %vm1753, %v2065, %v2067
    %v2081 = vsel %vm1753, %v2067, %v2069
    %v2082 = vsel %vm1753, %v2071, %v2073
    %v2083 = vsel %vm1753, %v2073, %v2075
    %v2092 = vadd.f32 %v1928, %v2076
    %v2093 = vadd.f32 %v1929, %v2077
    %v2094 = vadd.f32 %v1930, %v2078
    %v2095 = vadd.f32 %v1931, %v2079
    %v2096 = vadd.f32 %v1932, %v2080
    %v2097 = vadd.f32 %v1933, %v2081
    %v2098 = vadd.f32 %v1934, %v2082
    %v2099 = vadd.f32 %v1935, %v2083
    %s2100 = sld [smem:[#allocation4 + $0x25]]
    %v2101 = vstv %s2100
    %v2102 = vmul.f32 %v2101, %v1071
    %v2103 = vmul.f32 %v2101, %v1072
    %v2104 = vmul.f32 %v2101, %v1073
    %v2105 = vmul.f32 %v2101, %v1074
    %v2106 = vmul.f32 %v2101, %v1075
    %v2107 = vmul.f32 %v2101, %v1076
    %v2108 = vmul.f32 %v2101, %v1077
    %v2109 = vmul.f32 %v2101, %v1078
    %v2110 = vmul.f32 %v2101, %v1079
    %v2111 = vmul.f32 %v2101, %v1080
    %v2112 = vmul.f32 %v2101, %v1081
    %v2113 = vmul.f32 %v2101, %v1082
    %v2126 = vrot.slane %v2102, 4
    %v2127 = vrot.slane %v2106, 4
    %v2128 = vsel %vm934, %v2126, %v2127
    %v2129 = vrot.slane %v2103, 4
    %v2130 = vrot.slane %v2107, 4
    %v2131 = vsel %vm934, %v2129, %v2130
    %v2132 = vrot.slane %v2104, 4
    %v2133 = vrot.slane %v2108, 4
    %v2134 = vsel %vm934, %v2132, %v2133
    %v2135 = vrot.slane %v2105, 4
    %v2136 = vrot.slane %v2109, 4
    %v2137 = vsel %vm934, %v2135, %v2136
    %v2138 = vrot.slane %v2110, 4
    %v2139 = vsel %vm934, %v2127, %v2138
    %v2140 = vrot.slane %v2111, 4
    %v2141 = vsel %vm934, %v2130, %v2140
    %v2142 = vrot.slane %v2112, 4
    %v2143 = vsel %vm934, %v2133, %v2142
    %v2144 = vrot.slane %v2113, 4
    %v2145 = vsel %vm934, %v2136, %v2144
    %2146 = vrot.lane.b32.xlu0 %v2128, 122
    %v2147 = vpop.permute.xlu0 %2146
    %2148 = vrot.lane.b32.xlu0 %v2131, 122
    %v2149 = vpop.permute.xlu0 %2148
    %2150 = vrot.lane.b32.xlu0 %v2134, 122
    %v2151 = vpop.permute.xlu0 %2150
    %2152 = vrot.lane.b32.xlu0 %v2137, 122
    %v2153 = vpop.permute.xlu0 %2152
    %2154 = vrot.lane.b32.xlu0 %v2139, 122
    %v2155 = vpop.permute.xlu0 %2154
    %2156 = vrot.lane.b32.xlu0 %v2141, 122
    %v2157 = vpop.permute.xlu0 %2156
    %2158 = vrot.lane.b32.xlu0 %v2143, 122
    %v2159 = vpop.permute.xlu0 %2158
    %2160 = vrot.lane.b32.xlu0 %v2145, 122
    %v2161 = vpop.permute.xlu0 %2160
    %2162 = vrot.lane.b32.xlu0 %v2138, 122
    %v2163 = vpop.permute.xlu0 %2162
    %2164 = vrot.lane.b32.xlu0 %v2140, 122
    %v2165 = vpop.permute.xlu0 %2164
    %2166 = vrot.lane.b32.xlu0 %v2142, 122
    %v2167 = vpop.permute.xlu0 %2166
    %v2168 = vsel %vm1753, %v2147, %v2149
    %v2169 = vsel %vm1753, %v2149, %v2151
    %v2170 = vsel %vm1753, %v2151, %v2153
    %v2171 = vsel %vm1753, %v2155, %v2157
    %v2172 = vsel %vm1753, %v2157, %v2159
    %v2173 = vsel %vm1753, %v2159, %v2161
    %v2174 = vsel %vm1753, %v2163, %v2165
    %v2175 = vsel %vm1753, %v2165, %v2167
    %v2184 = vadd.f32 %v2004, %v2168
    %v2185 = vadd.f32 %v2005, %v2169
    %v2186 = vadd.f32 %v2006, %v2170
    %v2187 = vadd.f32 %v2007, %v2171
    %v2188 = vadd.f32 %v2008, %v2172
    %v2189 = vadd.f32 %v2009, %v2173
    %v2190 = vadd.f32 %v2010, %v2174
    %v2191 = vadd.f32 %v2011, %v2175
    %s2192 = sld [smem:[#allocation4 + $0x2c]]
    %v2193 = vstv %s2192
    %v2194 = vmul.f32 %v2193, %v1075
    %v2195 = vmul.f32 %v2193, %v1076
    %v2196 = vmul.f32 %v2193, %v1077
    %v2197 = vmul.f32 %v2193, %v1078
    %v2198 = vmul.f32 %v2193, %v1079
    %v2199 = vmul.f32 %v2193, %v1080
    %v2200 = vmul.f32 %v2193, %v1081
    %v2201 = vmul.f32 %v2193, %v1082
    %v2202 = vmul.f32 %v2193, %v1083
    %v2203 = vmul.f32 %v2193, %v1084
    %v2204 = vmul.f32 %v2193, %v1085
    %v2216 = vrot.slane %v2194, 2
    %v2217 = vrot.slane %v2195, 2
    %v2218 = vrot.slane %v2196, 2
    %v2219 = vrot.slane %v2197, 2
    %v2220 = vrot.slane %v2198, 2
    %v2221 = vsel %vm1033, %v2216, %v2220
    %v2222 = vrot.slane %v2199, 2
    %v2223 = vsel %vm1033, %v2217, %v2222
    %v2224 = vrot.slane %v2200, 2
    %v2225 = vsel %vm1033, %v2218, %v2224
    %v2226 = vrot.slane %v2201, 2
    %v2227 = vsel %vm1033, %v2219, %v2226
    %v2228 = vrot.slane %v2202, 2
    %v2229 = vsel %vm1033, %v2220, %v2228
    %v2230 = vrot.slane %v2203, 2
    %v2231 = vsel %vm1033, %v2222, %v2230
    %v2232 = vrot.slane %v2204, 2
    %v2233 = vsel %vm1033, %v2224, %v2232
    %2234 = vrot.lane.b32.xlu0 %v2216, 122
    %v2235 = vpop.permute.xlu0 %2234
    %2236 = vrot.lane.b32.xlu0 %v2217, 122
    %v2237 = vpop.permute.xlu0 %2236
    %2238 = vrot.lane.b32.xlu0 %v2218, 122
    %v2239 = vpop.permute.xlu0 %2238
    %2240 = vrot.lane.b32.xlu0 %v2219, 122
    %v2241 = vpop.permute.xlu0 %2240
    %2242 = vrot.lane.b32.xlu0 %v2221, 122
    %v2243 = vpop.permute.xlu0 %2242
    %2244 = vrot.lane.b32.xlu0 %v2223, 122
    %v2245 = vpop.permute.xlu0 %2244
    %2246 = vrot.lane.b32.xlu0 %v2225, 122
    %v2247 = vpop.permute.xlu0 %2246
    %2248 = vrot.lane.b32.xlu0 %v2227, 122
    %v2249 = vpop.permute.xlu0 %2248
    %2250 = vrot.lane.b32.xlu0 %v2229, 122
    %v2251 = vpop.permute.xlu0 %2250
    %2252 = vrot.lane.b32.xlu0 %v2231, 122
    %v2253 = vpop.permute.xlu0 %2252
    %2254 = vrot.lane.b32.xlu0 %v2233, 122
    %v2255 = vpop.permute.xlu0 %2254
    %v2256 = vsel %vm1753, %v2235, %v2237
    %v2257 = vsel %vm1753, %v2237, %v2239
    %v2258 = vsel %vm1753, %v2239, %v2241
    %v2259 = vsel %vm1753, %v2243, %v2245
    %v2260 = vsel %vm1753, %v2245, %v2247
    %v2261 = vsel %vm1753, %v2247, %v2249
    %v2262 = vsel %vm1753, %v2251, %v2253
    %v2263 = vsel %vm1753, %v2253, %v2255
    %v2272 = vadd.f32 %v2092, %v2256
    %v2273 = vadd.f32 %v2093, %v2257
    %v2274 = vadd.f32 %v2094, %v2258
    %v2275 = vadd.f32 %v2095, %v2259
    %v2276 = vadd.f32 %v2096, %v2260
    %v2277 = vadd.f32 %v2097, %v2261
    %v2278 = vadd.f32 %v2098, %v2262
    %v2279 = vadd.f32 %v2099, %v2263
    %s2280 = sld [smem:[#allocation4 + $0x3]]
    %v2281 = vstv %s2280
    %v2282 = vmul.f32 %v2281, %v1063
    %v2283 = vmul.f32 %v2281, %v1064
    %v2284 = vmul.f32 %v2281, %v1065
    %v2285 = vmul.f32 %v2281, %v1066
    %v2286 = vmul.f32 %v2281, %v1067
    %v2287 = vmul.f32 %v2281, %v1068
    %v2288 = vmul.f32 %v2281, %v1069
    %v2289 = vmul.f32 %v2281, %v1070
    %v2290 = vmul.f32 %v2281, %v1071
    %v2291 = vmul.f32 %v2281, %v1072
    %v2292 = vmul.f32 %v2281, %v1073
    %v2293 = vmul.f32 %v2281, %v1074
    %v2306 = vrot.slane %v2282, 5
    %v2307 = vrot.slane %v2286, 5
    %v2308 = vsel %vm1112, %v2306, %v2307
    %v2309 = vrot.slane %v2283, 5
    %v2310 = vrot.slane %v2287, 5
    %v2311 = vsel %vm1112, %v2309, %v2310
    %v2312 = vrot.slane %v2284, 5
    %v2313 = vrot.slane %v2288, 5
    %v2314 = vsel %vm1112, %v2312, %v2313
    %v2315 = vrot.slane %v2285, 5
    %v2316 = vrot.slane %v2289, 5
    %v2317 = vsel %vm1112, %v2315, %v2316
    %v2318 = vrot.slane %v2290, 5
    %v2319 = vsel %vm1112, %v2307, %v2318
    %v2320 = vrot.slane %v2291, 5
    %v2321 = vsel %vm1112, %v2310, %v2320
    %v2322 = vrot.slane %v2292, 5
    %v2323 = vsel %vm1112, %v2313, %v2322
    %v2324 = vrot.slane %v2293, 5
    %v2325 = vsel %vm1112, %v2316, %v2324
    %2326 = vrot.lane.b32.xlu0 %v2308, 119
    %v2327 = vpop.permute.xlu0 %2326
    %2328 = vrot.lane.b32.xlu0 %v2311, 119
    %v2329 = vpop.permute.xlu0 %2328
    %2330 = vrot.lane.b32.xlu0 %v2314, 119
    %v2331 = vpop.permute.xlu0 %2330
    %2332 = vrot.lane.b32.xlu0 %v2317, 119
    %v2333 = vpop.permute.xlu0 %2332
    %2334 = vrot.lane.b32.xlu0 %v2319, 119
    %v2335 = vpop.permute.xlu0 %2334
    %2336 = vrot.lane.b32.xlu0 %v2321, 119
    %v2337 = vpop.permute.xlu0 %2336
    %2338 = vrot.lane.b32.xlu0 %v2323, 119
    %v2339 = vpop.permute.xlu0 %2338
    %2340 = vrot.lane.b32.xlu0 %v2325, 119
    %v2341 = vpop.permute.xlu0 %2340
    %2342 = vrot.lane.b32.xlu0 %v2318, 119
    %v2343 = vpop.permute.xlu0 %2342
    %2344 = vrot.lane.b32.xlu0 %v2320, 119
    %v2345 = vpop.permute.xlu0 %2344
    %2346 = vrot.lane.b32.xlu0 %v2322, 119
    %v2347 = vpop.permute.xlu0 %2346
    %vm2348 = vcmask 973824
    %v2349 = vsel %vm2348, %v2327, %v2329
    %v2350 = vsel %vm2348, %v2329, %v2331
    %v2351 = vsel %vm2348, %v2331, %v2333
    %v2352 = vsel %vm2348, %v2335, %v2337
    %v2353 = vsel %vm2348, %v2337, %v2339
    %v2354 = vsel %vm2348, %v2339, %v2341
    %v2355 = vsel %vm2348, %v2343, %v2345
    %v2356 = vsel %vm2348, %v2345, %v2347
    %v2365 = vadd.f32 %v2184, %v2349
    %v2366 = vadd.f32 %v2185, %v2350
    %v2367 = vadd.f32 %v2186, %v2351
    %v2368 = vadd.f32 %v2187, %v2352
    %v2369 = vadd.f32 %v2188, %v2353
    %v2370 = vadd.f32 %v2189, %v2354
    %v2371 = vadd.f32 %v2190, %v2355
    %v2372 = vadd.f32 %v2191, %v2356
    %s2373 = sld [smem:[#allocation4 + $0xa]]
    %v2374 = vstv %s2373
    %v2375 = vmul.f32 %v2374, %v1067
    %v2376 = vmul.f32 %v2374, %v1068
    %v2377 = vmul.f32 %v2374, %v1069
    %v2378 = vmul.f32 %v2374, %v1070
    %v2379 = vmul.f32 %v2374, %v1071
    %v2380 = vmul.f32 %v2374, %v1072
    %v2381 = vmul.f32 %v2374, %v1073
    %v2382 = vmul.f32 %v2374, %v1074
    %v2383 = vmul.f32 %v2374, %v1075
    %v2384 = vmul.f32 %v2374, %v1076
    %v2385 = vmul.f32 %v2374, %v1077
    %v2397 = vrot.slane %v2375, 3
    %v2398 = vrot.slane %v2376, 3
    %v2399 = vrot.slane %v2377, 3
    %v2400 = vrot.slane %v2378, 3
    %v2401 = vrot.slane %v2379, 3
    %v2402 = vsel %vm1204, %v2397, %v2401
    %v2403 = vrot.slane %v2380, 3
    %v2404 = vsel %vm1204, %v2398, %v2403
    %v2405 = vrot.slane %v2381, 3
    %v2406 = vsel %vm1204, %v2399, %v2405
    %v2407 = vrot.slane %v2382, 3
    %v2408 = vsel %vm1204, %v2400, %v2407
    %v2409 = vrot.slane %v2383, 3
    %v2410 = vsel %vm1204, %v2401, %v2409
    %v2411 = vrot.slane %v2384, 3
    %v2412 = vsel %vm1204, %v2403, %v2411
    %v2413 = vrot.slane %v2385, 3
    %v2414 = vsel %vm1204, %v2405, %v2413
    %2415 = vrot.lane.b32.xlu0 %v2397, 119
    %v2416 = vpop.permute.xlu0 %2415
    %2417 = vrot.lane.b32.xlu0 %v2398, 119
    %v2418 = vpop.permute.xlu0 %2417
    %2419 = vrot.lane.b32.xlu0 %v2399, 119
    %v2420 = vpop.permute.xlu0 %2419
    %2421 = vrot.lane.b32.xlu0 %v2400, 119
    %v2422 = vpop.permute.xlu0 %2421
    %2423 = vrot.lane.b32.xlu0 %v2402, 119
    %v2424 = vpop.permute.xlu0 %2423
    %2425 = vrot.lane.b32.xlu0 %v2404, 119
    %v2426 = vpop.permute.xlu0 %2425
    %2427 = vrot.lane.b32.xlu0 %v2406, 119
    %v2428 = vpop.permute.xlu0 %2427
    %2429 = vrot.lane.b32.xlu0 %v2408, 119
    %v2430 = vpop.permute.xlu0 %2429
    %2431 = vrot.lane.b32.xlu0 %v2410, 119
    %v2432 = vpop.permute.xlu0 %2431
    %2433 = vrot.lane.b32.xlu0 %v2412, 119
    %v2434 = vpop.permute.xlu0 %2433
    %2435 = vrot.lane.b32.xlu0 %v2414, 119
    %v2436 = vpop.permute.xlu0 %2435
    %v2437 = vsel %vm2348, %v2416, %v2418
    %v2438 = vsel %vm2348, %v2418, %v2420
    %v2439 = vsel %vm2348, %v2420, %v2422
    %v2440 = vsel %vm2348, %v2424, %v2426
    %v2441 = vsel %vm2348, %v2426, %v2428
    %v2442 = vsel %vm2348, %v2428, %v2430
    %v2443 = vsel %vm2348, %v2432, %v2434
    %v2444 = vsel %vm2348, %v2434, %v2436
    %v2453 = vadd.f32 %v2272, %v2437
    %v2454 = vadd.f32 %v2273, %v2438
    %v2455 = vadd.f32 %v2274, %v2439
    %v2456 = vadd.f32 %v2275, %v2440
    %v2457 = vadd.f32 %v2276, %v2441
    %v2458 = vadd.f32 %v2277, %v2442
    %v2459 = vadd.f32 %v2278, %v2443
    %v2460 = vadd.f32 %v2279, %v2444
    %s2461 = sld [smem:[#allocation4 + $0x11]]
    %v2462 = vstv %s2461
    %v2463 = vmul.f32 %v2462, %v1067
    %v2464 = vmul.f32 %v2462, %v1068
    %v2465 = vmul.f32 %v2462, %v1069
    %v2466 = vmul.f32 %v2462, %v1070
    %v2467 = vmul.f32 %v2462, %v1071
    %v2468 = vmul.f32 %v2462, %v1072
    %v2469 = vmul.f32 %v2462, %v1073
    %v2470 = vmul.f32 %v2462, %v1074
    %v2471 = vmul.f32 %v2462, %v1075
    %v2472 = vmul.f32 %v2462, %v1076
    %v2473 = vmul.f32 %v2462, %v1077
    %v2474 = vmul.f32 %v2462, %v1078
    %v2487 = vrot.slane %v2463, 3
    %v2488 = vrot.slane %v2467, 3
    %v2489 = vsel %vm1204, %v2487, %v2488
    %v2490 = vrot.slane %v2464, 3
    %v2491 = vrot.slane %v2468, 3
    %v2492 = vsel %vm1204, %v2490, %v2491
    %v2493 = vrot.slane %v2465, 3
    %v2494 = vrot.slane %v2469, 3
    %v2495 = vsel %vm1204, %v2493, %v2494
    %v2496 = vrot.slane %v2466, 3
    %v2497 = vrot.slane %v2470, 3
    %v2498 = vsel %vm1204, %v2496, %v2497
    %v2499 = vrot.slane %v2471, 3
    %v2500 = vsel %vm1204, %v2488, %v2499
    %v2501 = vrot.slane %v2472, 3
    %v2502 = vsel %vm1204, %v2491, %v2501
    %v2503 = vrot.slane %v2473, 3
    %v2504 = vsel %vm1204, %v2494, %v2503
    %v2505 = vrot.slane %v2474, 3
    %v2506 = vsel %vm1204, %v2497, %v2505
    %2507 = vrot.lane.b32.xlu0 %v2489, 119
    %v2508 = vpop.permute.xlu0 %2507
    %2509 = vrot.lane.b32.xlu0 %v2492, 119
    %v2510 = vpop.permute.xlu0 %2509
    %2511 = vrot.lane.b32.xlu0 %v2495, 119
    %v2512 = vpop.permute.xlu0 %2511
    %2513 = vrot.lane.b32.xlu0 %v2498, 119
    %v2514 = vpop.permute.xlu0 %2513
    %2515 = vrot.lane.b32.xlu0 %v2500, 119
    %v2516 = vpop.permute.xlu0 %2515
    %2517 = vrot.lane.b32.xlu0 %v2502, 119
    %v2518 = vpop.permute.xlu0 %2517
    %2519 = vrot.lane.b32.xlu0 %v2504, 119
    %v2520 = vpop.permute.xlu0 %2519
    %2521 = vrot.lane.b32.xlu0 %v2506, 119
    %v2522 = vpop.permute.xlu0 %2521
    %2523 = vrot.lane.b32.xlu0 %v2499, 119
    %v2524 = vpop.permute.xlu0 %2523
    %2525 = vrot.lane.b32.xlu0 %v2501, 119
    %v2526 = vpop.permute.xlu0 %2525
    %2527 = vrot.lane.b32.xlu0 %v2503, 119
    %v2528 = vpop.permute.xlu0 %2527
    %v2529 = vsel %vm2348, %v2508, %v2510
    %v2530 = vsel %vm2348, %v2510, %v2512
    %v2531 = vsel %vm2348, %v2512, %v2514
    %v2532 = vsel %vm2348, %v2516, %v2518
    %v2533 = vsel %vm2348, %v2518, %v2520
    %v2534 = vsel %vm2348, %v2520, %v2522
    %v2535 = vsel %vm2348, %v2524, %v2526
    %v2536 = vsel %vm2348, %v2526, %v2528
    %v2545 = vadd.f32 %v2365, %v2529
    %v2546 = vadd.f32 %v2366, %v2530
    %v2547 = vadd.f32 %v2367, %v2531
    %v2548 = vadd.f32 %v2368, %v2532
    %v2549 = vadd.f32 %v2369, %v2533
    %v2550 = vadd.f32 %v2370, %v2534
    %v2551 = vadd.f32 %v2371, %v2535
    %v2552 = vadd.f32 %v2372, %v2536
    %s2553 = sld [smem:[#allocation4 + $0x18]]
    %v2554 = vstv %s2553
    %v2555 = vmul.f32 %v2554, %v1071
    %v2556 = vmul.f32 %v2554, %v1072
    %v2557 = vmul.f32 %v2554, %v1073
    %v2558 = vmul.f32 %v2554, %v1074
    %v2559 = vmul.f32 %v2554, %v1075
    %v2560 = vmul.f32 %v2554, %v1076
    %v2561 = vmul.f32 %v2554, %v1077
    %v2562 = vmul.f32 %v2554, %v1078
    %v2571 = vrot.slane %v2555, 1
    %v2572 = vrot.slane %v2556, 1
    %v2573 = vrot.slane %v2557, 1
    %v2574 = vrot.slane %v2558, 1
    %v2575 = vrot.slane %v2559, 1
    %v2576 = vsel %vm1379, %v2571, %v2575
    %v2577 = vrot.slane %v2560, 1
    %v2578 = vsel %vm1379, %v2572, %v2577
    %v2579 = vrot.slane %v2561, 1
    %v2580 = vsel %vm1379, %v2573, %v2579
    %v2581 = vrot.slane %v2562, 1
    %v2582 = vsel %vm1379, %v2574, %v2581
    %2583 = vrot.lane.b32.xlu0 %v2571, 119
    %v2584 = vpop.permute.xlu0 %2583
    %2585 = vrot.lane.b32.xlu0 %v2572, 119
    %v2586 = vpop.permute.xlu0 %2585
    %2587 = vrot.lane.b32.xlu0 %v2573, 119
    %v2588 = vpop.permute.xlu0 %2587
    %2589 = vrot.lane.b32.xlu0 %v2574, 119
    %v2590 = vpop.permute.xlu0 %2589
    %2591 = vrot.lane.b32.xlu0 %v2576, 119
    %v2592 = vpop.permute.xlu0 %2591
    %2593 = vrot.lane.b32.xlu0 %v2578, 119
    %v2594 = vpop.permute.xlu0 %2593
    %2595 = vrot.lane.b32.xlu0 %v2580, 119
    %v2596 = vpop.permute.xlu0 %2595
    %2597 = vrot.lane.b32.xlu0 %v2582, 119
    %v2598 = vpop.permute.xlu0 %2597
    %2599 = vrot.lane.b32.xlu0 %v2575, 119
    %v2600 = vpop.permute.xlu0 %2599
    %2601 = vrot.lane.b32.xlu0 %v2577, 119
    %v2602 = vpop.permute.xlu0 %2601
    %2603 = vrot.lane.b32.xlu0 %v2579, 119
    %v2604 = vpop.permute.xlu0 %2603
    %v2605 = vsel %vm2348, %v2584, %v2586
    %v2606 = vsel %vm2348, %v2586, %v2588
    %v2607 = vsel %vm2348, %v2588, %v2590
    %v2608 = vsel %vm2348, %v2592, %v2594
    %v2609 = vsel %vm2348, %v2594, %v2596
    %v2610 = vsel %vm2348, %v2596, %v2598
    %v2611 = vsel %vm2348, %v2600, %v2602
    %v2612 = vsel %vm2348, %v2602, %v2604
    %v2621 = vadd.f32 %v2453, %v2605
    %v2622 = vadd.f32 %v2454, %v2606
    %v2623 = vadd.f32 %v2455, %v2607
    %v2624 = vadd.f32 %v2456, %v2608
    %v2625 = vadd.f32 %v2457, %v2609
    %v2626 = vadd.f32 %v2458, %v2610
    %v2627 = vadd.f32 %v2459, %v2611
    %v2628 = vadd.f32 %v2460, %v2612
    %s2629 = sld [smem:[#allocation4 + $0x1f]]
    %v2630 = vstv %s2629
    %v2631 = vmul.f32 %v2630, %v1071
    %v2632 = vmul.f32 %v2630, %v1072
    %v2633 = vmul.f32 %v2630, %v1073
    %v2634 = vmul.f32 %v2630, %v1074
    %v2635 = vmul.f32 %v2630, %v1075
    %v2636 = vmul.f32 %v2630, %v1076
    %v2637 = vmul.f32 %v2630, %v1077
    %v2638 = vmul.f32 %v2630, %v1078
    %v2639 = vmul.f32 %v2630, %v1079
    %v2640 = vmul.f32 %v2630, %v1080
    %v2641 = vmul.f32 %v2630, %v1081
    %v2642 = vmul.f32 %v2630, %v1082
    %v2655 = vrot.slane %v2631, 1
    %v2656 = vrot.slane %v2635, 1
    %v2657 = vsel %vm1379, %v2655, %v2656
    %v2658 = vrot.slane %v2632, 1
    %v2659 = vrot.slane %v2636, 1
    %v2660 = vsel %vm1379, %v2658, %v2659
    %v2661 = vrot.slane %v2633, 1
    %v2662 = vrot.slane %v2637, 1
    %v2663 = vsel %vm1379, %v2661, %v2662
    %v2664 = vrot.slane %v2634, 1
    %v2665 = vrot.slane %v2638, 1
    %v2666 = vsel %vm1379, %v2664, %v2665
    %v2667 = vrot.slane %v2639, 1
    %v2668 = vsel %vm1379, %v2656, %v2667
    %v2669 = vrot.slane %v2640, 1
    %v2670 = vsel %vm1379, %v2659, %v2669
    %v2671 = vrot.slane %v2641, 1
    %v2672 = vsel %vm1379, %v2662, %v2671
    %v2673 = vrot.slane %v2642, 1
    %v2674 = vsel %vm1379, %v2665, %v2673
    %2675 = vrot.lane.b32.xlu0 %v2657, 119
    %v2676 = vpop.permute.xlu0 %2675
    %2677 = vrot.lane.b32.xlu0 %v2660, 119
    %v2678 = vpop.permute.xlu0 %2677
    %2679 = vrot.lane.b32.xlu0 %v2663, 119
    %v2680 = vpop.permute.xlu0 %2679
    %2681 = vrot.lane.b32.xlu0 %v2666, 119
    %v2682 = vpop.permute.xlu0 %2681
    %2683 = vrot.lane.b32.xlu0 %v2668, 119
    %v2684 = vpop.permute.xlu0 %2683
    %2685 = vrot.lane.b32.xlu0 %v2670, 119
    %v2686 = vpop.permute.xlu0 %2685
    %2687 = vrot.lane.b32.xlu0 %v2672, 119
    %v2688 = vpop.permute.xlu0 %2687
    %2689 = vrot.lane.b32.xlu0 %v2674, 119
    %v2690 = vpop.permute.xlu0 %2689
    %2691 = vrot.lane.b32.xlu0 %v2667, 119
    %v2692 = vpop.permute.xlu0 %2691
    %2693 = vrot.lane.b32.xlu0 %v2669, 119
    %v2694 = vpop.permute.xlu0 %2693
    %2695 = vrot.lane.b32.xlu0 %v2671, 119
    %v2696 = vpop.permute.xlu0 %2695
    %v2697 = vsel %vm2348, %v2676, %v2678
    %v2698 = vsel %vm2348, %v2678, %v2680
    %v2699 = vsel %vm2348, %v2680, %v2682
    %v2700 = vsel %vm2348, %v2684, %v2686
    %v2701 = vsel %vm2348, %v2686, %v2688
    %v2702 = vsel %vm2348, %v2688, %v2690
    %v2703 = vsel %vm2348, %v2692, %v2694
    %v2704 = vsel %vm2348, %v2694, %v2696
    %v2713 = vadd.f32 %v2545, %v2697
    %v2714 = vadd.f32 %v2546, %v2698
    %v2715 = vadd.f32 %v2547, %v2699
    %v2716 = vadd.f32 %v2548, %v2700
    %v2717 = vadd.f32 %v2549, %v2701
    %v2718 = vadd.f32 %v2550, %v2702
    %v2719 = vadd.f32 %v2551, %v2703
    %v2720 = vadd.f32 %v2552, %v2704
    %s2721 = sld [smem:[#allocation4 + $0x26]]
    %v2722 = vstv %s2721
    %v2723 = vmul.f32 %v2722, %v1071
    %v2724 = vmul.f32 %v2722, %v1072
    %v2725 = vmul.f32 %v2722, %v1073
    %v2726 = vmul.f32 %v2722, %v1074
    %v2727 = vmul.f32 %v2722, %v1075
    %v2728 = vmul.f32 %v2722, %v1076
    %v2729 = vmul.f32 %v2722, %v1077
    %v2730 = vmul.f32 %v2722, %v1078
    %v2731 = vmul.f32 %v2722, %v1079
    %v2732 = vmul.f32 %v2722, %v1080
    %v2733 = vmul.f32 %v2722, %v1081
    %v2745 = vrot.slane %v2723, 7
    %v2746 = vrot.slane %v2724, 7
    %v2747 = vrot.slane %v2725, 7
    %v2748 = vrot.slane %v2726, 7
    %v2749 = vrot.slane %v2727, 7
    %v2750 = vsel %vm1554, %v2745, %v2749
    %v2751 = vrot.slane %v2728, 7
    %v2752 = vsel %vm1554, %v2746, %v2751
    %v2753 = vrot.slane %v2729, 7
    %v2754 = vsel %vm1554, %v2747, %v2753
    %v2755 = vrot.slane %v2730, 7
    %v2756 = vsel %vm1554, %v2748, %v2755
    %v2757 = vrot.slane %v2731, 7
    %v2758 = vsel %vm1554, %v2749, %v2757
    %v2759 = vrot.slane %v2732, 7
    %v2760 = vsel %vm1554, %v2751, %v2759
    %v2761 = vrot.slane %v2733, 7
    %v2762 = vsel %vm1554, %v2753, %v2761
    %2763 = vrot.lane.b32.xlu0 %v2745, 119
    %v2764 = vpop.permute.xlu0 %2763
    %2765 = vrot.lane.b32.xlu0 %v2746, 119
    %v2766 = vpop.permute.xlu0 %2765
    %2767 = vrot.lane.b32.xlu0 %v2747, 119
    %v2768 = vpop.permute.xlu0 %2767
    %2769 = vrot.lane.b32.xlu0 %v2748, 119
    %v2770 = vpop.permute.xlu0 %2769
    %2771 = vrot.lane.b32.xlu0 %v2750, 119
    %v2772 = vpop.permute.xlu0 %2771
    %2773 = vrot.lane.b32.xlu0 %v2752, 119
    %v2774 = vpop.permute.xlu0 %2773
    %2775 = vrot.lane.b32.xlu0 %v2754, 119
    %v2776 = vpop.permute.xlu0 %2775
    %2777 = vrot.lane.b32.xlu0 %v2756, 119
    %v2778 = vpop.permute.xlu0 %2777
    %2779 = vrot.lane.b32.xlu0 %v2758, 119
    %v2780 = vpop.permute.xlu0 %2779
    %2781 = vrot.lane.b32.xlu0 %v2760, 119
    %v2782 = vpop.permute.xlu0 %2781
    %2783 = vrot.lane.b32.xlu0 %v2762, 119
    %v2784 = vpop.permute.xlu0 %2783
    %v2785 = vsel %vm2348, %v2764, %v2766
    %v2786 = vsel %vm2348, %v2766, %v2768
    %v2787 = vsel %vm2348, %v2768, %v2770
    %v2788 = vsel %vm2348, %v2772, %v2774
    %v2789 = vsel %vm2348, %v2774, %v2776
    %v2790 = vsel %vm2348, %v2776, %v2778
    %v2791 = vsel %vm2348, %v2780, %v2782
    %v2792 = vsel %vm2348, %v2782, %v2784
    %v2801 = vadd.f32 %v2621, %v2785
    %v2802 = vadd.f32 %v2622, %v2786
    %v2803 = vadd.f32 %v2623, %v2787
    %v2804 = vadd.f32 %v2624, %v2788
    %v2805 = vadd.f32 %v2625, %v2789
    %v2806 = vadd.f32 %v2626, %v2790
    %v2807 = vadd.f32 %v2627, %v2791
    %v2808 = vadd.f32 %v2628, %v2792
    %s2809 = sld [smem:[#allocation4 + $0x2d]]
    %v2810 = vstv %s2809
    %v2811 = vmul.f32 %v2810, %v1075
    %v2812 = vmul.f32 %v2810, %v1076
    %v2813 = vmul.f32 %v2810, %v1077
    %v2814 = vmul.f32 %v2810, %v1078
    %v2815 = vmul.f32 %v2810, %v1079
    %v2816 = vmul.f32 %v2810, %v1080
    %v2817 = vmul.f32 %v2810, %v1081
    %v2818 = vmul.f32 %v2810, %v1082
    %v2819 = vmul.f32 %v2810, %v1083
    %v2820 = vmul.f32 %v2810, %v1084
    %v2821 = vmul.f32 %v2810, %v1085
    %v2833 = vrot.slane %v2811, 7
    %v2834 = vrot.slane %v2812, 7
    %v2835 = vrot.slane %v2813, 7
    %v2836 = vrot.slane %v2814, 7
    %v2837 = vrot.slane %v2815, 7
    %v2838 = vsel %vm1554, %v2833, %v2837
    %v2839 = vrot.slane %v2816, 7
    %v2840 = vsel %vm1554, %v2834, %v2839
    %v2841 = vrot.slane %v2817, 7
    %v2842 = vsel %vm1554, %v2835, %v2841
    %v2843 = vrot.slane %v2818, 7
    %v2844 = vsel %vm1554, %v2836, %v2843
    %v2845 = vrot.slane %v2819, 7
    %v2846 = vsel %vm1554, %v2837, %v2845
    %v2847 = vrot.slane %v2820, 7
    %v2848 = vsel %vm1554, %v2839, %v2847
    %v2849 = vrot.slane %v2821, 7
    %v2850 = vsel %vm1554, %v2841, %v2849
    %2851 = vrot.lane.b32.xlu0 %v2833, 119
    %v2852 = vpop.permute.xlu0 %2851
    %2853 = vrot.lane.b32.xlu0 %v2834, 119
    %v2854 = vpop.permute.xlu0 %2853
    %2855 = vrot.lane.b32.xlu0 %v2835, 119
    %v2856 = vpop.permute.xlu0 %2855
    %2857 = vrot.lane.b32.xlu0 %v2836, 119
    %v2858 = vpop.permute.xlu0 %2857
    %2859 = vrot.lane.b32.xlu0 %v2838, 119
    %v2860 = vpop.permute.xlu0 %2859
    %2861 = vrot.lane.b32.xlu0 %v2840, 119
    %v2862 = vpop.permute.xlu0 %2861
    %2863 = vrot.lane.b32.xlu0 %v2842, 119
    %v2864 = vpop.permute.xlu0 %2863
    %2865 = vrot.lane.b32.xlu0 %v2844, 119
    %v2866 = vpop.permute.xlu0 %2865
    %2867 = vrot.lane.b32.xlu0 %v2846, 119
    %v2868 = vpop.permute.xlu0 %2867
    %2869 = vrot.lane.b32.xlu0 %v2848, 119
    %v2870 = vpop.permute.xlu0 %2869
    %2871 = vrot.lane.b32.xlu0 %v2850, 119
    %v2872 = vpop.permute.xlu0 %2871
    %v2873 = vsel %vm2348, %v2852, %v2854
    %v2874 = vsel %vm2348, %v2854, %v2856
    %v2875 = vsel %vm2348, %v2856, %v2858
    %v2876 = vsel %vm2348, %v2860, %v2862
    %v2877 = vsel %vm2348, %v2862, %v2864
    %v2878 = vsel %vm2348, %v2864, %v2866
    %v2879 = vsel %vm2348, %v2868, %v2870
    %v2880 = vsel %vm2348, %v2870, %v2872
    %v2889 = vadd.f32 %v2713, %v2873
    %v2890 = vadd.f32 %v2714, %v2874
    %v2891 = vadd.f32 %v2715, %v2875
    %v2892 = vadd.f32 %v2716, %v2876
    %v2893 = vadd.f32 %v2717, %v2877
    %v2894 = vadd.f32 %v2718, %v2878
    %v2895 = vadd.f32 %v2719, %v2879
    %v2896 = vadd.f32 %v2720, %v2880
    %s2897 = sld [smem:[#allocation4 + $0x4]]
    %v2898 = vstv %s2897
    %v2899 = vmul.f32 %v2898, %v1063
    %v2900 = vmul.f32 %v2898, %v1064
    %v2901 = vmul.f32 %v2898, %v1065
    %v2902 = vmul.f32 %v2898, %v1066
    %v2903 = vmul.f32 %v2898, %v1067
    %v2904 = vmul.f32 %v2898, %v1068
    %v2905 = vmul.f32 %v2898, %v1069
    %v2906 = vmul.f32 %v2898, %v1070
    %v2907 = vmul.f32 %v2898, %v1071
    %v2908 = vmul.f32 %v2898, %v1072
    %v2909 = vmul.f32 %v2898, %v1073
    %2921 = vrot.lane.b32.xlu0 %v2899, 116
    %v2922 = vpop.permute.xlu0 %2921
    %2923 = vrot.lane.b32.xlu0 %v2900, 116
    %v2924 = vpop.permute.xlu0 %2923
    %2925 = vrot.lane.b32.xlu0 %v2901, 116
    %v2926 = vpop.permute.xlu0 %2925
    %2927 = vrot.lane.b32.xlu0 %v2902, 116
    %v2928 = vpop.permute.xlu0 %2927
    %2929 = vrot.lane.b32.xlu0 %v2903, 116
    %v2930 = vpop.permute.xlu0 %2929
    %2931 = vrot.lane.b32.xlu0 %v2904, 116
    %v2932 = vpop.permute.xlu0 %2931
    %2933 = vrot.lane.b32.xlu0 %v2905, 116
    %v2934 = vpop.permute.xlu0 %2933
    %2935 = vrot.lane.b32.xlu0 %v2906, 116
    %v2936 = vpop.permute.xlu0 %2935
    %2937 = vrot.lane.b32.xlu0 %v2907, 116
    %v2938 = vpop.permute.xlu0 %2937
    %2939 = vrot.lane.b32.xlu0 %v2908, 116
    %v2940 = vpop.permute.xlu0 %2939
    %2941 = vrot.lane.b32.xlu0 %v2909, 116
    %v2942 = vpop.permute.xlu0 %2941
    %vm2943 = vcmask 949248
    %v2944 = vsel %vm2943, %v2922, %v2924
    %v2945 = vsel %vm2943, %v2924, %v2926
    %v2946 = vsel %vm2943, %v2926, %v2928
    %v2947 = vsel %vm2943, %v2930, %v2932
    %v2948 = vsel %vm2943, %v2932, %v2934
    %v2949 = vsel %vm2943, %v2934, %v2936
    %v2950 = vsel %vm2943, %v2938, %v2940
    %v2951 = vsel %vm2943, %v2940, %v2942
    %v2960 = vadd.f32 %v2801, %v2944
    %v2961 = vadd.f32 %v2802, %v2945
    %v2962 = vadd.f32 %v2803, %v2946
    %v2963 = vadd.f32 %v2804, %v2947
    %v2964 = vadd.f32 %v2805, %v2948
    %v2965 = vadd.f32 %v2806, %v2949
    %v2966 = vadd.f32 %v2807, %v2950
    %v2967 = vadd.f32 %v2808, %v2951
    %s2968 = sld [smem:[#allocation4 + $0xb]]
    %v2969 = vstv %s2968
    %v2970 = vmul.f32 %v2969, %v1067
    %v2971 = vmul.f32 %v2969, %v1068
    %v2972 = vmul.f32 %v2969, %v1069
    %v2973 = vmul.f32 %v2969, %v1070
    %v2974 = vmul.f32 %v2969, %v1071
    %v2975 = vmul.f32 %v2969, %v1072
    %v2976 = vmul.f32 %v2969, %v1073
    %v2977 = vmul.f32 %v2969, %v1074
    %v2978 = vmul.f32 %v2969, %v1075
    %v2979 = vmul.f32 %v2969, %v1076
    %v2980 = vmul.f32 %v2969, %v1077
    %2992 = vrot.lane.b32.xlu0 %v2970, 116
    %v2993 = vpop.permute.xlu0 %2992
    %2994 = vrot.lane.b32.xlu0 %v2971, 116
    %v2995 = vpop.permute.xlu0 %2994
    %2996 = vrot.lane.b32.xlu0 %v2972, 116
    %v2997 = vpop.permute.xlu0 %2996
    %2998 = vrot.lane.b32.xlu0 %v2973, 116
    %v2999 = vpop.permute.xlu0 %2998
    %3000 = vrot.lane.b32.xlu0 %v2974, 116
    %v3001 = vpop.permute.xlu0 %3000
    %3002 = vrot.lane.b32.xlu0 %v2975, 116
    %v3003 = vpop.permute.xlu0 %3002
    %3004 = vrot.lane.b32.xlu0 %v2976, 116
    %v3005 = vpop.permute.xlu0 %3004
    %3006 = vrot.lane.b32.xlu0 %v2977, 116
    %v3007 = vpop.permute.xlu0 %3006
    %3008 = vrot.lane.b32.xlu0 %v2978, 116
    %v3009 = vpop.permute.xlu0 %3008
    %3010 = vrot.lane.b32.xlu0 %v2979, 116
    %v3011 = vpop.permute.xlu0 %3010
    %3012 = vrot.lane.b32.xlu0 %v2980, 116
    %v3013 = vpop.permute.xlu0 %3012
    %v3014 = vsel %vm2943, %v2993, %v2995
    %v3015 = vsel %vm2943, %v2995, %v2997
    %v3016 = vsel %vm2943, %v2997, %v2999
    %v3017 = vsel %vm2943, %v3001, %v3003
    %v3018 = vsel %vm2943, %v3003, %v3005
    %v3019 = vsel %vm2943, %v3005, %v3007
    %v3020 = vsel %vm2943, %v3009, %v3011
    %v3021 = vsel %vm2943, %v3011, %v3013
    %v3030 = vadd.f32 %v2889, %v3014
    %v3031 = vadd.f32 %v2890, %v3015
    %v3032 = vadd.f32 %v2891, %v3016
    %v3033 = vadd.f32 %v2892, %v3017
    %v3034 = vadd.f32 %v2893, %v3018
    %v3035 = vadd.f32 %v2894, %v3019
    %v3036 = vadd.f32 %v2895, %v3020
    %v3037 = vadd.f32 %v2896, %v3021
    %s3038 = sld [smem:[#allocation4 + $0x12]]
    %v3039 = vstv %s3038
    %v3040 = vmul.f32 %v3039, %v1067
    %v3041 = vmul.f32 %v3039, %v1068
    %v3042 = vmul.f32 %v3039, %v1069
    %v3043 = vmul.f32 %v3039, %v1070
    %v3044 = vmul.f32 %v3039, %v1071
    %v3045 = vmul.f32 %v3039, %v1072
    %v3046 = vmul.f32 %v3039, %v1073
    %v3047 = vmul.f32 %v3039, %v1074
    %v3048 = vmul.f32 %v3039, %v1075
    %v3049 = vmul.f32 %v3039, %v1076
    %v3050 = vmul.f32 %v3039, %v1077
    %v3062 = vrot.slane %v3040, 6
    %v3063 = vrot.slane %v3041, 6
    %v3064 = vrot.slane %v3042, 6
    %v3065 = vrot.slane %v3043, 6
    %v3066 = vrot.slane %v3044, 6
    %v3067 = vsel %vm847, %v3062, %v3066
    %v3068 = vrot.slane %v3045, 6
    %v3069 = vsel %vm847, %v3063, %v3068
    %v3070 = vrot.slane %v3046, 6
    %v3071 = vsel %vm847, %v3064, %v3070
    %v3072 = vrot.slane %v3047, 6
    %v3073 = vsel %vm847, %v3065, %v3072
    %v3074 = vrot.slane %v3048, 6
    %v3075 = vsel %vm847, %v3066, %v3074
    %v3076 = vrot.slane %v3049, 6
    %v3077 = vsel %vm847, %v3068, %v3076
    %v3078 = vrot.slane %v3050, 6
    %v3079 = vsel %vm847, %v3070, %v3078
    %3080 = vrot.lane.b32.xlu0 %v3062, 116
    %v3081 = vpop.permute.xlu0 %3080
    %3082 = vrot.lane.b32.xlu0 %v3063, 116
    %v3083 = vpop.permute.xlu0 %3082
    %3084 = vrot.lane.b32.xlu0 %v3064, 116
    %v3085 = vpop.permute.xlu0 %3084
    %3086 = vrot.lane.b32.xlu0 %v3065, 116
    %v3087 = vpop.permute.xlu0 %3086
    %3088 = vrot.lane.b32.xlu0 %v3067, 116
    %v3089 = vpop.permute.xlu0 %3088
    %3090 = vrot.lane.b32.xlu0 %v3069, 116
    %v3091 = vpop.permute.xlu0 %3090
    %3092 = vrot.lane.b32.xlu0 %v3071, 116
    %v3093 = vpop.permute.xlu0 %3092
    %3094 = vrot.lane.b32.xlu0 %v3073, 116
    %v3095 = vpop.permute.xlu0 %3094
    %3096 = vrot.lane.b32.xlu0 %v3075, 116
    %v3097 = vpop.permute.xlu0 %3096
    %3098 = vrot.lane.b32.xlu0 %v3077, 116
    %v3099 = vpop.permute.xlu0 %3098
    %3100 = vrot.lane.b32.xlu0 %v3079, 116
    %v3101 = vpop.permute.xlu0 %3100
    %v3102 = vsel %vm2943, %v3081, %v3083
    %v3103 = vsel %vm2943, %v3083, %v3085
    %v3104 = vsel %vm2943, %v3085, %v3087
    %v3105 = vsel %vm2943, %v3089, %v3091
    %v3106 = vsel %vm2943, %v3091, %v3093
    %v3107 = vsel %vm2943, %v3093, %v3095
    %v3108 = vsel %vm2943, %v3097, %v3099
    %v3109 = vsel %vm2943, %v3099, %v3101
    %v3118 = vadd.f32 %v2960, %v3102
    %v3119 = vadd.f32 %v2961, %v3103
    %v3120 = vadd.f32 %v2962, %v3104
    %v3121 = vadd.f32 %v2963, %v3105
    %v3122 = vadd.f32 %v2964, %v3106
    %v3123 = vadd.f32 %v2965, %v3107
    %v3124 = vadd.f32 %v2966, %v3108
    %v3125 = vadd.f32 %v2967, %v3109
    %s3126 = sld [smem:[#allocation4 + $0x19]]
    %v3127 = vstv %s3126
    %v3128 = vmul.f32 %v3127, %v1071
    %v3129 = vmul.f32 %v3127, %v1072
    %v3130 = vmul.f32 %v3127, %v1073
    %v3131 = vmul.f32 %v3127, %v1074
    %v3132 = vmul.f32 %v3127, %v1075
    %v3133 = vmul.f32 %v3127, %v1076
    %v3134 = vmul.f32 %v3127, %v1077
    %v3135 = vmul.f32 %v3127, %v1078
    %v3144 = vrot.slane %v3128, 6
    %v3145 = vrot.slane %v3129, 6
    %v3146 = vrot.slane %v3130, 6
    %v3147 = vrot.slane %v3131, 6
    %v3148 = vrot.slane %v3132, 6
    %v3149 = vsel %vm847, %v3144, %v3148
    %v3150 = vrot.slane %v3133, 6
    %v3151 = vsel %vm847, %v3145, %v3150
    %v3152 = vrot.slane %v3134, 6
    %v3153 = vsel %vm847, %v3146, %v3152
    %v3154 = vrot.slane %v3135, 6
    %v3155 = vsel %vm847, %v3147, %v3154
    %3156 = vrot.lane.b32.xlu0 %v3144, 116
    %v3157 = vpop.permute.xlu0 %3156
    %3158 = vrot.lane.b32.xlu0 %v3145, 116
    %v3159 = vpop.permute.xlu0 %3158
    %3160 = vrot.lane.b32.xlu0 %v3146, 116
    %v3161 = vpop.permute.xlu0 %3160
    %3162 = vrot.lane.b32.xlu0 %v3147, 116
    %v3163 = vpop.permute.xlu0 %3162
    %3164 = vrot.lane.b32.xlu0 %v3149, 116
    %v3165 = vpop.permute.xlu0 %3164
    %3166 = vrot.lane.b32.xlu0 %v3151, 116
    %v3167 = vpop.permute.xlu0 %3166
    %3168 = vrot.lane.b32.xlu0 %v3153, 116
    %v3169 = vpop.permute.xlu0 %3168
    %3170 = vrot.lane.b32.xlu0 %v3155, 116
    %v3171 = vpop.permute.xlu0 %3170
    %3172 = vrot.lane.b32.xlu0 %v3148, 116
    %v3173 = vpop.permute.xlu0 %3172
    %3174 = vrot.lane.b32.xlu0 %v3150, 116
    %v3175 = vpop.permute.xlu0 %3174
    %3176 = vrot.lane.b32.xlu0 %v3152, 116
    %v3177 = vpop.permute.xlu0 %3176
    %v3178 = vsel %vm2943, %v3157, %v3159
    %v3179 = vsel %vm2943, %v3159, %v3161
    %v3180 = vsel %vm2943, %v3161, %v3163
    %v3181 = vsel %vm2943, %v3165, %v3167
    %v3182 = vsel %vm2943, %v3167, %v3169
    %v3183 = vsel %vm2943, %v3169, %v3171
    %v3184 = vsel %vm2943, %v3173, %v3175
    %v3185 = vsel %vm2943, %v3175, %v3177
    %v3194 = vadd.f32 %v3030, %v3178
    %v3195 = vadd.f32 %v3031, %v3179
    %v3196 = vadd.f32 %v3032, %v3180
    %v3197 = vadd.f32 %v3033, %v3181
    %v3198 = vadd.f32 %v3034, %v3182
    %v3199 = vadd.f32 %v3035, %v3183
    %v3200 = vadd.f32 %v3036, %v3184
    %v3201 = vadd.f32 %v3037, %v3185
    %s3202 = sld [smem:[#allocation4 + $0x20]]
    %v3203 = vstv %s3202
    %v3204 = vmul.f32 %v3203, %v1071
    %v3205 = vmul.f32 %v3203, %v1072
    %v3206 = vmul.f32 %v3203, %v1073
    %v3207 = vmul.f32 %v3203, %v1074
    %v3208 = vmul.f32 %v3203, %v1075
    %v3209 = vmul.f32 %v3203, %v1076
    %v3210 = vmul.f32 %v3203, %v1077
    %v3211 = vmul.f32 %v3203, %v1078
    %v3212 = vmul.f32 %v3203, %v1079
    %v3213 = vmul.f32 %v3203, %v1080
    %v3214 = vmul.f32 %v3203, %v1081
    %v3226 = vrot.slane %v3204, 4
    %v3227 = vrot.slane %v3205, 4
    %v3228 = vrot.slane %v3206, 4
    %v3229 = vrot.slane %v3207, 4
    %v3230 = vrot.slane %v3208, 4
    %v3231 = vsel %vm934, %v3226, %v3230
    %v3232 = vrot.slane %v3209, 4
    %v3233 = vsel %vm934, %v3227, %v3232
    %v3234 = vrot.slane %v3210, 4
    %v3235 = vsel %vm934, %v3228, %v3234
    %v3236 = vrot.slane %v3211, 4
    %v3237 = vsel %vm934, %v3229, %v3236
    %v3238 = vrot.slane %v3212, 4
    %v3239 = vsel %vm934, %v3230, %v3238
    %v3240 = vrot.slane %v3213, 4
    %v3241 = vsel %vm934, %v3232, %v3240
    %v3242 = vrot.slane %v3214, 4
    %v3243 = vsel %vm934, %v3234, %v3242
    %3244 = vrot.lane.b32.xlu0 %v3226, 116
    %v3245 = vpop.permute.xlu0 %3244
    %3246 = vrot.lane.b32.xlu0 %v3227, 116
    %v3247 = vpop.permute.xlu0 %3246
    %3248 = vrot.lane.b32.xlu0 %v3228, 116
    %v3249 = vpop.permute.xlu0 %3248
    %3250 = vrot.lane.b32.xlu0 %v3229, 116
    %v3251 = vpop.permute.xlu0 %3250
    %3252 = vrot.lane.b32.xlu0 %v3231, 116
    %v3253 = vpop.permute.xlu0 %3252
    %3254 = vrot.lane.b32.xlu0 %v3233, 116
    %v3255 = vpop.permute.xlu0 %3254
    %3256 = vrot.lane.b32.xlu0 %v3235, 116
    %v3257 = vpop.permute.xlu0 %3256
    %3258 = vrot.lane.b32.xlu0 %v3237, 116
    %v3259 = vpop.permute.xlu0 %3258
    %3260 = vrot.lane.b32.xlu0 %v3239, 116
    %v3261 = vpop.permute.xlu0 %3260
    %3262 = vrot.lane.b32.xlu0 %v3241, 116
    %v3263 = vpop.permute.xlu0 %3262
    %3264 = vrot.lane.b32.xlu0 %v3243, 116
    %v3265 = vpop.permute.xlu0 %3264
    %v3266 = vsel %vm2943, %v3245, %v3247
    %v3267 = vsel %vm2943, %v3247, %v3249
    %v3268 = vsel %vm2943, %v3249, %v3251
    %v3269 = vsel %vm2943, %v3253, %v3255
    %v3270 = vsel %vm2943, %v3255, %v3257
    %v3271 = vsel %vm2943, %v3257, %v3259
    %v3272 = vsel %vm2943, %v3261, %v3263
    %v3273 = vsel %vm2943, %v3263, %v3265
    %v3282 = vadd.f32 %v3118, %v3266
    %v3283 = vadd.f32 %v3119, %v3267
    %v3284 = vadd.f32 %v3120, %v3268
    %v3285 = vadd.f32 %v3121, %v3269
    %v3286 = vadd.f32 %v3122, %v3270
    %v3287 = vadd.f32 %v3123, %v3271
    %v3288 = vadd.f32 %v3124, %v3272
    %v3289 = vadd.f32 %v3125, %v3273
    %s3290 = sld [smem:[#allocation4 + $0x27]]
    %v3291 = vstv %s3290
    %v3292 = vmul.f32 %v3291, %v1071
    %v3293 = vmul.f32 %v3291, %v1072
    %v3294 = vmul.f32 %v3291, %v1073
    %v3295 = vmul.f32 %v3291, %v1074
    %v3296 = vmul.f32 %v3291, %v1075
    %v3297 = vmul.f32 %v3291, %v1076
    %v3298 = vmul.f32 %v3291, %v1077
    %v3299 = vmul.f32 %v3291, %v1078
    %v3300 = vmul.f32 %v3291, %v1079
    %v3301 = vmul.f32 %v3291, %v1080
    %v3302 = vmul.f32 %v3291, %v1081
    %v3303 = vmul.f32 %v3291, %v1082
    %v3316 = vrot.slane %v3292, 4
    %v3317 = vrot.slane %v3296, 4
    %v3318 = vsel %vm934, %v3316, %v3317
    %v3319 = vrot.slane %v3293, 4
    %v3320 = vrot.slane %v3297, 4
    %v3321 = vsel %vm934, %v3319, %v3320
    %v3322 = vrot.slane %v3294, 4
    %v3323 = vrot.slane %v3298, 4
    %v3324 = vsel %vm934, %v3322, %v3323
    %v3325 = vrot.slane %v3295, 4
    %v3326 = vrot.slane %v3299, 4
    %v3327 = vsel %vm934, %v3325, %v3326
    %v3328 = vrot.slane %v3300, 4
    %v3329 = vsel %vm934, %v3317, %v3328
    %v3330 = vrot.slane %v3301, 4
    %v3331 = vsel %vm934, %v3320, %v3330
    %v3332 = vrot.slane %v3302, 4
    %v3333 = vsel %vm934, %v3323, %v3332
    %v3334 = vrot.slane %v3303, 4
    %v3335 = vsel %vm934, %v3326, %v3334
    %3336 = vrot.lane.b32.xlu0 %v3318, 116
    %v3337 = vpop.permute.xlu0 %3336
    %3338 = vrot.lane.b32.xlu0 %v3321, 116
    %v3339 = vpop.permute.xlu0 %3338
    %3340 = vrot.lane.b32.xlu0 %v3324, 116
    %v3341 = vpop.permute.xlu0 %3340
    %3342 = vrot.lane.b32.xlu0 %v3327, 116
    %v3343 = vpop.permute.xlu0 %3342
    %3344 = vrot.lane.b32.xlu0 %v3329, 116
    %v3345 = vpop.permute.xlu0 %3344
    %3346 = vrot.lane.b32.xlu0 %v3331, 116
    %v3347 = vpop.permute.xlu0 %3346
    %3348 = vrot.lane.b32.xlu0 %v3333, 116
    %v3349 = vpop.permute.xlu0 %3348
    %3350 = vrot.lane.b32.xlu0 %v3335, 116
    %v3351 = vpop.permute.xlu0 %3350
    %3352 = vrot.lane.b32.xlu0 %v3328, 116
    %v3353 = vpop.permute.xlu0 %3352
    %3354 = vrot.lane.b32.xlu0 %v3330, 116
    %v3355 = vpop.permute.xlu0 %3354
    %3356 = vrot.lane.b32.xlu0 %v3332, 116
    %v3357 = vpop.permute.xlu0 %3356
    %v3358 = vsel %vm2943, %v3337, %v3339
    %v3359 = vsel %vm2943, %v3339, %v3341
    %v3360 = vsel %vm2943, %v3341, %v3343
    %v3361 = vsel %vm2943, %v3345, %v3347
    %v3362 = vsel %vm2943, %v3347, %v3349
    %v3363 = vsel %vm2943, %v3349, %v3351
    %v3364 = vsel %vm2943, %v3353, %v3355
    %v3365 = vsel %vm2943, %v3355, %v3357
    %v3374 = vadd.f32 %v3194, %v3358
    %v3375 = vadd.f32 %v3195, %v3359
    %v3376 = vadd.f32 %v3196, %v3360
    %v3377 = vadd.f32 %v3197, %v3361
    %v3378 = vadd.f32 %v3198, %v3362
    %v3379 = vadd.f32 %v3199, %v3363
    %v3380 = vadd.f32 %v3200, %v3364
    %v3381 = vadd.f32 %v3201, %v3365
    %s3382 = sld [smem:[#allocation4 + $0x2e]]
    %v3383 = vstv %s3382
    %v3384 = vmul.f32 %v3383, %v1075
    %v3385 = vmul.f32 %v3383, %v1076
    %v3386 = vmul.f32 %v3383, %v1077
    %v3387 = vmul.f32 %v3383, %v1078
    %v3388 = vmul.f32 %v3383, %v1079
    %v3389 = vmul.f32 %v3383, %v1080
    %v3390 = vmul.f32 %v3383, %v1081
    %v3391 = vmul.f32 %v3383, %v1082
    %v3392 = vmul.f32 %v3383, %v1083
    %v3393 = vmul.f32 %v3383, %v1084
    %v3394 = vmul.f32 %v3383, %v1085
    %v3406 = vrot.slane %v3384, 2
    %v3407 = vrot.slane %v3385, 2
    %v3408 = vrot.slane %v3386, 2
    %v3409 = vrot.slane %v3387, 2
    %v3410 = vrot.slane %v3388, 2
    %v3411 = vsel %vm1033, %v3406, %v3410
    %v3412 = vrot.slane %v3389, 2
    %v3413 = vsel %vm1033, %v3407, %v3412
    %v3414 = vrot.slane %v3390, 2
    %v3415 = vsel %vm1033, %v3408, %v3414
    %v3416 = vrot.slane %v3391, 2
    %v3417 = vsel %vm1033, %v3409, %v3416
    %v3418 = vrot.slane %v3392, 2
    %v3419 = vsel %vm1033, %v3410, %v3418
    %v3420 = vrot.slane %v3393, 2
    %v3421 = vsel %vm1033, %v3412, %v3420
    %v3422 = vrot.slane %v3394, 2
    %v3423 = vsel %vm1033, %v3414, %v3422
    %3424 = vrot.lane.b32.xlu0 %v3406, 116
    %v3425 = vpop.permute.xlu0 %3424
    %3426 = vrot.lane.b32.xlu0 %v3407, 116
    %v3427 = vpop.permute.xlu0 %3426
    %3428 = vrot.lane.b32.xlu0 %v3408, 116
    %v3429 = vpop.permute.xlu0 %3428
    %3430 = vrot.lane.b32.xlu0 %v3409, 116
    %v3431 = vpop.permute.xlu0 %3430
    %3432 = vrot.lane.b32.xlu0 %v3411, 116
    %v3433 = vpop.permute.xlu0 %3432
    %3434 = vrot.lane.b32.xlu0 %v3413, 116
    %v3435 = vpop.permute.xlu0 %3434
    %3436 = vrot.lane.b32.xlu0 %v3415, 116
    %v3437 = vpop.permute.xlu0 %3436
    %3438 = vrot.lane.b32.xlu0 %v3417, 116
    %v3439 = vpop.permute.xlu0 %3438
    %3440 = vrot.lane.b32.xlu0 %v3419, 116
    %v3441 = vpop.permute.xlu0 %3440
    %3442 = vrot.lane.b32.xlu0 %v3421, 116
    %v3443 = vpop.permute.xlu0 %3442
    %3444 = vrot.lane.b32.xlu0 %v3423, 116
    %v3445 = vpop.permute.xlu0 %3444
    %v3446 = vsel %vm2943, %v3425, %v3427
    %v3447 = vsel %vm2943, %v3427, %v3429
    %v3448 = vsel %vm2943, %v3429, %v3431
    %v3449 = vsel %vm2943, %v3433, %v3435
    %v3450 = vsel %vm2943, %v3435, %v3437
    %v3451 = vsel %vm2943, %v3437, %v3439
    %v3452 = vsel %vm2943, %v3441, %v3443
    %v3453 = vsel %vm2943, %v3443, %v3445
    %v3462 = vadd.f32 %v3282, %v3446
    %v3463 = vadd.f32 %v3283, %v3447
    %v3464 = vadd.f32 %v3284, %v3448
    %v3465 = vadd.f32 %v3285, %v3449
    %v3466 = vadd.f32 %v3286, %v3450
    %v3467 = vadd.f32 %v3287, %v3451
    %v3468 = vadd.f32 %v3288, %v3452
    %v3469 = vadd.f32 %v3289, %v3453
    %s3470 = sld [smem:[#allocation4 + $0x5]]
    %v3471 = vstv %s3470
    %v3472 = vmul.f32 %v3471, %v1063
    %v3473 = vmul.f32 %v3471, %v1064
    %v3474 = vmul.f32 %v3471, %v1065
    %v3475 = vmul.f32 %v3471, %v1066
    %v3476 = vmul.f32 %v3471, %v1067
    %v3477 = vmul.f32 %v3471, %v1068
    %v3478 = vmul.f32 %v3471, %v1069
    %v3479 = vmul.f32 %v3471, %v1070
    %v3480 = vmul.f32 %v3471, %v1071
    %v3481 = vmul.f32 %v3471, %v1072
    %v3482 = vmul.f32 %v3471, %v1073
    %v3483 = vmul.f32 %v3471, %v1074
    %v3496 = vrot.slane %v3472, 5
    %v3497 = vrot.slane %v3476, 5
    %v3498 = vsel %vm1112, %v3496, %v3497
    %v3499 = vrot.slane %v3473, 5
    %v3500 = vrot.slane %v3477, 5
    %v3501 = vsel %vm1112, %v3499, %v3500
    %v3502 = vrot.slane %v3474, 5
    %v3503 = vrot.slane %v3478, 5
    %v3504 = vsel %vm1112, %v3502, %v3503
    %v3505 = vrot.slane %v3475, 5
    %v3506 = vrot.slane %v3479, 5
    %v3507 = vsel %vm1112, %v3505, %v3506
    %v3508 = vrot.slane %v3480, 5
    %v3509 = vsel %vm1112, %v3497, %v3508
    %v3510 = vrot.slane %v3481, 5
    %v3511 = vsel %vm1112, %v3500, %v3510
    %v3512 = vrot.slane %v3482, 5
    %v3513 = vsel %vm1112, %v3503, %v3512
    %v3514 = vrot.slane %v3483, 5
    %v3515 = vsel %vm1112, %v3506, %v3514
    %3516 = vrot.lane.b32.xlu0 %v3498, 113
    %v3517 = vpop.permute.xlu0 %3516
    %3518 = vrot.lane.b32.xlu0 %v3501, 113
    %v3519 = vpop.permute.xlu0 %3518
    %3520 = vrot.lane.b32.xlu0 %v3504, 113
    %v3521 = vpop.permute.xlu0 %3520
    %3522 = vrot.lane.b32.xlu0 %v3507, 113
    %v3523 = vpop.permute.xlu0 %3522
    %3524 = vrot.lane.b32.xlu0 %v3509, 113
    %v3525 = vpop.permute.xlu0 %3524
    %3526 = vrot.lane.b32.xlu0 %v3511, 113
    %v3527 = vpop.permute.xlu0 %3526
    %3528 = vrot.lane.b32.xlu0 %v3513, 113
    %v3529 = vpop.permute.xlu0 %3528
    %3530 = vrot.lane.b32.xlu0 %v3515, 113
    %v3531 = vpop.permute.xlu0 %3530
    %3532 = vrot.lane.b32.xlu0 %v3508, 113
    %v3533 = vpop.permute.xlu0 %3532
    %3534 = vrot.lane.b32.xlu0 %v3510, 113
    %v3535 = vpop.permute.xlu0 %3534
    %3536 = vrot.lane.b32.xlu0 %v3512, 113
    %v3537 = vpop.permute.xlu0 %3536
    %vm3538 = vcmask 924672
    %v3539 = vsel %vm3538, %v3517, %v3519
    %v3540 = vsel %vm3538, %v3519, %v3521
    %v3541 = vsel %vm3538, %v3521, %v3523
    %v3542 = vsel %vm3538, %v3525, %v3527
    %v3543 = vsel %vm3538, %v3527, %v3529
    %v3544 = vsel %vm3538, %v3529, %v3531
    %v3545 = vsel %vm3538, %v3533, %v3535
    %v3546 = vsel %vm3538, %v3535, %v3537
    %v3555 = vadd.f32 %v3374, %v3539
    %v3556 = vadd.f32 %v3375, %v3540
    %v3557 = vadd.f32 %v3376, %v3541
    %v3558 = vadd.f32 %v3377, %v3542
    %v3559 = vadd.f32 %v3378, %v3543
    %v3560 = vadd.f32 %v3379, %v3544
    %v3561 = vadd.f32 %v3380, %v3545
    %v3562 = vadd.f32 %v3381, %v3546
    %s3563 = sld [smem:[#allocation4 + $0xc]]
    %v3564 = vstv %s3563
    %v3565 = vmul.f32 %v3564, %v1067
    %v3566 = vmul.f32 %v3564, %v1068
    %v3567 = vmul.f32 %v3564, %v1069
    %v3568 = vmul.f32 %v3564, %v1070
    %v3569 = vmul.f32 %v3564, %v1071
    %v3570 = vmul.f32 %v3564, %v1072
    %v3571 = vmul.f32 %v3564, %v1073
    %v3572 = vmul.f32 %v3564, %v1074
    %v3573 = vmul.f32 %v3564, %v1075
    %v3574 = vmul.f32 %v3564, %v1076
    %v3575 = vmul.f32 %v3564, %v1077
    %v3587 = vrot.slane %v3565, 3
    %v3588 = vrot.slane %v3566, 3
    %v3589 = vrot.slane %v3567, 3
    %v3590 = vrot.slane %v3568, 3
    %v3591 = vrot.slane %v3569, 3
    %v3592 = vsel %vm1204, %v3587, %v3591
    %v3593 = vrot.slane %v3570, 3
    %v3594 = vsel %vm1204, %v3588, %v3593
    %v3595 = vrot.slane %v3571, 3
    %v3596 = vsel %vm1204, %v3589, %v3595
    %v3597 = vrot.slane %v3572, 3
    %v3598 = vsel %vm1204, %v3590, %v3597
    %v3599 = vrot.slane %v3573, 3
    %v3600 = vsel %vm1204, %v3591, %v3599
    %v3601 = vrot.slane %v3574, 3
    %v3602 = vsel %vm1204, %v3593, %v3601
    %v3603 = vrot.slane %v3575, 3
    %v3604 = vsel %vm1204, %v3595, %v3603
    %3605 = vrot.lane.b32.xlu0 %v3587, 113
    %v3606 = vpop.permute.xlu0 %3605
    %3607 = vrot.lane.b32.xlu0 %v3588, 113
    %v3608 = vpop.permute.xlu0 %3607
    %3609 = vrot.lane.b32.xlu0 %v3589, 113
    %v3610 = vpop.permute.xlu0 %3609
    %3611 = vrot.lane.b32.xlu0 %v3590, 113
    %v3612 = vpop.permute.xlu0 %3611
    %3613 = vrot.lane.b32.xlu0 %v3592, 113
    %v3614 = vpop.permute.xlu0 %3613
    %3615 = vrot.lane.b32.xlu0 %v3594, 113
    %v3616 = vpop.permute.xlu0 %3615
    %3617 = vrot.lane.b32.xlu0 %v3596, 113
    %v3618 = vpop.permute.xlu0 %3617
    %3619 = vrot.lane.b32.xlu0 %v3598, 113
    %v3620 = vpop.permute.xlu0 %3619
    %3621 = vrot.lane.b32.xlu0 %v3600, 113
    %v3622 = vpop.permute.xlu0 %3621
    %3623 = vrot.lane.b32.xlu0 %v3602, 113
    %v3624 = vpop.permute.xlu0 %3623
    %3625 = vrot.lane.b32.xlu0 %v3604, 113
    %v3626 = vpop.permute.xlu0 %3625
    %v3627 = vsel %vm3538, %v3606, %v3608
    %v3628 = vsel %vm3538, %v3608, %v3610
    %v3629 = vsel %vm3538, %v3610, %v3612
    %v3630 = vsel %vm3538, %v3614, %v3616
    %v3631 = vsel %vm3538, %v3616, %v3618
    %v3632 = vsel %vm3538, %v3618, %v3620
    %v3633 = vsel %vm3538, %v3622, %v3624
    %v3634 = vsel %vm3538, %v3624, %v3626
    %v3643 = vadd.f32 %v3462, %v3627
    %v3644 = vadd.f32 %v3463, %v3628
    %v3645 = vadd.f32 %v3464, %v3629
    %v3646 = vadd.f32 %v3465, %v3630
    %v3647 = vadd.f32 %v3466, %v3631
    %v3648 = vadd.f32 %v3467, %v3632
    %v3649 = vadd.f32 %v3468, %v3633
    %v3650 = vadd.f32 %v3469, %v3634
    %s3651 = sld [smem:[#allocation4 + $0x13]]
    %v3652 = vstv %s3651
    %v3653 = vmul.f32 %v3652, %v1067
    %v3654 = vmul.f32 %v3652, %v1068
    %v3655 = vmul.f32 %v3652, %v1069
    %v3656 = vmul.f32 %v3652, %v1070
    %v3657 = vmul.f32 %v3652, %v1071
    %v3658 = vmul.f32 %v3652, %v1072
    %v3659 = vmul.f32 %v3652, %v1073
    %v3660 = vmul.f32 %v3652, %v1074
    %v3661 = vmul.f32 %v3652, %v1075
    %v3662 = vmul.f32 %v3652, %v1076
    %v3663 = vmul.f32 %v3652, %v1077
    %v3664 = vmul.f32 %v3652, %v1078
    %v3677 = vrot.slane %v3653, 3
    %v3678 = vrot.slane %v3657, 3
    %v3679 = vsel %vm1204, %v3677, %v3678
    %v3680 = vrot.slane %v3654, 3
    %v3681 = vrot.slane %v3658, 3
    %v3682 = vsel %vm1204, %v3680, %v3681
    %v3683 = vrot.slane %v3655, 3
    %v3684 = vrot.slane %v3659, 3
    %v3685 = vsel %vm1204, %v3683, %v3684
    %v3686 = vrot.slane %v3656, 3
    %v3687 = vrot.slane %v3660, 3
    %v3688 = vsel %vm1204, %v3686, %v3687
    %v3689 = vrot.slane %v3661, 3
    %v3690 = vsel %vm1204, %v3678, %v3689
    %v3691 = vrot.slane %v3662, 3
    %v3692 = vsel %vm1204, %v3681, %v3691
    %v3693 = vrot.slane %v3663, 3
    %v3694 = vsel %vm1204, %v3684, %v3693
    %v3695 = vrot.slane %v3664, 3
    %v3696 = vsel %vm1204, %v3687, %v3695
    %3697 = vrot.lane.b32.xlu0 %v3679, 113
    %v3698 = vpop.permute.xlu0 %3697
    %3699 = vrot.lane.b32.xlu0 %v3682, 113
    %v3700 = vpop.permute.xlu0 %3699
    %3701 = vrot.lane.b32.xlu0 %v3685, 113
    %v3702 = vpop.permute.xlu0 %3701
    %3703 = vrot.lane.b32.xlu0 %v3688, 113
    %v3704 = vpop.permute.xlu0 %3703
    %3705 = vrot.lane.b32.xlu0 %v3690, 113
    %v3706 = vpop.permute.xlu0 %3705
    %3707 = vrot.lane.b32.xlu0 %v3692, 113
    %v3708 = vpop.permute.xlu0 %3707
    %3709 = vrot.lane.b32.xlu0 %v3694, 113
    %v3710 = vpop.permute.xlu0 %3709
    %3711 = vrot.lane.b32.xlu0 %v3696, 113
    %v3712 = vpop.permute.xlu0 %3711
    %3713 = vrot.lane.b32.xlu0 %v3689, 113
    %v3714 = vpop.permute.xlu0 %3713
    %3715 = vrot.lane.b32.xlu0 %v3691, 113
    %v3716 = vpop.permute.xlu0 %3715
    %3717 = vrot.lane.b32.xlu0 %v3693, 113
    %v3718 = vpop.permute.xlu0 %3717
    %v3719 = vsel %vm3538, %v3698, %v3700
    %v3720 = vsel %vm3538, %v3700, %v3702
    %v3721 = vsel %vm3538, %v3702, %v3704
    %v3722 = vsel %vm3538, %v3706, %v3708
    %v3723 = vsel %vm3538, %v3708, %v3710
    %v3724 = vsel %vm3538, %v3710, %v3712
    %v3725 = vsel %vm3538, %v3714, %v3716
    %v3726 = vsel %vm3538, %v3716, %v3718
    %v3735 = vadd.f32 %v3555, %v3719
    %v3736 = vadd.f32 %v3556, %v3720
    %v3737 = vadd.f32 %v3557, %v3721
    %v3738 = vadd.f32 %v3558, %v3722
    %v3739 = vadd.f32 %v3559, %v3723
    %v3740 = vadd.f32 %v3560, %v3724
    %v3741 = vadd.f32 %v3561, %v3725
    %v3742 = vadd.f32 %v3562, %v3726
    %s3743 = sld [smem:[#allocation4 + $0x1a]]
    %v3744 = vstv %s3743
    %v3745 = vmul.f32 %v3744, %v1071
    %v3746 = vmul.f32 %v3744, %v1072
    %v3747 = vmul.f32 %v3744, %v1073
    %v3748 = vmul.f32 %v3744, %v1074
    %v3749 = vmul.f32 %v3744, %v1075
    %v3750 = vmul.f32 %v3744, %v1076
    %v3751 = vmul.f32 %v3744, %v1077
    %v3752 = vmul.f32 %v3744, %v1078
    %v3761 = vrot.slane %v3745, 1
    %v3762 = vrot.slane %v3746, 1
    %v3763 = vrot.slane %v3747, 1
    %v3764 = vrot.slane %v3748, 1
    %v3765 = vrot.slane %v3749, 1
    %v3766 = vsel %vm1379, %v3761, %v3765
    %v3767 = vrot.slane %v3750, 1
    %v3768 = vsel %vm1379, %v3762, %v3767
    %v3769 = vrot.slane %v3751, 1
    %v3770 = vsel %vm1379, %v3763, %v3769
    %v3771 = vrot.slane %v3752, 1
    %v3772 = vsel %vm1379, %v3764, %v3771
    %3773 = vrot.lane.b32.xlu0 %v3761, 113
    %v3774 = vpop.permute.xlu0 %3773
    %3775 = vrot.lane.b32.xlu0 %v3762, 113
    %v3776 = vpop.permute.xlu0 %3775
    %3777 = vrot.lane.b32.xlu0 %v3763, 113
    %v3778 = vpop.permute.xlu0 %3777
    %3779 = vrot.lane.b32.xlu0 %v3764, 113
    %v3780 = vpop.permute.xlu0 %3779
    %3781 = vrot.lane.b32.xlu0 %v3766, 113
    %v3782 = vpop.permute.xlu0 %3781
    %3783 = vrot.lane.b32.xlu0 %v3768, 113
    %v3784 = vpop.permute.xlu0 %3783
    %3785 = vrot.lane.b32.xlu0 %v3770, 113
    %v3786 = vpop.permute.xlu0 %3785
    %3787 = vrot.lane.b32.xlu0 %v3772, 113
    %v3788 = vpop.permute.xlu0 %3787
    %3789 = vrot.lane.b32.xlu0 %v3765, 113
    %v3790 = vpop.permute.xlu0 %3789
    %3791 = vrot.lane.b32.xlu0 %v3767, 113
    %v3792 = vpop.permute.xlu0 %3791
    %3793 = vrot.lane.b32.xlu0 %v3769, 113
    %v3794 = vpop.permute.xlu0 %3793
    %v3795 = vsel %vm3538, %v3774, %v3776
    %v3796 = vsel %vm3538, %v3776, %v3778
    %v3797 = vsel %vm3538, %v3778, %v3780
    %v3798 = vsel %vm3538, %v3782, %v3784
    %v3799 = vsel %vm3538, %v3784, %v3786
    %v3800 = vsel %vm3538, %v3786, %v3788
    %v3801 = vsel %vm3538, %v3790, %v3792
    %v3802 = vsel %vm3538, %v3792, %v3794
    %v3811 = vadd.f32 %v3643, %v3795
    %v3812 = vadd.f32 %v3644, %v3796
    %v3813 = vadd.f32 %v3645, %v3797
    %v3814 = vadd.f32 %v3646, %v3798
    %v3815 = vadd.f32 %v3647, %v3799
    %v3816 = vadd.f32 %v3648, %v3800
    %v3817 = vadd.f32 %v3649, %v3801
    %v3818 = vadd.f32 %v3650, %v3802
    %s3819 = sld [smem:[#allocation4 + $0x21]]
    %v3820 = vstv %s3819
    %v3821 = vmul.f32 %v3820, %v1071
    %v3822 = vmul.f32 %v3820, %v1072
    %v3823 = vmul.f32 %v3820, %v1073
    %v3824 = vmul.f32 %v3820, %v1074
    %v3825 = vmul.f32 %v3820, %v1075
    %v3826 = vmul.f32 %v3820, %v1076
    %v3827 = vmul.f32 %v3820, %v1077
    %v3828 = vmul.f32 %v3820, %v1078
    %v3829 = vmul.f32 %v3820, %v1079
    %v3830 = vmul.f32 %v3820, %v1080
    %v3831 = vmul.f32 %v3820, %v1081
    %v3832 = vmul.f32 %v3820, %v1082
    %v3845 = vrot.slane %v3821, 1
    %v3846 = vrot.slane %v3825, 1
    %v3847 = vsel %vm1379, %v3845, %v3846
    %v3848 = vrot.slane %v3822, 1
    %v3849 = vrot.slane %v3826, 1
    %v3850 = vsel %vm1379, %v3848, %v3849
    %v3851 = vrot.slane %v3823, 1
    %v3852 = vrot.slane %v3827, 1
    %v3853 = vsel %vm1379, %v3851, %v3852
    %v3854 = vrot.slane %v3824, 1
    %v3855 = vrot.slane %v3828, 1
    %v3856 = vsel %vm1379, %v3854, %v3855
    %v3857 = vrot.slane %v3829, 1
    %v3858 = vsel %vm1379, %v3846, %v3857
    %v3859 = vrot.slane %v3830, 1
    %v3860 = vsel %vm1379, %v3849, %v3859
    %v3861 = vrot.slane %v3831, 1
    %v3862 = vsel %vm1379, %v3852, %v3861
    %v3863 = vrot.slane %v3832, 1
    %v3864 = vsel %vm1379, %v3855, %v3863
    %3865 = vrot.lane.b32.xlu0 %v3847, 113
    %v3866 = vpop.permute.xlu0 %3865
    %3867 = vrot.lane.b32.xlu0 %v3850, 113
    %v3868 = vpop.permute.xlu0 %3867
    %3869 = vrot.lane.b32.xlu0 %v3853, 113
    %v3870 = vpop.permute.xlu0 %3869
    %3871 = vrot.lane.b32.xlu0 %v3856, 113
    %v3872 = vpop.permute.xlu0 %3871
    %3873 = vrot.lane.b32.xlu0 %v3858, 113
    %v3874 = vpop.permute.xlu0 %3873
    %3875 = vrot.lane.b32.xlu0 %v3860, 113
    %v3876 = vpop.permute.xlu0 %3875
    %3877 = vrot.lane.b32.xlu0 %v3862, 113
    %v3878 = vpop.permute.xlu0 %3877
    %3879 = vrot.lane.b32.xlu0 %v3864, 113
    %v3880 = vpop.permute.xlu0 %3879
    %3881 = vrot.lane.b32.xlu0 %v3857, 113
    %v3882 = vpop.permute.xlu0 %3881
    %3883 = vrot.lane.b32.xlu0 %v3859, 113
    %v3884 = vpop.permute.xlu0 %3883
    %3885 = vrot.lane.b32.xlu0 %v3861, 113
    %v3886 = vpop.permute.xlu0 %3885
    %v3887 = vsel %vm3538, %v3866, %v3868
    %v3888 = vsel %vm3538, %v3868, %v3870
    %v3889 = vsel %vm3538, %v3870, %v3872
    %v3890 = vsel %vm3538, %v3874, %v3876
    %v3891 = vsel %vm3538, %v3876, %v3878
    %v3892 = vsel %vm3538, %v3878, %v3880
    %v3893 = vsel %vm3538, %v3882, %v3884
    %v3894 = vsel %vm3538, %v3884, %v3886
    %v3903 = vadd.f32 %v3735, %v3887
    %v3904 = vadd.f32 %v3736, %v3888
    %v3905 = vadd.f32 %v3737, %v3889
    %v3906 = vadd.f32 %v3738, %v3890
    %v3907 = vadd.f32 %v3739, %v3891
    %v3908 = vadd.f32 %v3740, %v3892
    %v3909 = vadd.f32 %v3741, %v3893
    %v3910 = vadd.f32 %v3742, %v3894
    %s3911 = sld [smem:[#allocation4 + $0x28]]
    %v3912 = vstv %s3911
    %v3913 = vmul.f32 %v3912, %v1071
    %v3914 = vmul.f32 %v3912, %v1072
    %v3915 = vmul.f32 %v3912, %v1073
    %v3916 = vmul.f32 %v3912, %v1074
    %v3917 = vmul.f32 %v3912, %v1075
    %v3918 = vmul.f32 %v3912, %v1076
    %v3919 = vmul.f32 %v3912, %v1077
    %v3920 = vmul.f32 %v3912, %v1078
    %v3921 = vmul.f32 %v3912, %v1079
    %v3922 = vmul.f32 %v3912, %v1080
    %v3923 = vmul.f32 %v3912, %v1081
    %v3935 = vrot.slane %v3913, 7
    %v3936 = vrot.slane %v3914, 7
    %v3937 = vrot.slane %v3915, 7
    %v3938 = vrot.slane %v3916, 7
    %v3939 = vrot.slane %v3917, 7
    %v3940 = vsel %vm1554, %v3935, %v3939
    %v3941 = vrot.slane %v3918, 7
    %v3942 = vsel %vm1554, %v3936, %v3941
    %v3943 = vrot.slane %v3919, 7
    %v3944 = vsel %vm1554, %v3937, %v3943
    %v3945 = vrot.slane %v3920, 7
    %v3946 = vsel %vm1554, %v3938, %v3945
    %v3947 = vrot.slane %v3921, 7
    %v3948 = vsel %vm1554, %v3939, %v3947
    %v3949 = vrot.slane %v3922, 7
    %v3950 = vsel %vm1554, %v3941, %v3949
    %v3951 = vrot.slane %v3923, 7
    %v3952 = vsel %vm1554, %v3943, %v3951
    %3953 = vrot.lane.b32.xlu0 %v3935, 113
    %v3954 = vpop.permute.xlu0 %3953
    %3955 = vrot.lane.b32.xlu0 %v3936, 113
    %v3956 = vpop.permute.xlu0 %3955
    %3957 = vrot.lane.b32.xlu0 %v3937, 113
    %v3958 = vpop.permute.xlu0 %3957
    %3959 = vrot.lane.b32.xlu0 %v3938, 113
    %v3960 = vpop.permute.xlu0 %3959
    %3961 = vrot.lane.b32.xlu0 %v3940, 113
    %v3962 = vpop.permute.xlu0 %3961
    %3963 = vrot.lane.b32.xlu0 %v3942, 113
    %v3964 = vpop.permute.xlu0 %3963
    %3965 = vrot.lane.b32.xlu0 %v3944, 113
    %v3966 = vpop.permute.xlu0 %3965
    %3967 = vrot.lane.b32.xlu0 %v3946, 113
    %v3968 = vpop.permute.xlu0 %3967
    %3969 = vrot.lane.b32.xlu0 %v3948, 113
    %v3970 = vpop.permute.xlu0 %3969
    %3971 = vrot.lane.b32.xlu0 %v3950, 113
    %v3972 = vpop.permute.xlu0 %3971
    %3973 = vrot.lane.b32.xlu0 %v3952, 113
    %v3974 = vpop.permute.xlu0 %3973
    %v3975 = vsel %vm3538, %v3954, %v3956
    %v3976 = vsel %vm3538, %v3956, %v3958
    %v3977 = vsel %vm3538, %v3958, %v3960
    %v3978 = vsel %vm3538, %v3962, %v3964
    %v3979 = vsel %vm3538, %v3964, %v3966
    %v3980 = vsel %vm3538, %v3966, %v3968
    %v3981 = vsel %vm3538, %v3970, %v3972
    %v3982 = vsel %vm3538, %v3972, %v3974
    %v3991 = vadd.f32 %v3811, %v3975
    %v3992 = vadd.f32 %v3812, %v3976
    %v3993 = vadd.f32 %v3813, %v3977
    %v3994 = vadd.f32 %v3814, %v3978
    %v3995 = vadd.f32 %v3815, %v3979
    %v3996 = vadd.f32 %v3816, %v3980
    %v3997 = vadd.f32 %v3817, %v3981
    %v3998 = vadd.f32 %v3818, %v3982
    %s3999 = sld [smem:[#allocation4 + $0x2f]]
    %v4000 = vstv %s3999
    %v4001 = vmul.f32 %v4000, %v1075
    %v4002 = vmul.f32 %v4000, %v1076
    %v4003 = vmul.f32 %v4000, %v1077
    %v4004 = vmul.f32 %v4000, %v1078
    %v4005 = vmul.f32 %v4000, %v1079
    %v4006 = vmul.f32 %v4000, %v1080
    %v4007 = vmul.f32 %v4000, %v1081
    %v4008 = vmul.f32 %v4000, %v1082
    %v4009 = vmul.f32 %v4000, %v1083
    %v4010 = vmul.f32 %v4000, %v1084
    %v4011 = vmul.f32 %v4000, %v1085
    %v4023 = vrot.slane %v4001, 7
    %v4024 = vrot.slane %v4002, 7
    %v4025 = vrot.slane %v4003, 7
    %v4026 = vrot.slane %v4004, 7
    %v4027 = vrot.slane %v4005, 7
    %v4028 = vsel %vm1554, %v4023, %v4027
    %v4029 = vrot.slane %v4006, 7
    %v4030 = vsel %vm1554, %v4024, %v4029
    %v4031 = vrot.slane %v4007, 7
    %v4032 = vsel %vm1554, %v4025, %v4031
    %v4033 = vrot.slane %v4008, 7
    %v4034 = vsel %vm1554, %v4026, %v4033
    %v4035 = vrot.slane %v4009, 7
    %v4036 = vsel %vm1554, %v4027, %v4035
    %v4037 = vrot.slane %v4010, 7
    %v4038 = vsel %vm1554, %v4029, %v4037
    %v4039 = vrot.slane %v4011, 7
    %v4040 = vsel %vm1554, %v4031, %v4039
    %4041 = vrot.lane.b32.xlu0 %v4023, 113
    %v4042 = vpop.permute.xlu0 %4041
    %4043 = vrot.lane.b32.xlu0 %v4024, 113
    %v4044 = vpop.permute.xlu0 %4043
    %4045 = vrot.lane.b32.xlu0 %v4025, 113
    %v4046 = vpop.permute.xlu0 %4045
    %4047 = vrot.lane.b32.xlu0 %v4026, 113
    %v4048 = vpop.permute.xlu0 %4047
    %4049 = vrot.lane.b32.xlu0 %v4028, 113
    %v4050 = vpop.permute.xlu0 %4049
    %4051 = vrot.lane.b32.xlu0 %v4030, 113
    %v4052 = vpop.permute.xlu0 %4051
    %4053 = vrot.lane.b32.xlu0 %v4032, 113
    %v4054 = vpop.permute.xlu0 %4053
    %4055 = vrot.lane.b32.xlu0 %v4034, 113
    %v4056 = vpop.permute.xlu0 %4055
    %4057 = vrot.lane.b32.xlu0 %v4036, 113
    %v4058 = vpop.permute.xlu0 %4057
    %4059 = vrot.lane.b32.xlu0 %v4038, 113
    %v4060 = vpop.permute.xlu0 %4059
    %4061 = vrot.lane.b32.xlu0 %v4040, 113
    %v4062 = vpop.permute.xlu0 %4061
    %v4063 = vsel %vm3538, %v4042, %v4044
    %v4064 = vsel %vm3538, %v4044, %v4046
    %v4065 = vsel %vm3538, %v4046, %v4048
    %v4066 = vsel %vm3538, %v4050, %v4052
    %v4067 = vsel %vm3538, %v4052, %v4054
    %v4068 = vsel %vm3538, %v4054, %v4056
    %v4069 = vsel %vm3538, %v4058, %v4060
    %v4070 = vsel %vm3538, %v4060, %v4062
    %v4079 = vadd.f32 %v3903, %v4063
    %v4080 = vadd.f32 %v3904, %v4064
    %v4081 = vadd.f32 %v3905, %v4065
    %v4082 = vadd.f32 %v3906, %v4066
    %v4083 = vadd.f32 %v3907, %v4067
    %v4084 = vadd.f32 %v3908, %v4068
    %v4085 = vadd.f32 %v3909, %v4069
    %v4086 = vadd.f32 %v3910, %v4070
    %s4087 = sld [smem:[#allocation4 + $0x6]]
    %v4088 = vstv %s4087
    %v4089 = vmul.f32 %v4088, %v1063
    %v4090 = vmul.f32 %v4088, %v1064
    %v4091 = vmul.f32 %v4088, %v1065
    %v4092 = vmul.f32 %v4088, %v1066
    %v4093 = vmul.f32 %v4088, %v1067
    %v4094 = vmul.f32 %v4088, %v1068
    %v4095 = vmul.f32 %v4088, %v1069
    %v4096 = vmul.f32 %v4088, %v1070
    %v4097 = vmul.f32 %v4088, %v1071
    %v4098 = vmul.f32 %v4088, %v1072
    %v4099 = vmul.f32 %v4088, %v1073
    %4111 = vrot.lane.b32.xlu0 %v4089, 110
    %v4112 = vpop.permute.xlu0 %4111
    %4113 = vrot.lane.b32.xlu0 %v4090, 110
    %v4114 = vpop.permute.xlu0 %4113
    %4115 = vrot.lane.b32.xlu0 %v4091, 110
    %v4116 = vpop.permute.xlu0 %4115
    %4117 = vrot.lane.b32.xlu0 %v4092, 110
    %v4118 = vpop.permute.xlu0 %4117
    %4119 = vrot.lane.b32.xlu0 %v4093, 110
    %v4120 = vpop.permute.xlu0 %4119
    %4121 = vrot.lane.b32.xlu0 %v4094, 110
    %v4122 = vpop.permute.xlu0 %4121
    %4123 = vrot.lane.b32.xlu0 %v4095, 110
    %v4124 = vpop.permute.xlu0 %4123
    %4125 = vrot.lane.b32.xlu0 %v4096, 110
    %v4126 = vpop.permute.xlu0 %4125
    %4127 = vrot.lane.b32.xlu0 %v4097, 110
    %v4128 = vpop.permute.xlu0 %4127
    %4129 = vrot.lane.b32.xlu0 %v4098, 110
    %v4130 = vpop.permute.xlu0 %4129
    %4131 = vrot.lane.b32.xlu0 %v4099, 110
    %v4132 = vpop.permute.xlu0 %4131
    %vm4133 = vcmask 900096
    %v4134 = vsel %vm4133, %v4112, %v4114
    %v4135 = vsel %vm4133, %v4114, %v4116
    %v4136 = vsel %vm4133, %v4116, %v4118
    %v4137 = vsel %vm4133, %v4120, %v4122
    %v4138 = vsel %vm4133, %v4122, %v4124
    %v4139 = vsel %vm4133, %v4124, %v4126
    %v4140 = vsel %vm4133, %v4128, %v4130
    %v4141 = vsel %vm4133, %v4130, %v4132
    %v4150 = vadd.f32 %v3991, %v4134
    %v4151 = vadd.f32 %v3992, %v4135
    %v4152 = vadd.f32 %v3993, %v4136
    %v4153 = vadd.f32 %v3994, %v4137
    %v4154 = vadd.f32 %v3995, %v4138
    %v4155 = vadd.f32 %v3996, %v4139
    %v4156 = vadd.f32 %v3997, %v4140
    %v4157 = vadd.f32 %v3998, %v4141
    %s4158 = sld [smem:[#allocation4 + $0xd]]
    %v4159 = vstv %s4158
    %v4160 = vmul.f32 %v4159, %v1067
    %v4161 = vmul.f32 %v4159, %v1068
    %v4162 = vmul.f32 %v4159, %v1069
    %v4163 = vmul.f32 %v4159, %v1070
    %v4164 = vmul.f32 %v4159, %v1071
    %v4165 = vmul.f32 %v4159, %v1072
    %v4166 = vmul.f32 %v4159, %v1073
    %v4167 = vmul.f32 %v4159, %v1074
    %v4168 = vmul.f32 %v4159, %v1075
    %v4169 = vmul.f32 %v4159, %v1076
    %v4170 = vmul.f32 %v4159, %v1077
    %4182 = vrot.lane.b32.xlu0 %v4160, 110
    %v4183 = vpop.permute.xlu0 %4182
    %4184 = vrot.lane.b32.xlu0 %v4161, 110
    %v4185 = vpop.permute.xlu0 %4184
    %4186 = vrot.lane.b32.xlu0 %v4162, 110
    %v4187 = vpop.permute.xlu0 %4186
    %4188 = vrot.lane.b32.xlu0 %v4163, 110
    %v4189 = vpop.permute.xlu0 %4188
    %4190 = vrot.lane.b32.xlu0 %v4164, 110
    %v4191 = vpop.permute.xlu0 %4190
    %4192 = vrot.lane.b32.xlu0 %v4165, 110
    %v4193 = vpop.permute.xlu0 %4192
    %4194 = vrot.lane.b32.xlu0 %v4166, 110
    %v4195 = vpop.permute.xlu0 %4194
    %4196 = vrot.lane.b32.xlu0 %v4167, 110
    %v4197 = vpop.permute.xlu0 %4196
    %4198 = vrot.lane.b32.xlu0 %v4168, 110
    %v4199 = vpop.permute.xlu0 %4198
    %4200 = vrot.lane.b32.xlu0 %v4169, 110
    %v4201 = vpop.permute.xlu0 %4200
    %4202 = vrot.lane.b32.xlu0 %v4170, 110
    %v4203 = vpop.permute.xlu0 %4202
    %v4204 = vsel %vm4133, %v4183, %v4185
    %v4205 = vsel %vm4133, %v4185, %v4187
    %v4206 = vsel %vm4133, %v4187, %v4189
    %v4207 = vsel %vm4133, %v4191, %v4193
    %v4208 = vsel %vm4133, %v4193, %v4195
    %v4209 = vsel %vm4133, %v4195, %v4197
    %v4210 = vsel %vm4133, %v4199, %v4201
    %v4211 = vsel %vm4133, %v4201, %v4203
    %v4220 = vadd.f32 %v4079, %v4204
    %v4221 = vadd.f32 %v4080, %v4205
    %v4222 = vadd.f32 %v4081, %v4206
    %v4223 = vadd.f32 %v4082, %v4207
    %v4224 = vadd.f32 %v4083, %v4208
    %v4225 = vadd.f32 %v4084, %v4209
    %v4226 = vadd.f32 %v4085, %v4210
    %v4227 = vadd.f32 %v4086, %v4211
    %s4228 = sld [smem:[#allocation4 + $0x14]]
    %v4229 = vstv %s4228
    %v4230 = vmul.f32 %v4229, %v1067
    %v4231 = vmul.f32 %v4229, %v1068
    %v4232 = vmul.f32 %v4229, %v1069
    %v4233 = vmul.f32 %v4229, %v1070
    %v4234 = vmul.f32 %v4229, %v1071
    %v4235 = vmul.f32 %v4229, %v1072
    %v4236 = vmul.f32 %v4229, %v1073
    %v4237 = vmul.f32 %v4229, %v1074
    %v4238 = vmul.f32 %v4229, %v1075
    %v4239 = vmul.f32 %v4229, %v1076
    %v4240 = vmul.f32 %v4229, %v1077
    %v4252 = vrot.slane %v4230, 6
    %v4253 = vrot.slane %v4231, 6
    %v4254 = vrot.slane %v4232, 6
    %v4255 = vrot.slane %v4233, 6
    %v4256 = vrot.slane %v4234, 6
    %v4257 = vsel %vm847, %v4252, %v4256
    %v4258 = vrot.slane %v4235, 6
    %v4259 = vsel %vm847, %v4253, %v4258
    %v4260 = vrot.slane %v4236, 6
    %v4261 = vsel %vm847, %v4254, %v4260
    %v4262 = vrot.slane %v4237, 6
    %v4263 = vsel %vm847, %v4255, %v4262
    %v4264 = vrot.slane %v4238, 6
    %v4265 = vsel %vm847, %v4256, %v4264
    %v4266 = vrot.slane %v4239, 6
    %v4267 = vsel %vm847, %v4258, %v4266
    %v4268 = vrot.slane %v4240, 6
    %v4269 = vsel %vm847, %v4260, %v4268
    %4270 = vrot.lane.b32.xlu0 %v4252, 110
    %v4271 = vpop.permute.xlu0 %4270
    %4272 = vrot.lane.b32.xlu0 %v4253, 110
    %v4273 = vpop.permute.xlu0 %4272
    %4274 = vrot.lane.b32.xlu0 %v4254, 110
    %v4275 = vpop.permute.xlu0 %4274
    %4276 = vrot.lane.b32.xlu0 %v4255, 110
    %v4277 = vpop.permute.xlu0 %4276
    %4278 = vrot.lane.b32.xlu0 %v4257, 110
    %v4279 = vpop.permute.xlu0 %4278
    %4280 = vrot.lane.b32.xlu0 %v4259, 110
    %v4281 = vpop.permute.xlu0 %4280
    %4282 = vrot.lane.b32.xlu0 %v4261, 110
    %v4283 = vpop.permute.xlu0 %4282
    %4284 = vrot.lane.b32.xlu0 %v4263, 110
    %v4285 = vpop.permute.xlu0 %4284
    %4286 = vrot.lane.b32.xlu0 %v4265, 110
    %v4287 = vpop.permute.xlu0 %4286
    %4288 = vrot.lane.b32.xlu0 %v4267, 110
    %v4289 = vpop.permute.xlu0 %4288
    %4290 = vrot.lane.b32.xlu0 %v4269, 110
    %v4291 = vpop.permute.xlu0 %4290
    %v4292 = vsel %vm4133, %v4271, %v4273
    %v4293 = vsel %vm4133, %v4273, %v4275
    %v4294 = vsel %vm4133, %v4275, %v4277
    %v4295 = vsel %vm4133, %v4279, %v4281
    %v4296 = vsel %vm4133, %v4281, %v4283
    %v4297 = vsel %vm4133, %v4283, %v4285
    %v4298 = vsel %vm4133, %v4287, %v4289
    %v4299 = vsel %vm4133, %v4289, %v4291
    %v4308 = vadd.f32 %v4150, %v4292
    %v4309 = vadd.f32 %v4151, %v4293
    %v4310 = vadd.f32 %v4152, %v4294
    %v4311 = vadd.f32 %v4153, %v4295
    %v4312 = vadd.f32 %v4154, %v4296
    %v4313 = vadd.f32 %v4155, %v4297
    %v4314 = vadd.f32 %v4156, %v4298
    %v4315 = vadd.f32 %v4157, %v4299
    %s4316 = sld [smem:[#allocation4 + $0x1b]]
    %v4317 = vstv %s4316
    %v4318 = vmul.f32 %v4317, %v1071
    %v4319 = vmul.f32 %v4317, %v1072
    %v4320 = vmul.f32 %v4317, %v1073
    %v4321 = vmul.f32 %v4317, %v1074
    %v4322 = vmul.f32 %v4317, %v1075
    %v4323 = vmul.f32 %v4317, %v1076
    %v4324 = vmul.f32 %v4317, %v1077
    %v4325 = vmul.f32 %v4317, %v1078
    %v4334 = vrot.slane %v4318, 6
    %v4335 = vrot.slane %v4319, 6
    %v4336 = vrot.slane %v4320, 6
    %v4337 = vrot.slane %v4321, 6
    %v4338 = vrot.slane %v4322, 6
    %v4339 = vsel %vm847, %v4334, %v4338
    %v4340 = vrot.slane %v4323, 6
    %v4341 = vsel %vm847, %v4335, %v4340
    %v4342 = vrot.slane %v4324, 6
    %v4343 = vsel %vm847, %v4336, %v4342
    %v4344 = vrot.slane %v4325, 6
    %v4345 = vsel %vm847, %v4337, %v4344
    %4346 = vrot.lane.b32.xlu0 %v4334, 110
    %v4347 = vpop.permute.xlu0 %4346
    %4348 = vrot.lane.b32.xlu0 %v4335, 110
    %v4349 = vpop.permute.xlu0 %4348
    %4350 = vrot.lane.b32.xlu0 %v4336, 110
    %v4351 = vpop.permute.xlu0 %4350
    %4352 = vrot.lane.b32.xlu0 %v4337, 110
    %v4353 = vpop.permute.xlu0 %4352
    %4354 = vrot.lane.b32.xlu0 %v4339, 110
    %v4355 = vpop.permute.xlu0 %4354
    %4356 = vrot.lane.b32.xlu0 %v4341, 110
    %v4357 = vpop.permute.xlu0 %4356
    %4358 = vrot.lane.b32.xlu0 %v4343, 110
    %v4359 = vpop.permute.xlu0 %4358
    %4360 = vrot.lane.b32.xlu0 %v4345, 110
    %v4361 = vpop.permute.xlu0 %4360
    %4362 = vrot.lane.b32.xlu0 %v4338, 110
    %v4363 = vpop.permute.xlu0 %4362
    %4364 = vrot.lane.b32.xlu0 %v4340, 110
    %v4365 = vpop.permute.xlu0 %4364
    %4366 = vrot.lane.b32.xlu0 %v4342, 110
    %v4367 = vpop.permute.xlu0 %4366
    %v4368 = vsel %vm4133, %v4347, %v4349
    %v4369 = vsel %vm4133, %v4349, %v4351
    %v4370 = vsel %vm4133, %v4351, %v4353
    %v4371 = vsel %vm4133, %v4355, %v4357
    %v4372 = vsel %vm4133, %v4357, %v4359
    %v4373 = vsel %vm4133, %v4359, %v4361
    %v4374 = vsel %vm4133, %v4363, %v4365
    %v4375 = vsel %vm4133, %v4365, %v4367
    %v4384 = vadd.f32 %v4220, %v4368
    %v4385 = vadd.f32 %v4221, %v4369
    %v4386 = vadd.f32 %v4222, %v4370
    %v4387 = vadd.f32 %v4223, %v4371
    %v4388 = vadd.f32 %v4224, %v4372
    %v4389 = vadd.f32 %v4225, %v4373
    %v4390 = vadd.f32 %v4226, %v4374
    %v4391 = vadd.f32 %v4227, %v4375
    %s4392 = sld [smem:[#allocation4 + $0x22]]
    %v4393 = vstv %s4392
    %v4394 = vmul.f32 %v4393, %v1071
    %v4395 = vmul.f32 %v4393, %v1072
    %v4396 = vmul.f32 %v4393, %v1073
    %v4397 = vmul.f32 %v4393, %v1074
    %v4398 = vmul.f32 %v4393, %v1075
    %v4399 = vmul.f32 %v4393, %v1076
    %v4400 = vmul.f32 %v4393, %v1077
    %v4401 = vmul.f32 %v4393, %v1078
    %v4402 = vmul.f32 %v4393, %v1079
    %v4403 = vmul.f32 %v4393, %v1080
    %v4404 = vmul.f32 %v4393, %v1081
    %v4416 = vrot.slane %v4394, 4
    %v4417 = vrot.slane %v4395, 4
    %v4418 = vrot.slane %v4396, 4
    %v4419 = vrot.slane %v4397, 4
    %v4420 = vrot.slane %v4398, 4
    %v4421 = vsel %vm934, %v4416, %v4420
    %v4422 = vrot.slane %v4399, 4
    %v4423 = vsel %vm934, %v4417, %v4422
    %v4424 = vrot.slane %v4400, 4
    %v4425 = vsel %vm934, %v4418, %v4424
    %v4426 = vrot.slane %v4401, 4
    %v4427 = vsel %vm934, %v4419, %v4426
    %v4428 = vrot.slane %v4402, 4
    %v4429 = vsel %vm934, %v4420, %v4428
    %v4430 = vrot.slane %v4403, 4
    %v4431 = vsel %vm934, %v4422, %v4430
    %v4432 = vrot.slane %v4404, 4
    %v4433 = vsel %vm934, %v4424, %v4432
    %4434 = vrot.lane.b32.xlu0 %v4416, 110
    %v4435 = vpop.permute.xlu0 %4434
    %4436 = vrot.lane.b32.xlu0 %v4417, 110
    %v4437 = vpop.permute.xlu0 %4436
    %4438 = vrot.lane.b32.xlu0 %v4418, 110
    %v4439 = vpop.permute.xlu0 %4438
    %4440 = vrot.lane.b32.xlu0 %v4419, 110
    %v4441 = vpop.permute.xlu0 %4440
    %4442 = vrot.lane.b32.xlu0 %v4421, 110
    %v4443 = vpop.permute.xlu0 %4442
    %4444 = vrot.lane.b32.xlu0 %v4423, 110
    %v4445 = vpop.permute.xlu0 %4444
    %4446 = vrot.lane.b32.xlu0 %v4425, 110
    %v4447 = vpop.permute.xlu0 %4446
    %4448 = vrot.lane.b32.xlu0 %v4427, 110
    %v4449 = vpop.permute.xlu0 %4448
    %4450 = vrot.lane.b32.xlu0 %v4429, 110
    %v4451 = vpop.permute.xlu0 %4450
    %4452 = vrot.lane.b32.xlu0 %v4431, 110
    %v4453 = vpop.permute.xlu0 %4452
    %4454 = vrot.lane.b32.xlu0 %v4433, 110
    %v4455 = vpop.permute.xlu0 %4454
    %v4456 = vsel %vm4133, %v4435, %v4437
    %v4457 = vsel %vm4133, %v4437, %v4439
    %v4458 = vsel %vm4133, %v4439, %v4441
    %v4459 = vsel %vm4133, %v4443, %v4445
    %v4460 = vsel %vm4133, %v4445, %v4447
    %v4461 = vsel %vm4133, %v4447, %v4449
    %v4462 = vsel %vm4133, %v4451, %v4453
    %v4463 = vsel %vm4133, %v4453, %v4455
    %v4472 = vadd.f32 %v4308, %v4456
    %v4473 = vadd.f32 %v4309, %v4457
    %v4474 = vadd.f32 %v4310, %v4458
    %v4475 = vadd.f32 %v4311, %v4459
    %v4476 = vadd.f32 %v4312, %v4460
    %v4477 = vadd.f32 %v4313, %v4461
    %v4478 = vadd.f32 %v4314, %v4462
    %v4479 = vadd.f32 %v4315, %v4463
    %s4480 = sld [smem:[#allocation4 + $0x29]]
    %v4481 = vstv %s4480
    %v4482 = vmul.f32 %v4481, %v1071
    %v4483 = vmul.f32 %v4481, %v1072
    %v4484 = vmul.f32 %v4481, %v1073
    %v4485 = vmul.f32 %v4481, %v1074
    %v4486 = vmul.f32 %v4481, %v1075
    %v4487 = vmul.f32 %v4481, %v1076
    %v4488 = vmul.f32 %v4481, %v1077
    %v4489 = vmul.f32 %v4481, %v1078
    %v4490 = vmul.f32 %v4481, %v1079
    %v4491 = vmul.f32 %v4481, %v1080
    %v4492 = vmul.f32 %v4481, %v1081
    %v4493 = vmul.f32 %v4481, %v1082
    %v4506 = vrot.slane %v4482, 4
    %v4507 = vrot.slane %v4486, 4
    %v4508 = vsel %vm934, %v4506, %v4507
    %v4509 = vrot.slane %v4483, 4
    %v4510 = vrot.slane %v4487, 4
    %v4511 = vsel %vm934, %v4509, %v4510
    %v4512 = vrot.slane %v4484, 4
    %v4513 = vrot.slane %v4488, 4
    %v4514 = vsel %vm934, %v4512, %v4513
    %v4515 = vrot.slane %v4485, 4
    %v4516 = vrot.slane %v4489, 4
    %v4517 = vsel %vm934, %v4515, %v4516
    %v4518 = vrot.slane %v4490, 4
    %v4519 = vsel %vm934, %v4507, %v4518
    %v4520 = vrot.slane %v4491, 4
    %v4521 = vsel %vm934, %v4510, %v4520
    %v4522 = vrot.slane %v4492, 4
    %v4523 = vsel %vm934, %v4513, %v4522
    %v4524 = vrot.slane %v4493, 4
    %v4525 = vsel %vm934, %v4516, %v4524
    %4526 = vrot.lane.b32.xlu0 %v4508, 110
    %v4527 = vpop.permute.xlu0 %4526
    %4528 = vrot.lane.b32.xlu0 %v4511, 110
    %v4529 = vpop.permute.xlu0 %4528
    %4530 = vrot.lane.b32.xlu0 %v4514, 110
    %v4531 = vpop.permute.xlu0 %4530
    %4532 = vrot.lane.b32.xlu0 %v4517, 110
    %v4533 = vpop.permute.xlu0 %4532
    %4534 = vrot.lane.b32.xlu0 %v4519, 110
    %v4535 = vpop.permute.xlu0 %4534
    %4536 = vrot.lane.b32.xlu0 %v4521, 110
    %v4537 = vpop.permute.xlu0 %4536
    %4538 = vrot.lane.b32.xlu0 %v4523, 110
    %v4539 = vpop.permute.xlu0 %4538
    %4540 = vrot.lane.b32.xlu0 %v4525, 110
    %v4541 = vpop.permute.xlu0 %4540
    %4542 = vrot.lane.b32.xlu0 %v4518, 110
    %v4543 = vpop.permute.xlu0 %4542
    %4544 = vrot.lane.b32.xlu0 %v4520, 110
    %v4545 = vpop.permute.xlu0 %4544
    %4546 = vrot.lane.b32.xlu0 %v4522, 110
    %v4547 = vpop.permute.xlu0 %4546
    %v4548 = vsel %vm4133, %v4527, %v4529
    %v4549 = vsel %vm4133, %v4529, %v4531
    %v4550 = vsel %vm4133, %v4531, %v4533
    %v4551 = vsel %vm4133, %v4535, %v4537
    %v4552 = vsel %vm4133, %v4537, %v4539
    %v4553 = vsel %vm4133, %v4539, %v4541
    %v4554 = vsel %vm4133, %v4543, %v4545
    %v4555 = vsel %vm4133, %v4545, %v4547
    %v4564 = vadd.f32 %v4384, %v4548
    %v4565 = vadd.f32 %v4385, %v4549
    %v4566 = vadd.f32 %v4386, %v4550
    %v4567 = vadd.f32 %v4387, %v4551
    %v4568 = vadd.f32 %v4388, %v4552
    %v4569 = vadd.f32 %v4389, %v4553
    %v4570 = vadd.f32 %v4390, %v4554
    %v4571 = vadd.f32 %v4391, %v4555
    %s4572 = sld [smem:[#allocation4 + $0x30]]
    %v4573 = vstv %s4572
    %v4574 = vmul.f32 %v4573, %v1075
    %v4575 = vmul.f32 %v4573, %v1076
    %v4576 = vmul.f32 %v4573, %v1077
    %v4577 = vmul.f32 %v4573, %v1078
    %v4578 = vmul.f32 %v4573, %v1079
    %v4579 = vmul.f32 %v4573, %v1080
    %v4580 = vmul.f32 %v4573, %v1081
    %v4581 = vmul.f32 %v4573, %v1082
    %v4582 = vmul.f32 %v4573, %v1083
    %v4583 = vmul.f32 %v4573, %v1084
    %v4584 = vmul.f32 %v4573, %v1085
    %v4596 = vrot.slane %v4574, 2
    %v4597 = vrot.slane %v4575, 2
    %v4598 = vrot.slane %v4576, 2
    %v4599 = vrot.slane %v4577, 2
    %v4600 = vrot.slane %v4578, 2
    %v4601 = vsel %vm1033, %v4596, %v4600
    %v4602 = vrot.slane %v4579, 2
    %v4603 = vsel %vm1033, %v4597, %v4602
    %v4604 = vrot.slane %v4580, 2
    %v4605 = vsel %vm1033, %v4598, %v4604
    %v4606 = vrot.slane %v4581, 2
    %v4607 = vsel %vm1033, %v4599, %v4606
    %v4608 = vrot.slane %v4582, 2
    %v4609 = vsel %vm1033, %v4600, %v4608
    %v4610 = vrot.slane %v4583, 2
    %v4611 = vsel %vm1033, %v4602, %v4610
    %v4612 = vrot.slane %v4584, 2
    %v4613 = vsel %vm1033, %v4604, %v4612
    %4614 = vrot.lane.b32.xlu0 %v4596, 110
    %v4615 = vpop.permute.xlu0 %4614
    %4616 = vrot.lane.b32.xlu0 %v4597, 110
    %v4617 = vpop.permute.xlu0 %4616
    %4618 = vrot.lane.b32.xlu0 %v4598, 110
    %v4619 = vpop.permute.xlu0 %4618
    %4620 = vrot.lane.b32.xlu0 %v4599, 110
    %v4621 = vpop.permute.xlu0 %4620
    %4622 = vrot.lane.b32.xlu0 %v4601, 110
    %v4623 = vpop.permute.xlu0 %4622
    %4624 = vrot.lane.b32.xlu0 %v4603, 110
    %v4625 = vpop.permute.xlu0 %4624
    %4626 = vrot.lane.b32.xlu0 %v4605, 110
    %v4627 = vpop.permute.xlu0 %4626
    %4628 = vrot.lane.b32.xlu0 %v4607, 110
    %v4629 = vpop.permute.xlu0 %4628
    %4630 = vrot.lane.b32.xlu0 %v4609, 110
    %v4631 = vpop.permute.xlu0 %4630
    %4632 = vrot.lane.b32.xlu0 %v4611, 110
    %v4633 = vpop.permute.xlu0 %4632
    %4634 = vrot.lane.b32.xlu0 %v4613, 110
    %v4635 = vpop.permute.xlu0 %4634
    %v4636 = vsel %vm4133, %v4615, %v4617
    %v4637 = vsel %vm4133, %v4617, %v4619
    %v4638 = vsel %vm4133, %v4619, %v4621
    %v4639 = vsel %vm4133, %v4623, %v4625
    %v4640 = vsel %vm4133, %v4625, %v4627
    %v4641 = vsel %vm4133, %v4627, %v4629
    %v4642 = vsel %vm4133, %v4631, %v4633
    %v4643 = vsel %vm4133, %v4633, %v4635
    %v4652 = vadd.f32 %v4472, %v4636
    %v4653 = vadd.f32 %v4473, %v4637
    %v4654 = vadd.f32 %v4474, %v4638
    %v4655 = vadd.f32 %v4475, %v4639
    %v4656 = vadd.f32 %v4476, %v4640
    %v4657 = vadd.f32 %v4477, %v4641
    %v4658 = vadd.f32 %v4478, %v4642
    %v4659 = vadd.f32 %v4479, %v4643
    %v4660 = vld [vmem:[%s249] sm:$0xff]
    %v4661 = vld [vmem:[%s249 + $0x8] sm:$0xff]
    %v4662 = vld [vmem:[%s249 + $0x10] sm:$0xff]
    %v4663 = vld [vmem:[%s249 + $0x20] sm:$0xff]
    %v4664 = vld [vmem:[%s249 + $0x28] sm:$0xff]
    %v4665 = vld [vmem:[%s249 + $0x30] sm:$0xff]
    %v4666 = vld [vmem:[%s249 + $0x40] sm:$0xff]
    %v4667 = vld [vmem:[%s249 + $0x48] sm:$0xff]
    %v4668 = vld [vmem:[%s249 + $0x50] sm:$0xff]
    %v4669 = vld [vmem:[%s249 + $0x60] sm:$0xff]
    %v4670 = vld [vmem:[%s249 + $0x68] sm:$0xff]
    %v4671 = vld [vmem:[%s249 + $0x70] sm:$0xff]
    %v4672 = vld [vmem:[%s249 + $0x80] sm:$0xff]
    %v4673 = vld [vmem:[%s249 + $0x88] sm:$0xff]
    %v4674 = vld [vmem:[%s249 + $0x90] sm:$0xff]
    %v4675 = vld [vmem:[%s249 + $0xa0] sm:$0xff]
    %v4676 = vld [vmem:[%s249 + $0xa8] sm:$0xff]
    %s4677 = sld [smem:[#allocation4 + $0x31]]
    %v4678 = vstv %s4677
    %v4679 = vmul.f32 %v4678, %v4660
    %v4680 = vmul.f32 %v4678, %v4661
    %v4681 = vmul.f32 %v4678, %v4662
    %v4682 = vmul.f32 %v4678, %v4663
    %v4683 = vmul.f32 %v4678, %v4664
    %v4684 = vmul.f32 %v4678, %v4665
    %v4685 = vmul.f32 %v4678, %v4666
    %v4686 = vmul.f32 %v4678, %v4667
    %v4687 = vmul.f32 %v4678, %v4668
    %v4697 = vrot.slane %v4679, 5
    %v4698 = vrot.slane %v4682, 5
    %v4699 = vsel %vm1112, %v4697, %v4698
    %v4700 = vrot.slane %v4680, 5
    %v4701 = vrot.slane %v4683, 5
    %v4702 = vsel %vm1112, %v4700, %v4701
    %v4703 = vrot.slane %v4681, 5
    %v4704 = vrot.slane %v4684, 5
    %v4705 = vsel %vm1112, %v4703, %v4704
    %v4706 = vrot.slane %v4685, 5
    %v4707 = vsel %vm1112, %v4698, %v4706
    %v4708 = vrot.slane %v4686, 5
    %v4709 = vsel %vm1112, %v4701, %v4708
    %v4710 = vrot.slane %v4687, 5
    %v4711 = vsel %vm1112, %v4704, %v4710
    %v4720 = vadd.f32 %v4564, %v4699
    %v4721 = vadd.f32 %v4565, %v4702
    %v4722 = vadd.f32 %v4566, %v4705
    %v4723 = vadd.f32 %v4567, %v4707
    %v4724 = vadd.f32 %v4568, %v4709
    %v4725 = vadd.f32 %v4569, %v4711
    %v4726 = vadd.f32 %v4570, %v4706
    %v4727 = vadd.f32 %v4571, %v4708
    %s4728 = sld [smem:[#allocation4 + $0x38]]
    %v4729 = vstv %s4728
    %v4730 = vmul.f32 %v4729, %v4663
    %v4731 = vmul.f32 %v4729, %v4664
    %v4732 = vmul.f32 %v4729, %v4665
    %v4733 = vmul.f32 %v4729, %v4666
    %v4734 = vmul.f32 %v4729, %v4667
    %v4735 = vmul.f32 %v4729, %v4668
    %v4736 = vmul.f32 %v4729, %v4669
    %v4737 = vmul.f32 %v4729, %v4670
    %v4746 = vrot.slane %v4730, 3
    %v4747 = vrot.slane %v4731, 3
    %v4748 = vrot.slane %v4732, 3
    %v4749 = vrot.slane %v4733, 3
    %v4750 = vsel %vm1204, %v4746, %v4749
    %v4751 = vrot.slane %v4734, 3
    %v4752 = vsel %vm1204, %v4747, %v4751
    %v4753 = vrot.slane %v4735, 3
    %v4754 = vsel %vm1204, %v4748, %v4753
    %v4755 = vrot.slane %v4736, 3
    %v4756 = vsel %vm1204, %v4749, %v4755
    %v4757 = vrot.slane %v4737, 3
    %v4758 = vsel %vm1204, %v4751, %v4757
    %v4767 = vadd.f32 %v4652, %v4746
    %v4768 = vadd.f32 %v4653, %v4747
    %v4769 = vadd.f32 %v4654, %v4748
    %v4770 = vadd.f32 %v4655, %v4750
    %v4771 = vadd.f32 %v4656, %v4752
    %v4772 = vadd.f32 %v4657, %v4754
    %v4773 = vadd.f32 %v4658, %v4756
    %v4774 = vadd.f32 %v4659, %v4758
    %s4775 = sld [smem:[#allocation4 + $0x3f]]
    %v4776 = vstv %s4775
    %v4777 = vmul.f32 %v4776, %v4663
    %v4778 = vmul.f32 %v4776, %v4664
    %v4779 = vmul.f32 %v4776, %v4665
    %v4780 = vmul.f32 %v4776, %v4666
    %v4781 = vmul.f32 %v4776, %v4667
    %v4782 = vmul.f32 %v4776, %v4668
    %v4783 = vmul.f32 %v4776, %v4669
    %v4784 = vmul.f32 %v4776, %v4670
    %v4785 = vmul.f32 %v4776, %v4671
    %v4795 = vrot.slane %v4777, 3
    %v4796 = vrot.slane %v4780, 3
    %v4797 = vsel %vm1204, %v4795, %v4796
    %v4798 = vrot.slane %v4778, 3
    %v4799 = vrot.slane %v4781, 3
    %v4800 = vsel %vm1204, %v4798, %v4799
    %v4801 = vrot.slane %v4779, 3
    %v4802 = vrot.slane %v4782, 3
    %v4803 = vsel %vm1204, %v4801, %v4802
    %v4804 = vrot.slane %v4783, 3
    %v4805 = vsel %vm1204, %v4796, %v4804
    %v4806 = vrot.slane %v4784, 3
    %v4807 = vsel %vm1204, %v4799, %v4806
    %v4808 = vrot.slane %v4785, 3
    %v4809 = vsel %vm1204, %v4802, %v4808
    %v4818 = vadd.f32 %v4720, %v4797
    %v4819 = vadd.f32 %v4721, %v4800
    %v4820 = vadd.f32 %v4722, %v4803
    %v4821 = vadd.f32 %v4723, %v4805
    %v4822 = vadd.f32 %v4724, %v4807
    %v4823 = vadd.f32 %v4725, %v4809
    %v4824 = vadd.f32 %v4726, %v4804
    %v4825 = vadd.f32 %v4727, %v4806
    %s4826 = sld [smem:[#allocation4 + $0x46]]
    %v4827 = vstv %s4826
    %v4828 = vmul.f32 %v4827, %v4666
    %v4829 = vmul.f32 %v4827, %v4667
    %v4830 = vmul.f32 %v4827, %v4668
    %v4831 = vmul.f32 %v4827, %v4669
    %v4832 = vmul.f32 %v4827, %v4670
    %v4833 = vmul.f32 %v4827, %v4671
    %v4840 = vrot.slane %v4828, 1
    %v4841 = vrot.slane %v4829, 1
    %v4842 = vrot.slane %v4830, 1
    %v4843 = vrot.slane %v4831, 1
    %v4844 = vsel %vm1379, %v4840, %v4843
    %v4845 = vrot.slane %v4832, 1
    %v4846 = vsel %vm1379, %v4841, %v4845
    %v4847 = vrot.slane %v4833, 1
    %v4848 = vsel %vm1379, %v4842, %v4847
    %v4857 = vadd.f32 %v4767, %v4840
    %v4858 = vadd.f32 %v4768, %v4841
    %v4859 = vadd.f32 %v4769, %v4842
    %v4860 = vadd.f32 %v4770, %v4844
    %v4861 = vadd.f32 %v4771, %v4846
    %v4862 = vadd.f32 %v4772, %v4848
    %v4863 = vadd.f32 %v4773, %v4843
    %v4864 = vadd.f32 %v4774, %v4845
    %s4865 = sld [smem:[#allocation4 + $0x4d]]
    %v4866 = vstv %s4865
    %v4867 = vmul.f32 %v4866, %v4666
    %v4868 = vmul.f32 %v4866, %v4667
    %v4869 = vmul.f32 %v4866, %v4668
    %v4870 = vmul.f32 %v4866, %v4669
    %v4871 = vmul.f32 %v4866, %v4670
    %v4872 = vmul.f32 %v4866, %v4671
    %v4873 = vmul.f32 %v4866, %v4672
    %v4874 = vmul.f32 %v4866, %v4673
    %v4875 = vmul.f32 %v4866, %v4674
    %v4885 = vrot.slane %v4867, 1
    %v4886 = vrot.slane %v4870, 1
    %v4887 = vsel %vm1379, %v4885, %v4886
    %v4888 = vrot.slane %v4868, 1
    %v4889 = vrot.slane %v4871, 1
    %v4890 = vsel %vm1379, %v4888, %v4889
    %v4891 = vrot.slane %v4869, 1
    %v4892 = vrot.slane %v4872, 1
    %v4893 = vsel %vm1379, %v4891, %v4892
    %v4894 = vrot.slane %v4873, 1
    %v4895 = vsel %vm1379, %v4886, %v4894
    %v4896 = vrot.slane %v4874, 1
    %v4897 = vsel %vm1379, %v4889, %v4896
    %v4898 = vrot.slane %v4875, 1
    %v4899 = vsel %vm1379, %v4892, %v4898
    %v4908 = vadd.f32 %v4818, %v4887
    %v4909 = vadd.f32 %v4819, %v4890
    %v4910 = vadd.f32 %v4820, %v4893
    %v4911 = vadd.f32 %v4821, %v4895
    %v4912 = vadd.f32 %v4822, %v4897
    %v4913 = vadd.f32 %v4823, %v4899
    %v4914 = vadd.f32 %v4824, %v4894
    %v4915 = vadd.f32 %v4825, %v4896
    %s4916 = sld [smem:[#allocation4 + $0x54]]
    %v4917 = vstv %s4916
    %v4918 = vmul.f32 %v4917, %v4666
    %v4919 = vmul.f32 %v4917, %v4667
    %v4920 = vmul.f32 %v4917, %v4668
    %v4921 = vmul.f32 %v4917, %v4669
    %v4922 = vmul.f32 %v4917, %v4670
    %v4923 = vmul.f32 %v4917, %v4671
    %v4924 = vmul.f32 %v4917, %v4672
    %v4925 = vmul.f32 %v4917, %v4673
    %v4934 = vrot.slane %v4918, 7
    %v4935 = vrot.slane %v4919, 7
    %v4936 = vrot.slane %v4920, 7
    %v4937 = vrot.slane %v4921, 7
    %v4938 = vsel %vm1554, %v4934, %v4937
    %v4939 = vrot.slane %v4922, 7
    %v4940 = vsel %vm1554, %v4935, %v4939
    %v4941 = vrot.slane %v4923, 7
    %v4942 = vsel %vm1554, %v4936, %v4941
    %v4943 = vrot.slane %v4924, 7
    %v4944 = vsel %vm1554, %v4937, %v4943
    %v4945 = vrot.slane %v4925, 7
    %v4946 = vsel %vm1554, %v4939, %v4945
    %v4955 = vadd.f32 %v4857, %v4934
    %v4956 = vadd.f32 %v4858, %v4935
    %v4957 = vadd.f32 %v4859, %v4936
    %v4958 = vadd.f32 %v4860, %v4938
    %v4959 = vadd.f32 %v4861, %v4940
    %v4960 = vadd.f32 %v4862, %v4942
    %v4961 = vadd.f32 %v4863, %v4944
    %v4962 = vadd.f32 %v4864, %v4946
    %s4963 = sld [smem:[#allocation4 + $0x5b]]
    %v4964 = vstv %s4963
    %v4965 = vmul.f32 %v4964, %v4669
    %v4966 = vmul.f32 %v4964, %v4670
    %v4967 = vmul.f32 %v4964, %v4671
    %v4968 = vmul.f32 %v4964, %v4672
    %v4969 = vmul.f32 %v4964, %v4673
    %v4970 = vmul.f32 %v4964, %v4674
    %v4971 = vmul.f32 %v4964, %v4675
    %v4972 = vmul.f32 %v4964, %v4676
    %v4981 = vrot.slane %v4965, 7
    %v4982 = vrot.slane %v4966, 7
    %v4983 = vrot.slane %v4967, 7
    %v4984 = vrot.slane %v4968, 7
    %v4985 = vsel %vm1554, %v4981, %v4984
    %v4986 = vrot.slane %v4969, 7
    %v4987 = vsel %vm1554, %v4982, %v4986
    %v4988 = vrot.slane %v4970, 7
    %v4989 = vsel %vm1554, %v4983, %v4988
    %v4990 = vrot.slane %v4971, 7
    %v4991 = vsel %vm1554, %v4984, %v4990
    %v4992 = vrot.slane %v4972, 7
    %v4993 = vsel %vm1554, %v4986, %v4992
    %v5002 = vadd.f32 %v4908, %v4981
    %v5003 = vadd.f32 %v4909, %v4982
    %v5004 = vadd.f32 %v4910, %v4983
    %v5005 = vadd.f32 %v4911, %v4985
    %v5006 = vadd.f32 %v4912, %v4987
    %v5007 = vadd.f32 %v4913, %v4989
    %v5008 = vadd.f32 %v4914, %v4991
    %v5009 = vadd.f32 %v4915, %v4993
    %v5010 = vld [vmem:[%s249] sm:$0xff]
    %v5011 = vld [vmem:[%s249 + $0x8] sm:$0xff]
    %v5012 = vld [vmem:[%s249 + $0x10] sm:$0xff]
    %v5013 = vld [vmem:[%s249 + $0x18] sm:$0xff]
    %v5014 = vld [vmem:[%s249 + $0x20] sm:$0xff]
    %v5015 = vld [vmem:[%s249 + $0x28] sm:$0xff]
    %v5016 = vld [vmem:[%s249 + $0x30] sm:$0xff]
    %v5017 = vld [vmem:[%s249 + $0x38] sm:$0xff]
    %v5018 = vld [vmem:[%s249 + $0x40] sm:$0xff]
    %v5019 = vld [vmem:[%s249 + $0x48] sm:$0xff]
    %v5020 = vld [vmem:[%s249 + $0x50] sm:$0xff]
    %v5021 = vld [vmem:[%s249 + $0x58] sm:$0xff]
    %v5022 = vld [vmem:[%s249 + $0x60] sm:$0xff]
    %v5023 = vld [vmem:[%s249 + $0x68] sm:$0xff]
    %v5024 = vld [vmem:[%s249 + $0x70] sm:$0xff]
    %v5025 = vld [vmem:[%s249 + $0x78] sm:$0xff]
    %v5026 = vld [vmem:[%s249 + $0x80] sm:$0xff]
    %v5027 = vld [vmem:[%s249 + $0x88] sm:$0xff]
    %v5028 = vld [vmem:[%s249 + $0x90] sm:$0xff]
    %v5029 = vld [vmem:[%s249 + $0x98] sm:$0xff]
    %v5030 = vld [vmem:[%s249 + $0xa0] sm:$0xff]
    %v5031 = vld [vmem:[%s249 + $0xa8] sm:$0xff]
    %v5032 = vld [vmem:[%s249 + $0xb0] sm:$0xff]
    %s5033 = sld [smem:[#allocation4 + $0x32]]
    %v5034 = vstv %s5033
    %v5035 = vmul.f32 %v5034, %v5010
    %v5036 = vmul.f32 %v5034, %v5011
    %v5037 = vmul.f32 %v5034, %v5012
    %v5038 = vmul.f32 %v5034, %v5013
    %v5039 = vmul.f32 %v5034, %v5014
    %v5040 = vmul.f32 %v5034, %v5015
    %v5041 = vmul.f32 %v5034, %v5016
    %v5042 = vmul.f32 %v5034, %v5017
    %v5043 = vmul.f32 %v5034, %v5018
    %v5044 = vmul.f32 %v5034, %v5019
    %v5045 = vmul.f32 %v5034, %v5020
    %5057 = vrot.lane.b32.xlu0 %v5035, 125
    %v5058 = vpop.permute.xlu0 %5057
    %5059 = vrot.lane.b32.xlu0 %v5036, 125
    %v5060 = vpop.permute.xlu0 %5059
    %5061 = vrot.lane.b32.xlu0 %v5037, 125
    %v5062 = vpop.permute.xlu0 %5061
    %5063 = vrot.lane.b32.xlu0 %v5038, 125
    %v5064 = vpop.permute.xlu0 %5063
    %5065 = vrot.lane.b32.xlu0 %v5039, 125
    %v5066 = vpop.permute.xlu0 %5065
    %5067 = vrot.lane.b32.xlu0 %v5040, 125
    %v5068 = vpop.permute.xlu0 %5067
    %5069 = vrot.lane.b32.xlu0 %v5041, 125
    %v5070 = vpop.permute.xlu0 %5069
    %5071 = vrot.lane.b32.xlu0 %v5042, 125
    %v5072 = vpop.permute.xlu0 %5071
    %5073 = vrot.lane.b32.xlu0 %v5043, 125
    %v5074 = vpop.permute.xlu0 %5073
    %5075 = vrot.lane.b32.xlu0 %v5044, 125
    %v5076 = vpop.permute.xlu0 %5075
    %5077 = vrot.lane.b32.xlu0 %v5045, 125
    %v5078 = vpop.permute.xlu0 %5077
    %v5079 = vsel %vm1155, %v5058, %v5060
    %v5080 = vsel %vm1155, %v5060, %v5062
    %v5081 = vsel %vm1155, %v5062, %v5064
    %v5082 = vsel %vm1155, %v5066, %v5068
    %v5083 = vsel %vm1155, %v5068, %v5070
    %v5084 = vsel %vm1155, %v5070, %v5072
    %v5085 = vsel %vm1155, %v5074, %v5076
    %v5086 = vsel %vm1155, %v5076, %v5078
    %v5095 = vadd.f32 %v4955, %v5079
    %v5096 = vadd.f32 %v4956, %v5080
    %v5097 = vadd.f32 %v4957, %v5081
    %v5098 = vadd.f32 %v4958, %v5082
    %v5099 = vadd.f32 %v4959, %v5083
    %v5100 = vadd.f32 %v4960, %v5084
    %v5101 = vadd.f32 %v4961, %v5085
    %v5102 = vadd.f32 %v4962, %v5086
    %s5103 = sld [smem:[#allocation4 + $0x39]]
    %v5104 = vstv %s5103
    %v5105 = vmul.f32 %v5104, %v5014
    %v5106 = vmul.f32 %v5104, %v5015
    %v5107 = vmul.f32 %v5104, %v5016
    %v5108 = vmul.f32 %v5104, %v5017
    %v5109 = vmul.f32 %v5104, %v5018
    %v5110 = vmul.f32 %v5104, %v5019
    %v5111 = vmul.f32 %v5104, %v5020
    %v5112 = vmul.f32 %v5104, %v5021
    %v5113 = vmul.f32 %v5104, %v5022
    %v5114 = vmul.f32 %v5104, %v5023
    %v5115 = vmul.f32 %v5104, %v5024
    %5127 = vrot.lane.b32.xlu0 %v5105, 125
    %v5128 = vpop.permute.xlu0 %5127
    %5129 = vrot.lane.b32.xlu0 %v5106, 125
    %v5130 = vpop.permute.xlu0 %5129
    %5131 = vrot.lane.b32.xlu0 %v5107, 125
    %v5132 = vpop.permute.xlu0 %5131
    %5133 = vrot.lane.b32.xlu0 %v5108, 125
    %v5134 = vpop.permute.xlu0 %5133
    %5135 = vrot.lane.b32.xlu0 %v5109, 125
    %v5136 = vpop.permute.xlu0 %5135
    %5137 = vrot.lane.b32.xlu0 %v5110, 125
    %v5138 = vpop.permute.xlu0 %5137
    %5139 = vrot.lane.b32.xlu0 %v5111, 125
    %v5140 = vpop.permute.xlu0 %5139
    %5141 = vrot.lane.b32.xlu0 %v5112, 125
    %v5142 = vpop.permute.xlu0 %5141
    %5143 = vrot.lane.b32.xlu0 %v5113, 125
    %v5144 = vpop.permute.xlu0 %5143
    %5145 = vrot.lane.b32.xlu0 %v5114, 125
    %v5146 = vpop.permute.xlu0 %5145
    %5147 = vrot.lane.b32.xlu0 %v5115, 125
    %v5148 = vpop.permute.xlu0 %5147
    %v5149 = vsel %vm1155, %v5128, %v5130
    %v5150 = vsel %vm1155, %v5130, %v5132
    %v5151 = vsel %vm1155, %v5132, %v5134
    %v5152 = vsel %vm1155, %v5136, %v5138
    %v5153 = vsel %vm1155, %v5138, %v5140
    %v5154 = vsel %vm1155, %v5140, %v5142
    %v5155 = vsel %vm1155, %v5144, %v5146
    %v5156 = vsel %vm1155, %v5146, %v5148
    %v5165 = vadd.f32 %v5002, %v5149
    %v5166 = vadd.f32 %v5003, %v5150
    %v5167 = vadd.f32 %v5004, %v5151
    %v5168 = vadd.f32 %v5005, %v5152
    %v5169 = vadd.f32 %v5006, %v5153
    %v5170 = vadd.f32 %v5007, %v5154
    %v5171 = vadd.f32 %v5008, %v5155
    %v5172 = vadd.f32 %v5009, %v5156
    %s5173 = sld [smem:[#allocation4 + $0x40]]
    %v5174 = vstv %s5173
    %v5175 = vmul.f32 %v5174, %v5014
    %v5176 = vmul.f32 %v5174, %v5015
    %v5177 = vmul.f32 %v5174, %v5016
    %v5178 = vmul.f32 %v5174, %v5017
    %v5179 = vmul.f32 %v5174, %v5018
    %v5180 = vmul.f32 %v5174, %v5019
    %v5181 = vmul.f32 %v5174, %v5020
    %v5182 = vmul.f32 %v5174, %v5021
    %v5183 = vmul.f32 %v5174, %v5022
    %v5184 = vmul.f32 %v5174, %v5023
    %v5185 = vmul.f32 %v5174, %v5024
    %v5197 = vrot.slane %v5175, 6
    %v5198 = vrot.slane %v5176, 6
    %v5199 = vrot.slane %v5177, 6
    %v5200 = vrot.slane %v5178, 6
    %v5201 = vrot.slane %v5179, 6
    %v5202 = vsel %vm847, %v5197, %v5201
    %v5203 = vrot.slane %v5180, 6
    %v5204 = vsel %vm847, %v5198, %v5203
    %v5205 = vrot.slane %v5181, 6
    %v5206 = vsel %vm847, %v5199, %v5205
    %v5207 = vrot.slane %v5182, 6
    %v5208 = vsel %vm847, %v5200, %v5207
    %v5209 = vrot.slane %v5183, 6
    %v5210 = vsel %vm847, %v5201, %v5209
    %v5211 = vrot.slane %v5184, 6
    %v5212 = vsel %vm847, %v5203, %v5211
    %v5213 = vrot.slane %v5185, 6
    %v5214 = vsel %vm847, %v5205, %v5213
    %5215 = vrot.lane.b32.xlu0 %v5197, 125
    %v5216 = vpop.permute.xlu0 %5215
    %5217 = vrot.lane.b32.xlu0 %v5198, 125
    %v5218 = vpop.permute.xlu0 %5217
    %5219 = vrot.lane.b32.xlu0 %v5199, 125
    %v5220 = vpop.permute.xlu0 %5219
    %5221 = vrot.lane.b32.xlu0 %v5200, 125
    %v5222 = vpop.permute.xlu0 %5221
    %5223 = vrot.lane.b32.xlu0 %v5202, 125
    %v5224 = vpop.permute.xlu0 %5223
    %5225 = vrot.lane.b32.xlu0 %v5204, 125
    %v5226 = vpop.permute.xlu0 %5225
    %5227 = vrot.lane.b32.xlu0 %v5206, 125
    %v5228 = vpop.permute.xlu0 %5227
    %5229 = vrot.lane.b32.xlu0 %v5208, 125
    %v5230 = vpop.permute.xlu0 %5229
    %5231 = vrot.lane.b32.xlu0 %v5210, 125
    %v5232 = vpop.permute.xlu0 %5231
    %5233 = vrot.lane.b32.xlu0 %v5212, 125
    %v5234 = vpop.permute.xlu0 %5233
    %5235 = vrot.lane.b32.xlu0 %v5214, 125
    %v5236 = vpop.permute.xlu0 %5235
    %v5237 = vsel %vm1155, %v5216, %v5218
    %v5238 = vsel %vm1155, %v5218, %v5220
    %v5239 = vsel %vm1155, %v5220, %v5222
    %v5240 = vsel %vm1155, %v5224, %v5226
    %v5241 = vsel %vm1155, %v5226, %v5228
    %v5242 = vsel %vm1155, %v5228, %v5230
    %v5243 = vsel %vm1155, %v5232, %v5234
    %v5244 = vsel %vm1155, %v5234, %v5236
    %v5253 = vadd.f32 %v5095, %v5237
    %v5254 = vadd.f32 %v5096, %v5238
    %v5255 = vadd.f32 %v5097, %v5239
    %v5256 = vadd.f32 %v5098, %v5240
    %v5257 = vadd.f32 %v5099, %v5241
    %v5258 = vadd.f32 %v5100, %v5242
    %v5259 = vadd.f32 %v5101, %v5243
    %v5260 = vadd.f32 %v5102, %v5244
    %s5261 = sld [smem:[#allocation4 + $0x47]]
    %v5262 = vstv %s5261
    %v5263 = vmul.f32 %v5262, %v5018
    %v5264 = vmul.f32 %v5262, %v5019
    %v5265 = vmul.f32 %v5262, %v5020
    %v5266 = vmul.f32 %v5262, %v5021
    %v5267 = vmul.f32 %v5262, %v5022
    %v5268 = vmul.f32 %v5262, %v5023
    %v5269 = vmul.f32 %v5262, %v5024
    %v5270 = vmul.f32 %v5262, %v5025
    %v5279 = vrot.slane %v5263, 6
    %v5280 = vrot.slane %v5264, 6
    %v5281 = vrot.slane %v5265, 6
    %v5282 = vrot.slane %v5266, 6
    %v5283 = vrot.slane %v5267, 6
    %v5284 = vsel %vm847, %v5279, %v5283
    %v5285 = vrot.slane %v5268, 6
    %v5286 = vsel %vm847, %v5280, %v5285
    %v5287 = vrot.slane %v5269, 6
    %v5288 = vsel %vm847, %v5281, %v5287
    %v5289 = vrot.slane %v5270, 6
    %v5290 = vsel %vm847, %v5282, %v5289
    %5291 = vrot.lane.b32.xlu0 %v5279, 125
    %v5292 = vpop.permute.xlu0 %5291
    %5293 = vrot.lane.b32.xlu0 %v5280, 125
    %v5294 = vpop.permute.xlu0 %5293
    %5295 = vrot.lane.b32.xlu0 %v5281, 125
    %v5296 = vpop.permute.xlu0 %5295
    %5297 = vrot.lane.b32.xlu0 %v5282, 125
    %v5298 = vpop.permute.xlu0 %5297
    %5299 = vrot.lane.b32.xlu0 %v5284, 125
    %v5300 = vpop.permute.xlu0 %5299
    %5301 = vrot.lane.b32.xlu0 %v5286, 125
    %v5302 = vpop.permute.xlu0 %5301
    %5303 = vrot.lane.b32.xlu0 %v5288, 125
    %v5304 = vpop.permute.xlu0 %5303
    %5305 = vrot.lane.b32.xlu0 %v5290, 125
    %v5306 = vpop.permute.xlu0 %5305
    %5307 = vrot.lane.b32.xlu0 %v5283, 125
    %v5308 = vpop.permute.xlu0 %5307
    %5309 = vrot.lane.b32.xlu0 %v5285, 125
    %v5310 = vpop.permute.xlu0 %5309
    %5311 = vrot.lane.b32.xlu0 %v5287, 125
    %v5312 = vpop.permute.xlu0 %5311
    %v5313 = vsel %vm1155, %v5292, %v5294
    %v5314 = vsel %vm1155, %v5294, %v5296
    %v5315 = vsel %vm1155, %v5296, %v5298
    %v5316 = vsel %vm1155, %v5300, %v5302
    %v5317 = vsel %vm1155, %v5302, %v5304
    %v5318 = vsel %vm1155, %v5304, %v5306
    %v5319 = vsel %vm1155, %v5308, %v5310
    %v5320 = vsel %vm1155, %v5310, %v5312
    %v5329 = vadd.f32 %v5165, %v5313
    %v5330 = vadd.f32 %v5166, %v5314
    %v5331 = vadd.f32 %v5167, %v5315
    %v5332 = vadd.f32 %v5168, %v5316
    %v5333 = vadd.f32 %v5169, %v5317
    %v5334 = vadd.f32 %v5170, %v5318
    %v5335 = vadd.f32 %v5171, %v5319
    %v5336 = vadd.f32 %v5172, %v5320
    %s5337 = sld [smem:[#allocation4 + $0x4e]]
    %v5338 = vstv %s5337
    %v5339 = vmul.f32 %v5338, %v5018
    %v5340 = vmul.f32 %v5338, %v5019
    %v5341 = vmul.f32 %v5338, %v5020
    %v5342 = vmul.f32 %v5338, %v5021
    %v5343 = vmul.f32 %v5338, %v5022
    %v5344 = vmul.f32 %v5338, %v5023
    %v5345 = vmul.f32 %v5338, %v5024
    %v5346 = vmul.f32 %v5338, %v5025
    %v5347 = vmul.f32 %v5338, %v5026
    %v5348 = vmul.f32 %v5338, %v5027
    %v5349 = vmul.f32 %v5338, %v5028
    %v5361 = vrot.slane %v5339, 4
    %v5362 = vrot.slane %v5340, 4
    %v5363 = vrot.slane %v5341, 4
    %v5364 = vrot.slane %v5342, 4
    %v5365 = vrot.slane %v5343, 4
    %v5366 = vsel %vm934, %v5361, %v5365
    %v5367 = vrot.slane %v5344, 4
    %v5368 = vsel %vm934, %v5362, %v5367
    %v5369 = vrot.slane %v5345, 4
    %v5370 = vsel %vm934, %v5363, %v5369
    %v5371 = vrot.slane %v5346, 4
    %v5372 = vsel %vm934, %v5364, %v5371
    %v5373 = vrot.slane %v5347, 4
    %v5374 = vsel %vm934, %v5365, %v5373
    %v5375 = vrot.slane %v5348, 4
    %v5376 = vsel %vm934, %v5367, %v5375
    %v5377 = vrot.slane %v5349, 4
    %v5378 = vsel %vm934, %v5369, %v5377
    %5379 = vrot.lane.b32.xlu0 %v5361, 125
    %v5380 = vpop.permute.xlu0 %5379
    %5381 = vrot.lane.b32.xlu0 %v5362, 125
    %v5382 = vpop.permute.xlu0 %5381
    %5383 = vrot.lane.b32.xlu0 %v5363, 125
    %v5384 = vpop.permute.xlu0 %5383
    %5385 = vrot.lane.b32.xlu0 %v5364, 125
    %v5386 = vpop.permute.xlu0 %5385
    %5387 = vrot.lane.b32.xlu0 %v5366, 125
    %v5388 = vpop.permute.xlu0 %5387
    %5389 = vrot.lane.b32.xlu0 %v5368, 125
    %v5390 = vpop.permute.xlu0 %5389
    %5391 = vrot.lane.b32.xlu0 %v5370, 125
    %v5392 = vpop.permute.xlu0 %5391
    %5393 = vrot.lane.b32.xlu0 %v5372, 125
    %v5394 = vpop.permute.xlu0 %5393
    %5395 = vrot.lane.b32.xlu0 %v5374, 125
    %v5396 = vpop.permute.xlu0 %5395
    %5397 = vrot.lane.b32.xlu0 %v5376, 125
    %v5398 = vpop.permute.xlu0 %5397
    %5399 = vrot.lane.b32.xlu0 %v5378, 125
    %v5400 = vpop.permute.xlu0 %5399
    %v5401 = vsel %vm1155, %v5380, %v5382
    %v5402 = vsel %vm1155, %v5382, %v5384
    %v5403 = vsel %vm1155, %v5384, %v5386
    %v5404 = vsel %vm1155, %v5388, %v5390
    %v5405 = vsel %vm1155, %v5390, %v5392
    %v5406 = vsel %vm1155, %v5392, %v5394
    %v5407 = vsel %vm1155, %v5396, %v5398
    %v5408 = vsel %vm1155, %v5398, %v5400
    %v5417 = vadd.f32 %v5253, %v5401
    %v5418 = vadd.f32 %v5254, %v5402
    %v5419 = vadd.f32 %v5255, %v5403
    %v5420 = vadd.f32 %v5256, %v5404
    %v5421 = vadd.f32 %v5257, %v5405
    %v5422 = vadd.f32 %v5258, %v5406
    %v5423 = vadd.f32 %v5259, %v5407
    %v5424 = vadd.f32 %v5260, %v5408
    %s5425 = sld [smem:[#allocation4 + $0x55]]
    %v5426 = vstv %s5425
    %v5427 = vmul.f32 %v5426, %v5018
    %v5428 = vmul.f32 %v5426, %v5019
    %v5429 = vmul.f32 %v5426, %v5020
    %v5430 = vmul.f32 %v5426, %v5021
    %v5431 = vmul.f32 %v5426, %v5022
    %v5432 = vmul.f32 %v5426, %v5023
    %v5433 = vmul.f32 %v5426, %v5024
    %v5434 = vmul.f32 %v5426, %v5025
    %v5435 = vmul.f32 %v5426, %v5026
    %v5436 = vmul.f32 %v5426, %v5027
    %v5437 = vmul.f32 %v5426, %v5028
    %v5438 = vmul.f32 %v5426, %v5029
    %v5451 = vrot.slane %v5427, 4
    %v5452 = vrot.slane %v5431, 4
    %v5453 = vsel %vm934, %v5451, %v5452
    %v5454 = vrot.slane %v5428, 4
    %v5455 = vrot.slane %v5432, 4
    %v5456 = vsel %vm934, %v5454, %v5455
    %v5457 = vrot.slane %v5429, 4
    %v5458 = vrot.slane %v5433, 4
    %v5459 = vsel %vm934, %v5457, %v5458
    %v5460 = vrot.slane %v5430, 4
    %v5461 = vrot.slane %v5434, 4
    %v5462 = vsel %vm934, %v5460, %v5461
    %v5463 = vrot.slane %v5435, 4
    %v5464 = vsel %vm934, %v5452, %v5463
    %v5465 = vrot.slane %v5436, 4
    %v5466 = vsel %vm934, %v5455, %v5465
    %v5467 = vrot.slane %v5437, 4
    %v5468 = vsel %vm934, %v5458, %v5467
    %v5469 = vrot.slane %v5438, 4
    %v5470 = vsel %vm934, %v5461, %v5469
    %5471 = vrot.lane.b32.xlu0 %v5453, 125
    %v5472 = vpop.permute.xlu0 %5471
    %5473 = vrot.lane.b32.xlu0 %v5456, 125
    %v5474 = vpop.permute.xlu0 %5473
    %5475 = vrot.lane.b32.xlu0 %v5459, 125
    %v5476 = vpop.permute.xlu0 %5475
    %5477 = vrot.lane.b32.xlu0 %v5462, 125
    %v5478 = vpop.permute.xlu0 %5477
    %5479 = vrot.lane.b32.xlu0 %v5464, 125
    %v5480 = vpop.permute.xlu0 %5479
    %5481 = vrot.lane.b32.xlu0 %v5466, 125
    %v5482 = vpop.permute.xlu0 %5481
    %5483 = vrot.lane.b32.xlu0 %v5468, 125
    %v5484 = vpop.permute.xlu0 %5483
    %5485 = vrot.lane.b32.xlu0 %v5470, 125
    %v5486 = vpop.permute.xlu0 %5485
    %5487 = vrot.lane.b32.xlu0 %v5463, 125
    %v5488 = vpop.permute.xlu0 %5487
    %5489 = vrot.lane.b32.xlu0 %v5465, 125
    %v5490 = vpop.permute.xlu0 %5489
    %5491 = vrot.lane.b32.xlu0 %v5467, 125
    %v5492 = vpop.permute.xlu0 %5491
    %v5493 = vsel %vm1155, %v5472, %v5474
    %v5494 = vsel %vm1155, %v5474, %v5476
    %v5495 = vsel %vm1155, %v5476, %v5478
    %v5496 = vsel %vm1155, %v5480, %v5482
    %v5497 = vsel %vm1155, %v5482, %v5484
    %v5498 = vsel %vm1155, %v5484, %v5486
    %v5499 = vsel %vm1155, %v5488, %v5490
    %v5500 = vsel %vm1155, %v5490, %v5492
    %v5509 = vadd.f32 %v5329, %v5493
    %v5510 = vadd.f32 %v5330, %v5494
    %v5511 = vadd.f32 %v5331, %v5495
    %v5512 = vadd.f32 %v5332, %v5496
    %v5513 = vadd.f32 %v5333, %v5497
    %v5514 = vadd.f32 %v5334, %v5498
    %v5515 = vadd.f32 %v5335, %v5499
    %v5516 = vadd.f32 %v5336, %v5500
    %s5517 = sld [smem:[#allocation4 + $0x5c]]
    %v5518 = vstv %s5517
    %v5519 = vmul.f32 %v5518, %v5022
    %v5520 = vmul.f32 %v5518, %v5023
    %v5521 = vmul.f32 %v5518, %v5024
    %v5522 = vmul.f32 %v5518, %v5025
    %v5523 = vmul.f32 %v5518, %v5026
    %v5524 = vmul.f32 %v5518, %v5027
    %v5525 = vmul.f32 %v5518, %v5028
    %v5526 = vmul.f32 %v5518, %v5029
    %v5527 = vmul.f32 %v5518, %v5030
    %v5528 = vmul.f32 %v5518, %v5031
    %v5529 = vmul.f32 %v5518, %v5032
    %v5541 = vrot.slane %v5519, 2
    %v5542 = vrot.slane %v5520, 2
    %v5543 = vrot.slane %v5521, 2
    %v5544 = vrot.slane %v5522, 2
    %v5545 = vrot.slane %v5523, 2
    %v5546 = vsel %vm1033, %v5541, %v5545
    %v5547 = vrot.slane %v5524, 2
    %v5548 = vsel %vm1033, %v5542, %v5547
    %v5549 = vrot.slane %v5525, 2
    %v5550 = vsel %vm1033, %v5543, %v5549
    %v5551 = vrot.slane %v5526, 2
    %v5552 = vsel %vm1033, %v5544, %v5551
    %v5553 = vrot.slane %v5527, 2
    %v5554 = vsel %vm1033, %v5545, %v5553
    %v5555 = vrot.slane %v5528, 2
    %v5556 = vsel %vm1033, %v5547, %v5555
    %v5557 = vrot.slane %v5529, 2
    %v5558 = vsel %vm1033, %v5549, %v5557
    %5559 = vrot.lane.b32.xlu0 %v5541, 125
    %v5560 = vpop.permute.xlu0 %5559
    %5561 = vrot.lane.b32.xlu0 %v5542, 125
    %v5562 = vpop.permute.xlu0 %5561
    %5563 = vrot.lane.b32.xlu0 %v5543, 125
    %v5564 = vpop.permute.xlu0 %5563
    %5565 = vrot.lane.b32.xlu0 %v5544, 125
    %v5566 = vpop.permute.xlu0 %5565
    %5567 = vrot.lane.b32.xlu0 %v5546, 125
    %v5568 = vpop.permute.xlu0 %5567
    %5569 = vrot.lane.b32.xlu0 %v5548, 125
    %v5570 = vpop.permute.xlu0 %5569
    %5571 = vrot.lane.b32.xlu0 %v5550, 125
    %v5572 = vpop.permute.xlu0 %5571
    %5573 = vrot.lane.b32.xlu0 %v5552, 125
    %v5574 = vpop.permute.xlu0 %5573
    %5575 = vrot.lane.b32.xlu0 %v5554, 125
    %v5576 = vpop.permute.xlu0 %5575
    %5577 = vrot.lane.b32.xlu0 %v5556, 125
    %v5578 = vpop.permute.xlu0 %5577
    %5579 = vrot.lane.b32.xlu0 %v5558, 125
    %v5580 = vpop.permute.xlu0 %5579
    %v5581 = vsel %vm1155, %v5560, %v5562
    %v5582 = vsel %vm1155, %v5562, %v5564
    %v5583 = vsel %vm1155, %v5564, %v5566
    %v5584 = vsel %vm1155, %v5568, %v5570
    %v5585 = vsel %vm1155, %v5570, %v5572
    %v5586 = vsel %vm1155, %v5572, %v5574
    %v5587 = vsel %vm1155, %v5576, %v5578
    %v5588 = vsel %vm1155, %v5578, %v5580
    %v5597 = vadd.f32 %v5417, %v5581
    %v5598 = vadd.f32 %v5418, %v5582
    %v5599 = vadd.f32 %v5419, %v5583
    %v5600 = vadd.f32 %v5420, %v5584
    %v5601 = vadd.f32 %v5421, %v5585
    %v5602 = vadd.f32 %v5422, %v5586
    %v5603 = vadd.f32 %v5423, %v5587
    %v5604 = vadd.f32 %v5424, %v5588
    %s5605 = sld [smem:[#allocation4 + $0x33]]
    %v5606 = vstv %s5605
    %v5607 = vmul.f32 %v5606, %v5010
    %v5608 = vmul.f32 %v5606, %v5011
    %v5609 = vmul.f32 %v5606, %v5012
    %v5610 = vmul.f32 %v5606, %v5013
    %v5611 = vmul.f32 %v5606, %v5014
    %v5612 = vmul.f32 %v5606, %v5015
    %v5613 = vmul.f32 %v5606, %v5016
    %v5614 = vmul.f32 %v5606, %v5017
    %v5615 = vmul.f32 %v5606, %v5018
    %v5616 = vmul.f32 %v5606, %v5019
    %v5617 = vmul.f32 %v5606, %v5020
    %v5618 = vmul.f32 %v5606, %v5021
    %v5631 = vrot.slane %v5607, 5
    %v5632 = vrot.slane %v5611, 5
    %v5633 = vsel %vm1112, %v5631, %v5632
    %v5634 = vrot.slane %v5608, 5
    %v5635 = vrot.slane %v5612, 5
    %v5636 = vsel %vm1112, %v5634, %v5635
    %v5637 = vrot.slane %v5609, 5
    %v5638 = vrot.slane %v5613, 5
    %v5639 = vsel %vm1112, %v5637, %v5638
    %v5640 = vrot.slane %v5610, 5
    %v5641 = vrot.slane %v5614, 5
    %v5642 = vsel %vm1112, %v5640, %v5641
    %v5643 = vrot.slane %v5615, 5
    %v5644 = vsel %vm1112, %v5632, %v5643
    %v5645 = vrot.slane %v5616, 5
    %v5646 = vsel %vm1112, %v5635, %v5645
    %v5647 = vrot.slane %v5617, 5
    %v5648 = vsel %vm1112, %v5638, %v5647
    %v5649 = vrot.slane %v5618, 5
    %v5650 = vsel %vm1112, %v5641, %v5649
    %5651 = vrot.lane.b32.xlu0 %v5633, 122
    %v5652 = vpop.permute.xlu0 %5651
    %5653 = vrot.lane.b32.xlu0 %v5636, 122
    %v5654 = vpop.permute.xlu0 %5653
    %5655 = vrot.lane.b32.xlu0 %v5639, 122
    %v5656 = vpop.permute.xlu0 %5655
    %5657 = vrot.lane.b32.xlu0 %v5642, 122
    %v5658 = vpop.permute.xlu0 %5657
    %5659 = vrot.lane.b32.xlu0 %v5644, 122
    %v5660 = vpop.permute.xlu0 %5659
    %5661 = vrot.lane.b32.xlu0 %v5646, 122
    %v5662 = vpop.permute.xlu0 %5661
    %5663 = vrot.lane.b32.xlu0 %v5648, 122
    %v5664 = vpop.permute.xlu0 %5663
    %5665 = vrot.lane.b32.xlu0 %v5650, 122
    %v5666 = vpop.permute.xlu0 %5665
    %5667 = vrot.lane.b32.xlu0 %v5643, 122
    %v5668 = vpop.permute.xlu0 %5667
    %5669 = vrot.lane.b32.xlu0 %v5645, 122
    %v5670 = vpop.permute.xlu0 %5669
    %5671 = vrot.lane.b32.xlu0 %v5647, 122
    %v5672 = vpop.permute.xlu0 %5671
    %v5673 = vsel %vm1753, %v5652, %v5654
    %v5674 = vsel %vm1753, %v5654, %v5656
    %v5675 = vsel %vm1753, %v5656, %v5658
    %v5676 = vsel %vm1753, %v5660, %v5662
    %v5677 = vsel %vm1753, %v5662, %v5664
    %v5678 = vsel %vm1753, %v5664, %v5666
    %v5679 = vsel %vm1753, %v5668, %v5670
    %v5680 = vsel %vm1753, %v5670, %v5672
    %v5689 = vadd.f32 %v5509, %v5673
    %v5690 = vadd.f32 %v5510, %v5674
    %v5691 = vadd.f32 %v5511, %v5675
    %v5692 = vadd.f32 %v5512, %v5676
    %v5693 = vadd.f32 %v5513, %v5677
    %v5694 = vadd.f32 %v5514, %v5678
    %v5695 = vadd.f32 %v5515, %v5679
    %v5696 = vadd.f32 %v5516, %v5680
    %s5697 = sld [smem:[#allocation4 + $0x3a]]
    %v5698 = vstv %s5697
    %v5699 = vmul.f32 %v5698, %v5014
    %v5700 = vmul.f32 %v5698, %v5015
    %v5701 = vmul.f32 %v5698, %v5016
    %v5702 = vmul.f32 %v5698, %v5017
    %v5703 = vmul.f32 %v5698, %v5018
    %v5704 = vmul.f32 %v5698, %v5019
    %v5705 = vmul.f32 %v5698, %v5020
    %v5706 = vmul.f32 %v5698, %v5021
    %v5707 = vmul.f32 %v5698, %v5022
    %v5708 = vmul.f32 %v5698, %v5023
    %v5709 = vmul.f32 %v5698, %v5024
    %v5721 = vrot.slane %v5699, 3
    %v5722 = vrot.slane %v5700, 3
    %v5723 = vrot.slane %v5701, 3
    %v5724 = vrot.slane %v5702, 3
    %v5725 = vrot.slane %v5703, 3
    %v5726 = vsel %vm1204, %v5721, %v5725
    %v5727 = vrot.slane %v5704, 3
    %v5728 = vsel %vm1204, %v5722, %v5727
    %v5729 = vrot.slane %v5705, 3
    %v5730 = vsel %vm1204, %v5723, %v5729
    %v5731 = vrot.slane %v5706, 3
    %v5732 = vsel %vm1204, %v5724, %v5731
    %v5733 = vrot.slane %v5707, 3
    %v5734 = vsel %vm1204, %v5725, %v5733
    %v5735 = vrot.slane %v5708, 3
    %v5736 = vsel %vm1204, %v5727, %v5735
    %v5737 = vrot.slane %v5709, 3
    %v5738 = vsel %vm1204, %v5729, %v5737
    %5739 = vrot.lane.b32.xlu0 %v5721, 122
    %v5740 = vpop.permute.xlu0 %5739
    %5741 = vrot.lane.b32.xlu0 %v5722, 122
    %v5742 = vpop.permute.xlu0 %5741
    %5743 = vrot.lane.b32.xlu0 %v5723, 122
    %v5744 = vpop.permute.xlu0 %5743
    %5745 = vrot.lane.b32.xlu0 %v5724, 122
    %v5746 = vpop.permute.xlu0 %5745
    %5747 = vrot.lane.b32.xlu0 %v5726, 122
    %v5748 = vpop.permute.xlu0 %5747
    %5749 = vrot.lane.b32.xlu0 %v5728, 122
    %v5750 = vpop.permute.xlu0 %5749
    %5751 = vrot.lane.b32.xlu0 %v5730, 122
    %v5752 = vpop.permute.xlu0 %5751
    %5753 = vrot.lane.b32.xlu0 %v5732, 122
    %v5754 = vpop.permute.xlu0 %5753
    %5755 = vrot.lane.b32.xlu0 %v5734, 122
    %v5756 = vpop.permute.xlu0 %5755
    %5757 = vrot.lane.b32.xlu0 %v5736, 122
    %v5758 = vpop.permute.xlu0 %5757
    %5759 = vrot.lane.b32.xlu0 %v5738, 122
    %v5760 = vpop.permute.xlu0 %5759
    %v5761 = vsel %vm1753, %v5740, %v5742
    %v5762 = vsel %vm1753, %v5742, %v5744
    %v5763 = vsel %vm1753, %v5744, %v5746
    %v5764 = vsel %vm1753, %v5748, %v5750
    %v5765 = vsel %vm1753, %v5750, %v5752
    %v5766 = vsel %vm1753, %v5752, %v5754
    %v5767 = vsel %vm1753, %v5756, %v5758
    %v5768 = vsel %vm1753, %v5758, %v5760
    %v5777 = vadd.f32 %v5597, %v5761
    %v5778 = vadd.f32 %v5598, %v5762
    %v5779 = vadd.f32 %v5599, %v5763
    %v5780 = vadd.f32 %v5600, %v5764
    %v5781 = vadd.f32 %v5601, %v5765
    %v5782 = vadd.f32 %v5602, %v5766
    %v5783 = vadd.f32 %v5603, %v5767
    %v5784 = vadd.f32 %v5604, %v5768
    %s5785 = sld [smem:[#allocation4 + $0x41]]
    %v5786 = vstv %s5785
    %v5787 = vmul.f32 %v5786, %v5014
    %v5788 = vmul.f32 %v5786, %v5015
    %v5789 = vmul.f32 %v5786, %v5016
    %v5790 = vmul.f32 %v5786, %v5017
    %v5791 = vmul.f32 %v5786, %v5018
    %v5792 = vmul.f32 %v5786, %v5019
    %v5793 = vmul.f32 %v5786, %v5020
    %v5794 = vmul.f32 %v5786, %v5021
    %v5795 = vmul.f32 %v5786, %v5022
    %v5796 = vmul.f32 %v5786, %v5023
    %v5797 = vmul.f32 %v5786, %v5024
    %v5798 = vmul.f32 %v5786, %v5025
    %v5811 = vrot.slane %v5787, 3
    %v5812 = vrot.slane %v5791, 3
    %v5813 = vsel %vm1204, %v5811, %v5812
    %v5814 = vrot.slane %v5788, 3
    %v5815 = vrot.slane %v5792, 3
    %v5816 = vsel %vm1204, %v5814, %v5815
    %v5817 = vrot.slane %v5789, 3
    %v5818 = vrot.slane %v5793, 3
    %v5819 = vsel %vm1204, %v5817, %v5818
    %v5820 = vrot.slane %v5790, 3
    %v5821 = vrot.slane %v5794, 3
    %v5822 = vsel %vm1204, %v5820, %v5821
    %v5823 = vrot.slane %v5795, 3
    %v5824 = vsel %vm1204, %v5812, %v5823
    %v5825 = vrot.slane %v5796, 3
    %v5826 = vsel %vm1204, %v5815, %v5825
    %v5827 = vrot.slane %v5797, 3
    %v5828 = vsel %vm1204, %v5818, %v5827
    %v5829 = vrot.slane %v5798, 3
    %v5830 = vsel %vm1204, %v5821, %v5829
    %5831 = vrot.lane.b32.xlu0 %v5813, 122
    %v5832 = vpop.permute.xlu0 %5831
    %5833 = vrot.lane.b32.xlu0 %v5816, 122
    %v5834 = vpop.permute.xlu0 %5833
    %5835 = vrot.lane.b32.xlu0 %v5819, 122
    %v5836 = vpop.permute.xlu0 %5835
    %5837 = vrot.lane.b32.xlu0 %v5822, 122
    %v5838 = vpop.permute.xlu0 %5837
    %5839 = vrot.lane.b32.xlu0 %v5824, 122
    %v5840 = vpop.permute.xlu0 %5839
    %5841 = vrot.lane.b32.xlu0 %v5826, 122
    %v5842 = vpop.permute.xlu0 %5841
    %5843 = vrot.lane.b32.xlu0 %v5828, 122
    %v5844 = vpop.permute.xlu0 %5843
    %5845 = vrot.lane.b32.xlu0 %v5830, 122
    %v5846 = vpop.permute.xlu0 %5845
    %5847 = vrot.lane.b32.xlu0 %v5823, 122
    %v5848 = vpop.permute.xlu0 %5847
    %5849 = vrot.lane.b32.xlu0 %v5825, 122
    %v5850 = vpop.permute.xlu0 %5849
    %5851 = vrot.lane.b32.xlu0 %v5827, 122
    %v5852 = vpop.permute.xlu0 %5851
    %v5853 = vsel %vm1753, %v5832, %v5834
    %v5854 = vsel %vm1753, %v5834, %v5836
    %v5855 = vsel %vm1753, %v5836, %v5838
    %v5856 = vsel %vm1753, %v5840, %v5842
    %v5857 = vsel %vm1753, %v5842, %v5844
    %v5858 = vsel %vm1753, %v5844, %v5846
    %v5859 = vsel %vm1753, %v5848, %v5850
    %v5860 = vsel %vm1753, %v5850, %v5852
    %v5869 = vadd.f32 %v5689, %v5853
    %v5870 = vadd.f32 %v5690, %v5854
    %v5871 = vadd.f32 %v5691, %v5855
    %v5872 = vadd.f32 %v5692, %v5856
    %v5873 = vadd.f32 %v5693, %v5857
    %v5874 = vadd.f32 %v5694, %v5858
    %v5875 = vadd.f32 %v5695, %v5859
    %v5876 = vadd.f32 %v5696, %v5860
    %s5877 = sld [smem:[#allocation4 + $0x48]]
    %v5878 = vstv %s5877
    %v5879 = vmul.f32 %v5878, %v5018
    %v5880 = vmul.f32 %v5878, %v5019
    %v5881 = vmul.f32 %v5878, %v5020
    %v5882 = vmul.f32 %v5878, %v5021
    %v5883 = vmul.f32 %v5878, %v5022
    %v5884 = vmul.f32 %v5878, %v5023
    %v5885 = vmul.f32 %v5878, %v5024
    %v5886 = vmul.f32 %v5878, %v5025
    %v5895 = vrot.slane %v5879, 1
    %v5896 = vrot.slane %v5880, 1
    %v5897 = vrot.slane %v5881, 1
    %v5898 = vrot.slane %v5882, 1
    %v5899 = vrot.slane %v5883, 1
    %v5900 = vsel %vm1379, %v5895, %v5899
    %v5901 = vrot.slane %v5884, 1
    %v5902 = vsel %vm1379, %v5896, %v5901
    %v5903 = vrot.slane %v5885, 1
    %v5904 = vsel %vm1379, %v5897, %v5903
    %v5905 = vrot.slane %v5886, 1
    %v5906 = vsel %vm1379, %v5898, %v5905
    %5907 = vrot.lane.b32.xlu0 %v5895, 122
    %v5908 = vpop.permute.xlu0 %5907
    %5909 = vrot.lane.b32.xlu0 %v5896, 122
    %v5910 = vpop.permute.xlu0 %5909
    %5911 = vrot.lane.b32.xlu0 %v5897, 122
    %v5912 = vpop.permute.xlu0 %5911
    %5913 = vrot.lane.b32.xlu0 %v5898, 122
    %v5914 = vpop.permute.xlu0 %5913
    %5915 = vrot.lane.b32.xlu0 %v5900, 122
    %v5916 = vpop.permute.xlu0 %5915
    %5917 = vrot.lane.b32.xlu0 %v5902, 122
    %v5918 = vpop.permute.xlu0 %5917
    %5919 = vrot.lane.b32.xlu0 %v5904, 122
    %v5920 = vpop.permute.xlu0 %5919
    %5921 = vrot.lane.b32.xlu0 %v5906, 122
    %v5922 = vpop.permute.xlu0 %5921
    %5923 = vrot.lane.b32.xlu0 %v5899, 122
    %v5924 = vpop.permute.xlu0 %5923
    %5925 = vrot.lane.b32.xlu0 %v5901, 122
    %v5926 = vpop.permute.xlu0 %5925
    %5927 = vrot.lane.b32.xlu0 %v5903, 122
    %v5928 = vpop.permute.xlu0 %5927
    %v5929 = vsel %vm1753, %v5908, %v5910
    %v5930 = vsel %vm1753, %v5910, %v5912
    %v5931 = vsel %vm1753, %v5912, %v5914
    %v5932 = vsel %vm1753, %v5916, %v5918
    %v5933 = vsel %vm1753, %v5918, %v5920
    %v5934 = vsel %vm1753, %v5920, %v5922
    %v5935 = vsel %vm1753, %v5924, %v5926
    %v5936 = vsel %vm1753, %v5926, %v5928
    %v5945 = vadd.f32 %v5777, %v5929
    %v5946 = vadd.f32 %v5778, %v5930
    %v5947 = vadd.f32 %v5779, %v5931
    %v5948 = vadd.f32 %v5780, %v5932
    %v5949 = vadd.f32 %v5781, %v5933
    %v5950 = vadd.f32 %v5782, %v5934
    %v5951 = vadd.f32 %v5783, %v5935
    %v5952 = vadd.f32 %v5784, %v5936
    %s5953 = sld [smem:[#allocation4 + $0x4f]]
    %v5954 = vstv %s5953
    %v5955 = vmul.f32 %v5954, %v5018
    %v5956 = vmul.f32 %v5954, %v5019
    %v5957 = vmul.f32 %v5954, %v5020
    %v5958 = vmul.f32 %v5954, %v5021
    %v5959 = vmul.f32 %v5954, %v5022
    %v5960 = vmul.f32 %v5954, %v5023
    %v5961 = vmul.f32 %v5954, %v5024
    %v5962 = vmul.f32 %v5954, %v5025
    %v5963 = vmul.f32 %v5954, %v5026
    %v5964 = vmul.f32 %v5954, %v5027
    %v5965 = vmul.f32 %v5954, %v5028
    %v5966 = vmul.f32 %v5954, %v5029
    %v5979 = vrot.slane %v5955, 1
    %v5980 = vrot.slane %v5959, 1
    %v5981 = vsel %vm1379, %v5979, %v5980
    %v5982 = vrot.slane %v5956, 1
    %v5983 = vrot.slane %v5960, 1
    %v5984 = vsel %vm1379, %v5982, %v5983
    %v5985 = vrot.slane %v5957, 1
    %v5986 = vrot.slane %v5961, 1
    %v5987 = vsel %vm1379, %v5985, %v5986
    %v5988 = vrot.slane %v5958, 1
    %v5989 = vrot.slane %v5962, 1
    %v5990 = vsel %vm1379, %v5988, %v5989
    %v5991 = vrot.slane %v5963, 1
    %v5992 = vsel %vm1379, %v5980, %v5991
    %v5993 = vrot.slane %v5964, 1
    %v5994 = vsel %vm1379, %v5983, %v5993
    %v5995 = vrot.slane %v5965, 1
    %v5996 = vsel %vm1379, %v5986, %v5995
    %v5997 = vrot.slane %v5966, 1
    %v5998 = vsel %vm1379, %v5989, %v5997
    %5999 = vrot.lane.b32.xlu0 %v5981, 122
    %v6000 = vpop.permute.xlu0 %5999
    %6001 = vrot.lane.b32.xlu0 %v5984, 122
    %v6002 = vpop.permute.xlu0 %6001
    %6003 = vrot.lane.b32.xlu0 %v5987, 122
    %v6004 = vpop.permute.xlu0 %6003
    %6005 = vrot.lane.b32.xlu0 %v5990, 122
    %v6006 = vpop.permute.xlu0 %6005
    %6007 = vrot.lane.b32.xlu0 %v5992, 122
    %v6008 = vpop.permute.xlu0 %6007
    %6009 = vrot.lane.b32.xlu0 %v5994, 122
    %v6010 = vpop.permute.xlu0 %6009
    %6011 = vrot.lane.b32.xlu0 %v5996, 122
    %v6012 = vpop.permute.xlu0 %6011
    %6013 = vrot.lane.b32.xlu0 %v5998, 122
    %v6014 = vpop.permute.xlu0 %6013
    %6015 = vrot.lane.b32.xlu0 %v5991, 122
    %v6016 = vpop.permute.xlu0 %6015
    %6017 = vrot.lane.b32.xlu0 %v5993, 122
    %v6018 = vpop.permute.xlu0 %6017
    %6019 = vrot.lane.b32.xlu0 %v5995, 122
    %v6020 = vpop.permute.xlu0 %6019
    %v6021 = vsel %vm1753, %v6000, %v6002
    %v6022 = vsel %vm1753, %v6002, %v6004
    %v6023 = vsel %vm1753, %v6004, %v6006
    %v6024 = vsel %vm1753, %v6008, %v6010
    %v6025 = vsel %vm1753, %v6010, %v6012
    %v6026 = vsel %vm1753, %v6012, %v6014
    %v6027 = vsel %vm1753, %v6016, %v6018
    %v6028 = vsel %vm1753, %v6018, %v6020
    %v6037 = vadd.f32 %v5869, %v6021
    %v6038 = vadd.f32 %v5870, %v6022
    %v6039 = vadd.f32 %v5871, %v6023
    %v6040 = vadd.f32 %v5872, %v6024
    %v6041 = vadd.f32 %v5873, %v6025
    %v6042 = vadd.f32 %v5874, %v6026
    %v6043 = vadd.f32 %v5875, %v6027
    %v6044 = vadd.f32 %v5876, %v6028
    %s6045 = sld [smem:[#allocation4 + $0x56]]
    %v6046 = vstv %s6045
    %v6047 = vmul.f32 %v6046, %v5018
    %v6048 = vmul.f32 %v6046, %v5019
    %v6049 = vmul.f32 %v6046, %v5020
    %v6050 = vmul.f32 %v6046, %v5021
    %v6051 = vmul.f32 %v6046, %v5022
    %v6052 = vmul.f32 %v6046, %v5023
    %v6053 = vmul.f32 %v6046, %v5024
    %v6054 = vmul.f32 %v6046, %v5025
    %v6055 = vmul.f32 %v6046, %v5026
    %v6056 = vmul.f32 %v6046, %v5027
    %v6057 = vmul.f32 %v6046, %v5028
    %v6069 = vrot.slane %v6047, 7
    %v6070 = vrot.slane %v6048, 7
    %v6071 = vrot.slane %v6049, 7
    %v6072 = vrot.slane %v6050, 7
    %v6073 = vrot.slane %v6051, 7
    %v6074 = vsel %vm1554, %v6069, %v6073
    %v6075 = vrot.slane %v6052, 7
    %v6076 = vsel %vm1554, %v6070, %v6075
    %v6077 = vrot.slane %v6053, 7
    %v6078 = vsel %vm1554, %v6071, %v6077
    %v6079 = vrot.slane %v6054, 7
    %v6080 = vsel %vm1554, %v6072, %v6079
    %v6081 = vrot.slane %v6055, 7
    %v6082 = vsel %vm1554, %v6073, %v6081
    %v6083 = vrot.slane %v6056, 7
    %v6084 = vsel %vm1554, %v6075, %v6083
    %v6085 = vrot.slane %v6057, 7
    %v6086 = vsel %vm1554, %v6077, %v6085
    %6087 = vrot.lane.b32.xlu0 %v6069, 122
    %v6088 = vpop.permute.xlu0 %6087
    %6089 = vrot.lane.b32.xlu0 %v6070, 122
    %v6090 = vpop.permute.xlu0 %6089
    %6091 = vrot.lane.b32.xlu0 %v6071, 122
    %v6092 = vpop.permute.xlu0 %6091
    %6093 = vrot.lane.b32.xlu0 %v6072, 122
    %v6094 = vpop.permute.xlu0 %6093
    %6095 = vrot.lane.b32.xlu0 %v6074, 122
    %v6096 = vpop.permute.xlu0 %6095
    %6097 = vrot.lane.b32.xlu0 %v6076, 122
    %v6098 = vpop.permute.xlu0 %6097
    %6099 = vrot.lane.b32.xlu0 %v6078, 122
    %v6100 = vpop.permute.xlu0 %6099
    %6101 = vrot.lane.b32.xlu0 %v6080, 122
    %v6102 = vpop.permute.xlu0 %6101
    %6103 = vrot.lane.b32.xlu0 %v6082, 122
    %v6104 = vpop.permute.xlu0 %6103
    %6105 = vrot.lane.b32.xlu0 %v6084, 122
    %v6106 = vpop.permute.xlu0 %6105
    %6107 = vrot.lane.b32.xlu0 %v6086, 122
    %v6108 = vpop.permute.xlu0 %6107
    %v6109 = vsel %vm1753, %v6088, %v6090
    %v6110 = vsel %vm1753, %v6090, %v6092
    %v6111 = vsel %vm1753, %v6092, %v6094
    %v6112 = vsel %vm1753, %v6096, %v6098
    %v6113 = vsel %vm1753, %v6098, %v6100
    %v6114 = vsel %vm1753, %v6100, %v6102
    %v6115 = vsel %vm1753, %v6104, %v6106
    %v6116 = vsel %vm1753, %v6106, %v6108
    %v6125 = vadd.f32 %v5945, %v6109
    %v6126 = vadd.f32 %v5946, %v6110
    %v6127 = vadd.f32 %v5947, %v6111
    %v6128 = vadd.f32 %v5948, %v6112
    %v6129 = vadd.f32 %v5949, %v6113
    %v6130 = vadd.f32 %v5950, %v6114
    %v6131 = vadd.f32 %v5951, %v6115
    %v6132 = vadd.f32 %v5952, %v6116
    %s6133 = sld [smem:[#allocation4 + $0x5d]]
    %v6134 = vstv %s6133
    %v6135 = vmul.f32 %v6134, %v5022
    %v6136 = vmul.f32 %v6134, %v5023
    %v6137 = vmul.f32 %v6134, %v5024
    %v6138 = vmul.f32 %v6134, %v5025
    %v6139 = vmul.f32 %v6134, %v5026
    %v6140 = vmul.f32 %v6134, %v5027
    %v6141 = vmul.f32 %v6134, %v5028
    %v6142 = vmul.f32 %v6134, %v5029
    %v6143 = vmul.f32 %v6134, %v5030
    %v6144 = vmul.f32 %v6134, %v5031
    %v6145 = vmul.f32 %v6134, %v5032
    %v6157 = vrot.slane %v6135, 7
    %v6158 = vrot.slane %v6136, 7
    %v6159 = vrot.slane %v6137, 7
    %v6160 = vrot.slane %v6138, 7
    %v6161 = vrot.slane %v6139, 7
    %v6162 = vsel %vm1554, %v6157, %v6161
    %v6163 = vrot.slane %v6140, 7
    %v6164 = vsel %vm1554, %v6158, %v6163
    %v6165 = vrot.slane %v6141, 7
    %v6166 = vsel %vm1554, %v6159, %v6165
    %v6167 = vrot.slane %v6142, 7
    %v6168 = vsel %vm1554, %v6160, %v6167
    %v6169 = vrot.slane %v6143, 7
    %v6170 = vsel %vm1554, %v6161, %v6169
    %v6171 = vrot.slane %v6144, 7
    %v6172 = vsel %vm1554, %v6163, %v6171
    %v6173 = vrot.slane %v6145, 7
    %v6174 = vsel %vm1554, %v6165, %v6173
    %6175 = vrot.lane.b32.xlu0 %v6157, 122
    %v6176 = vpop.permute.xlu0 %6175
    %6177 = vrot.lane.b32.xlu0 %v6158, 122
    %v6178 = vpop.permute.xlu0 %6177
    %6179 = vrot.lane.b32.xlu0 %v6159, 122
    %v6180 = vpop.permute.xlu0 %6179
    %6181 = vrot.lane.b32.xlu0 %v6160, 122
    %v6182 = vpop.permute.xlu0 %6181
    %6183 = vrot.lane.b32.xlu0 %v6162, 122
    %v6184 = vpop.permute.xlu0 %6183
    %6185 = vrot.lane.b32.xlu0 %v6164, 122
    %v6186 = vpop.permute.xlu0 %6185
    %6187 = vrot.lane.b32.xlu0 %v6166, 122
    %v6188 = vpop.permute.xlu0 %6187
    %6189 = vrot.lane.b32.xlu0 %v6168, 122
    %v6190 = vpop.permute.xlu0 %6189
    %6191 = vrot.lane.b32.xlu0 %v6170, 122
    %v6192 = vpop.permute.xlu0 %6191
    %6193 = vrot.lane.b32.xlu0 %v6172, 122
    %v6194 = vpop.permute.xlu0 %6193
    %6195 = vrot.lane.b32.xlu0 %v6174, 122
    %v6196 = vpop.permute.xlu0 %6195
    %v6197 = vsel %vm1753, %v6176, %v6178
    %v6198 = vsel %vm1753, %v6178, %v6180
    %v6199 = vsel %vm1753, %v6180, %v6182
    %v6200 = vsel %vm1753, %v6184, %v6186
    %v6201 = vsel %vm1753, %v6186, %v6188
    %v6202 = vsel %vm1753, %v6188, %v6190
    %v6203 = vsel %vm1753, %v6192, %v6194
    %v6204 = vsel %vm1753, %v6194, %v6196
    %v6213 = vadd.f32 %v6037, %v6197
    %v6214 = vadd.f32 %v6038, %v6198
    %v6215 = vadd.f32 %v6039, %v6199
    %v6216 = vadd.f32 %v6040, %v6200
    %v6217 = vadd.f32 %v6041, %v6201
    %v6218 = vadd.f32 %v6042, %v6202
    %v6219 = vadd.f32 %v6043, %v6203
    %v6220 = vadd.f32 %v6044, %v6204
    %s6221 = sld [smem:[#allocation4 + $0x34]]
    %v6222 = vstv %s6221
    %v6223 = vmul.f32 %v6222, %v5010
    %v6224 = vmul.f32 %v6222, %v5011
    %v6225 = vmul.f32 %v6222, %v5012
    %v6226 = vmul.f32 %v6222, %v5013
    %v6227 = vmul.f32 %v6222, %v5014
    %v6228 = vmul.f32 %v6222, %v5015
    %v6229 = vmul.f32 %v6222, %v5016
    %v6230 = vmul.f32 %v6222, %v5017
    %v6231 = vmul.f32 %v6222, %v5018
    %v6232 = vmul.f32 %v6222, %v5019
    %v6233 = vmul.f32 %v6222, %v5020
    %6245 = vrot.lane.b32.xlu0 %v6223, 119
    %v6246 = vpop.permute.xlu0 %6245
    %6247 = vrot.lane.b32.xlu0 %v6224, 119
    %v6248 = vpop.permute.xlu0 %6247
    %6249 = vrot.lane.b32.xlu0 %v6225, 119
    %v6250 = vpop.permute.xlu0 %6249
    %6251 = vrot.lane.b32.xlu0 %v6226, 119
    %v6252 = vpop.permute.xlu0 %6251
    %6253 = vrot.lane.b32.xlu0 %v6227, 119
    %v6254 = vpop.permute.xlu0 %6253
    %6255 = vrot.lane.b32.xlu0 %v6228, 119
    %v6256 = vpop.permute.xlu0 %6255
    %6257 = vrot.lane.b32.xlu0 %v6229, 119
    %v6258 = vpop.permute.xlu0 %6257
    %6259 = vrot.lane.b32.xlu0 %v6230, 119
    %v6260 = vpop.permute.xlu0 %6259
    %6261 = vrot.lane.b32.xlu0 %v6231, 119
    %v6262 = vpop.permute.xlu0 %6261
    %6263 = vrot.lane.b32.xlu0 %v6232, 119
    %v6264 = vpop.permute.xlu0 %6263
    %6265 = vrot.lane.b32.xlu0 %v6233, 119
    %v6266 = vpop.permute.xlu0 %6265
    %v6267 = vsel %vm2348, %v6246, %v6248
    %v6268 = vsel %vm2348, %v6248, %v6250
    %v6269 = vsel %vm2348, %v6250, %v6252
    %v6270 = vsel %vm2348, %v6254, %v6256
    %v6271 = vsel %vm2348, %v6256, %v6258
    %v6272 = vsel %vm2348, %v6258, %v6260
    %v6273 = vsel %vm2348, %v6262, %v6264
    %v6274 = vsel %vm2348, %v6264, %v6266
    %v6283 = vadd.f32 %v6125, %v6267
    %v6284 = vadd.f32 %v6126, %v6268
    %v6285 = vadd.f32 %v6127, %v6269
    %v6286 = vadd.f32 %v6128, %v6270
    %v6287 = vadd.f32 %v6129, %v6271
    %v6288 = vadd.f32 %v6130, %v6272
    %v6289 = vadd.f32 %v6131, %v6273
    %v6290 = vadd.f32 %v6132, %v6274
    %s6291 = sld [smem:[#allocation4 + $0x3b]]
    %v6292 = vstv %s6291
    %v6293 = vmul.f32 %v6292, %v5014
    %v6294 = vmul.f32 %v6292, %v5015
    %v6295 = vmul.f32 %v6292, %v5016
    %v6296 = vmul.f32 %v6292, %v5017
    %v6297 = vmul.f32 %v6292, %v5018
    %v6298 = vmul.f32 %v6292, %v5019
    %v6299 = vmul.f32 %v6292, %v5020
    %v6300 = vmul.f32 %v6292, %v5021
    %v6301 = vmul.f32 %v6292, %v5022
    %v6302 = vmul.f32 %v6292, %v5023
    %v6303 = vmul.f32 %v6292, %v5024
    %6315 = vrot.lane.b32.xlu0 %v6293, 119
    %v6316 = vpop.permute.xlu0 %6315
    %6317 = vrot.lane.b32.xlu0 %v6294, 119
    %v6318 = vpop.permute.xlu0 %6317
    %6319 = vrot.lane.b32.xlu0 %v6295, 119
    %v6320 = vpop.permute.xlu0 %6319
    %6321 = vrot.lane.b32.xlu0 %v6296, 119
    %v6322 = vpop.permute.xlu0 %6321
    %6323 = vrot.lane.b32.xlu0 %v6297, 119
    %v6324 = vpop.permute.xlu0 %6323
    %6325 = vrot.lane.b32.xlu0 %v6298, 119
    %v6326 = vpop.permute.xlu0 %6325
    %6327 = vrot.lane.b32.xlu0 %v6299, 119
    %v6328 = vpop.permute.xlu0 %6327
    %6329 = vrot.lane.b32.xlu0 %v6300, 119
    %v6330 = vpop.permute.xlu0 %6329
    %6331 = vrot.lane.b32.xlu0 %v6301, 119
    %v6332 = vpop.permute.xlu0 %6331
    %6333 = vrot.lane.b32.xlu0 %v6302, 119
    %v6334 = vpop.permute.xlu0 %6333
    %6335 = vrot.lane.b32.xlu0 %v6303, 119
    %v6336 = vpop.permute.xlu0 %6335
    %v6337 = vsel %vm2348, %v6316, %v6318
    %v6338 = vsel %vm2348, %v6318, %v6320
    %v6339 = vsel %vm2348, %v6320, %v6322
    %v6340 = vsel %vm2348, %v6324, %v6326
    %v6341 = vsel %vm2348, %v6326, %v6328
    %v6342 = vsel %vm2348, %v6328, %v6330
    %v6343 = vsel %vm2348, %v6332, %v6334
    %v6344 = vsel %vm2348, %v6334, %v6336
    %v6353 = vadd.f32 %v6213, %v6337
    %v6354 = vadd.f32 %v6214, %v6338
    %v6355 = vadd.f32 %v6215, %v6339
    %v6356 = vadd.f32 %v6216, %v6340
    %v6357 = vadd.f32 %v6217, %v6341
    %v6358 = vadd.f32 %v6218, %v6342
    %v6359 = vadd.f32 %v6219, %v6343
    %v6360 = vadd.f32 %v6220, %v6344
    %s6361 = sld [smem:[#allocation4 + $0x42]]
    %v6362 = vstv %s6361
    %v6363 = vmul.f32 %v6362, %v5014
    %v6364 = vmul.f32 %v6362, %v5015
    %v6365 = vmul.f32 %v6362, %v5016
    %v6366 = vmul.f32 %v6362, %v5017
    %v6367 = vmul.f32 %v6362, %v5018
    %v6368 = vmul.f32 %v6362, %v5019
    %v6369 = vmul.f32 %v6362, %v5020
    %v6370 = vmul.f32 %v6362, %v5021
    %v6371 = vmul.f32 %v6362, %v5022
    %v6372 = vmul.f32 %v6362, %v5023
    %v6373 = vmul.f32 %v6362, %v5024
    %v6385 = vrot.slane %v6363, 6
    %v6386 = vrot.slane %v6364, 6
    %v6387 = vrot.slane %v6365, 6
    %v6388 = vrot.slane %v6366, 6
    %v6389 = vrot.slane %v6367, 6
    %v6390 = vsel %vm847, %v6385, %v6389
    %v6391 = vrot.slane %v6368, 6
    %v6392 = vsel %vm847, %v6386, %v6391
    %v6393 = vrot.slane %v6369, 6
    %v6394 = vsel %vm847, %v6387, %v6393
    %v6395 = vrot.slane %v6370, 6
    %v6396 = vsel %vm847, %v6388, %v6395
    %v6397 = vrot.slane %v6371, 6
    %v6398 = vsel %vm847, %v6389, %v6397
    %v6399 = vrot.slane %v6372, 6
    %v6400 = vsel %vm847, %v6391, %v6399
    %v6401 = vrot.slane %v6373, 6
    %v6402 = vsel %vm847, %v6393, %v6401
    %6403 = vrot.lane.b32.xlu0 %v6385, 119
    %v6404 = vpop.permute.xlu0 %6403
    %6405 = vrot.lane.b32.xlu0 %v6386, 119
    %v6406 = vpop.permute.xlu0 %6405
    %6407 = vrot.lane.b32.xlu0 %v6387, 119
    %v6408 = vpop.permute.xlu0 %6407
    %6409 = vrot.lane.b32.xlu0 %v6388, 119
    %v6410 = vpop.permute.xlu0 %6409
    %6411 = vrot.lane.b32.xlu0 %v6390, 119
    %v6412 = vpop.permute.xlu0 %6411
    %6413 = vrot.lane.b32.xlu0 %v6392, 119
    %v6414 = vpop.permute.xlu0 %6413
    %6415 = vrot.lane.b32.xlu0 %v6394, 119
    %v6416 = vpop.permute.xlu0 %6415
    %6417 = vrot.lane.b32.xlu0 %v6396, 119
    %v6418 = vpop.permute.xlu0 %6417
    %6419 = vrot.lane.b32.xlu0 %v6398, 119
    %v6420 = vpop.permute.xlu0 %6419
    %6421 = vrot.lane.b32.xlu0 %v6400, 119
    %v6422 = vpop.permute.xlu0 %6421
    %6423 = vrot.lane.b32.xlu0 %v6402, 119
    %v6424 = vpop.permute.xlu0 %6423
    %v6425 = vsel %vm2348, %v6404, %v6406
    %v6426 = vsel %vm2348, %v6406, %v6408
    %v6427 = vsel %vm2348, %v6408, %v6410
    %v6428 = vsel %vm2348, %v6412, %v6414
    %v6429 = vsel %vm2348, %v6414, %v6416
    %v6430 = vsel %vm2348, %v6416, %v6418
    %v6431 = vsel %vm2348, %v6420, %v6422
    %v6432 = vsel %vm2348, %v6422, %v6424
    %v6441 = vadd.f32 %v6283, %v6425
    %v6442 = vadd.f32 %v6284, %v6426
    %v6443 = vadd.f32 %v6285, %v6427
    %v6444 = vadd.f32 %v6286, %v6428
    %v6445 = vadd.f32 %v6287, %v6429
    %v6446 = vadd.f32 %v6288, %v6430
    %v6447 = vadd.f32 %v6289, %v6431
    %v6448 = vadd.f32 %v6290, %v6432
    %s6449 = sld [smem:[#allocation4 + $0x49]]
    %v6450 = vstv %s6449
    %v6451 = vmul.f32 %v6450, %v5018
    %v6452 = vmul.f32 %v6450, %v5019
    %v6453 = vmul.f32 %v6450, %v5020
    %v6454 = vmul.f32 %v6450, %v5021
    %v6455 = vmul.f32 %v6450, %v5022
    %v6456 = vmul.f32 %v6450, %v5023
    %v6457 = vmul.f32 %v6450, %v5024
    %v6458 = vmul.f32 %v6450, %v5025
    %v6467 = vrot.slane %v6451, 6
    %v6468 = vrot.slane %v6452, 6
    %v6469 = vrot.slane %v6453, 6
    %v6470 = vrot.slane %v6454, 6
    %v6471 = vrot.slane %v6455, 6
    %v6472 = vsel %vm847, %v6467, %v6471
    %v6473 = vrot.slane %v6456, 6
    %v6474 = vsel %vm847, %v6468, %v6473
    %v6475 = vrot.slane %v6457, 6
    %v6476 = vsel %vm847, %v6469, %v6475
    %v6477 = vrot.slane %v6458, 6
    %v6478 = vsel %vm847, %v6470, %v6477
    %6479 = vrot.lane.b32.xlu0 %v6467, 119
    %v6480 = vpop.permute.xlu0 %6479
    %6481 = vrot.lane.b32.xlu0 %v6468, 119
    %v6482 = vpop.permute.xlu0 %6481
    %6483 = vrot.lane.b32.xlu0 %v6469, 119
    %v6484 = vpop.permute.xlu0 %6483
    %6485 = vrot.lane.b32.xlu0 %v6470, 119
    %v6486 = vpop.permute.xlu0 %6485
    %6487 = vrot.lane.b32.xlu0 %v6472, 119
    %v6488 = vpop.permute.xlu0 %6487
    %6489 = vrot.lane.b32.xlu0 %v6474, 119
    %v6490 = vpop.permute.xlu0 %6489
    %6491 = vrot.lane.b32.xlu0 %v6476, 119
    %v6492 = vpop.permute.xlu0 %6491
    %6493 = vrot.lane.b32.xlu0 %v6478, 119
    %v6494 = vpop.permute.xlu0 %6493
    %6495 = vrot.lane.b32.xlu0 %v6471, 119
    %v6496 = vpop.permute.xlu0 %6495
    %6497 = vrot.lane.b32.xlu0 %v6473, 119
    %v6498 = vpop.permute.xlu0 %6497
    %6499 = vrot.lane.b32.xlu0 %v6475, 119
    %v6500 = vpop.permute.xlu0 %6499
    %v6501 = vsel %vm2348, %v6480, %v6482
    %v6502 = vsel %vm2348, %v6482, %v6484
    %v6503 = vsel %vm2348, %v6484, %v6486
    %v6504 = vsel %vm2348, %v6488, %v6490
    %v6505 = vsel %vm2348, %v6490, %v6492
    %v6506 = vsel %vm2348, %v6492, %v6494
    %v6507 = vsel %vm2348, %v6496, %v6498
    %v6508 = vsel %vm2348, %v6498, %v6500
    %v6517 = vadd.f32 %v6353, %v6501
    %v6518 = vadd.f32 %v6354, %v6502
    %v6519 = vadd.f32 %v6355, %v6503
    %v6520 = vadd.f32 %v6356, %v6504
    %v6521 = vadd.f32 %v6357, %v6505
    %v6522 = vadd.f32 %v6358, %v6506
    %v6523 = vadd.f32 %v6359, %v6507
    %v6524 = vadd.f32 %v6360, %v6508
    %s6525 = sld [smem:[#allocation4 + $0x50]]
    %v6526 = vstv %s6525
    %v6527 = vmul.f32 %v6526, %v5018
    %v6528 = vmul.f32 %v6526, %v5019
    %v6529 = vmul.f32 %v6526, %v5020
    %v6530 = vmul.f32 %v6526, %v5021
    %v6531 = vmul.f32 %v6526, %v5022
    %v6532 = vmul.f32 %v6526, %v5023
    %v6533 = vmul.f32 %v6526, %v5024
    %v6534 = vmul.f32 %v6526, %v5025
    %v6535 = vmul.f32 %v6526, %v5026
    %v6536 = vmul.f32 %v6526, %v5027
    %v6537 = vmul.f32 %v6526, %v5028
    %v6549 = vrot.slane %v6527, 4
    %v6550 = vrot.slane %v6528, 4
    %v6551 = vrot.slane %v6529, 4
    %v6552 = vrot.slane %v6530, 4
    %v6553 = vrot.slane %v6531, 4
    %v6554 = vsel %vm934, %v6549, %v6553
    %v6555 = vrot.slane %v6532, 4
    %v6556 = vsel %vm934, %v6550, %v6555
    %v6557 = vrot.slane %v6533, 4
    %v6558 = vsel %vm934, %v6551, %v6557
    %v6559 = vrot.slane %v6534, 4
    %v6560 = vsel %vm934, %v6552, %v6559
    %v6561 = vrot.slane %v6535, 4
    %v6562 = vsel %vm934, %v6553, %v6561
    %v6563 = vrot.slane %v6536, 4
    %v6564 = vsel %vm934, %v6555, %v6563
    %v6565 = vrot.slane %v6537, 4
    %v6566 = vsel %vm934, %v6557, %v6565
    %6567 = vrot.lane.b32.xlu0 %v6549, 119
    %v6568 = vpop.permute.xlu0 %6567
    %6569 = vrot.lane.b32.xlu0 %v6550, 119
    %v6570 = vpop.permute.xlu0 %6569
    %6571 = vrot.lane.b32.xlu0 %v6551, 119
    %v6572 = vpop.permute.xlu0 %6571
    %6573 = vrot.lane.b32.xlu0 %v6552, 119
    %v6574 = vpop.permute.xlu0 %6573
    %6575 = vrot.lane.b32.xlu0 %v6554, 119
    %v6576 = vpop.permute.xlu0 %6575
    %6577 = vrot.lane.b32.xlu0 %v6556, 119
    %v6578 = vpop.permute.xlu0 %6577
    %6579 = vrot.lane.b32.xlu0 %v6558, 119
    %v6580 = vpop.permute.xlu0 %6579
    %6581 = vrot.lane.b32.xlu0 %v6560, 119
    %v6582 = vpop.permute.xlu0 %6581
    %6583 = vrot.lane.b32.xlu0 %v6562, 119
    %v6584 = vpop.permute.xlu0 %6583
    %6585 = vrot.lane.b32.xlu0 %v6564, 119
    %v6586 = vpop.permute.xlu0 %6585
    %6587 = vrot.lane.b32.xlu0 %v6566, 119
    %v6588 = vpop.permute.xlu0 %6587
    %v6589 = vsel %vm2348, %v6568, %v6570
    %v6590 = vsel %vm2348, %v6570, %v6572
    %v6591 = vsel %vm2348, %v6572, %v6574
    %v6592 = vsel %vm2348, %v6576, %v6578
    %v6593 = vsel %vm2348, %v6578, %v6580
    %v6594 = vsel %vm2348, %v6580, %v6582
    %v6595 = vsel %vm2348, %v6584, %v6586
    %v6596 = vsel %vm2348, %v6586, %v6588
    %v6605 = vadd.f32 %v6441, %v6589
    %v6606 = vadd.f32 %v6442, %v6590
    %v6607 = vadd.f32 %v6443, %v6591
    %v6608 = vadd.f32 %v6444, %v6592
    %v6609 = vadd.f32 %v6445, %v6593
    %v6610 = vadd.f32 %v6446, %v6594
    %v6611 = vadd.f32 %v6447, %v6595
    %v6612 = vadd.f32 %v6448, %v6596
    %s6613 = sld [smem:[#allocation4 + $0x57]]
    %v6614 = vstv %s6613
    %v6615 = vmul.f32 %v6614, %v5018
    %v6616 = vmul.f32 %v6614, %v5019
    %v6617 = vmul.f32 %v6614, %v5020
    %v6618 = vmul.f32 %v6614, %v5021
    %v6619 = vmul.f32 %v6614, %v5022
    %v6620 = vmul.f32 %v6614, %v5023
    %v6621 = vmul.f32 %v6614, %v5024
    %v6622 = vmul.f32 %v6614, %v5025
    %v6623 = vmul.f32 %v6614, %v5026
    %v6624 = vmul.f32 %v6614, %v5027
    %v6625 = vmul.f32 %v6614, %v5028
    %v6626 = vmul.f32 %v6614, %v5029
    %v6639 = vrot.slane %v6615, 4
    %v6640 = vrot.slane %v6619, 4
    %v6641 = vsel %vm934, %v6639, %v6640
    %v6642 = vrot.slane %v6616, 4
    %v6643 = vrot.slane %v6620, 4
    %v6644 = vsel %vm934, %v6642, %v6643
    %v6645 = vrot.slane %v6617, 4
    %v6646 = vrot.slane %v6621, 4
    %v6647 = vsel %vm934, %v6645, %v6646
    %v6648 = vrot.slane %v6618, 4
    %v6649 = vrot.slane %v6622, 4
    %v6650 = vsel %vm934, %v6648, %v6649
    %v6651 = vrot.slane %v6623, 4
    %v6652 = vsel %vm934, %v6640, %v6651
    %v6653 = vrot.slane %v6624, 4
    %v6654 = vsel %vm934, %v6643, %v6653
    %v6655 = vrot.slane %v6625, 4
    %v6656 = vsel %vm934, %v6646, %v6655
    %v6657 = vrot.slane %v6626, 4
    %v6658 = vsel %vm934, %v6649, %v6657
    %6659 = vrot.lane.b32.xlu0 %v6641, 119
    %v6660 = vpop.permute.xlu0 %6659
    %6661 = vrot.lane.b32.xlu0 %v6644, 119
    %v6662 = vpop.permute.xlu0 %6661
    %6663 = vrot.lane.b32.xlu0 %v6647, 119
    %v6664 = vpop.permute.xlu0 %6663
    %6665 = vrot.lane.b32.xlu0 %v6650, 119
    %v6666 = vpop.permute.xlu0 %6665
    %6667 = vrot.lane.b32.xlu0 %v6652, 119
    %v6668 = vpop.permute.xlu0 %6667
    %6669 = vrot.lane.b32.xlu0 %v6654, 119
    %v6670 = vpop.permute.xlu0 %6669
    %6671 = vrot.lane.b32.xlu0 %v6656, 119
    %v6672 = vpop.permute.xlu0 %6671
    %6673 = vrot.lane.b32.xlu0 %v6658, 119
    %v6674 = vpop.permute.xlu0 %6673
    %6675 = vrot.lane.b32.xlu0 %v6651, 119
    %v6676 = vpop.permute.xlu0 %6675
    %6677 = vrot.lane.b32.xlu0 %v6653, 119
    %v6678 = vpop.permute.xlu0 %6677
    %6679 = vrot.lane.b32.xlu0 %v6655, 119
    %v6680 = vpop.permute.xlu0 %6679
    %v6681 = vsel %vm2348, %v6660, %v6662
    %v6682 = vsel %vm2348, %v6662, %v6664
    %v6683 = vsel %vm2348, %v6664, %v6666
    %v6684 = vsel %vm2348, %v6668, %v6670
    %v6685 = vsel %vm2348, %v6670, %v6672
    %v6686 = vsel %vm2348, %v6672, %v6674
    %v6687 = vsel %vm2348, %v6676, %v6678
    %v6688 = vsel %vm2348, %v6678, %v6680
    %v6697 = vadd.f32 %v6517, %v6681
    %v6698 = vadd.f32 %v6518, %v6682
    %v6699 = vadd.f32 %v6519, %v6683
    %v6700 = vadd.f32 %v6520, %v6684
    %v6701 = vadd.f32 %v6521, %v6685
    %v6702 = vadd.f32 %v6522, %v6686
    %v6703 = vadd.f32 %v6523, %v6687
    %v6704 = vadd.f32 %v6524, %v6688
    %s6705 = sld [smem:[#allocation4 + $0x5e]]
    %v6706 = vstv %s6705
    %v6707 = vmul.f32 %v6706, %v5022
    %v6708 = vmul.f32 %v6706, %v5023
    %v6709 = vmul.f32 %v6706, %v5024
    %v6710 = vmul.f32 %v6706, %v5025
    %v6711 = vmul.f32 %v6706, %v5026
    %v6712 = vmul.f32 %v6706, %v5027
    %v6713 = vmul.f32 %v6706, %v5028
    %v6714 = vmul.f32 %v6706, %v5029
    %v6715 = vmul.f32 %v6706, %v5030
    %v6716 = vmul.f32 %v6706, %v5031
    %v6717 = vmul.f32 %v6706, %v5032
    %v6729 = vrot.slane %v6707, 2
    %v6730 = vrot.slane %v6708, 2
    %v6731 = vrot.slane %v6709, 2
    %v6732 = vrot.slane %v6710, 2
    %v6733 = vrot.slane %v6711, 2
    %v6734 = vsel %vm1033, %v6729, %v6733
    %v6735 = vrot.slane %v6712, 2
    %v6736 = vsel %vm1033, %v6730, %v6735
    %v6737 = vrot.slane %v6713, 2
    %v6738 = vsel %vm1033, %v6731, %v6737
    %v6739 = vrot.slane %v6714, 2
    %v6740 = vsel %vm1033, %v6732, %v6739
    %v6741 = vrot.slane %v6715, 2
    %v6742 = vsel %vm1033, %v6733, %v6741
    %v6743 = vrot.slane %v6716, 2
    %v6744 = vsel %vm1033, %v6735, %v6743
    %v6745 = vrot.slane %v6717, 2
    %v6746 = vsel %vm1033, %v6737, %v6745
    %6747 = vrot.lane.b32.xlu0 %v6729, 119
    %v6748 = vpop.permute.xlu0 %6747
    %6749 = vrot.lane.b32.xlu0 %v6730, 119
    %v6750 = vpop.permute.xlu0 %6749
    %6751 = vrot.lane.b32.xlu0 %v6731, 119
    %v6752 = vpop.permute.xlu0 %6751
    %6753 = vrot.lane.b32.xlu0 %v6732, 119
    %v6754 = vpop.permute.xlu0 %6753
    %6755 = vrot.lane.b32.xlu0 %v6734, 119
    %v6756 = vpop.permute.xlu0 %6755
    %6757 = vrot.lane.b32.xlu0 %v6736, 119
    %v6758 = vpop.permute.xlu0 %6757
    %6759 = vrot.lane.b32.xlu0 %v6738, 119
    %v6760 = vpop.permute.xlu0 %6759
    %6761 = vrot.lane.b32.xlu0 %v6740, 119
    %v6762 = vpop.permute.xlu0 %6761
    %6763 = vrot.lane.b32.xlu0 %v6742, 119
    %v6764 = vpop.permute.xlu0 %6763
    %6765 = vrot.lane.b32.xlu0 %v6744, 119
    %v6766 = vpop.permute.xlu0 %6765
    %6767 = vrot.lane.b32.xlu0 %v6746, 119
    %v6768 = vpop.permute.xlu0 %6767
    %v6769 = vsel %vm2348, %v6748, %v6750
    %v6770 = vsel %vm2348, %v6750, %v6752
    %v6771 = vsel %vm2348, %v6752, %v6754
    %v6772 = vsel %vm2348, %v6756, %v6758
    %v6773 = vsel %vm2348, %v6758, %v6760
    %v6774 = vsel %vm2348, %v6760, %v6762
    %v6775 = vsel %vm2348, %v6764, %v6766
    %v6776 = vsel %vm2348, %v6766, %v6768
    %v6785 = vadd.f32 %v6605, %v6769
    %v6786 = vadd.f32 %v6606, %v6770
    %v6787 = vadd.f32 %v6607, %v6771
    %v6788 = vadd.f32 %v6608, %v6772
    %v6789 = vadd.f32 %v6609, %v6773
    %v6790 = vadd.f32 %v6610, %v6774
    %v6791 = vadd.f32 %v6611, %v6775
    %v6792 = vadd.f32 %v6612, %v6776
    %s6793 = sld [smem:[#allocation4 + $0x35]]
    %v6794 = vstv %s6793
    %v6795 = vmul.f32 %v6794, %v5010
    %v6796 = vmul.f32 %v6794, %v5011
    %v6797 = vmul.f32 %v6794, %v5012
    %v6798 = vmul.f32 %v6794, %v5013
    %v6799 = vmul.f32 %v6794, %v5014
    %v6800 = vmul.f32 %v6794, %v5015
    %v6801 = vmul.f32 %v6794, %v5016
    %v6802 = vmul.f32 %v6794, %v5017
    %v6803 = vmul.f32 %v6794, %v5018
    %v6804 = vmul.f32 %v6794, %v5019
    %v6805 = vmul.f32 %v6794, %v5020
    %v6806 = vmul.f32 %v6794, %v5021
    %v6819 = vrot.slane %v6795, 5
    %v6820 = vrot.slane %v6799, 5
    %v6821 = vsel %vm1112, %v6819, %v6820
    %v6822 = vrot.slane %v6796, 5
    %v6823 = vrot.slane %v6800, 5
    %v6824 = vsel %vm1112, %v6822, %v6823
    %v6825 = vrot.slane %v6797, 5
    %v6826 = vrot.slane %v6801, 5
    %v6827 = vsel %vm1112, %v6825, %v6826
    %v6828 = vrot.slane %v6798, 5
    %v6829 = vrot.slane %v6802, 5
    %v6830 = vsel %vm1112, %v6828, %v6829
    %v6831 = vrot.slane %v6803, 5
    %v6832 = vsel %vm1112, %v6820, %v6831
    %v6833 = vrot.slane %v6804, 5
    %v6834 = vsel %vm1112, %v6823, %v6833
    %v6835 = vrot.slane %v6805, 5
    %v6836 = vsel %vm1112, %v6826, %v6835
    %v6837 = vrot.slane %v6806, 5
    %v6838 = vsel %vm1112, %v6829, %v6837
    %6839 = vrot.lane.b32.xlu0 %v6821, 116
    %v6840 = vpop.permute.xlu0 %6839
    %6841 = vrot.lane.b32.xlu0 %v6824, 116
    %v6842 = vpop.permute.xlu0 %6841
    %6843 = vrot.lane.b32.xlu0 %v6827, 116
    %v6844 = vpop.permute.xlu0 %6843
    %6845 = vrot.lane.b32.xlu0 %v6830, 116
    %v6846 = vpop.permute.xlu0 %6845
    %6847 = vrot.lane.b32.xlu0 %v6832, 116
    %v6848 = vpop.permute.xlu0 %6847
    %6849 = vrot.lane.b32.xlu0 %v6834, 116
    %v6850 = vpop.permute.xlu0 %6849
    %6851 = vrot.lane.b32.xlu0 %v6836, 116
    %v6852 = vpop.permute.xlu0 %6851
    %6853 = vrot.lane.b32.xlu0 %v6838, 116
    %v6854 = vpop.permute.xlu0 %6853
    %6855 = vrot.lane.b32.xlu0 %v6831, 116
    %v6856 = vpop.permute.xlu0 %6855
    %6857 = vrot.lane.b32.xlu0 %v6833, 116
    %v6858 = vpop.permute.xlu0 %6857
    %6859 = vrot.lane.b32.xlu0 %v6835, 116
    %v6860 = vpop.permute.xlu0 %6859
    %v6861 = vsel %vm2943, %v6840, %v6842
    %v6862 = vsel %vm2943, %v6842, %v6844
    %v6863 = vsel %vm2943, %v6844, %v6846
    %v6864 = vsel %vm2943, %v6848, %v6850
    %v6865 = vsel %vm2943, %v6850, %v6852
    %v6866 = vsel %vm2943, %v6852, %v6854
    %v6867 = vsel %vm2943, %v6856, %v6858
    %v6868 = vsel %vm2943, %v6858, %v6860
    %v6877 = vadd.f32 %v6697, %v6861
    %v6878 = vadd.f32 %v6698, %v6862
    %v6879 = vadd.f32 %v6699, %v6863
    %v6880 = vadd.f32 %v6700, %v6864
    %v6881 = vadd.f32 %v6701, %v6865
    %v6882 = vadd.f32 %v6702, %v6866
    %v6883 = vadd.f32 %v6703, %v6867
    %v6884 = vadd.f32 %v6704, %v6868
    %s6885 = sld [smem:[#allocation4 + $0x3c]]
    %v6886 = vstv %s6885
    %v6887 = vmul.f32 %v6886, %v5014
    %v6888 = vmul.f32 %v6886, %v5015
    %v6889 = vmul.f32 %v6886, %v5016
    %v6890 = vmul.f32 %v6886, %v5017
    %v6891 = vmul.f32 %v6886, %v5018
    %v6892 = vmul.f32 %v6886, %v5019
    %v6893 = vmul.f32 %v6886, %v5020
    %v6894 = vmul.f32 %v6886, %v5021
    %v6895 = vmul.f32 %v6886, %v5022
    %v6896 = vmul.f32 %v6886, %v5023
    %v6897 = vmul.f32 %v6886, %v5024
    %v6909 = vrot.slane %v6887, 3
    %v6910 = vrot.slane %v6888, 3
    %v6911 = vrot.slane %v6889, 3
    %v6912 = vrot.slane %v6890, 3
    %v6913 = vrot.slane %v6891, 3
    %v6914 = vsel %vm1204, %v6909, %v6913
    %v6915 = vrot.slane %v6892, 3
    %v6916 = vsel %vm1204, %v6910, %v6915
    %v6917 = vrot.slane %v6893, 3
    %v6918 = vsel %vm1204, %v6911, %v6917
    %v6919 = vrot.slane %v6894, 3
    %v6920 = vsel %vm1204, %v6912, %v6919
    %v6921 = vrot.slane %v6895, 3
    %v6922 = vsel %vm1204, %v6913, %v6921
    %v6923 = vrot.slane %v6896, 3
    %v6924 = vsel %vm1204, %v6915, %v6923
    %v6925 = vrot.slane %v6897, 3
    %v6926 = vsel %vm1204, %v6917, %v6925
    %6927 = vrot.lane.b32.xlu0 %v6909, 116
    %v6928 = vpop.permute.xlu0 %6927
    %6929 = vrot.lane.b32.xlu0 %v6910, 116
    %v6930 = vpop.permute.xlu0 %6929
    %6931 = vrot.lane.b32.xlu0 %v6911, 116
    %v6932 = vpop.permute.xlu0 %6931
    %6933 = vrot.lane.b32.xlu0 %v6912, 116
    %v6934 = vpop.permute.xlu0 %6933
    %6935 = vrot.lane.b32.xlu0 %v6914, 116
    %v6936 = vpop.permute.xlu0 %6935
    %6937 = vrot.lane.b32.xlu0 %v6916, 116
    %v6938 = vpop.permute.xlu0 %6937
    %6939 = vrot.lane.b32.xlu0 %v6918, 116
    %v6940 = vpop.permute.xlu0 %6939
    %6941 = vrot.lane.b32.xlu0 %v6920, 116
    %v6942 = vpop.permute.xlu0 %6941
    %6943 = vrot.lane.b32.xlu0 %v6922, 116
    %v6944 = vpop.permute.xlu0 %6943
    %6945 = vrot.lane.b32.xlu0 %v6924, 116
    %v6946 = vpop.permute.xlu0 %6945
    %6947 = vrot.lane.b32.xlu0 %v6926, 116
    %v6948 = vpop.permute.xlu0 %6947
    %v6949 = vsel %vm2943, %v6928, %v6930
    %v6950 = vsel %vm2943, %v6930, %v6932
    %v6951 = vsel %vm2943, %v6932, %v6934
    %v6952 = vsel %vm2943, %v6936, %v6938
    %v6953 = vsel %vm2943, %v6938, %v6940
    %v6954 = vsel %vm2943, %v6940, %v6942
    %v6955 = vsel %vm2943, %v6944, %v6946
    %v6956 = vsel %vm2943, %v6946, %v6948
    %v6965 = vadd.f32 %v6785, %v6949
    %v6966 = vadd.f32 %v6786, %v6950
    %v6967 = vadd.f32 %v6787, %v6951
    %v6968 = vadd.f32 %v6788, %v6952
    %v6969 = vadd.f32 %v6789, %v6953
    %v6970 = vadd.f32 %v6790, %v6954
    %v6971 = vadd.f32 %v6791, %v6955
    %v6972 = vadd.f32 %v6792, %v6956
    %s6973 = sld [smem:[#allocation4 + $0x43]]
    %v6974 = vstv %s6973
    %v6975 = vmul.f32 %v6974, %v5014
    %v6976 = vmul.f32 %v6974, %v5015
    %v6977 = vmul.f32 %v6974, %v5016
    %v6978 = vmul.f32 %v6974, %v5017
    %v6979 = vmul.f32 %v6974, %v5018
    %v6980 = vmul.f32 %v6974, %v5019
    %v6981 = vmul.f32 %v6974, %v5020
    %v6982 = vmul.f32 %v6974, %v5021
    %v6983 = vmul.f32 %v6974, %v5022
    %v6984 = vmul.f32 %v6974, %v5023
    %v6985 = vmul.f32 %v6974, %v5024
    %v6986 = vmul.f32 %v6974, %v5025
    %v6999 = vrot.slane %v6975, 3
    %v7000 = vrot.slane %v6979, 3
    %v7001 = vsel %vm1204, %v6999, %v7000
    %v7002 = vrot.slane %v6976, 3
    %v7003 = vrot.slane %v6980, 3
    %v7004 = vsel %vm1204, %v7002, %v7003
    %v7005 = vrot.slane %v6977, 3
    %v7006 = vrot.slane %v6981, 3
    %v7007 = vsel %vm1204, %v7005, %v7006
    %v7008 = vrot.slane %v6978, 3
    %v7009 = vrot.slane %v6982, 3
    %v7010 = vsel %vm1204, %v7008, %v7009
    %v7011 = vrot.slane %v6983, 3
    %v7012 = vsel %vm1204, %v7000, %v7011
    %v7013 = vrot.slane %v6984, 3
    %v7014 = vsel %vm1204, %v7003, %v7013
    %v7015 = vrot.slane %v6985, 3
    %v7016 = vsel %vm1204, %v7006, %v7015
    %v7017 = vrot.slane %v6986, 3
    %v7018 = vsel %vm1204, %v7009, %v7017
    %7019 = vrot.lane.b32.xlu0 %v7001, 116
    %v7020 = vpop.permute.xlu0 %7019
    %7021 = vrot.lane.b32.xlu0 %v7004, 116
    %v7022 = vpop.permute.xlu0 %7021
    %7023 = vrot.lane.b32.xlu0 %v7007, 116
    %v7024 = vpop.permute.xlu0 %7023
    %7025 = vrot.lane.b32.xlu0 %v7010, 116
    %v7026 = vpop.permute.xlu0 %7025
    %7027 = vrot.lane.b32.xlu0 %v7012, 116
    %v7028 = vpop.permute.xlu0 %7027
    %7029 = vrot.lane.b32.xlu0 %v7014, 116
    %v7030 = vpop.permute.xlu0 %7029
    %7031 = vrot.lane.b32.xlu0 %v7016, 116
    %v7032 = vpop.permute.xlu0 %7031
    %7033 = vrot.lane.b32.xlu0 %v7018, 116
    %v7034 = vpop.permute.xlu0 %7033
    %7035 = vrot.lane.b32.xlu0 %v7011, 116
    %v7036 = vpop.permute.xlu0 %7035
    %7037 = vrot.lane.b32.xlu0 %v7013, 116
    %v7038 = vpop.permute.xlu0 %7037
    %7039 = vrot.lane.b32.xlu0 %v7015, 116
    %v7040 = vpop.permute.xlu0 %7039
    %v7041 = vsel %vm2943, %v7020, %v7022
    %v7042 = vsel %vm2943, %v7022, %v7024
    %v7043 = vsel %vm2943, %v7024, %v7026
    %v7044 = vsel %vm2943, %v7028, %v7030
    %v7045 = vsel %vm2943, %v7030, %v7032
    %v7046 = vsel %vm2943, %v7032, %v7034
    %v7047 = vsel %vm2943, %v7036, %v7038
    %v7048 = vsel %vm2943, %v7038, %v7040
    %v7057 = vadd.f32 %v6877, %v7041
    %v7058 = vadd.f32 %v6878, %v7042
    %v7059 = vadd.f32 %v6879, %v7043
    %v7060 = vadd.f32 %v6880, %v7044
    %v7061 = vadd.f32 %v6881, %v7045
    %v7062 = vadd.f32 %v6882, %v7046
    %v7063 = vadd.f32 %v6883, %v7047
    %v7064 = vadd.f32 %v6884, %v7048
    %s7065 = sld [smem:[#allocation4 + $0x4a]]
    %v7066 = vstv %s7065
    %v7067 = vmul.f32 %v7066, %v5018
    %v7068 = vmul.f32 %v7066, %v5019
    %v7069 = vmul.f32 %v7066, %v5020
    %v7070 = vmul.f32 %v7066, %v5021
    %v7071 = vmul.f32 %v7066, %v5022
    %v7072 = vmul.f32 %v7066, %v5023
    %v7073 = vmul.f32 %v7066, %v5024
    %v7074 = vmul.f32 %v7066, %v5025
    %v7083 = vrot.slane %v7067, 1
    %v7084 = vrot.slane %v7068, 1
    %v7085 = vrot.slane %v7069, 1
    %v7086 = vrot.slane %v7070, 1
    %v7087 = vrot.slane %v7071, 1
    %v7088 = vsel %vm1379, %v7083, %v7087
    %v7089 = vrot.slane %v7072, 1
    %v7090 = vsel %vm1379, %v7084, %v7089
    %v7091 = vrot.slane %v7073, 1
    %v7092 = vsel %vm1379, %v7085, %v7091
    %v7093 = vrot.slane %v7074, 1
    %v7094 = vsel %vm1379, %v7086, %v7093
    %7095 = vrot.lane.b32.xlu0 %v7083, 116
    %v7096 = vpop.permute.xlu0 %7095
    %7097 = vrot.lane.b32.xlu0 %v7084, 116
    %v7098 = vpop.permute.xlu0 %7097
    %7099 = vrot.lane.b32.xlu0 %v7085, 116
    %v7100 = vpop.permute.xlu0 %7099
    %7101 = vrot.lane.b32.xlu0 %v7086, 116
    %v7102 = vpop.permute.xlu0 %7101
    %7103 = vrot.lane.b32.xlu0 %v7088, 116
    %v7104 = vpop.permute.xlu0 %7103
    %7105 = vrot.lane.b32.xlu0 %v7090, 116
    %v7106 = vpop.permute.xlu0 %7105
    %7107 = vrot.lane.b32.xlu0 %v7092, 116
    %v7108 = vpop.permute.xlu0 %7107
    %7109 = vrot.lane.b32.xlu0 %v7094, 116
    %v7110 = vpop.permute.xlu0 %7109
    %7111 = vrot.lane.b32.xlu0 %v7087, 116
    %v7112 = vpop.permute.xlu0 %7111
    %7113 = vrot.lane.b32.xlu0 %v7089, 116
    %v7114 = vpop.permute.xlu0 %7113
    %7115 = vrot.lane.b32.xlu0 %v7091, 116
    %v7116 = vpop.permute.xlu0 %7115
    %v7117 = vsel %vm2943, %v7096, %v7098
    %v7118 = vsel %vm2943, %v7098, %v7100
    %v7119 = vsel %vm2943, %v7100, %v7102
    %v7120 = vsel %vm2943, %v7104, %v7106
    %v7121 = vsel %vm2943, %v7106, %v7108
    %v7122 = vsel %vm2943, %v7108, %v7110
    %v7123 = vsel %vm2943, %v7112, %v7114
    %v7124 = vsel %vm2943, %v7114, %v7116
    %v7133 = vadd.f32 %v6965, %v7117
    %v7134 = vadd.f32 %v6966, %v7118
    %v7135 = vadd.f32 %v6967, %v7119
    %v7136 = vadd.f32 %v6968, %v7120
    %v7137 = vadd.f32 %v6969, %v7121
    %v7138 = vadd.f32 %v6970, %v7122
    %v7139 = vadd.f32 %v6971, %v7123
    %v7140 = vadd.f32 %v6972, %v7124
    %s7141 = sld [smem:[#allocation4 + $0x51]]
    %v7142 = vstv %s7141
    %v7143 = vmul.f32 %v7142, %v5018
    %v7144 = vmul.f32 %v7142, %v5019
    %v7145 = vmul.f32 %v7142, %v5020
    %v7146 = vmul.f32 %v7142, %v5021
    %v7147 = vmul.f32 %v7142, %v5022
    %v7148 = vmul.f32 %v7142, %v5023
    %v7149 = vmul.f32 %v7142, %v5024
    %v7150 = vmul.f32 %v7142, %v5025
    %v7151 = vmul.f32 %v7142, %v5026
    %v7152 = vmul.f32 %v7142, %v5027
    %v7153 = vmul.f32 %v7142, %v5028
    %v7154 = vmul.f32 %v7142, %v5029
    %v7167 = vrot.slane %v7143, 1
    %v7168 = vrot.slane %v7147, 1
    %v7169 = vsel %vm1379, %v7167, %v7168
    %v7170 = vrot.slane %v7144, 1
    %v7171 = vrot.slane %v7148, 1
    %v7172 = vsel %vm1379, %v7170, %v7171
    %v7173 = vrot.slane %v7145, 1
    %v7174 = vrot.slane %v7149, 1
    %v7175 = vsel %vm1379, %v7173, %v7174
    %v7176 = vrot.slane %v7146, 1
    %v7177 = vrot.slane %v7150, 1
    %v7178 = vsel %vm1379, %v7176, %v7177
    %v7179 = vrot.slane %v7151, 1
    %v7180 = vsel %vm1379, %v7168, %v7179
    %v7181 = vrot.slane %v7152, 1
    %v7182 = vsel %vm1379, %v7171, %v7181
    %v7183 = vrot.slane %v7153, 1
    %v7184 = vsel %vm1379, %v7174, %v7183
    %v7185 = vrot.slane %v7154, 1
    %v7186 = vsel %vm1379, %v7177, %v7185
    %7187 = vrot.lane.b32.xlu0 %v7169, 116
    %v7188 = vpop.permute.xlu0 %7187
    %7189 = vrot.lane.b32.xlu0 %v7172, 116
    %v7190 = vpop.permute.xlu0 %7189
    %7191 = vrot.lane.b32.xlu0 %v7175, 116
    %v7192 = vpop.permute.xlu0 %7191
    %7193 = vrot.lane.b32.xlu0 %v7178, 116
    %v7194 = vpop.permute.xlu0 %7193
    %7195 = vrot.lane.b32.xlu0 %v7180, 116
    %v7196 = vpop.permute.xlu0 %7195
    %7197 = vrot.lane.b32.xlu0 %v7182, 116
    %v7198 = vpop.permute.xlu0 %7197
    %7199 = vrot.lane.b32.xlu0 %v7184, 116
    %v7200 = vpop.permute.xlu0 %7199
    %7201 = vrot.lane.b32.xlu0 %v7186, 116
    %v7202 = vpop.permute.xlu0 %7201
    %7203 = vrot.lane.b32.xlu0 %v7179, 116
    %v7204 = vpop.permute.xlu0 %7203
    %7205 = vrot.lane.b32.xlu0 %v7181, 116
    %v7206 = vpop.permute.xlu0 %7205
    %7207 = vrot.lane.b32.xlu0 %v7183, 116
    %v7208 = vpop.permute.xlu0 %7207
    %v7209 = vsel %vm2943, %v7188, %v7190
    %v7210 = vsel %vm2943, %v7190, %v7192
    %v7211 = vsel %vm2943, %v7192, %v7194
    %v7212 = vsel %vm2943, %v7196, %v7198
    %v7213 = vsel %vm2943, %v7198, %v7200
    %v7214 = vsel %vm2943, %v7200, %v7202
    %v7215 = vsel %vm2943, %v7204, %v7206
    %v7216 = vsel %vm2943, %v7206, %v7208
    %v7225 = vadd.f32 %v7057, %v7209
    %v7226 = vadd.f32 %v7058, %v7210
    %v7227 = vadd.f32 %v7059, %v7211
    %v7228 = vadd.f32 %v7060, %v7212
    %v7229 = vadd.f32 %v7061, %v7213
    %v7230 = vadd.f32 %v7062, %v7214
    %v7231 = vadd.f32 %v7063, %v7215
    %v7232 = vadd.f32 %v7064, %v7216
    %s7233 = sld [smem:[#allocation4 + $0x58]]
    %v7234 = vstv %s7233
    %v7235 = vmul.f32 %v7234, %v5018
    %v7236 = vmul.f32 %v7234, %v5019
    %v7237 = vmul.f32 %v7234, %v5020
    %v7238 = vmul.f32 %v7234, %v5021
    %v7239 = vmul.f32 %v7234, %v5022
    %v7240 = vmul.f32 %v7234, %v5023
    %v7241 = vmul.f32 %v7234, %v5024
    %v7242 = vmul.f32 %v7234, %v5025
    %v7243 = vmul.f32 %v7234, %v5026
    %v7244 = vmul.f32 %v7234, %v5027
    %v7245 = vmul.f32 %v7234, %v5028
    %v7257 = vrot.slane %v7235, 7
    %v7258 = vrot.slane %v7236, 7
    %v7259 = vrot.slane %v7237, 7
    %v7260 = vrot.slane %v7238, 7
    %v7261 = vrot.slane %v7239, 7
    %v7262 = vsel %vm1554, %v7257, %v7261
    %v7263 = vrot.slane %v7240, 7
    %v7264 = vsel %vm1554, %v7258, %v7263
    %v7265 = vrot.slane %v7241, 7
    %v7266 = vsel %vm1554, %v7259, %v7265
    %v7267 = vrot.slane %v7242, 7
    %v7268 = vsel %vm1554, %v7260, %v7267
    %v7269 = vrot.slane %v7243, 7
    %v7270 = vsel %vm1554, %v7261, %v7269
    %v7271 = vrot.slane %v7244, 7
    %v7272 = vsel %vm1554, %v7263, %v7271
    %v7273 = vrot.slane %v7245, 7
    %v7274 = vsel %vm1554, %v7265, %v7273
    %7275 = vrot.lane.b32.xlu0 %v7257, 116
    %v7276 = vpop.permute.xlu0 %7275
    %7277 = vrot.lane.b32.xlu0 %v7258, 116
    %v7278 = vpop.permute.xlu0 %7277
    %7279 = vrot.lane.b32.xlu0 %v7259, 116
    %v7280 = vpop.permute.xlu0 %7279
    %7281 = vrot.lane.b32.xlu0 %v7260, 116
    %v7282 = vpop.permute.xlu0 %7281
    %7283 = vrot.lane.b32.xlu0 %v7262, 116
    %v7284 = vpop.permute.xlu0 %7283
    %7285 = vrot.lane.b32.xlu0 %v7264, 116
    %v7286 = vpop.permute.xlu0 %7285
    %7287 = vrot.lane.b32.xlu0 %v7266, 116
    %v7288 = vpop.permute.xlu0 %7287
    %7289 = vrot.lane.b32.xlu0 %v7268, 116
    %v7290 = vpop.permute.xlu0 %7289
    %7291 = vrot.lane.b32.xlu0 %v7270, 116
    %v7292 = vpop.permute.xlu0 %7291
    %7293 = vrot.lane.b32.xlu0 %v7272, 116
    %v7294 = vpop.permute.xlu0 %7293
    %7295 = vrot.lane.b32.xlu0 %v7274, 116
    %v7296 = vpop.permute.xlu0 %7295
    %v7297 = vsel %vm2943, %v7276, %v7278
    %v7298 = vsel %vm2943, %v7278, %v7280
    %v7299 = vsel %vm2943, %v7280, %v7282
    %v7300 = vsel %vm2943, %v7284, %v7286
    %v7301 = vsel %vm2943, %v7286, %v7288
    %v7302 = vsel %vm2943, %v7288, %v7290
    %v7303 = vsel %vm2943, %v7292, %v7294
    %v7304 = vsel %vm2943, %v7294, %v7296
    %v7313 = vadd.f32 %v7133, %v7297
    %v7314 = vadd.f32 %v7134, %v7298
    %v7315 = vadd.f32 %v7135, %v7299
    %v7316 = vadd.f32 %v7136, %v7300
    %v7317 = vadd.f32 %v7137, %v7301
    %v7318 = vadd.f32 %v7138, %v7302
    %v7319 = vadd.f32 %v7139, %v7303
    %v7320 = vadd.f32 %v7140, %v7304
    %s7321 = sld [smem:[#allocation4 + $0x5f]]
    %v7322 = vstv %s7321
    %v7323 = vmul.f32 %v7322, %v5022
    %v7324 = vmul.f32 %v7322, %v5023
    %v7325 = vmul.f32 %v7322, %v5024
    %v7326 = vmul.f32 %v7322, %v5025
    %v7327 = vmul.f32 %v7322, %v5026
    %v7328 = vmul.f32 %v7322, %v5027
    %v7329 = vmul.f32 %v7322, %v5028
    %v7330 = vmul.f32 %v7322, %v5029
    %v7331 = vmul.f32 %v7322, %v5030
    %v7332 = vmul.f32 %v7322, %v5031
    %v7333 = vmul.f32 %v7322, %v5032
    %v7345 = vrot.slane %v7323, 7
    %v7346 = vrot.slane %v7324, 7
    %v7347 = vrot.slane %v7325, 7
    %v7348 = vrot.slane %v7326, 7
    %v7349 = vrot.slane %v7327, 7
    %v7350 = vsel %vm1554, %v7345, %v7349
    %v7351 = vrot.slane %v7328, 7
    %v7352 = vsel %vm1554, %v7346, %v7351
    %v7353 = vrot.slane %v7329, 7
    %v7354 = vsel %vm1554, %v7347, %v7353
    %v7355 = vrot.slane %v7330, 7
    %v7356 = vsel %vm1554, %v7348, %v7355
    %v7357 = vrot.slane %v7331, 7
    %v7358 = vsel %vm1554, %v7349, %v7357
    %v7359 = vrot.slane %v7332, 7
    %v7360 = vsel %vm1554, %v7351, %v7359
    %v7361 = vrot.slane %v7333, 7
    %v7362 = vsel %vm1554, %v7353, %v7361
    %7363 = vrot.lane.b32.xlu0 %v7345, 116
    %v7364 = vpop.permute.xlu0 %7363
    %7365 = vrot.lane.b32.xlu0 %v7346, 116
    %v7366 = vpop.permute.xlu0 %7365
    %7367 = vrot.lane.b32.xlu0 %v7347, 116
    %v7368 = vpop.permute.xlu0 %7367
    %7369 = vrot.lane.b32.xlu0 %v7348, 116
    %v7370 = vpop.permute.xlu0 %7369
    %7371 = vrot.lane.b32.xlu0 %v7350, 116
    %v7372 = vpop.permute.xlu0 %7371
    %7373 = vrot.lane.b32.xlu0 %v7352, 116
    %v7374 = vpop.permute.xlu0 %7373
    %7375 = vrot.lane.b32.xlu0 %v7354, 116
    %v7376 = vpop.permute.xlu0 %7375
    %7377 = vrot.lane.b32.xlu0 %v7356, 116
    %v7378 = vpop.permute.xlu0 %7377
    %7379 = vrot.lane.b32.xlu0 %v7358, 116
    %v7380 = vpop.permute.xlu0 %7379
    %7381 = vrot.lane.b32.xlu0 %v7360, 116
    %v7382 = vpop.permute.xlu0 %7381
    %7383 = vrot.lane.b32.xlu0 %v7362, 116
    %v7384 = vpop.permute.xlu0 %7383
    %v7385 = vsel %vm2943, %v7364, %v7366
    %v7386 = vsel %vm2943, %v7366, %v7368
    %v7387 = vsel %vm2943, %v7368, %v7370
    %v7388 = vsel %vm2943, %v7372, %v7374
    %v7389 = vsel %vm2943, %v7374, %v7376
    %v7390 = vsel %vm2943, %v7376, %v7378
    %v7391 = vsel %vm2943, %v7380, %v7382
    %v7392 = vsel %vm2943, %v7382, %v7384
    %v7401 = vadd.f32 %v7225, %v7385
    %v7402 = vadd.f32 %v7226, %v7386
    %v7403 = vadd.f32 %v7227, %v7387
    %v7404 = vadd.f32 %v7228, %v7388
    %v7405 = vadd.f32 %v7229, %v7389
    %v7406 = vadd.f32 %v7230, %v7390
    %v7407 = vadd.f32 %v7231, %v7391
    %v7408 = vadd.f32 %v7232, %v7392
    %s7409 = sld [smem:[#allocation4 + $0x36]]
    %v7410 = vstv %s7409
    %v7411 = vmul.f32 %v7410, %v5010
    %v7412 = vmul.f32 %v7410, %v5011
    %v7413 = vmul.f32 %v7410, %v5012
    %v7414 = vmul.f32 %v7410, %v5013
    %v7415 = vmul.f32 %v7410, %v5014
    %v7416 = vmul.f32 %v7410, %v5015
    %v7417 = vmul.f32 %v7410, %v5016
    %v7418 = vmul.f32 %v7410, %v5017
    %v7419 = vmul.f32 %v7410, %v5018
    %v7420 = vmul.f32 %v7410, %v5019
    %v7421 = vmul.f32 %v7410, %v5020
    %7433 = vrot.lane.b32.xlu0 %v7411, 113
    %v7434 = vpop.permute.xlu0 %7433
    %7435 = vrot.lane.b32.xlu0 %v7412, 113
    %v7436 = vpop.permute.xlu0 %7435
    %7437 = vrot.lane.b32.xlu0 %v7413, 113
    %v7438 = vpop.permute.xlu0 %7437
    %7439 = vrot.lane.b32.xlu0 %v7414, 113
    %v7440 = vpop.permute.xlu0 %7439
    %7441 = vrot.lane.b32.xlu0 %v7415, 113
    %v7442 = vpop.permute.xlu0 %7441
    %7443 = vrot.lane.b32.xlu0 %v7416, 113
    %v7444 = vpop.permute.xlu0 %7443
    %7445 = vrot.lane.b32.xlu0 %v7417, 113
    %v7446 = vpop.permute.xlu0 %7445
    %7447 = vrot.lane.b32.xlu0 %v7418, 113
    %v7448 = vpop.permute.xlu0 %7447
    %7449 = vrot.lane.b32.xlu0 %v7419, 113
    %v7450 = vpop.permute.xlu0 %7449
    %7451 = vrot.lane.b32.xlu0 %v7420, 113
    %v7452 = vpop.permute.xlu0 %7451
    %7453 = vrot.lane.b32.xlu0 %v7421, 113
    %v7454 = vpop.permute.xlu0 %7453
    %v7455 = vsel %vm3538, %v7434, %v7436
    %v7456 = vsel %vm3538, %v7436, %v7438
    %v7457 = vsel %vm3538, %v7438, %v7440
    %v7458 = vsel %vm3538, %v7442, %v7444
    %v7459 = vsel %vm3538, %v7444, %v7446
    %v7460 = vsel %vm3538, %v7446, %v7448
    %v7461 = vsel %vm3538, %v7450, %v7452
    %v7462 = vsel %vm3538, %v7452, %v7454
    %v7471 = vadd.f32 %v7313, %v7455
    %v7472 = vadd.f32 %v7314, %v7456
    %v7473 = vadd.f32 %v7315, %v7457
    %v7474 = vadd.f32 %v7316, %v7458
    %v7475 = vadd.f32 %v7317, %v7459
    %v7476 = vadd.f32 %v7318, %v7460
    %v7477 = vadd.f32 %v7319, %v7461
    %v7478 = vadd.f32 %v7320, %v7462
    %s7479 = sld [smem:[#allocation4 + $0x3d]]
    %v7480 = vstv %s7479
    %v7481 = vmul.f32 %v7480, %v5014
    %v7482 = vmul.f32 %v7480, %v5015
    %v7483 = vmul.f32 %v7480, %v5016
    %v7484 = vmul.f32 %v7480, %v5017
    %v7485 = vmul.f32 %v7480, %v5018
    %v7486 = vmul.f32 %v7480, %v5019
    %v7487 = vmul.f32 %v7480, %v5020
    %v7488 = vmul.f32 %v7480, %v5021
    %v7489 = vmul.f32 %v7480, %v5022
    %v7490 = vmul.f32 %v7480, %v5023
    %v7491 = vmul.f32 %v7480, %v5024
    %7503 = vrot.lane.b32.xlu0 %v7481, 113
    %v7504 = vpop.permute.xlu0 %7503
    %7505 = vrot.lane.b32.xlu0 %v7482, 113
    %v7506 = vpop.permute.xlu0 %7505
    %7507 = vrot.lane.b32.xlu0 %v7483, 113
    %v7508 = vpop.permute.xlu0 %7507
    %7509 = vrot.lane.b32.xlu0 %v7484, 113
    %v7510 = vpop.permute.xlu0 %7509
    %7511 = vrot.lane.b32.xlu0 %v7485, 113
    %v7512 = vpop.permute.xlu0 %7511
    %7513 = vrot.lane.b32.xlu0 %v7486, 113
    %v7514 = vpop.permute.xlu0 %7513
    %7515 = vrot.lane.b32.xlu0 %v7487, 113
    %v7516 = vpop.permute.xlu0 %7515
    %7517 = vrot.lane.b32.xlu0 %v7488, 113
    %v7518 = vpop.permute.xlu0 %7517
    %7519 = vrot.lane.b32.xlu0 %v7489, 113
    %v7520 = vpop.permute.xlu0 %7519
    %7521 = vrot.lane.b32.xlu0 %v7490, 113
    %v7522 = vpop.permute.xlu0 %7521
    %7523 = vrot.lane.b32.xlu0 %v7491, 113
    %v7524 = vpop.permute.xlu0 %7523
    %v7525 = vsel %vm3538, %v7504, %v7506
    %v7526 = vsel %vm3538, %v7506, %v7508
    %v7527 = vsel %vm3538, %v7508, %v7510
    %v7528 = vsel %vm3538, %v7512, %v7514
    %v7529 = vsel %vm3538, %v7514, %v7516
    %v7530 = vsel %vm3538, %v7516, %v7518
    %v7531 = vsel %vm3538, %v7520, %v7522
    %v7532 = vsel %vm3538, %v7522, %v7524
    %v7541 = vadd.f32 %v7401, %v7525
    %v7542 = vadd.f32 %v7402, %v7526
    %v7543 = vadd.f32 %v7403, %v7527
    %v7544 = vadd.f32 %v7404, %v7528
    %v7545 = vadd.f32 %v7405, %v7529
    %v7546 = vadd.f32 %v7406, %v7530
    %v7547 = vadd.f32 %v7407, %v7531
    %v7548 = vadd.f32 %v7408, %v7532
    %s7549 = sld [smem:[#allocation4 + $0x44]]
    %v7550 = vstv %s7549
    %v7551 = vmul.f32 %v7550, %v5014
    %v7552 = vmul.f32 %v7550, %v5015
    %v7553 = vmul.f32 %v7550, %v5016
    %v7554 = vmul.f32 %v7550, %v5017
    %v7555 = vmul.f32 %v7550, %v5018
    %v7556 = vmul.f32 %v7550, %v5019
    %v7557 = vmul.f32 %v7550, %v5020
    %v7558 = vmul.f32 %v7550, %v5021
    %v7559 = vmul.f32 %v7550, %v5022
    %v7560 = vmul.f32 %v7550, %v5023
    %v7561 = vmul.f32 %v7550, %v5024
    %v7573 = vrot.slane %v7551, 6
    %v7574 = vrot.slane %v7552, 6
    %v7575 = vrot.slane %v7553, 6
    %v7576 = vrot.slane %v7554, 6
    %v7577 = vrot.slane %v7555, 6
    %v7578 = vsel %vm847, %v7573, %v7577
    %v7579 = vrot.slane %v7556, 6
    %v7580 = vsel %vm847, %v7574, %v7579
    %v7581 = vrot.slane %v7557, 6
    %v7582 = vsel %vm847, %v7575, %v7581
    %v7583 = vrot.slane %v7558, 6
    %v7584 = vsel %vm847, %v7576, %v7583
    %v7585 = vrot.slane %v7559, 6
    %v7586 = vsel %vm847, %v7577, %v7585
    %v7587 = vrot.slane %v7560, 6
    %v7588 = vsel %vm847, %v7579, %v7587
    %v7589 = vrot.slane %v7561, 6
    %v7590 = vsel %vm847, %v7581, %v7589
    %7591 = vrot.lane.b32.xlu0 %v7573, 113
    %v7592 = vpop.permute.xlu0 %7591
    %7593 = vrot.lane.b32.xlu0 %v7574, 113
    %v7594 = vpop.permute.xlu0 %7593
    %7595 = vrot.lane.b32.xlu0 %v7575, 113
    %v7596 = vpop.permute.xlu0 %7595
    %7597 = vrot.lane.b32.xlu0 %v7576, 113
    %v7598 = vpop.permute.xlu0 %7597
    %7599 = vrot.lane.b32.xlu0 %v7578, 113
    %v7600 = vpop.permute.xlu0 %7599
    %7601 = vrot.lane.b32.xlu0 %v7580, 113
    %v7602 = vpop.permute.xlu0 %7601
    %7603 = vrot.lane.b32.xlu0 %v7582, 113
    %v7604 = vpop.permute.xlu0 %7603
    %7605 = vrot.lane.b32.xlu0 %v7584, 113
    %v7606 = vpop.permute.xlu0 %7605
    %7607 = vrot.lane.b32.xlu0 %v7586, 113
    %v7608 = vpop.permute.xlu0 %7607
    %7609 = vrot.lane.b32.xlu0 %v7588, 113
    %v7610 = vpop.permute.xlu0 %7609
    %7611 = vrot.lane.b32.xlu0 %v7590, 113
    %v7612 = vpop.permute.xlu0 %7611
    %v7613 = vsel %vm3538, %v7592, %v7594
    %v7614 = vsel %vm3538, %v7594, %v7596
    %v7615 = vsel %vm3538, %v7596, %v7598
    %v7616 = vsel %vm3538, %v7600, %v7602
    %v7617 = vsel %vm3538, %v7602, %v7604
    %v7618 = vsel %vm3538, %v7604, %v7606
    %v7619 = vsel %vm3538, %v7608, %v7610
    %v7620 = vsel %vm3538, %v7610, %v7612
    %v7629 = vadd.f32 %v7471, %v7613
    %v7630 = vadd.f32 %v7472, %v7614
    %v7631 = vadd.f32 %v7473, %v7615
    %v7632 = vadd.f32 %v7474, %v7616
    %v7633 = vadd.f32 %v7475, %v7617
    %v7634 = vadd.f32 %v7476, %v7618
    %v7635 = vadd.f32 %v7477, %v7619
    %v7636 = vadd.f32 %v7478, %v7620
    %s7637 = sld [smem:[#allocation4 + $0x4b]]
    %v7638 = vstv %s7637
    %v7639 = vmul.f32 %v7638, %v5018
    %v7640 = vmul.f32 %v7638, %v5019
    %v7641 = vmul.f32 %v7638, %v5020
    %v7642 = vmul.f32 %v7638, %v5021
    %v7643 = vmul.f32 %v7638, %v5022
    %v7644 = vmul.f32 %v7638, %v5023
    %v7645 = vmul.f32 %v7638, %v5024
    %v7646 = vmul.f32 %v7638, %v5025
    %v7655 = vrot.slane %v7639, 6
    %v7656 = vrot.slane %v7640, 6
    %v7657 = vrot.slane %v7641, 6
    %v7658 = vrot.slane %v7642, 6
    %v7659 = vrot.slane %v7643, 6
    %v7660 = vsel %vm847, %v7655, %v7659
    %v7661 = vrot.slane %v7644, 6
    %v7662 = vsel %vm847, %v7656, %v7661
    %v7663 = vrot.slane %v7645, 6
    %v7664 = vsel %vm847, %v7657, %v7663
    %v7665 = vrot.slane %v7646, 6
    %v7666 = vsel %vm847, %v7658, %v7665
    %7667 = vrot.lane.b32.xlu0 %v7655, 113
    %v7668 = vpop.permute.xlu0 %7667
    %7669 = vrot.lane.b32.xlu0 %v7656, 113
    %v7670 = vpop.permute.xlu0 %7669
    %7671 = vrot.lane.b32.xlu0 %v7657, 113
    %v7672 = vpop.permute.xlu0 %7671
    %7673 = vrot.lane.b32.xlu0 %v7658, 113
    %v7674 = vpop.permute.xlu0 %7673
    %7675 = vrot.lane.b32.xlu0 %v7660, 113
    %v7676 = vpop.permute.xlu0 %7675
    %7677 = vrot.lane.b32.xlu0 %v7662, 113
    %v7678 = vpop.permute.xlu0 %7677
    %7679 = vrot.lane.b32.xlu0 %v7664, 113
    %v7680 = vpop.permute.xlu0 %7679
    %7681 = vrot.lane.b32.xlu0 %v7666, 113
    %v7682 = vpop.permute.xlu0 %7681
    %7683 = vrot.lane.b32.xlu0 %v7659, 113
    %v7684 = vpop.permute.xlu0 %7683
    %7685 = vrot.lane.b32.xlu0 %v7661, 113
    %v7686 = vpop.permute.xlu0 %7685
    %7687 = vrot.lane.b32.xlu0 %v7663, 113
    %v7688 = vpop.permute.xlu0 %7687
    %v7689 = vsel %vm3538, %v7668, %v7670
    %v7690 = vsel %vm3538, %v7670, %v7672
    %v7691 = vsel %vm3538, %v7672, %v7674
    %v7692 = vsel %vm3538, %v7676, %v7678
    %v7693 = vsel %vm3538, %v7678, %v7680
    %v7694 = vsel %vm3538, %v7680, %v7682
    %v7695 = vsel %vm3538, %v7684, %v7686
    %v7696 = vsel %vm3538, %v7686, %v7688
    %v7705 = vadd.f32 %v7541, %v7689
    %v7706 = vadd.f32 %v7542, %v7690
    %v7707 = vadd.f32 %v7543, %v7691
    %v7708 = vadd.f32 %v7544, %v7692
    %v7709 = vadd.f32 %v7545, %v7693
    %v7710 = vadd.f32 %v7546, %v7694
    %v7711 = vadd.f32 %v7547, %v7695
    %v7712 = vadd.f32 %v7548, %v7696
    %s7713 = sld [smem:[#allocation4 + $0x52]]
    %v7714 = vstv %s7713
    %v7715 = vmul.f32 %v7714, %v5018
    %v7716 = vmul.f32 %v7714, %v5019
    %v7717 = vmul.f32 %v7714, %v5020
    %v7718 = vmul.f32 %v7714, %v5021
    %v7719 = vmul.f32 %v7714, %v5022
    %v7720 = vmul.f32 %v7714, %v5023
    %v7721 = vmul.f32 %v7714, %v5024
    %v7722 = vmul.f32 %v7714, %v5025
    %v7723 = vmul.f32 %v7714, %v5026
    %v7724 = vmul.f32 %v7714, %v5027
    %v7725 = vmul.f32 %v7714, %v5028
    %v7737 = vrot.slane %v7715, 4
    %v7738 = vrot.slane %v7716, 4
    %v7739 = vrot.slane %v7717, 4
    %v7740 = vrot.slane %v7718, 4
    %v7741 = vrot.slane %v7719, 4
    %v7742 = vsel %vm934, %v7737, %v7741
    %v7743 = vrot.slane %v7720, 4
    %v7744 = vsel %vm934, %v7738, %v7743
    %v7745 = vrot.slane %v7721, 4
    %v7746 = vsel %vm934, %v7739, %v7745
    %v7747 = vrot.slane %v7722, 4
    %v7748 = vsel %vm934, %v7740, %v7747
    %v7749 = vrot.slane %v7723, 4
    %v7750 = vsel %vm934, %v7741, %v7749
    %v7751 = vrot.slane %v7724, 4
    %v7752 = vsel %vm934, %v7743, %v7751
    %v7753 = vrot.slane %v7725, 4
    %v7754 = vsel %vm934, %v7745, %v7753
    %7755 = vrot.lane.b32.xlu0 %v7737, 113
    %v7756 = vpop.permute.xlu0 %7755
    %7757 = vrot.lane.b32.xlu0 %v7738, 113
    %v7758 = vpop.permute.xlu0 %7757
    %7759 = vrot.lane.b32.xlu0 %v7739, 113
    %v7760 = vpop.permute.xlu0 %7759
    %7761 = vrot.lane.b32.xlu0 %v7740, 113
    %v7762 = vpop.permute.xlu0 %7761
    %7763 = vrot.lane.b32.xlu0 %v7742, 113
    %v7764 = vpop.permute.xlu0 %7763
    %7765 = vrot.lane.b32.xlu0 %v7744, 113
    %v7766 = vpop.permute.xlu0 %7765
    %7767 = vrot.lane.b32.xlu0 %v7746, 113
    %v7768 = vpop.permute.xlu0 %7767
    %7769 = vrot.lane.b32.xlu0 %v7748, 113
    %v7770 = vpop.permute.xlu0 %7769
    %7771 = vrot.lane.b32.xlu0 %v7750, 113
    %v7772 = vpop.permute.xlu0 %7771
    %7773 = vrot.lane.b32.xlu0 %v7752, 113
    %v7774 = vpop.permute.xlu0 %7773
    %7775 = vrot.lane.b32.xlu0 %v7754, 113
    %v7776 = vpop.permute.xlu0 %7775
    %v7777 = vsel %vm3538, %v7756, %v7758
    %v7778 = vsel %vm3538, %v7758, %v7760
    %v7779 = vsel %vm3538, %v7760, %v7762
    %v7780 = vsel %vm3538, %v7764, %v7766
    %v7781 = vsel %vm3538, %v7766, %v7768
    %v7782 = vsel %vm3538, %v7768, %v7770
    %v7783 = vsel %vm3538, %v7772, %v7774
    %v7784 = vsel %vm3538, %v7774, %v7776
    %v7793 = vadd.f32 %v7629, %v7777
    %v7794 = vadd.f32 %v7630, %v7778
    %v7795 = vadd.f32 %v7631, %v7779
    %v7796 = vadd.f32 %v7632, %v7780
    %v7797 = vadd.f32 %v7633, %v7781
    %v7798 = vadd.f32 %v7634, %v7782
    %v7799 = vadd.f32 %v7635, %v7783
    %v7800 = vadd.f32 %v7636, %v7784
    %s7801 = sld [smem:[#allocation4 + $0x59]]
    %v7802 = vstv %s7801
    %v7803 = vmul.f32 %v7802, %v5018
    %v7804 = vmul.f32 %v7802, %v5019
    %v7805 = vmul.f32 %v7802, %v5020
    %v7806 = vmul.f32 %v7802, %v5021
    %v7807 = vmul.f32 %v7802, %v5022
    %v7808 = vmul.f32 %v7802, %v5023
    %v7809 = vmul.f32 %v7802, %v5024
    %v7810 = vmul.f32 %v7802, %v5025
    %v7811 = vmul.f32 %v7802, %v5026
    %v7812 = vmul.f32 %v7802, %v5027
    %v7813 = vmul.f32 %v7802, %v5028
    %v7814 = vmul.f32 %v7802, %v5029
    %v7827 = vrot.slane %v7803, 4
    %v7828 = vrot.slane %v7807, 4
    %v7829 = vsel %vm934, %v7827, %v7828
    %v7830 = vrot.slane %v7804, 4
    %v7831 = vrot.slane %v7808, 4
    %v7832 = vsel %vm934, %v7830, %v7831
    %v7833 = vrot.slane %v7805, 4
    %v7834 = vrot.slane %v7809, 4
    %v7835 = vsel %vm934, %v7833, %v7834
    %v7836 = vrot.slane %v7806, 4
    %v7837 = vrot.slane %v7810, 4
    %v7838 = vsel %vm934, %v7836, %v7837
    %v7839 = vrot.slane %v7811, 4
    %v7840 = vsel %vm934, %v7828, %v7839
    %v7841 = vrot.slane %v7812, 4
    %v7842 = vsel %vm934, %v7831, %v7841
    %v7843 = vrot.slane %v7813, 4
    %v7844 = vsel %vm934, %v7834, %v7843
    %v7845 = vrot.slane %v7814, 4
    %v7846 = vsel %vm934, %v7837, %v7845
    %7847 = vrot.lane.b32.xlu0 %v7829, 113
    %v7848 = vpop.permute.xlu0 %7847
    %7849 = vrot.lane.b32.xlu0 %v7832, 113
    %v7850 = vpop.permute.xlu0 %7849
    %7851 = vrot.lane.b32.xlu0 %v7835, 113
    %v7852 = vpop.permute.xlu0 %7851
    %7853 = vrot.lane.b32.xlu0 %v7838, 113
    %v7854 = vpop.permute.xlu0 %7853
    %7855 = vrot.lane.b32.xlu0 %v7840, 113
    %v7856 = vpop.permute.xlu0 %7855
    %7857 = vrot.lane.b32.xlu0 %v7842, 113
    %v7858 = vpop.permute.xlu0 %7857
    %7859 = vrot.lane.b32.xlu0 %v7844, 113
    %v7860 = vpop.permute.xlu0 %7859
    %7861 = vrot.lane.b32.xlu0 %v7846, 113
    %v7862 = vpop.permute.xlu0 %7861
    %7863 = vrot.lane.b32.xlu0 %v7839, 113
    %v7864 = vpop.permute.xlu0 %7863
    %7865 = vrot.lane.b32.xlu0 %v7841, 113
    %v7866 = vpop.permute.xlu0 %7865
    %7867 = vrot.lane.b32.xlu0 %v7843, 113
    %v7868 = vpop.permute.xlu0 %7867
    %v7869 = vsel %vm3538, %v7848, %v7850
    %v7870 = vsel %vm3538, %v7850, %v7852
    %v7871 = vsel %vm3538, %v7852, %v7854
    %v7872 = vsel %vm3538, %v7856, %v7858
    %v7873 = vsel %vm3538, %v7858, %v7860
    %v7874 = vsel %vm3538, %v7860, %v7862
    %v7875 = vsel %vm3538, %v7864, %v7866
    %v7876 = vsel %vm3538, %v7866, %v7868
    %v7885 = vadd.f32 %v7705, %v7869
    %v7886 = vadd.f32 %v7706, %v7870
    %v7887 = vadd.f32 %v7707, %v7871
    %v7888 = vadd.f32 %v7708, %v7872
    %v7889 = vadd.f32 %v7709, %v7873
    %v7890 = vadd.f32 %v7710, %v7874
    %v7891 = vadd.f32 %v7711, %v7875
    %v7892 = vadd.f32 %v7712, %v7876
    %s7893 = sld [smem:[#allocation4 + $0x60]]
    %v7894 = vstv %s7893
    %v7895 = vmul.f32 %v7894, %v5022
    %v7896 = vmul.f32 %v7894, %v5023
    %v7897 = vmul.f32 %v7894, %v5024
    %v7898 = vmul.f32 %v7894, %v5025
    %v7899 = vmul.f32 %v7894, %v5026
    %v7900 = vmul.f32 %v7894, %v5027
    %v7901 = vmul.f32 %v7894, %v5028
    %v7902 = vmul.f32 %v7894, %v5029
    %v7903 = vmul.f32 %v7894, %v5030
    %v7904 = vmul.f32 %v7894, %v5031
    %v7905 = vmul.f32 %v7894, %v5032
    %v7917 = vrot.slane %v7895, 2
    %v7918 = vrot.slane %v7896, 2
    %v7919 = vrot.slane %v7897, 2
    %v7920 = vrot.slane %v7898, 2
    %v7921 = vrot.slane %v7899, 2
    %v7922 = vsel %vm1033, %v7917, %v7921
    %v7923 = vrot.slane %v7900, 2
    %v7924 = vsel %vm1033, %v7918, %v7923
    %v7925 = vrot.slane %v7901, 2
    %v7926 = vsel %vm1033, %v7919, %v7925
    %v7927 = vrot.slane %v7902, 2
    %v7928 = vsel %vm1033, %v7920, %v7927
    %v7929 = vrot.slane %v7903, 2
    %v7930 = vsel %vm1033, %v7921, %v7929
    %v7931 = vrot.slane %v7904, 2
    %v7932 = vsel %vm1033, %v7923, %v7931
    %v7933 = vrot.slane %v7905, 2
    %v7934 = vsel %vm1033, %v7925, %v7933
    %7935 = vrot.lane.b32.xlu0 %v7917, 113
    %v7936 = vpop.permute.xlu0 %7935
    %7937 = vrot.lane.b32.xlu0 %v7918, 113
    %v7938 = vpop.permute.xlu0 %7937
    %7939 = vrot.lane.b32.xlu0 %v7919, 113
    %v7940 = vpop.permute.xlu0 %7939
    %7941 = vrot.lane.b32.xlu0 %v7920, 113
    %v7942 = vpop.permute.xlu0 %7941
    %7943 = vrot.lane.b32.xlu0 %v7922, 113
    %v7944 = vpop.permute.xlu0 %7943
    %7945 = vrot.lane.b32.xlu0 %v7924, 113
    %v7946 = vpop.permute.xlu0 %7945
    %7947 = vrot.lane.b32.xlu0 %v7926, 113
    %v7948 = vpop.permute.xlu0 %7947
    %7949 = vrot.lane.b32.xlu0 %v7928, 113
    %v7950 = vpop.permute.xlu0 %7949
    %7951 = vrot.lane.b32.xlu0 %v7930, 113
    %v7952 = vpop.permute.xlu0 %7951
    %7953 = vrot.lane.b32.xlu0 %v7932, 113
    %v7954 = vpop.permute.xlu0 %7953
    %7955 = vrot.lane.b32.xlu0 %v7934, 113
    %v7956 = vpop.permute.xlu0 %7955
    %v7957 = vsel %vm3538, %v7936, %v7938
    %v7958 = vsel %vm3538, %v7938, %v7940
    %v7959 = vsel %vm3538, %v7940, %v7942
    %v7960 = vsel %vm3538, %v7944, %v7946
    %v7961 = vsel %vm3538, %v7946, %v7948
    %v7962 = vsel %vm3538, %v7948, %v7950
    %v7963 = vsel %vm3538, %v7952, %v7954
    %v7964 = vsel %vm3538, %v7954, %v7956
    %v7973 = vadd.f32 %v7793, %v7957
    %v7974 = vadd.f32 %v7794, %v7958
    %v7975 = vadd.f32 %v7795, %v7959
    %v7976 = vadd.f32 %v7796, %v7960
    %v7977 = vadd.f32 %v7797, %v7961
    %v7978 = vadd.f32 %v7798, %v7962
    %v7979 = vadd.f32 %v7799, %v7963
    %v7980 = vadd.f32 %v7800, %v7964
    %s7981 = sld [smem:[#allocation4 + $0x37]]
    %v7982 = vstv %s7981
    %v7983 = vmul.f32 %v7982, %v5010
    %v7984 = vmul.f32 %v7982, %v5011
    %v7985 = vmul.f32 %v7982, %v5012
    %v7986 = vmul.f32 %v7982, %v5013
    %v7987 = vmul.f32 %v7982, %v5014
    %v7988 = vmul.f32 %v7982, %v5015
    %v7989 = vmul.f32 %v7982, %v5016
    %v7990 = vmul.f32 %v7982, %v5017
    %v7991 = vmul.f32 %v7982, %v5018
    %v7992 = vmul.f32 %v7982, %v5019
    %v7993 = vmul.f32 %v7982, %v5020
    %v7994 = vmul.f32 %v7982, %v5021
    %v8007 = vrot.slane %v7983, 5
    %v8008 = vrot.slane %v7987, 5
    %v8009 = vsel %vm1112, %v8007, %v8008
    %v8010 = vrot.slane %v7984, 5
    %v8011 = vrot.slane %v7988, 5
    %v8012 = vsel %vm1112, %v8010, %v8011
    %v8013 = vrot.slane %v7985, 5
    %v8014 = vrot.slane %v7989, 5
    %v8015 = vsel %vm1112, %v8013, %v8014
    %v8016 = vrot.slane %v7986, 5
    %v8017 = vrot.slane %v7990, 5
    %v8018 = vsel %vm1112, %v8016, %v8017
    %v8019 = vrot.slane %v7991, 5
    %v8020 = vsel %vm1112, %v8008, %v8019
    %v8021 = vrot.slane %v7992, 5
    %v8022 = vsel %vm1112, %v8011, %v8021
    %v8023 = vrot.slane %v7993, 5
    %v8024 = vsel %vm1112, %v8014, %v8023
    %v8025 = vrot.slane %v7994, 5
    %v8026 = vsel %vm1112, %v8017, %v8025
    %8027 = vrot.lane.b32.xlu0 %v8009, 110
    %v8028 = vpop.permute.xlu0 %8027
    %8029 = vrot.lane.b32.xlu0 %v8012, 110
    %v8030 = vpop.permute.xlu0 %8029
    %8031 = vrot.lane.b32.xlu0 %v8015, 110
    %v8032 = vpop.permute.xlu0 %8031
    %8033 = vrot.lane.b32.xlu0 %v8018, 110
    %v8034 = vpop.permute.xlu0 %8033
    %8035 = vrot.lane.b32.xlu0 %v8020, 110
    %v8036 = vpop.permute.xlu0 %8035
    %8037 = vrot.lane.b32.xlu0 %v8022, 110
    %v8038 = vpop.permute.xlu0 %8037
    %8039 = vrot.lane.b32.xlu0 %v8024, 110
    %v8040 = vpop.permute.xlu0 %8039
    %8041 = vrot.lane.b32.xlu0 %v8026, 110
    %v8042 = vpop.permute.xlu0 %8041
    %8043 = vrot.lane.b32.xlu0 %v8019, 110
    %v8044 = vpop.permute.xlu0 %8043
    %8045 = vrot.lane.b32.xlu0 %v8021, 110
    %v8046 = vpop.permute.xlu0 %8045
    %8047 = vrot.lane.b32.xlu0 %v8023, 110
    %v8048 = vpop.permute.xlu0 %8047
    %v8049 = vsel %vm4133, %v8028, %v8030
    %v8050 = vsel %vm4133, %v8030, %v8032
    %v8051 = vsel %vm4133, %v8032, %v8034
    %v8052 = vsel %vm4133, %v8036, %v8038
    %v8053 = vsel %vm4133, %v8038, %v8040
    %v8054 = vsel %vm4133, %v8040, %v8042
    %v8055 = vsel %vm4133, %v8044, %v8046
    %v8056 = vsel %vm4133, %v8046, %v8048
    %v8065 = vadd.f32 %v7885, %v8049
    %v8066 = vadd.f32 %v7886, %v8050
    %v8067 = vadd.f32 %v7887, %v8051
    %v8068 = vadd.f32 %v7888, %v8052
    %v8069 = vadd.f32 %v7889, %v8053
    %v8070 = vadd.f32 %v7890, %v8054
    %v8071 = vadd.f32 %v7891, %v8055
    %v8072 = vadd.f32 %v7892, %v8056
    %s8073 = sld [smem:[#allocation4 + $0x3e]]
    %v8074 = vstv %s8073
    %v8075 = vmul.f32 %v8074, %v5014
    %v8076 = vmul.f32 %v8074, %v5015
    %v8077 = vmul.f32 %v8074, %v5016
    %v8078 = vmul.f32 %v8074, %v5017
    %v8079 = vmul.f32 %v8074, %v5018
    %v8080 = vmul.f32 %v8074, %v5019
    %v8081 = vmul.f32 %v8074, %v5020
    %v8082 = vmul.f32 %v8074, %v5021
    %v8083 = vmul.f32 %v8074, %v5022
    %v8084 = vmul.f32 %v8074, %v5023
    %v8085 = vmul.f32 %v8074, %v5024
    %v8097 = vrot.slane %v8075, 3
    %v8098 = vrot.slane %v8076, 3
    %v8099 = vrot.slane %v8077, 3
    %v8100 = vrot.slane %v8078, 3
    %v8101 = vrot.slane %v8079, 3
    %v8102 = vsel %vm1204, %v8097, %v8101
    %v8103 = vrot.slane %v8080, 3
    %v8104 = vsel %vm1204, %v8098, %v8103
    %v8105 = vrot.slane %v8081, 3
    %v8106 = vsel %vm1204, %v8099, %v8105
    %v8107 = vrot.slane %v8082, 3
    %v8108 = vsel %vm1204, %v8100, %v8107
    %v8109 = vrot.slane %v8083, 3
    %v8110 = vsel %vm1204, %v8101, %v8109
    %v8111 = vrot.slane %v8084, 3
    %v8112 = vsel %vm1204, %v8103, %v8111
    %v8113 = vrot.slane %v8085, 3
    %v8114 = vsel %vm1204, %v8105, %v8113
    %8115 = vrot.lane.b32.xlu0 %v8097, 110
    %v8116 = vpop.permute.xlu0 %8115
    %8117 = vrot.lane.b32.xlu0 %v8098, 110
    %v8118 = vpop.permute.xlu0 %8117
    %8119 = vrot.lane.b32.xlu0 %v8099, 110
    %v8120 = vpop.permute.xlu0 %8119
    %8121 = vrot.lane.b32.xlu0 %v8100, 110
    %v8122 = vpop.permute.xlu0 %8121
    %8123 = vrot.lane.b32.xlu0 %v8102, 110
    %v8124 = vpop.permute.xlu0 %8123
    %8125 = vrot.lane.b32.xlu0 %v8104, 110
    %v8126 = vpop.permute.xlu0 %8125
    %8127 = vrot.lane.b32.xlu0 %v8106, 110
    %v8128 = vpop.permute.xlu0 %8127
    %8129 = vrot.lane.b32.xlu0 %v8108, 110
    %v8130 = vpop.permute.xlu0 %8129
    %8131 = vrot.lane.b32.xlu0 %v8110, 110
    %v8132 = vpop.permute.xlu0 %8131
    %8133 = vrot.lane.b32.xlu0 %v8112, 110
    %v8134 = vpop.permute.xlu0 %8133
    %8135 = vrot.lane.b32.xlu0 %v8114, 110
    %v8136 = vpop.permute.xlu0 %8135
    %v8137 = vsel %vm4133, %v8116, %v8118
    %v8138 = vsel %vm4133, %v8118, %v8120
    %v8139 = vsel %vm4133, %v8120, %v8122
    %v8140 = vsel %vm4133, %v8124, %v8126
    %v8141 = vsel %vm4133, %v8126, %v8128
    %v8142 = vsel %vm4133, %v8128, %v8130
    %v8143 = vsel %vm4133, %v8132, %v8134
    %v8144 = vsel %vm4133, %v8134, %v8136
    %v8153 = vadd.f32 %v7973, %v8137
    %v8154 = vadd.f32 %v7974, %v8138
    %v8155 = vadd.f32 %v7975, %v8139
    %v8156 = vadd.f32 %v7976, %v8140
    %v8157 = vadd.f32 %v7977, %v8141
    %v8158 = vadd.f32 %v7978, %v8142
    %v8159 = vadd.f32 %v7979, %v8143
    %v8160 = vadd.f32 %v7980, %v8144
    %s8161 = sld [smem:[#allocation4 + $0x45]]
    %v8162 = vstv %s8161
    %v8163 = vmul.f32 %v8162, %v5014
    %v8164 = vmul.f32 %v8162, %v5015
    %v8165 = vmul.f32 %v8162, %v5016
    %v8166 = vmul.f32 %v8162, %v5017
    %v8167 = vmul.f32 %v8162, %v5018
    %v8168 = vmul.f32 %v8162, %v5019
    %v8169 = vmul.f32 %v8162, %v5020
    %v8170 = vmul.f32 %v8162, %v5021
    %v8171 = vmul.f32 %v8162, %v5022
    %v8172 = vmul.f32 %v8162, %v5023
    %v8173 = vmul.f32 %v8162, %v5024
    %v8174 = vmul.f32 %v8162, %v5025
    %v8187 = vrot.slane %v8163, 3
    %v8188 = vrot.slane %v8167, 3
    %v8189 = vsel %vm1204, %v8187, %v8188
    %v8190 = vrot.slane %v8164, 3
    %v8191 = vrot.slane %v8168, 3
    %v8192 = vsel %vm1204, %v8190, %v8191
    %v8193 = vrot.slane %v8165, 3
    %v8194 = vrot.slane %v8169, 3
    %v8195 = vsel %vm1204, %v8193, %v8194
    %v8196 = vrot.slane %v8166, 3
    %v8197 = vrot.slane %v8170, 3
    %v8198 = vsel %vm1204, %v8196, %v8197
    %v8199 = vrot.slane %v8171, 3
    %v8200 = vsel %vm1204, %v8188, %v8199
    %v8201 = vrot.slane %v8172, 3
    %v8202 = vsel %vm1204, %v8191, %v8201
    %v8203 = vrot.slane %v8173, 3
    %v8204 = vsel %vm1204, %v8194, %v8203
    %v8205 = vrot.slane %v8174, 3
    %v8206 = vsel %vm1204, %v8197, %v8205
    %8207 = vrot.lane.b32.xlu0 %v8189, 110
    %v8208 = vpop.permute.xlu0 %8207
    %8209 = vrot.lane.b32.xlu0 %v8192, 110
    %v8210 = vpop.permute.xlu0 %8209
    %8211 = vrot.lane.b32.xlu0 %v8195, 110
    %v8212 = vpop.permute.xlu0 %8211
    %8213 = vrot.lane.b32.xlu0 %v8198, 110
    %v8214 = vpop.permute.xlu0 %8213
    %8215 = vrot.lane.b32.xlu0 %v8200, 110
    %v8216 = vpop.permute.xlu0 %8215
    %8217 = vrot.lane.b32.xlu0 %v8202, 110
    %v8218 = vpop.permute.xlu0 %8217
    %8219 = vrot.lane.b32.xlu0 %v8204, 110
    %v8220 = vpop.permute.xlu0 %8219
    %8221 = vrot.lane.b32.xlu0 %v8206, 110
    %v8222 = vpop.permute.xlu0 %8221
    %8223 = vrot.lane.b32.xlu0 %v8199, 110
    %v8224 = vpop.permute.xlu0 %8223
    %8225 = vrot.lane.b32.xlu0 %v8201, 110
    %v8226 = vpop.permute.xlu0 %8225
    %8227 = vrot.lane.b32.xlu0 %v8203, 110
    %v8228 = vpop.permute.xlu0 %8227
    %v8229 = vsel %vm4133, %v8208, %v8210
    %v8230 = vsel %vm4133, %v8210, %v8212
    %v8231 = vsel %vm4133, %v8212, %v8214
    %v8232 = vsel %vm4133, %v8216, %v8218
    %v8233 = vsel %vm4133, %v8218, %v8220
    %v8234 = vsel %vm4133, %v8220, %v8222
    %v8235 = vsel %vm4133, %v8224, %v8226
    %v8236 = vsel %vm4133, %v8226, %v8228
    %v8245 = vadd.f32 %v8065, %v8229
    %v8246 = vadd.f32 %v8066, %v8230
    %v8247 = vadd.f32 %v8067, %v8231
    %v8248 = vadd.f32 %v8068, %v8232
    %v8249 = vadd.f32 %v8069, %v8233
    %v8250 = vadd.f32 %v8070, %v8234
    %v8251 = vadd.f32 %v8071, %v8235
    %v8252 = vadd.f32 %v8072, %v8236
    %s8253 = sld [smem:[#allocation4 + $0x4c]]
    %v8254 = vstv %s8253
    %v8255 = vmul.f32 %v8254, %v5018
    %v8256 = vmul.f32 %v8254, %v5019
    %v8257 = vmul.f32 %v8254, %v5020
    %v8258 = vmul.f32 %v8254, %v5021
    %v8259 = vmul.f32 %v8254, %v5022
    %v8260 = vmul.f32 %v8254, %v5023
    %v8261 = vmul.f32 %v8254, %v5024
    %v8262 = vmul.f32 %v8254, %v5025
    %v8271 = vrot.slane %v8255, 1
    %v8272 = vrot.slane %v8256, 1
    %v8273 = vrot.slane %v8257, 1
    %v8274 = vrot.slane %v8258, 1
    %v8275 = vrot.slane %v8259, 1
    %v8276 = vsel %vm1379, %v8271, %v8275
    %v8277 = vrot.slane %v8260, 1
    %v8278 = vsel %vm1379, %v8272, %v8277
    %v8279 = vrot.slane %v8261, 1
    %v8280 = vsel %vm1379, %v8273, %v8279
    %v8281 = vrot.slane %v8262, 1
    %v8282 = vsel %vm1379, %v8274, %v8281
    %8283 = vrot.lane.b32.xlu0 %v8271, 110
    %v8284 = vpop.permute.xlu0 %8283
    %8285 = vrot.lane.b32.xlu0 %v8272, 110
    %v8286 = vpop.permute.xlu0 %8285
    %8287 = vrot.lane.b32.xlu0 %v8273, 110
    %v8288 = vpop.permute.xlu0 %8287
    %8289 = vrot.lane.b32.xlu0 %v8274, 110
    %v8290 = vpop.permute.xlu0 %8289
    %8291 = vrot.lane.b32.xlu0 %v8276, 110
    %v8292 = vpop.permute.xlu0 %8291
    %8293 = vrot.lane.b32.xlu0 %v8278, 110
    %v8294 = vpop.permute.xlu0 %8293
    %8295 = vrot.lane.b32.xlu0 %v8280, 110
    %v8296 = vpop.permute.xlu0 %8295
    %8297 = vrot.lane.b32.xlu0 %v8282, 110
    %v8298 = vpop.permute.xlu0 %8297
    %8299 = vrot.lane.b32.xlu0 %v8275, 110
    %v8300 = vpop.permute.xlu0 %8299
    %8301 = vrot.lane.b32.xlu0 %v8277, 110
    %v8302 = vpop.permute.xlu0 %8301
    %8303 = vrot.lane.b32.xlu0 %v8279, 110
    %v8304 = vpop.permute.xlu0 %8303
    %v8305 = vsel %vm4133, %v8284, %v8286
    %v8306 = vsel %vm4133, %v8286, %v8288
    %v8307 = vsel %vm4133, %v8288, %v8290
    %v8308 = vsel %vm4133, %v8292, %v8294
    %v8309 = vsel %vm4133, %v8294, %v8296
    %v8310 = vsel %vm4133, %v8296, %v8298
    %v8311 = vsel %vm4133, %v8300, %v8302
    %v8312 = vsel %vm4133, %v8302, %v8304
    %v8321 = vadd.f32 %v8153, %v8305
    %v8322 = vadd.f32 %v8154, %v8306
    %v8323 = vadd.f32 %v8155, %v8307
    %v8324 = vadd.f32 %v8156, %v8308
    %v8325 = vadd.f32 %v8157, %v8309
    %v8326 = vadd.f32 %v8158, %v8310
    %v8327 = vadd.f32 %v8159, %v8311
    %v8328 = vadd.f32 %v8160, %v8312
    %s8329 = sld [smem:[#allocation4 + $0x53]]
    %v8330 = vstv %s8329
    %v8331 = vmul.f32 %v8330, %v5018
    %v8332 = vmul.f32 %v8330, %v5019
    %v8333 = vmul.f32 %v8330, %v5020
    %v8334 = vmul.f32 %v8330, %v5021
    %v8335 = vmul.f32 %v8330, %v5022
    %v8336 = vmul.f32 %v8330, %v5023
    %v8337 = vmul.f32 %v8330, %v5024
    %v8338 = vmul.f32 %v8330, %v5025
    %v8339 = vmul.f32 %v8330, %v5026
    %v8340 = vmul.f32 %v8330, %v5027
    %v8341 = vmul.f32 %v8330, %v5028
    %v8342 = vmul.f32 %v8330, %v5029
    %v8355 = vrot.slane %v8331, 1
    %v8356 = vrot.slane %v8335, 1
    %v8357 = vsel %vm1379, %v8355, %v8356
    %v8358 = vrot.slane %v8332, 1
    %v8359 = vrot.slane %v8336, 1
    %v8360 = vsel %vm1379, %v8358, %v8359
    %v8361 = vrot.slane %v8333, 1
    %v8362 = vrot.slane %v8337, 1
    %v8363 = vsel %vm1379, %v8361, %v8362
    %v8364 = vrot.slane %v8334, 1
    %v8365 = vrot.slane %v8338, 1
    %v8366 = vsel %vm1379, %v8364, %v8365
    %v8367 = vrot.slane %v8339, 1
    %v8368 = vsel %vm1379, %v8356, %v8367
    %v8369 = vrot.slane %v8340, 1
    %v8370 = vsel %vm1379, %v8359, %v8369
    %v8371 = vrot.slane %v8341, 1
    %v8372 = vsel %vm1379, %v8362, %v8371
    %v8373 = vrot.slane %v8342, 1
    %v8374 = vsel %vm1379, %v8365, %v8373
    %8375 = vrot.lane.b32.xlu0 %v8357, 110
    %v8376 = vpop.permute.xlu0 %8375
    %8377 = vrot.lane.b32.xlu0 %v8360, 110
    %v8378 = vpop.permute.xlu0 %8377
    %8379 = vrot.lane.b32.xlu0 %v8363, 110
    %v8380 = vpop.permute.xlu0 %8379
    %8381 = vrot.lane.b32.xlu0 %v8366, 110
    %v8382 = vpop.permute.xlu0 %8381
    %8383 = vrot.lane.b32.xlu0 %v8368, 110
    %v8384 = vpop.permute.xlu0 %8383
    %8385 = vrot.lane.b32.xlu0 %v8370, 110
    %v8386 = vpop.permute.xlu0 %8385
    %8387 = vrot.lane.b32.xlu0 %v8372, 110
    %v8388 = vpop.permute.xlu0 %8387
    %8389 = vrot.lane.b32.xlu0 %v8374, 110
    %v8390 = vpop.permute.xlu0 %8389
    %8391 = vrot.lane.b32.xlu0 %v8367, 110
    %v8392 = vpop.permute.xlu0 %8391
    %8393 = vrot.lane.b32.xlu0 %v8369, 110
    %v8394 = vpop.permute.xlu0 %8393
    %8395 = vrot.lane.b32.xlu0 %v8371, 110
    %v8396 = vpop.permute.xlu0 %8395
    %v8397 = vsel %vm4133, %v8376, %v8378
    %v8398 = vsel %vm4133, %v8378, %v8380
    %v8399 = vsel %vm4133, %v8380, %v8382
    %v8400 = vsel %vm4133, %v8384, %v8386
    %v8401 = vsel %vm4133, %v8386, %v8388
    %v8402 = vsel %vm4133, %v8388, %v8390
    %v8403 = vsel %vm4133, %v8392, %v8394
    %v8404 = vsel %vm4133, %v8394, %v8396
    %v8413 = vadd.f32 %v8245, %v8397
    %v8414 = vadd.f32 %v8246, %v8398
    %v8415 = vadd.f32 %v8247, %v8399
    %v8416 = vadd.f32 %v8248, %v8400
    %v8417 = vadd.f32 %v8249, %v8401
    %v8418 = vadd.f32 %v8250, %v8402
    %v8419 = vadd.f32 %v8251, %v8403
    %v8420 = vadd.f32 %v8252, %v8404
    %s8421 = sld [smem:[#allocation4 + $0x5a]]
    %v8422 = vstv %s8421
    %v8423 = vmul.f32 %v8422, %v5018
    %v8424 = vmul.f32 %v8422, %v5019
    %v8425 = vmul.f32 %v8422, %v5020
    %v8426 = vmul.f32 %v8422, %v5021
    %v8427 = vmul.f32 %v8422, %v5022
    %v8428 = vmul.f32 %v8422, %v5023
    %v8429 = vmul.f32 %v8422, %v5024
    %v8430 = vmul.f32 %v8422, %v5025
    %v8431 = vmul.f32 %v8422, %v5026
    %v8432 = vmul.f32 %v8422, %v5027
    %v8433 = vmul.f32 %v8422, %v5028
    %v8445 = vrot.slane %v8423, 7
    %v8446 = vrot.slane %v8424, 7
    %v8447 = vrot.slane %v8425, 7
    %v8448 = vrot.slane %v8426, 7
    %v8449 = vrot.slane %v8427, 7
    %v8450 = vsel %vm1554, %v8445, %v8449
    %v8451 = vrot.slane %v8428, 7
    %v8452 = vsel %vm1554, %v8446, %v8451
    %v8453 = vrot.slane %v8429, 7
    %v8454 = vsel %vm1554, %v8447, %v8453
    %v8455 = vrot.slane %v8430, 7
    %v8456 = vsel %vm1554, %v8448, %v8455
    %v8457 = vrot.slane %v8431, 7
    %v8458 = vsel %vm1554, %v8449, %v8457
    %v8459 = vrot.slane %v8432, 7
    %v8460 = vsel %vm1554, %v8451, %v8459
    %v8461 = vrot.slane %v8433, 7
    %v8462 = vsel %vm1554, %v8453, %v8461
    %8463 = vrot.lane.b32.xlu0 %v8445, 110
    %v8464 = vpop.permute.xlu0 %8463
    %8465 = vrot.lane.b32.xlu0 %v8446, 110
    %v8466 = vpop.permute.xlu0 %8465
    %8467 = vrot.lane.b32.xlu0 %v8447, 110
    %v8468 = vpop.permute.xlu0 %8467
    %8469 = vrot.lane.b32.xlu0 %v8448, 110
    %v8470 = vpop.permute.xlu0 %8469
    %8471 = vrot.lane.b32.xlu0 %v8450, 110
    %v8472 = vpop.permute.xlu0 %8471
    %8473 = vrot.lane.b32.xlu0 %v8452, 110
    %v8474 = vpop.permute.xlu0 %8473
    %8475 = vrot.lane.b32.xlu0 %v8454, 110
    %v8476 = vpop.permute.xlu0 %8475
    %8477 = vrot.lane.b32.xlu0 %v8456, 110
    %v8478 = vpop.permute.xlu0 %8477
    %8479 = vrot.lane.b32.xlu0 %v8458, 110
    %v8480 = vpop.permute.xlu0 %8479
    %8481 = vrot.lane.b32.xlu0 %v8460, 110
    %v8482 = vpop.permute.xlu0 %8481
    %8483 = vrot.lane.b32.xlu0 %v8462, 110
    %v8484 = vpop.permute.xlu0 %8483
    %v8485 = vsel %vm4133, %v8464, %v8466
    %v8486 = vsel %vm4133, %v8466, %v8468
    %v8487 = vsel %vm4133, %v8468, %v8470
    %v8488 = vsel %vm4133, %v8472, %v8474
    %v8489 = vsel %vm4133, %v8474, %v8476
    %v8490 = vsel %vm4133, %v8476, %v8478
    %v8491 = vsel %vm4133, %v8480, %v8482
    %v8492 = vsel %vm4133, %v8482, %v8484
    %v8501 = vadd.f32 %v8321, %v8485
    %v8502 = vadd.f32 %v8322, %v8486
    %v8503 = vadd.f32 %v8323, %v8487
    %v8504 = vadd.f32 %v8324, %v8488
    %v8505 = vadd.f32 %v8325, %v8489
    %v8506 = vadd.f32 %v8326, %v8490
    %v8507 = vadd.f32 %v8327, %v8491
    %v8508 = vadd.f32 %v8328, %v8492
    %s8509 = sld [smem:[#allocation4 + $0x61]]
    %v8510 = vstv %s8509
    %v8511 = vmul.f32 %v8510, %v5022
    %v8512 = vmul.f32 %v8510, %v5023
    %v8513 = vmul.f32 %v8510, %v5024
    %v8514 = vmul.f32 %v8510, %v5025
    %v8515 = vmul.f32 %v8510, %v5026
    %v8516 = vmul.f32 %v8510, %v5027
    %v8517 = vmul.f32 %v8510, %v5028
    %v8518 = vmul.f32 %v8510, %v5029
    %v8519 = vmul.f32 %v8510, %v5030
    %v8520 = vmul.f32 %v8510, %v5031
    %v8521 = vmul.f32 %v8510, %v5032
    %v8533 = vrot.slane %v8511, 7
    %v8534 = vrot.slane %v8512, 7
    %v8535 = vrot.slane %v8513, 7
    %v8536 = vrot.slane %v8514, 7
    %v8537 = vrot.slane %v8515, 7
    %v8538 = vsel %vm1554, %v8533, %v8537
    %v8539 = vrot.slane %v8516, 7
    %v8540 = vsel %vm1554, %v8534, %v8539
    %v8541 = vrot.slane %v8517, 7
    %v8542 = vsel %vm1554, %v8535, %v8541
    %v8543 = vrot.slane %v8518, 7
    %v8544 = vsel %vm1554, %v8536, %v8543
    %v8545 = vrot.slane %v8519, 7
    %v8546 = vsel %vm1554, %v8537, %v8545
    %v8547 = vrot.slane %v8520, 7
    %v8548 = vsel %vm1554, %v8539, %v8547
    %v8549 = vrot.slane %v8521, 7
    %v8550 = vsel %vm1554, %v8541, %v8549
    %8551 = vrot.lane.b32.xlu0 %v8533, 110
    %v8552 = vpop.permute.xlu0 %8551
    %8553 = vrot.lane.b32.xlu0 %v8534, 110
    %v8554 = vpop.permute.xlu0 %8553
    %8555 = vrot.lane.b32.xlu0 %v8535, 110
    %v8556 = vpop.permute.xlu0 %8555
    %8557 = vrot.lane.b32.xlu0 %v8536, 110
    %v8558 = vpop.permute.xlu0 %8557
    %8559 = vrot.lane.b32.xlu0 %v8538, 110
    %v8560 = vpop.permute.xlu0 %8559
    %8561 = vrot.lane.b32.xlu0 %v8540, 110
    %v8562 = vpop.permute.xlu0 %8561
    %8563 = vrot.lane.b32.xlu0 %v8542, 110
    %v8564 = vpop.permute.xlu0 %8563
    %8565 = vrot.lane.b32.xlu0 %v8544, 110
    %v8566 = vpop.permute.xlu0 %8565
    %8567 = vrot.lane.b32.xlu0 %v8546, 110
    %v8568 = vpop.permute.xlu0 %8567
    %8569 = vrot.lane.b32.xlu0 %v8548, 110
    %v8570 = vpop.permute.xlu0 %8569
    %8571 = vrot.lane.b32.xlu0 %v8550, 110
    %v8572 = vpop.permute.xlu0 %8571
    %v8573 = vsel %vm4133, %v8552, %v8554
    %v8574 = vsel %vm4133, %v8554, %v8556
    %v8575 = vsel %vm4133, %v8556, %v8558
    %v8576 = vsel %vm4133, %v8560, %v8562
    %v8577 = vsel %vm4133, %v8562, %v8564
    %v8578 = vsel %vm4133, %v8564, %v8566
    %v8579 = vsel %vm4133, %v8568, %v8570
    %v8580 = vsel %vm4133, %v8570, %v8572
    %v8589 = vadd.f32 %v8413, %v8573
    %v8590 = vadd.f32 %v8414, %v8574
    %v8591 = vadd.f32 %v8415, %v8575
    %v8592 = vadd.f32 %v8416, %v8576
    %v8593 = vadd.f32 %v8417, %v8577
    %v8594 = vadd.f32 %v8418, %v8578
    %v8595 = vadd.f32 %v8419, %v8579
    %v8596 = vadd.f32 %v8420, %v8580
    %v8605 = vrot.slane %v8589, 3
    %v8606 = vrot.slane %v8590, 3
    %v8607 = vrot.slane %v8591, 3
    %v8608 = vrot.slane %v8592, 3
    %v8609 = vsel %vm1204, %v8605, %v8608
    %v8610 = vrot.slane %v8593, 3
    %v8611 = vsel %vm1204, %v8606, %v8610
    %v8612 = vrot.slane %v8594, 3
    %v8613 = vsel %vm1204, %v8607, %v8612
    %v8614 = vrot.slane %v8595, 3
    %v8615 = vsel %vm1204, %v8608, %v8614
    %v8616 = vrot.slane %v8596, 3
    %v8617 = vsel %vm1204, %v8610, %v8616
    %v8626 = vadd.f32 %v8501, %v8605
    %v8627 = vadd.f32 %v8502, %v8606
    %v8628 = vadd.f32 %v8503, %v8607
    %v8629 = vadd.f32 %v8504, %v8609
    %v8630 = vadd.f32 %v8505, %v8611
    %v8631 = vadd.f32 %v8506, %v8613
    %v8632 = vadd.f32 %v8507, %v8615
    %v8633 = vadd.f32 %v8508, %v8617
    %s8634 = sld [smem:[#allocation3]]
    %v8635 = vstv %s8634
    %v8636 = vadd.f32 %v8626, %v8635
    %v8637 = vadd.f32 %v8627, %v8635
    %v8638 = vadd.f32 %v8628, %v8635
    %v8639 = vadd.f32 %v8629, %v8635
    %v8640 = vadd.f32 %v8630, %v8635
    %v8641 = vadd.f32 %v8631, %v8635
    %v8642 = vadd.f32 %v8632, %v8635
    %v8643 = vadd.f32 %v8633, %v8635
    %v8644 = vxor.u32 %v8636, 2147483648
    %v8645 = vxor.u32 %v8637, 2147483648
    %v8646 = vxor.u32 %v8638, 2147483648
    %v8647 = vxor.u32 %v8639, 2147483648
    %v8648 = vxor.u32 %v8640, 2147483648
    %v8649 = vxor.u32 %v8641, 2147483648
    %v8650 = vxor.u32 %v8642, 2147483648
    %v8651 = vxor.u32 %v8643, 2147483648
    %v8652 = vmul.f32 %v8644, 1.442695
    %v8653 = vpow.pop %v8652
    %v8654 = vmul.f32 %v8645, 1.442695
    %v8655 = vpow.pop %v8654
    %v8656 = vmul.f32 %v8646, 1.442695
    %v8657 = vpow.pop %v8656
    %v8658 = vmul.f32 %v8647, 1.442695
    %v8659 = vpow.pop %v8658
    %v8660 = vmul.f32 %v8648, 1.442695
    %v8661 = vpow.pop %v8660
    %v8662 = vmul.f32 %v8649, 1.442695
    %v8663 = vpow.pop %v8662
    %v8664 = vmul.f32 %v8650, 1.442695
    %v8665 = vpow.pop %v8664
    %v8666 = vmul.f32 %v8651, 1.442695
    %v8667 = vpow.pop %v8666
    %v8668 = vadd.f32 %v8653, 1.0
    %v8669 = vadd.f32 %v8655, 1.0
    %v8670 = vadd.f32 %v8657, 1.0
    %v8671 = vadd.f32 %v8659, 1.0
    %v8672 = vadd.f32 %v8661, 1.0
    %v8673 = vadd.f32 %v8663, 1.0
    %v8674 = vadd.f32 %v8665, 1.0
    %v8675 = vadd.f32 %v8667, 1.0
    %v8676 = vrcp.pop %v8668
    %v8677 = vmul.f32 1.0, %v8676
    %v8678 = vrcp.pop %v8669
    %v8679 = vmul.f32 1.0, %v8678
    %v8680 = vrcp.pop %v8670
    %v8681 = vmul.f32 1.0, %v8680
    %v8682 = vrcp.pop %v8671
    %v8683 = vmul.f32 1.0, %v8682
    %v8684 = vrcp.pop %v8672
    %v8685 = vmul.f32 1.0, %v8684
    %v8686 = vrcp.pop %v8673
    %v8687 = vmul.f32 1.0, %v8686
    %v8688 = vrcp.pop %v8674
    %v8689 = vmul.f32 1.0, %v8688
    %v8690 = vrcp.pop %v8675
    %v8691 = vmul.f32 1.0, %v8690
    %vm8692 = vcmask 130055
    %8693 = vst.msk [vmem:[#allocation15 - $0x7] sm:$0x80] %vm8692, %v8677
    %8694 = vst.msk [vmem:[#allocation15 + $0x1] sm:$0xff] %vm168, %v8683
    %vm8695 = vcmask 129024
    %8696 = vst.msk [vmem:[#allocation15 + $0x9] sm:$0x7f] %vm8695, %v8689
    %8700 = vrot.lane.b32.xlu0 %v8677, 94
    %v8701 = vpop.permute.xlu0 %8700
    %8702 = vrot.lane.b32.xlu0 %v8683, 94
    %v8703 = vpop.permute.xlu0 %8702
    %8704 = vrot.lane.b32.xlu0 %v8689, 94
    %v8705 = vpop.permute.xlu0 %8704
    %s8709 = scalar_lea.vmem [#allocation15], 16
    %8710 = vst.msk [vmem:[%s8709 - $0x7] sm:$0x80] %vm8692, %v8701
    %8711 = vst.msk [vmem:[%s8709 + $0x1] sm:$0xff] %vm168, %v8703
    %8712 = vst.msk [vmem:[%s8709 + $0x9] sm:$0x7f] %vm8695, %v8705
    %8713 = vrot.lane.b32.xlu0 %v8677, 60
    %v8714 = vpop.permute.xlu0 %8713
    %8715 = vrot.lane.b32.xlu0 %v8683, 60
    %v8716 = vpop.permute.xlu0 %8715
    %8717 = vrot.lane.b32.xlu0 %v8689, 60
    %v8718 = vpop.permute.xlu0 %8717
    %8722 = vst.msk [vmem:[#allocation16 - $0x7] sm:$0x80] %vm8692, %v8714
    %8723 = vst.msk [vmem:[#allocation16 + $0x1] sm:$0xff] %vm168, %v8716
    %8724 = vst.msk [vmem:[#allocation16 + $0x9] sm:$0x7f] %vm8695, %v8718
    %8725 = vrot.lane.b32.xlu0 %v8677, 26
    %v8726 = vpop.permute.xlu0 %8725
    %8727 = vrot.lane.b32.xlu0 %v8683, 26
    %v8728 = vpop.permute.xlu0 %8727
    %8729 = vrot.lane.b32.xlu0 %v8689, 26
    %v8730 = vpop.permute.xlu0 %8729
    %s8734 = scalar_lea.vmem [#allocation16], 16
    %8735 = vst.msk [vmem:[%s8734 - $0x7] sm:$0x80] %vm8692, %v8726
    %8736 = vst.msk [vmem:[%s8734 + $0x1] sm:$0xff] %vm168, %v8728
    %8737 = vst.msk [vmem:[%s8734 + $0x9] sm:$0x7f] %vm8695, %v8730
    %8741 = vrot.lane.b32.xlu0 %v8679, 120
    %v8742 = vpop.permute.xlu0 %8741
    %8743 = vrot.lane.b32.xlu0 %v8685, 120
    %v8744 = vpop.permute.xlu0 %8743
    %8745 = vrot.lane.b32.xlu0 %v8691, 120
    %v8746 = vpop.permute.xlu0 %8745
    %8750 = vst.msk [vmem:[#allocation18 - $0x7] sm:$0x80] %vm8692, %v8742
    %8751 = vst.msk [vmem:[#allocation18 + $0x1] sm:$0xff] %vm168, %v8744
    %8752 = vst.msk [vmem:[#allocation18 + $0x9] sm:$0x7f] %vm8695, %v8746
    %8753 = vrot.lane.b32.xlu0 %v8679, 86
    %v8754 = vpop.permute.xlu0 %8753
    %8755 = vrot.lane.b32.xlu0 %v8685, 86
    %v8756 = vpop.permute.xlu0 %8755
    %8757 = vrot.lane.b32.xlu0 %v8691, 86
    %v8758 = vpop.permute.xlu0 %8757
    %s8762 = scalar_lea.vmem [#allocation18], 16
    %8763 = vst.msk [vmem:[%s8762 - $0x7] sm:$0x80] %vm8692, %v8754
    %8764 = vst.msk [vmem:[%s8762 + $0x1] sm:$0xff] %vm168, %v8756
    %8765 = vst.msk [vmem:[%s8762 + $0x9] sm:$0x7f] %vm8695, %v8758
    %8766 = vrot.lane.b32.xlu0 %v8679, 52
    %v8767 = vpop.permute.xlu0 %8766
    %8768 = vrot.lane.b32.xlu0 %v8685, 52
    %v8769 = vpop.permute.xlu0 %8768
    %vm8772 = vcmask 64519
    %8773 = vst.msk [vmem:[#allocation19 - $0x7] sm:$0x80] %vm8772, %v8767
    %vm8774 = vcmask 63488
    %8775 = vst.msk [vmem:[#allocation19 + $0x1] sm:$0x7f] %vm8774, %v8769
    %8776 = vrot.lane.b32.xlu0 %v8679, 26
    %v8777 = vpop.permute.xlu0 %8776
    %8778 = vrot.lane.b32.xlu0 %v8685, 26
    %v8779 = vpop.permute.xlu0 %8778
    %s8782 = scalar_lea.vmem [#allocation19], 8
    %8783 = vst.msk [vmem:[%s8782 - $0x7] sm:$0x80] %vm8772, %v8777
    %8784 = vst.msk [vmem:[%s8782 + $0x1] sm:$0x7f] %vm8774, %v8779
    %8785 = vst.msk [vmem:[#allocation21 - $0x7] sm:$0x80] %vm8772, %v8681
    %8786 = vst.msk [vmem:[#allocation21 + $0x1] sm:$0x7f] %vm8774, %v8687
    %8789 = vrot.lane.b32.xlu0 %v8681, 102
    %v8790 = vpop.permute.xlu0 %8789
    %8791 = vrot.lane.b32.xlu0 %v8687, 102
    %v8792 = vpop.permute.xlu0 %8791
    %s8795 = scalar_lea.vmem [#allocation21], 8
    %8796 = vst.msk [vmem:[%s8795 - $0x7] sm:$0x80] %vm8772, %v8790
    %8797 = vst.msk [vmem:[%s8795 + $0x1] sm:$0x7f] %vm8774, %v8792
    // Predicated region
    $region54: #{tpu_custom_call.1} parent=1 // pred_check
      _
    $region55: #{tpu_custom_call.1} parent=1 // pred_check_branch
      %8799 = sbr.rel (0) target = $region57
    $region56: #{tpu_custom_call.1} parent=1 // pred_region
      %s8801 = ssub.s32 512, 512
      %8802 = vsyncadd [#allocation6], %s8801
      %s8803 = sshll.u32 [#allocation15], 4
      %s8804 = int_to_ptr.vmem [resolvable:$true] %s8803
      %8809 = dma.vmem_to_hbm [thread:$0]  %s8804, 512, %s7, [#allocation6], 128, 128, 8
    $region57: #{tpu_custom_call.1} parent=1 // pred_fallthru
      _
    // Predicated region
    $region58: #{tpu_custom_call.1} parent=1 // pred_check
      _
    $region59: #{tpu_custom_call.1} parent=1 // pred_check_branch
      %8811 = sbr.rel (0) target = $region61
    $region60: #{tpu_custom_call.1} parent=1 // pred_region
      %s8813 = ssub.s32 512, 512
      %8814 = vsyncadd [#allocation17], %s8813
      %s8815 = sshll.u32 [#allocation16], 4
      %s8816 = int_to_ptr.vmem [resolvable:$true] %s8815
      %8821 = dma.vmem_to_hbm [thread:$0]  %s8816, 512, %s8, [#allocation17], 128, 128, 8
    $region61: #{tpu_custom_call.1} parent=1 // pred_fallthru
      _
    // Predicated region
    $region62: #{tpu_custom_call.1} parent=1 // pred_check
      _
    $region63: #{tpu_custom_call.1} parent=1 // pred_check_branch
      %8823 = sbr.rel (0) target = $region65
    $region64: #{tpu_custom_call.1} parent=1 // pred_region
      %s8825 = ssub.s32 512, 512
      %8826 = vsyncadd [#allocation17], %s8825
      %s8827 = sshll.u32 [#allocation18], 4
      %s8828 = int_to_ptr.vmem [resolvable:$true] %s8827
      %8833 = dma.vmem_to_hbm [thread:$0]  %s8828, 512, %s9, [#allocation17], 128, 128, 8
    $region65: #{tpu_custom_call.1} parent=1 // pred_fallthru
      _
    // Predicated region
    $region66: #{tpu_custom_call.1} parent=1 // pred_check
      _
    $region67: #{tpu_custom_call.1} parent=1 // pred_check_branch
      %8835 = sbr.rel (0) target = $region69
    $region68: #{tpu_custom_call.1} parent=1 // pred_region
      %s8837 = ssub.s32 256, 256
      %8838 = vsyncadd [#allocation20], %s8837
      %s8839 = sshll.u32 [#allocation19], 4
      %s8840 = int_to_ptr.vmem [resolvable:$true] %s8839
      %8845 = dma.vmem_to_hbm [thread:$0]  %s8840, 256, %s10, [#allocation20], 128, 128, 8
    $region69: #{tpu_custom_call.1} parent=1 // pred_fallthru
      _
    // Predicated region
    $region70: #{tpu_custom_call.1} parent=1 // pred_check
      _
    $region71: #{tpu_custom_call.1} parent=1 // pred_check_branch
      %8847 = sbr.rel (0) target = $region73
    $region72: #{tpu_custom_call.1} parent=1 // pred_region
      %s8849 = ssub.s32 256, 256
      %8850 = vsyncadd [#allocation20], %s8849
      %s8851 = sshll.u32 [#allocation21], 4
      %s8852 = int_to_ptr.vmem [resolvable:$true] %s8851
      %8857 = dma.vmem_to_hbm [thread:$0]  %s8852, 256, %s11, [#allocation20], 128, 128, 8
    $region73: #{tpu_custom_call.1} parent=1 // pred_fallthru
      _
    // Predicated region
    $region74: #{tpu_custom_call.1} parent=1 // pred_check
      _
    $region75: #{tpu_custom_call.1} parent=1 // pred_check_branch
      %8859 = sbr.rel (0) target = $region77
    $region76: #{tpu_custom_call.1} parent=1 // pred_region
      %8860 = dma.done [#allocation6], 512
    $region77: #{tpu_custom_call.1} parent=1 // pred_fallthru
      _
    // Predicated region
    $region78: #{tpu_custom_call.1} parent=1 // pred_check
      _
    $region79: #{tpu_custom_call.1} parent=1 // pred_check_branch
      %8862 = sbr.rel (0) target = $region81
    $region80: #{tpu_custom_call.1} parent=1 // pred_region
      %8863 = dma.done [#allocation17], 512
    $region81: #{tpu_custom_call.1} parent=1 // pred_fallthru
      _
    // Predicated region
    $region82: #{tpu_custom_call.1} parent=1 // pred_check
      _
    $region83: #{tpu_custom_call.1} parent=1 // pred_check_branch
      %8865 = sbr.rel (0) target = $region85
    $region84: #{tpu_custom_call.1} parent=1 // pred_region
      %8866 = dma.done [#allocation17], 512
    $region85: #{tpu_custom_call.1} parent=1 // pred_fallthru
      _
    // Predicated region
    $region86: #{tpu_custom_call.1} parent=1 // pred_check
      _
    $region87: #{tpu_custom_call.1} parent=1 // pred_check_branch
      %8868 = sbr.rel (0) target = $region89
    $region88: #{tpu_custom_call.1} parent=1 // pred_region
      %8869 = dma.done [#allocation20], 256
    $region89: #{tpu_custom_call.1} parent=1 // pred_fallthru
      _
    // Predicated region
    $region90: #{tpu_custom_call.1} parent=1 // pred_check
      _
    $region91: #{tpu_custom_call.1} parent=1 // pred_check_branch
      %8871 = sbr.rel (0) target = $region93
    $region92: #{tpu_custom_call.1} parent=1 // pred_region
      %8872 = dma.done [#allocation20], 256
    $region93: #{tpu_custom_call.1} parent=1 // pred_fallthru
      _
    %8873 = vsyncpa [#allocation5], 1
    %8874 = vsyncpa [#allocation10], 1
    %8875 = vsyncpa [#allocation13], 1
    %8876 = vsyncpa [#allocation6], 1
    %8877 = vsyncpa [#allocation17], 1
    %8878 = vsyncpa [#allocation20], 1
    %8879 = vsyncpa [#allocation7], 1

</llo_original>
